<compile_context>
chip_gen: v7x
topology: tpu7x:2x2x1
jax: 0.10.0
libtpu: 0.0.40
codegen_flags: <defaults>
</compile_context>

<pallas_src>
import jax
import jax.numpy as jnp
from jax.experimental import pallas as pl
from jax.experimental.pallas import tpu as pltpu

EPS = 1e-5  # nn.InstanceNorm2d default eps


# ---------------------------------------------------------------- kernel ----
def _fill_halo(xp_ref, img, H, W):
    """Write img (H, W, C) and its pad=1 reflect halo into xp_ref (H+2, W+2, C).

    Only the interior plus 2 border rows, 2 border cols and 4 corners are
    stored — no full-image concatenate/relayout copies.
    """
    xp_ref[1:H + 1, 1:W + 1, :] = img                                   # interior
    xp_ref[1:H + 1, 0:1, :] = img[:, 1:2, :]                            # left col
    xp_ref[1:H + 1, W + 1:W + 2, :] = img[:, W - 2:W - 1, :]            # right col
    xp_ref[0:1, 1:W + 1, :] = img[1:2, :, :]                            # top row
    xp_ref[H + 1:H + 2, 1:W + 1, :] = img[H - 2:H - 1, :, :]            # bottom row
    xp_ref[0:1, 0:1, :] = img[1:2, 1:2, :]                              # corners
    xp_ref[0:1, W + 1:W + 2, :] = img[1:2, W - 2:W - 1, :]
    xp_ref[H + 1:H + 2, 0:1, :] = img[H - 2:H - 1, 1:2, :]
    xp_ref[H + 1:H + 2, W + 1:W + 2, :] = img[H - 2:H - 1, W - 2:W - 1, :]


def _conv3x3_from_halo(xp_ref, w_ref, b_ref, H, W, C):
    """3x3 conv of the halo scratch: 9 bf16 MXU dots with f32 accumulation.

    xp_ref: (H+2, W+2, C) bf16 padded image; w_ref: (9, Cin, Cout) bf16;
    b_ref: (1, Cout) f32.  Returns (H*W, Cout) f32.
    """
    # Tap 0 initializes the accumulator together with the bias
    # (no zeros init, no trailing "+ bias" pass).
    acc = jnp.dot(xp_ref[0:H, 0:W, :].reshape(H * W, C), w_ref[0],
                  preferred_element_type=jnp.float32) + b_ref[...]
    for k in range(1, 9):                                # static unroll, 8 taps
        dy, dx = divmod(k, 3)
        patch = xp_ref[dy:dy + H, dx:dx + W, :].reshape(H * W, C)
        acc = acc + jnp.dot(patch, w_ref[k], preferred_element_type=jnp.float32)
    return acc


def _instance_norm(y):
    """y: (H*W, C) f32. Per-sample, per-channel norm over spatial dims.

    Two-pass biased variance — exact match to nn.InstanceNorm2d (affine=False).
    rsqrt lowers to the EUP (separate bundle slot).
    """
    mean = jnp.mean(y, axis=0, keepdims=True)
    centered = y - mean
    var = jnp.mean(centered * centered, axis=0, keepdims=True)
    return centered * jax.lax.rsqrt(var + EPS)


def residual_block_kernel(x_ref, w1_ref, b1_ref, w2_ref, b2_ref, o_ref, xp_ref):
    _, H, W, C = x_ref.shape
    x = x_ref[0]                                  # (H, W, C), input dtype
    x_f32 = x.astype(jnp.float32)

    # ---- GBlock 1: conv3x3(reflect) -> instance norm -> ReLU --------------
    _fill_halo(xp_ref, x.astype(jnp.bfloat16), H, W)
    acc = _conv3x3_from_halo(xp_ref, w1_ref, b1_ref, H, W, C)
    y = jnp.maximum(_instance_norm(acc), 0.0)     # norm fused with ReLU, (H*W, C)

    # ---- GBlock 2: conv3x3(reflect) -> instance norm (use_act=False) ------
    _fill_halo(xp_ref, y.astype(jnp.bfloat16).reshape(H, W, C), H, W)
    acc = _conv3x3_from_halo(xp_ref, w2_ref, b2_ref, H, W, C)
    y = _instance_norm(acc).reshape(H, W, C)

    # ---- residual add (fused with the final normalize + dtype cast) -------
    o_ref[0] = (x_f32 + y).astype(o_ref.dtype)


# --------------------------------------------------------------- wrapper ----
def residual_block(x_nchw, w1, b1, w2, b2):
    """ResidualBlock forward.

    x_nchw: (N, C, H, W)   — PyTorch layout.
    w1, w2: (C, C, 3, 3)   — PyTorch OIHW conv weights.
    b1, b2: (C,)           — conv biases.
    Returns (N, C, H, W) with the same dtype as x_nchw.
    """
    N, C, H, W = x_nchw.shape
    assert H >= 2 and W >= 2, "reflect padding=1 requires H >= 2 and W >= 2"

    x = jnp.transpose(x_nchw, (0, 2, 3, 1))                  # NHWC

    def prep_w(w):
        # OIHW -> (kh*kw, Cin, Cout), bf16 for the MXU.
        return jnp.transpose(w, (2, 3, 1, 0)).reshape(9, C, C).astype(jnp.bfloat16)

    w1p, w2p = prep_w(w1), prep_w(w2)
    b1r = b1.reshape(1, C).astype(jnp.float32)
    b2r = b2.reshape(1, C).astype(jnp.float32)

    # Advisory cost hint for XLA's scheduler around the custom call.
    itemsize = jnp.dtype(x_nchw.dtype).itemsize
    conv_flops = 2 * H * W * C * C * 9                         # per conv, per image
    cost = pl.CostEstimate(
        flops=int(N * 2 * conv_flops),
        transcendentals=int(N * 2 * C),                        # rsqrt per channel/norm
        bytes_accessed=int(2 * N * H * W * C * itemsize        # x in + out
                           + 2 * 9 * C * C * 2                 # bf16 weights
                           + 2 * C * 4),                       # f32 biases
    )

    out = pl.pallas_call(
        residual_block_kernel,
        out_shape=jax.ShapeDtypeStruct((N, H, W, C), x_nchw.dtype),
        grid_spec=pltpu.PrefetchScalarGridSpec(
            num_scalar_prefetch=0,
            grid=(N,),
            in_specs=[
                pl.BlockSpec((1, H, W, C), lambda n: (n, 0, 0, 0)),
                # Weights / biases are grid-invariant (constant index_map):
                # they are DMA'd once and stay resident across the grid.
                pl.BlockSpec((9, C, C), lambda n: (0, 0, 0)),
                pl.BlockSpec((1, C), lambda n: (0, 0)),
                pl.BlockSpec((9, C, C), lambda n: (0, 0, 0)),
                pl.BlockSpec((1, C), lambda n: (0, 0)),
            ],
            out_specs=pl.BlockSpec((1, H, W, C), lambda n: (n, 0, 0, 0)),
            # bf16 halo scratch reused by both convs (pad written once each).
            scratch_shapes=[pltpu.VMEM((H + 2, W + 2, C), jnp.bfloat16)],
        ),
        compiler_params=pltpu.CompilerParams(
            dimension_semantics=("parallel",),
            vmem_limit_bytes=64 * 1024 * 1024,
        ),
        cost_estimate=cost,
    )(x, w1p, b1r, w2p, b2r)

    return jnp.transpose(out, (0, 3, 1, 2))                  # back to NCHW


# ------------------------------------------------------------- reference ----
def _reference(x_nchw, w1, b1, w2, b2):
    # Pure-JAX reference mirroring the kernel's numerics: bf16 conv operands,
    # f32 accumulation, f32 instance norm and residual add.
    N, C, H, W = x_nchw.shape
    x = jnp.transpose(x_nchw, (0, 2, 3, 1)).astype(jnp.float32)

    def conv(a, w, b):
        ap = jnp.pad(a, ((0, 0), (1, 1), (1, 1), (0, 0)),
                     mode="reflect").astype(jnp.bfloat16)
        whw = jnp.transpose(w, (2, 3, 1, 0)).astype(jnp.bfloat16)   # HWIO
        y = jax.lax.conv_general_dilated(
            ap, whw, window_strides=(1, 1), padding="VALID",
            dimension_numbers=("NHWC", "HWIO", "NHWC"),
            preferred_element_type=jnp.float32)
        return y + b.astype(jnp.float32)

    def inorm(y):
        m = jnp.mean(y, axis=(1, 2), keepdims=True)
        v = jnp.mean((y - m) ** 2, axis=(1, 2), keepdims=True)
        return (y - m) * jax.lax.rsqrt(v + EPS)

    y = jnp.maximum(inorm(conv(x, w1, b1)), 0.0)
    y = inorm(conv(y, w2, b2))
    return jnp.transpose(x + y, (0, 3, 1, 2)).astype(x_nchw.dtype)


# ------------------------------------------------------------------ main ----
if __name__ == "__main__":
    N, C, H, W = 2, 4, 16, 16
    key = jax.random.PRNGKey(0)
    kx, kw1, kb1, kw2, kb2 = jax.random.split(key, 5)

    x = jax.random.normal(kx, (N, C, H, W), dtype=jnp.float32)

    # Conv2d default init: uniform(-bound, bound), bound = 1/sqrt(fan_in)
    bound = 1.0 / jnp.sqrt(float(C * 9))
    w1 = jax.random.uniform(kw1, (C, C, 3, 3), jnp.float32, -bound, bound)
    b1 = jax.random.uniform(kb1, (C,), jnp.float32, -bound, bound)
    w2 = jax.random.uniform(kw2, (C, C, 3, 3), jnp.float32, -bound, bound)
    b2 = jax.random.uniform(kb2, (C,), jnp.float32, -bound, bound)

    out = jax.block_until_ready(residual_block(x, w1, b1, w2, b2))
    ref = jax.block_until_ready(_reference(x, w1, b1, w2, b2))

    assert out.shape == (N, C, H, W)
    assert out.dtype == x.dtype
    # Conv matmuls run in bf16 with f32 accumulation -> loosen the tolerance.
    assert jnp.allclose(out, ref, rtol=1e-2, atol=1e-2), "mismatch vs reference"

    print("KERNEL_OK")
</pallas_src>

<mosaic_0001>
module attributes {stable_mosaic.version = 11 : i64} {
  func.func @residual_block_kernel(%arg0: i32, %arg1: memref<1x16x16x4xf32, #tpu.memory_space<vmem>>, %arg2: memref<9x4x4xbf16, #tpu.memory_space<vmem>>, %arg3: memref<1x4xf32, #tpu.memory_space<vmem>>, %arg4: memref<9x4x4xbf16, #tpu.memory_space<vmem>>, %arg5: memref<1x4xf32, #tpu.memory_space<vmem>>, %arg6: memref<1x16x16x4xf32, #tpu.memory_space<vmem>>, %arg7: memref<18x18x4xbf16, #tpu.memory_space<vmem>>) attributes {dimension_semantics = [#tpu.dimension_semantics<parallel>], iteration_bounds = array<i64: 2>, scalar_prefetch = 0 : i64, scratch_operands = 1 : i64, tpu.core_type = #tpu.core_type<tc>, window_params = [{transform_indices = @transform_0, window_bounds = array<i64: 1, 16, 16, 4>}, {pipeline_mode = #tpu.pipeline_mode<synchronous>, transform_indices = @transform_1, window_bounds = array<i64: 9, 4, 4>}, {pipeline_mode = #tpu.pipeline_mode<synchronous>, transform_indices = @transform_2, window_bounds = array<i64: 1, 4>}, {pipeline_mode = #tpu.pipeline_mode<synchronous>, transform_indices = @transform_3, window_bounds = array<i64: 9, 4, 4>}, {pipeline_mode = #tpu.pipeline_mode<synchronous>, transform_indices = @transform_4, window_bounds = array<i64: 1, 4>}, {transform_indices = @transform_5, window_bounds = array<i64: 1, 16, 16, 4>}]} {
    %c0 = arith.constant 0 : index
    %c0_0 = arith.constant 0 : index
    %c0_1 = arith.constant 0 : index
    %c0_2 = arith.constant 0 : index
    %0 = vector.load %arg1[%c0, %c0_0, %c0_1, %c0_2] : memref<1x16x16x4xf32, #tpu.memory_space<vmem>>, vector<1x16x16x4xf32>
    %1 = vector.shape_cast %0 : vector<1x16x16x4xf32> to vector<16x16x4xf32>
    %2 = arith.truncf %1 : vector<16x16x4xf32> to vector<16x16x4xbf16>
    %c1 = arith.constant 1 : index
    %c1_3 = arith.constant 1 : index
    %c0_4 = arith.constant 0 : index
    %3 = vector.load %arg7[%c1, %c1_3, %c0_4] : memref<18x18x4xbf16, #tpu.memory_space<vmem>>, vector<16x16x4xbf16>
    tpu.vector_store %arg7[%c1, %c1_3, %c0_4], %2 {strides = array<i32>} : memref<18x18x4xbf16, #tpu.memory_space<vmem>>, vector<16x16x4xbf16>,
    %4 = vector.extract_strided_slice %2 {offsets = [0, 1, 0], sizes = [16, 1, 4], strides = [1, 1, 1]} : vector<16x16x4xbf16> to vector<16x1x4xbf16>
    %c1_5 = arith.constant 1 : index
    %c0_6 = arith.constant 0 : index
    %c0_7 = arith.constant 0 : index
    %5 = vector.load %arg7[%c1_5, %c0_6, %c0_7] : memref<18x18x4xbf16, #tpu.memory_space<vmem>>, vector<16x1x4xbf16>
    tpu.vector_store %arg7[%c1_5, %c0_6, %c0_7], %4 {strides = array<i32>} : memref<18x18x4xbf16, #tpu.memory_space<vmem>>, vector<16x1x4xbf16>,
    %6 = vector.extract_strided_slice %2 {offsets = [0, 14, 0], sizes = [16, 1, 4], strides = [1, 1, 1]} : vector<16x16x4xbf16> to vector<16x1x4xbf16>
    %c1_8 = arith.constant 1 : index
    %c17 = arith.constant 17 : index
    %c0_9 = arith.constant 0 : index
    %7 = vector.load %arg7[%c1_8, %c17, %c0_9] : memref<18x18x4xbf16, #tpu.memory_space<vmem>>, vector<16x1x4xbf16>
    tpu.vector_store %arg7[%c1_8, %c17, %c0_9], %6 {strides = array<i32>} : memref<18x18x4xbf16, #tpu.memory_space<vmem>>, vector<16x1x4xbf16>,
    %8 = vector.extract_strided_slice %2 {offsets = [1, 0, 0], sizes = [1, 16, 4], strides = [1, 1, 1]} : vector<16x16x4xbf16> to vector<1x16x4xbf16>
    %c0_10 = arith.constant 0 : index
    %c1_11 = arith.constant 1 : index
    %c0_12 = arith.constant 0 : index
    %9 = vector.load %arg7[%c0_10, %c1_11, %c0_12] : memref<18x18x4xbf16, #tpu.memory_space<vmem>>, vector<1x16x4xbf16>
    tpu.vector_store %arg7[%c0_10, %c1_11, %c0_12], %8 {strides = array<i32>} : memref<18x18x4xbf16, #tpu.memory_space<vmem>>, vector<1x16x4xbf16>,
    %10 = vector.extract_strided_slice %2 {offsets = [14, 0, 0], sizes = [1, 16, 4], strides = [1, 1, 1]} : vector<16x16x4xbf16> to vector<1x16x4xbf16>
    %c17_13 = arith.constant 17 : index
    %c1_14 = arith.constant 1 : index
    %c0_15 = arith.constant 0 : index
    %11 = vector.load %arg7[%c17_13, %c1_14, %c0_15] : memref<18x18x4xbf16, #tpu.memory_space<vmem>>, vector<1x16x4xbf16>
    tpu.vector_store %arg7[%c17_13, %c1_14, %c0_15], %10 {strides = array<i32>} : memref<18x18x4xbf16, #tpu.memory_space<vmem>>, vector<1x16x4xbf16>,
    %12 = vector.extract_strided_slice %2 {offsets = [1, 1, 0], sizes = [1, 1, 4], strides = [1, 1, 1]} : vector<16x16x4xbf16> to vector<1x1x4xbf16>
    %c0_16 = arith.constant 0 : index
    %c0_17 = arith.constant 0 : index
    %c0_18 = arith.constant 0 : index
    %13 = vector.load %arg7[%c0_16, %c0_17, %c0_18] : memref<18x18x4xbf16, #tpu.memory_space<vmem>>, vector<1x1x4xbf16>
    tpu.vector_store %arg7[%c0_16, %c0_17, %c0_18], %12 {strides = array<i32>} : memref<18x18x4xbf16, #tpu.memory_space<vmem>>, vector<1x1x4xbf16>,
    %14 = vector.extract_strided_slice %2 {offsets = [1, 14, 0], sizes = [1, 1, 4], strides = [1, 1, 1]} : vector<16x16x4xbf16> to vector<1x1x4xbf16>
    %c0_19 = arith.constant 0 : index
    %c17_20 = arith.constant 17 : index
    %c0_21 = arith.constant 0 : index
    %15 = vector.load %arg7[%c0_19, %c17_20, %c0_21] : memref<18x18x4xbf16, #tpu.memory_space<vmem>>, vector<1x1x4xbf16>
    tpu.vector_store %arg7[%c0_19, %c17_20, %c0_21], %14 {strides = array<i32>} : memref<18x18x4xbf16, #tpu.memory_space<vmem>>, vector<1x1x4xbf16>,
    %16 = vector.extract_strided_slice %2 {offsets = [14, 1, 0], sizes = [1, 1, 4], strides = [1, 1, 1]} : vector<16x16x4xbf16> to vector<1x1x4xbf16>
    %c17_22 = arith.constant 17 : index
    %c0_23 = arith.constant 0 : index
    %c0_24 = arith.constant 0 : index
    %17 = vector.load %arg7[%c17_22, %c0_23, %c0_24] : memref<18x18x4xbf16, #tpu.memory_space<vmem>>, vector<1x1x4xbf16>
    tpu.vector_store %arg7[%c17_22, %c0_23, %c0_24], %16 {strides = array<i32>} : memref<18x18x4xbf16, #tpu.memory_space<vmem>>, vector<1x1x4xbf16>,
    %18 = vector.extract_strided_slice %2 {offsets = [14, 14, 0], sizes = [1, 1, 4], strides = [1, 1, 1]} : vector<16x16x4xbf16> to vector<1x1x4xbf16>
    %c17_25 = arith.constant 17 : index
    %c17_26 = arith.constant 17 : index
    %c0_27 = arith.constant 0 : index
    %19 = vector.load %arg7[%c17_25, %c17_26, %c0_27] : memref<18x18x4xbf16, #tpu.memory_space<vmem>>, vector<1x1x4xbf16>
    tpu.vector_store %arg7[%c17_25, %c17_26, %c0_27], %18 {strides = array<i32>} : memref<18x18x4xbf16, #tpu.memory_space<vmem>>, vector<1x1x4xbf16>,
    %c0_28 = arith.constant 0 : index
    %c0_29 = arith.constant 0 : index
    %c0_30 = arith.constant 0 : index
    %20 = vector.load %arg7[%c0_28, %c0_29, %c0_30] : memref<18x18x4xbf16, #tpu.memory_space<vmem>>, vector<16x16x4xbf16>
    %21 = vector.shape_cast %20 : vector<16x16x4xbf16> to vector<256x4xbf16>
    %c0_31 = arith.constant 0 : index
    %c0_32 = arith.constant 0 : index
    %c0_33 = arith.constant 0 : index
    %22 = vector.load %arg2[%c0_31, %c0_32, %c0_33] : memref<9x4x4xbf16, #tpu.memory_space<vmem>>, vector<1x4x4xbf16>
    %23 = vector.shape_cast %22 : vector<1x4x4xbf16> to vector<4x4xbf16>
    %cst = arith.constant dense<0.000000e+00> : vector<256x4xf32>
    %24 = tpu.matmul %21, %23, %cst {dimension_numbers = #tpu.dot_dimension_numbers<[1], [0], [0], [1], [0, 0, 1, 1], [], []>} : vector<256x4xbf16>, vector<4x4xbf16>, vector<256x4xf32> -> vector<256x4xf32>
    %c0_34 = arith.constant 0 : index
    %c0_35 = arith.constant 0 : index
    %25 = vector.load %arg3[%c0_34, %c0_35] : memref<1x4xf32, #tpu.memory_space<vmem>>, vector<1x4xf32>
    %26 = vector.broadcast %25 : vector<1x4xf32> to vector<256x4xf32>
    %27 = arith.addf %24, %26 : vector<256x4xf32>
    %c0_36 = arith.constant 0 : index
    %c1_37 = arith.constant 1 : index
    %c0_38 = arith.constant 0 : index
    %28 = vector.load %arg7[%c0_36, %c1_37, %c0_38] : memref<18x18x4xbf16, #tpu.memory_space<vmem>>, vector<16x16x4xbf16>
    %29 = vector.shape_cast %28 : vector<16x16x4xbf16> to vector<256x4xbf16>
    %c1_39 = arith.constant 1 : index
    %c0_40 = arith.constant 0 : index
    %c0_41 = arith.constant 0 : index
    %30 = vector.load %arg2[%c1_39, %c0_40, %c0_41] : memref<9x4x4xbf16, #tpu.memory_space<vmem>>, vector<1x4x4xbf16>
    %31 = vector.shape_cast %30 : vector<1x4x4xbf16> to vector<4x4xbf16>
    %cst_42 = arith.constant dense<0.000000e+00> : vector<256x4xf32>
    %32 = tpu.matmul %29, %31, %cst_42 {dimension_numbers = #tpu.dot_dimension_numbers<[1], [0], [0], [1], [0, 0, 1, 1], [], []>} : vector<256x4xbf16>, vector<4x4xbf16>, vector<256x4xf32> -> vector<256x4xf32>
    %33 = arith.addf %27, %32 : vector<256x4xf32>
    %c0_43 = arith.constant 0 : index
    %c2 = arith.constant 2 : index
    %c0_44 = arith.constant 0 : index
    %34 = vector.load %arg7[%c0_43, %c2, %c0_44] : memref<18x18x4xbf16, #tpu.memory_space<vmem>>, vector<16x16x4xbf16>
    %35 = vector.shape_cast %34 : vector<16x16x4xbf16> to vector<256x4xbf16>
    %c2_45 = arith.constant 2 : index
    %c0_46 = arith.constant 0 : index
    %c0_47 = arith.constant 0 : index
    %36 = vector.load %arg2[%c2_45, %c0_46, %c0_47] : memref<9x4x4xbf16, #tpu.memory_space<vmem>>, vector<1x4x4xbf16>
    %37 = vector.shape_cast %36 : vector<1x4x4xbf16> to vector<4x4xbf16>
    %cst_48 = arith.constant dense<0.000000e+00> : vector<256x4xf32>
    %38 = tpu.matmul %35, %37, %cst_48 {dimension_numbers = #tpu.dot_dimension_numbers<[1], [0], [0], [1], [0, 0, 1, 1], [], []>} : vector<256x4xbf16>, vector<4x4xbf16>, vector<256x4xf32> -> vector<256x4xf32>
    %39 = arith.addf %33, %38 : vector<256x4xf32>
    %c1_49 = arith.constant 1 : index
    %c0_50 = arith.constant 0 : index
    %c0_51 = arith.constant 0 : index
    %40 = vector.load %arg7[%c1_49, %c0_50, %c0_51] : memref<18x18x4xbf16, #tpu.memory_space<vmem>>, vector<16x16x4xbf16>
    %41 = vector.shape_cast %40 : vector<16x16x4xbf16> to vector<256x4xbf16>
    %c3 = arith.constant 3 : index
    %c0_52 = arith.constant 0 : index
    %c0_53 = arith.constant 0 : index
    %42 = vector.load %arg2[%c3, %c0_52, %c0_53] : memref<9x4x4xbf16, #tpu.memory_space<vmem>>, vector<1x4x4xbf16>
    %43 = vector.shape_cast %42 : vector<1x4x4xbf16> to vector<4x4xbf16>
    %cst_54 = arith.constant dense<0.000000e+00> : vector<256x4xf32>
    %44 = tpu.matmul %41, %43, %cst_54 {dimension_numbers = #tpu.dot_dimension_numbers<[1], [0], [0], [1], [0, 0, 1, 1], [], []>} : vector<256x4xbf16>, vector<4x4xbf16>, vector<256x4xf32> -> vector<256x4xf32>
    %45 = arith.addf %39, %44 : vector<256x4xf32>
    %c1_55 = arith.constant 1 : index
    %c1_56 = arith.constant 1 : index
    %c0_57 = arith.constant 0 : index
    %46 = vector.load %arg7[%c1_55, %c1_56, %c0_57] : memref<18x18x4xbf16, #tpu.memory_space<vmem>>, vector<16x16x4xbf16>
    %47 = vector.shape_cast %46 : vector<16x16x4xbf16> to vector<256x4xbf16>
    %c4 = arith.constant 4 : index
    %c0_58 = arith.constant 0 : index
    %c0_59 = arith.constant 0 : index
    %48 = vector.load %arg2[%c4, %c0_58, %c0_59] : memref<9x4x4xbf16, #tpu.memory_space<vmem>>, vector<1x4x4xbf16>
    %49 = vector.shape_cast %48 : vector<1x4x4xbf16> to vector<4x4xbf16>
    %cst_60 = arith.constant dense<0.000000e+00> : vector<256x4xf32>
    %50 = tpu.matmul %47, %49, %cst_60 {dimension_numbers = #tpu.dot_dimension_numbers<[1], [0], [0], [1], [0, 0, 1, 1], [], []>} : vector<256x4xbf16>, vector<4x4xbf16>, vector<256x4xf32> -> vector<256x4xf32>
    %51 = arith.addf %45, %50 : vector<256x4xf32>
    %c1_61 = arith.constant 1 : index
    %c2_62 = arith.constant 2 : index
    %c0_63 = arith.constant 0 : index
    %52 = vector.load %arg7[%c1_61, %c2_62, %c0_63] : memref<18x18x4xbf16, #tpu.memory_space<vmem>>, vector<16x16x4xbf16>
    %53 = vector.shape_cast %52 : vector<16x16x4xbf16> to vector<256x4xbf16>
    %c5 = arith.constant 5 : index
    %c0_64 = arith.constant 0 : index
    %c0_65 = arith.constant 0 : index
    %54 = vector.load %arg2[%c5, %c0_64, %c0_65] : memref<9x4x4xbf16, #tpu.memory_space<vmem>>, vector<1x4x4xbf16>
    %55 = vector.shape_cast %54 : vector<1x4x4xbf16> to vector<4x4xbf16>
    %cst_66 = arith.constant dense<0.000000e+00> : vector<256x4xf32>
    %56 = tpu.matmul %53, %55, %cst_66 {dimension_numbers = #tpu.dot_dimension_numbers<[1], [0], [0], [1], [0, 0, 1, 1], [], []>} : vector<256x4xbf16>, vector<4x4xbf16>, vector<256x4xf32> -> vector<256x4xf32>
    %57 = arith.addf %51, %56 : vector<256x4xf32>
    %c2_67 = arith.constant 2 : index
    %c0_68 = arith.constant 0 : index
    %c0_69 = arith.constant 0 : index
    %58 = vector.load %arg7[%c2_67, %c0_68, %c0_69] : memref<18x18x4xbf16, #tpu.memory_space<vmem>>, vector<16x16x4xbf16>
    %59 = vector.shape_cast %58 : vector<16x16x4xbf16> to vector<256x4xbf16>
    %c6 = arith.constant 6 : index
    %c0_70 = arith.constant 0 : index
    %c0_71 = arith.constant 0 : index
    %60 = vector.load %arg2[%c6, %c0_70, %c0_71] : memref<9x4x4xbf16, #tpu.memory_space<vmem>>, vector<1x4x4xbf16>
    %61 = vector.shape_cast %60 : vector<1x4x4xbf16> to vector<4x4xbf16>
    %cst_72 = arith.constant dense<0.000000e+00> : vector<256x4xf32>
    %62 = tpu.matmul %59, %61, %cst_72 {dimension_numbers = #tpu.dot_dimension_numbers<[1], [0], [0], [1], [0, 0, 1, 1], [], []>} : vector<256x4xbf16>, vector<4x4xbf16>, vector<256x4xf32> -> vector<256x4xf32>
    %63 = arith.addf %57, %62 : vector<256x4xf32>
    %c2_73 = arith.constant 2 : index
    %c1_74 = arith.constant 1 : index
    %c0_75 = arith.constant 0 : index
    %64 = vector.load %arg7[%c2_73, %c1_74, %c0_75] : memref<18x18x4xbf16, #tpu.memory_space<vmem>>, vector<16x16x4xbf16>
    %65 = vector.shape_cast %64 : vector<16x16x4xbf16> to vector<256x4xbf16>
    %c7 = arith.constant 7 : index
    %c0_76 = arith.constant 0 : index
    %c0_77 = arith.constant 0 : index
    %66 = vector.load %arg2[%c7, %c0_76, %c0_77] : memref<9x4x4xbf16, #tpu.memory_space<vmem>>, vector<1x4x4xbf16>
    %67 = vector.shape_cast %66 : vector<1x4x4xbf16> to vector<4x4xbf16>
    %cst_78 = arith.constant dense<0.000000e+00> : vector<256x4xf32>
    %68 = tpu.matmul %65, %67, %cst_78 {dimension_numbers = #tpu.dot_dimension_numbers<[1], [0], [0], [1], [0, 0, 1, 1], [], []>} : vector<256x4xbf16>, vector<4x4xbf16>, vector<256x4xf32> -> vector<256x4xf32>
    %69 = arith.addf %63, %68 : vector<256x4xf32>
    %c2_79 = arith.constant 2 : index
    %c2_80 = arith.constant 2 : index
    %c0_81 = arith.constant 0 : index
    %70 = vector.load %arg7[%c2_79, %c2_80, %c0_81] : memref<18x18x4xbf16, #tpu.memory_space<vmem>>, vector<16x16x4xbf16>
    %71 = vector.shape_cast %70 : vector<16x16x4xbf16> to vector<256x4xbf16>
    %c8 = arith.constant 8 : index
    %c0_82 = arith.constant 0 : index
    %c0_83 = arith.constant 0 : index
    %72 = vector.load %arg2[%c8, %c0_82, %c0_83] : memref<9x4x4xbf16, #tpu.memory_space<vmem>>, vector<1x4x4xbf16>
    %73 = vector.shape_cast %72 : vector<1x4x4xbf16> to vector<4x4xbf16>
    %cst_84 = arith.constant dense<0.000000e+00> : vector<256x4xf32>
    %74 = tpu.matmul %71, %73, %cst_84 {dimension_numbers = #tpu.dot_dimension_numbers<[1], [0], [0], [1], [0, 0, 1, 1], [], []>} : vector<256x4xbf16>, vector<4x4xbf16>, vector<256x4xf32> -> vector<256x4xf32>
    %75 = arith.addf %69, %74 : vector<256x4xf32>
    %cst_85 = arith.constant dense<0.000000e+00> : vector<4xf32>
    %76 = vector.multi_reduction <add>, %75, %cst_85 [0] : vector<256x4xf32> to vector<4xf32>
    %77 = vector.shape_cast %76 : vector<4xf32> to vector<1x4xf32>
    %cst_86 = arith.constant 2.560000e+02 : f32
    %78 = vector.broadcast %cst_86 : f32 to vector<1x4xf32>
    %79 = arith.divf %77, %78 : vector<1x4xf32>
    %80 = vector.broadcast %79 : vector<1x4xf32> to vector<256x4xf32>
    %81 = arith.subf %75, %80 : vector<256x4xf32>
    %82 = arith.mulf %81, %81 : vector<256x4xf32>
    %cst_87 = arith.constant dense<0.000000e+00> : vector<4xf32>
    %83 = vector.multi_reduction <add>, %82, %cst_87 [0] : vector<256x4xf32> to vector<4xf32>
    %84 = vector.shape_cast %83 : vector<4xf32> to vector<1x4xf32>
    %cst_88 = arith.constant 2.560000e+02 : f32
    %85 = vector.broadcast %cst_88 : f32 to vector<1x4xf32>
    %86 = arith.divf %84, %85 : vector<1x4xf32>
    %cst_89 = arith.constant 9.99999974E-6 : f32
    %87 = vector.broadcast %cst_89 : f32 to vector<1x4xf32>
    %88 = arith.addf %86, %87 : vector<1x4xf32>
    %89 = math.rsqrt %88 : vector<1x4xf32>
    %90 = vector.broadcast %89 : vector<1x4xf32> to vector<256x4xf32>
    %91 = arith.mulf %81, %90 : vector<256x4xf32>
    %cst_90 = arith.constant 0.000000e+00 : f32
    %92 = vector.broadcast %cst_90 : f32 to vector<256x4xf32>
    %93 = arith.maximumf %91, %92 : vector<256x4xf32>
    %94 = arith.truncf %93 : vector<256x4xf32> to vector<256x4xbf16>
    %95 = vector.shape_cast %94 : vector<256x4xbf16> to vector<16x16x4xbf16>
    %c1_91 = arith.constant 1 : index
    %c1_92 = arith.constant 1 : index
    %c0_93 = arith.constant 0 : index
    %96 = vector.load %arg7[%c1_91, %c1_92, %c0_93] : memref<18x18x4xbf16, #tpu.memory_space<vmem>>, vector<16x16x4xbf16>
    tpu.vector_store %arg7[%c1_91, %c1_92, %c0_93], %95 {strides = array<i32>} : memref<18x18x4xbf16, #tpu.memory_space<vmem>>, vector<16x16x4xbf16>,
    %97 = vector.extract_strided_slice %95 {offsets = [0, 1, 0], sizes = [16, 1, 4], strides = [1, 1, 1]} : vector<16x16x4xbf16> to vector<16x1x4xbf16>
    %c1_94 = arith.constant 1 : index
    %c0_95 = arith.constant 0 : index
    %c0_96 = arith.constant 0 : index
    %98 = vector.load %arg7[%c1_94, %c0_95, %c0_96] : memref<18x18x4xbf16, #tpu.memory_space<vmem>>, vector<16x1x4xbf16>
    tpu.vector_store %arg7[%c1_94, %c0_95, %c0_96], %97 {strides = array<i32>} : memref<18x18x4xbf16, #tpu.memory_space<vmem>>, vector<16x1x4xbf16>,
    %99 = vector.extract_strided_slice %95 {offsets = [0, 14, 0], sizes = [16, 1, 4], strides = [1, 1, 1]} : vector<16x16x4xbf16> to vector<16x1x4xbf16>
    %c1_97 = arith.constant 1 : index
    %c17_98 = arith.constant 17 : index
    %c0_99 = arith.constant 0 : index
    %100 = vector.load %arg7[%c1_97, %c17_98, %c0_99] : memref<18x18x4xbf16, #tpu.memory_space<vmem>>, vector<16x1x4xbf16>
    tpu.vector_store %arg7[%c1_97, %c17_98, %c0_99], %99 {strides = array<i32>} : memref<18x18x4xbf16, #tpu.memory_space<vmem>>, vector<16x1x4xbf16>,
    %101 = vector.extract_strided_slice %95 {offsets = [1, 0, 0], sizes = [1, 16, 4], strides = [1, 1, 1]} : vector<16x16x4xbf16> to vector<1x16x4xbf16>
    %c0_100 = arith.constant 0 : index
    %c1_101 = arith.constant 1 : index
    %c0_102 = arith.constant 0 : index
    %102 = vector.load %arg7[%c0_100, %c1_101, %c0_102] : memref<18x18x4xbf16, #tpu.memory_space<vmem>>, vector<1x16x4xbf16>
    tpu.vector_store %arg7[%c0_100, %c1_101, %c0_102], %101 {strides = array<i32>} : memref<18x18x4xbf16, #tpu.memory_space<vmem>>, vector<1x16x4xbf16>,
    %103 = vector.extract_strided_slice %95 {offsets = [14, 0, 0], sizes = [1, 16, 4], strides = [1, 1, 1]} : vector<16x16x4xbf16> to vector<1x16x4xbf16>
    %c17_103 = arith.constant 17 : index
    %c1_104 = arith.constant 1 : index
    %c0_105 = arith.constant 0 : index
    %104 = vector.load %arg7[%c17_103, %c1_104, %c0_105] : memref<18x18x4xbf16, #tpu.memory_space<vmem>>, vector<1x16x4xbf16>
    tpu.vector_store %arg7[%c17_103, %c1_104, %c0_105], %103 {strides = array<i32>} : memref<18x18x4xbf16, #tpu.memory_space<vmem>>, vector<1x16x4xbf16>,
    %105 = vector.extract_strided_slice %95 {offsets = [1, 1, 0], sizes = [1, 1, 4], strides = [1, 1, 1]} : vector<16x16x4xbf16> to vector<1x1x4xbf16>
    %c0_106 = arith.constant 0 : index
    %c0_107 = arith.constant 0 : index
    %c0_108 = arith.constant 0 : index
    %106 = vector.load %arg7[%c0_106, %c0_107, %c0_108] : memref<18x18x4xbf16, #tpu.memory_space<vmem>>, vector<1x1x4xbf16>
    tpu.vector_store %arg7[%c0_106, %c0_107, %c0_108], %105 {strides = array<i32>} : memref<18x18x4xbf16, #tpu.memory_space<vmem>>, vector<1x1x4xbf16>,
    %107 = vector.extract_strided_slice %95 {offsets = [1, 14, 0], sizes = [1, 1, 4], strides = [1, 1, 1]} : vector<16x16x4xbf16> to vector<1x1x4xbf16>
    %c0_109 = arith.constant 0 : index
    %c17_110 = arith.constant 17 : index
    %c0_111 = arith.constant 0 : index
    %108 = vector.load %arg7[%c0_109, %c17_110, %c0_111] : memref<18x18x4xbf16, #tpu.memory_space<vmem>>, vector<1x1x4xbf16>
    tpu.vector_store %arg7[%c0_109, %c17_110, %c0_111], %107 {strides = array<i32>} : memref<18x18x4xbf16, #tpu.memory_space<vmem>>, vector<1x1x4xbf16>,
    %109 = vector.extract_strided_slice %95 {offsets = [14, 1, 0], sizes = [1, 1, 4], strides = [1, 1, 1]} : vector<16x16x4xbf16> to vector<1x1x4xbf16>
    %c17_112 = arith.constant 17 : index
    %c0_113 = arith.constant 0 : index
    %c0_114 = arith.constant 0 : index
    %110 = vector.load %arg7[%c17_112, %c0_113, %c0_114] : memref<18x18x4xbf16, #tpu.memory_space<vmem>>, vector<1x1x4xbf16>
    tpu.vector_store %arg7[%c17_112, %c0_113, %c0_114], %109 {strides = array<i32>} : memref<18x18x4xbf16, #tpu.memory_space<vmem>>, vector<1x1x4xbf16>,
    %111 = vector.extract_strided_slice %95 {offsets = [14, 14, 0], sizes = [1, 1, 4], strides = [1, 1, 1]} : vector<16x16x4xbf16> to vector<1x1x4xbf16>
    %c17_115 = arith.constant 17 : index
    %c17_116 = arith.constant 17 : index
    %c0_117 = arith.constant 0 : index
    %112 = vector.load %arg7[%c17_115, %c17_116, %c0_117] : memref<18x18x4xbf16, #tpu.memory_space<vmem>>, vector<1x1x4xbf16>
    tpu.vector_store %arg7[%c17_115, %c17_116, %c0_117], %111 {strides = array<i32>} : memref<18x18x4xbf16, #tpu.memory_space<vmem>>, vector<1x1x4xbf16>,
    %c0_118 = arith.constant 0 : index
    %c0_119 = arith.constant 0 : index
    %c0_120 = arith.constant 0 : index
    %113 = vector.load %arg7[%c0_118, %c0_119, %c0_120] : memref<18x18x4xbf16, #tpu.memory_space<vmem>>, vector<16x16x4xbf16>
    %114 = vector.shape_cast %113 : vector<16x16x4xbf16> to vector<256x4xbf16>
    %c0_121 = arith.constant 0 : index
    %c0_122 = arith.constant 0 : index
    %c0_123 = arith.constant 0 : index
    %115 = vector.load %arg4[%c0_121, %c0_122, %c0_123] : memref<9x4x4xbf16, #tpu.memory_space<vmem>>, vector<1x4x4xbf16>
    %116 = vector.shape_cast %115 : vector<1x4x4xbf16> to vector<4x4xbf16>
    %cst_124 = arith.constant dense<0.000000e+00> : vector<256x4xf32>
    %117 = tpu.matmul %114, %116, %cst_124 {dimension_numbers = #tpu.dot_dimension_numbers<[1], [0], [0], [1], [0, 0, 1, 1], [], []>} : vector<256x4xbf16>, vector<4x4xbf16>, vector<256x4xf32> -> vector<256x4xf32>
    %c0_125 = arith.constant 0 : index
    %c0_126 = arith.constant 0 : index
    %118 = vector.load %arg5[%c0_125, %c0_126] : memref<1x4xf32, #tpu.memory_space<vmem>>, vector<1x4xf32>
    %119 = vector.broadcast %118 : vector<1x4xf32> to vector<256x4xf32>
    %120 = arith.addf %117, %119 : vector<256x4xf32>
    %c0_127 = arith.constant 0 : index
    %c1_128 = arith.constant 1 : index
    %c0_129 = arith.constant 0 : index
    %121 = vector.load %arg7[%c0_127, %c1_128, %c0_129] : memref<18x18x4xbf16, #tpu.memory_space<vmem>>, vector<16x16x4xbf16>
    %122 = vector.shape_cast %121 : vector<16x16x4xbf16> to vector<256x4xbf16>
    %c1_130 = arith.constant 1 : index
    %c0_131 = arith.constant 0 : index
    %c0_132 = arith.constant 0 : index
    %123 = vector.load %arg4[%c1_130, %c0_131, %c0_132] : memref<9x4x4xbf16, #tpu.memory_space<vmem>>, vector<1x4x4xbf16>
    %124 = vector.shape_cast %123 : vector<1x4x4xbf16> to vector<4x4xbf16>
    %cst_133 = arith.constant dense<0.000000e+00> : vector<256x4xf32>
    %125 = tpu.matmul %122, %124, %cst_133 {dimension_numbers = #tpu.dot_dimension_numbers<[1], [0], [0], [1], [0, 0, 1, 1], [], []>} : vector<256x4xbf16>, vector<4x4xbf16>, vector<256x4xf32> -> vector<256x4xf32>
    %126 = arith.addf %120, %125 : vector<256x4xf32>
    %c0_134 = arith.constant 0 : index
    %c2_135 = arith.constant 2 : index
    %c0_136 = arith.constant 0 : index
    %127 = vector.load %arg7[%c0_134, %c2_135, %c0_136] : memref<18x18x4xbf16, #tpu.memory_space<vmem>>, vector<16x16x4xbf16>
    %128 = vector.shape_cast %127 : vector<16x16x4xbf16> to vector<256x4xbf16>
    %c2_137 = arith.constant 2 : index
    %c0_138 = arith.constant 0 : index
    %c0_139 = arith.constant 0 : index
    %129 = vector.load %arg4[%c2_137, %c0_138, %c0_139] : memref<9x4x4xbf16, #tpu.memory_space<vmem>>, vector<1x4x4xbf16>
    %130 = vector.shape_cast %129 : vector<1x4x4xbf16> to vector<4x4xbf16>
    %cst_140 = arith.constant dense<0.000000e+00> : vector<256x4xf32>
    %131 = tpu.matmul %128, %130, %cst_140 {dimension_numbers = #tpu.dot_dimension_numbers<[1], [0], [0], [1], [0, 0, 1, 1], [], []>} : vector<256x4xbf16>, vector<4x4xbf16>, vector<256x4xf32> -> vector<256x4xf32>
    %132 = arith.addf %126, %131 : vector<256x4xf32>
    %c1_141 = arith.constant 1 : index
    %c0_142 = arith.constant 0 : index
    %c0_143 = arith.constant 0 : index
    %133 = vector.load %arg7[%c1_141, %c0_142, %c0_143] : memref<18x18x4xbf16, #tpu.memory_space<vmem>>, vector<16x16x4xbf16>
    %134 = vector.shape_cast %133 : vector<16x16x4xbf16> to vector<256x4xbf16>
    %c3_144 = arith.constant 3 : index
    %c0_145 = arith.constant 0 : index
    %c0_146 = arith.constant 0 : index
    %135 = vector.load %arg4[%c3_144, %c0_145, %c0_146] : memref<9x4x4xbf16, #tpu.memory_space<vmem>>, vector<1x4x4xbf16>
    %136 = vector.shape_cast %135 : vector<1x4x4xbf16> to vector<4x4xbf16>
    %cst_147 = arith.constant dense<0.000000e+00> : vector<256x4xf32>
    %137 = tpu.matmul %134, %136, %cst_147 {dimension_numbers = #tpu.dot_dimension_numbers<[1], [0], [0], [1], [0, 0, 1, 1], [], []>} : vector<256x4xbf16>, vector<4x4xbf16>, vector<256x4xf32> -> vector<256x4xf32>
    %138 = arith.addf %132, %137 : vector<256x4xf32>
    %c1_148 = arith.constant 1 : index
    %c1_149 = arith.constant 1 : index
    %c0_150 = arith.constant 0 : index
    %139 = vector.load %arg7[%c1_148, %c1_149, %c0_150] : memref<18x18x4xbf16, #tpu.memory_space<vmem>>, vector<16x16x4xbf16>
    %140 = vector.shape_cast %139 : vector<16x16x4xbf16> to vector<256x4xbf16>
    %c4_151 = arith.constant 4 : index
    %c0_152 = arith.constant 0 : index
    %c0_153 = arith.constant 0 : index
    %141 = vector.load %arg4[%c4_151, %c0_152, %c0_153] : memref<9x4x4xbf16, #tpu.memory_space<vmem>>, vector<1x4x4xbf16>
    %142 = vector.shape_cast %141 : vector<1x4x4xbf16> to vector<4x4xbf16>
    %cst_154 = arith.constant dense<0.000000e+00> : vector<256x4xf32>
    %143 = tpu.matmul %140, %142, %cst_154 {dimension_numbers = #tpu.dot_dimension_numbers<[1], [0], [0], [1], [0, 0, 1, 1], [], []>} : vector<256x4xbf16>, vector<4x4xbf16>, vector<256x4xf32> -> vector<256x4xf32>
    %144 = arith.addf %138, %143 : vector<256x4xf32>
    %c1_155 = arith.constant 1 : index
    %c2_156 = arith.constant 2 : index
    %c0_157 = arith.constant 0 : index
    %145 = vector.load %arg7[%c1_155, %c2_156, %c0_157] : memref<18x18x4xbf16, #tpu.memory_space<vmem>>, vector<16x16x4xbf16>
    %146 = vector.shape_cast %145 : vector<16x16x4xbf16> to vector<256x4xbf16>
    %c5_158 = arith.constant 5 : index
    %c0_159 = arith.constant 0 : index
    %c0_160 = arith.constant 0 : index
    %147 = vector.load %arg4[%c5_158, %c0_159, %c0_160] : memref<9x4x4xbf16, #tpu.memory_space<vmem>>, vector<1x4x4xbf16>
    %148 = vector.shape_cast %147 : vector<1x4x4xbf16> to vector<4x4xbf16>
    %cst_161 = arith.constant dense<0.000000e+00> : vector<256x4xf32>
    %149 = tpu.matmul %146, %148, %cst_161 {dimension_numbers = #tpu.dot_dimension_numbers<[1], [0], [0], [1], [0, 0, 1, 1], [], []>} : vector<256x4xbf16>, vector<4x4xbf16>, vector<256x4xf32> -> vector<256x4xf32>
    %150 = arith.addf %144, %149 : vector<256x4xf32>
    %c2_162 = arith.constant 2 : index
    %c0_163 = arith.constant 0 : index
    %c0_164 = arith.constant 0 : index
    %151 = vector.load %arg7[%c2_162, %c0_163, %c0_164] : memref<18x18x4xbf16, #tpu.memory_space<vmem>>, vector<16x16x4xbf16>
    %152 = vector.shape_cast %151 : vector<16x16x4xbf16> to vector<256x4xbf16>
    %c6_165 = arith.constant 6 : index
    %c0_166 = arith.constant 0 : index
    %c0_167 = arith.constant 0 : index
    %153 = vector.load %arg4[%c6_165, %c0_166, %c0_167] : memref<9x4x4xbf16, #tpu.memory_space<vmem>>, vector<1x4x4xbf16>
    %154 = vector.shape_cast %153 : vector<1x4x4xbf16> to vector<4x4xbf16>
    %cst_168 = arith.constant dense<0.000000e+00> : vector<256x4xf32>
    %155 = tpu.matmul %152, %154, %cst_168 {dimension_numbers = #tpu.dot_dimension_numbers<[1], [0], [0], [1], [0, 0, 1, 1], [], []>} : vector<256x4xbf16>, vector<4x4xbf16>, vector<256x4xf32> -> vector<256x4xf32>
    %156 = arith.addf %150, %155 : vector<256x4xf32>
    %c2_169 = arith.constant 2 : index
    %c1_170 = arith.constant 1 : index
    %c0_171 = arith.constant 0 : index
    %157 = vector.load %arg7[%c2_169, %c1_170, %c0_171] : memref<18x18x4xbf16, #tpu.memory_space<vmem>>, vector<16x16x4xbf16>
    %158 = vector.shape_cast %157 : vector<16x16x4xbf16> to vector<256x4xbf16>
    %c7_172 = arith.constant 7 : index
    %c0_173 = arith.constant 0 : index
    %c0_174 = arith.constant 0 : index
    %159 = vector.load %arg4[%c7_172, %c0_173, %c0_174] : memref<9x4x4xbf16, #tpu.memory_space<vmem>>, vector<1x4x4xbf16>
    %160 = vector.shape_cast %159 : vector<1x4x4xbf16> to vector<4x4xbf16>
    %cst_175 = arith.constant dense<0.000000e+00> : vector<256x4xf32>
    %161 = tpu.matmul %158, %160, %cst_175 {dimension_numbers = #tpu.dot_dimension_numbers<[1], [0], [0], [1], [0, 0, 1, 1], [], []>} : vector<256x4xbf16>, vector<4x4xbf16>, vector<256x4xf32> -> vector<256x4xf32>
    %162 = arith.addf %156, %161 : vector<256x4xf32>
    %c2_176 = arith.constant 2 : index
    %c2_177 = arith.constant 2 : index
    %c0_178 = arith.constant 0 : index
    %163 = vector.load %arg7[%c2_176, %c2_177, %c0_178] : memref<18x18x4xbf16, #tpu.memory_space<vmem>>, vector<16x16x4xbf16>
    %164 = vector.shape_cast %163 : vector<16x16x4xbf16> to vector<256x4xbf16>
    %c8_179 = arith.constant 8 : index
    %c0_180 = arith.constant 0 : index
    %c0_181 = arith.constant 0 : index
    %165 = vector.load %arg4[%c8_179, %c0_180, %c0_181] : memref<9x4x4xbf16, #tpu.memory_space<vmem>>, vector<1x4x4xbf16>
    %166 = vector.shape_cast %165 : vector<1x4x4xbf16> to vector<4x4xbf16>
    %cst_182 = arith.constant dense<0.000000e+00> : vector<256x4xf32>
    %167 = tpu.matmul %164, %166, %cst_182 {dimension_numbers = #tpu.dot_dimension_numbers<[1], [0], [0], [1], [0, 0, 1, 1], [], []>} : vector<256x4xbf16>, vector<4x4xbf16>, vector<256x4xf32> -> vector<256x4xf32>
    %168 = arith.addf %162, %167 : vector<256x4xf32>
    %cst_183 = arith.constant dense<0.000000e+00> : vector<4xf32>
    %169 = vector.multi_reduction <add>, %168, %cst_183 [0] : vector<256x4xf32> to vector<4xf32>
    %170 = vector.shape_cast %169 : vector<4xf32> to vector<1x4xf32>
    %cst_184 = arith.constant 2.560000e+02 : f32
    %171 = vector.broadcast %cst_184 : f32 to vector<1x4xf32>
    %172 = arith.divf %170, %171 : vector<1x4xf32>
    %173 = vector.broadcast %172 : vector<1x4xf32> to vector<256x4xf32>
    %174 = arith.subf %168, %173 : vector<256x4xf32>
    %175 = arith.mulf %174, %174 : vector<256x4xf32>
    %cst_185 = arith.constant dense<0.000000e+00> : vector<4xf32>
    %176 = vector.multi_reduction <add>, %175, %cst_185 [0] : vector<256x4xf32> to vector<4xf32>
    %177 = vector.shape_cast %176 : vector<4xf32> to vector<1x4xf32>
    %cst_186 = arith.constant 2.560000e+02 : f32
    %178 = vector.broadcast %cst_186 : f32 to vector<1x4xf32>
    %179 = arith.divf %177, %178 : vector<1x4xf32>
    %cst_187 = arith.constant 9.99999974E-6 : f32
    %180 = vector.broadcast %cst_187 : f32 to vector<1x4xf32>
    %181 = arith.addf %179, %180 : vector<1x4xf32>
    %182 = math.rsqrt %181 : vector<1x4xf32>
    %183 = vector.broadcast %182 : vector<1x4xf32> to vector<256x4xf32>
    %184 = arith.mulf %174, %183 : vector<256x4xf32>
    %185 = vector.shape_cast %184 : vector<256x4xf32> to vector<16x16x4xf32>
    %186 = arith.addf %1, %185 : vector<16x16x4xf32>
    %c0_188 = arith.constant 0 : index
    %c0_189 = arith.constant 0 : index
    %c0_190 = arith.constant 0 : index
    %c0_191 = arith.constant 0 : index
    %187 = vector.load %arg6[%c0_188, %c0_189, %c0_190, %c0_191] : memref<1x16x16x4xf32, #tpu.memory_space<vmem>>, vector<1x16x16x4xf32>
    %188 = vector.shape_cast %187 : vector<1x16x16x4xf32> to vector<16x16x4xf32>
    %189 = vector.shape_cast %186 : vector<16x16x4xf32> to vector<1x16x16x4xf32>
    tpu.vector_store %arg6[%c0_188, %c0_189, %c0_190, %c0_191], %189 {strides = array<i32>} : memref<1x16x16x4xf32, #tpu.memory_space<vmem>>, vector<1x16x16x4xf32>,
    return
  }
  func.func @transform_0(%arg0: i32) -> (i32, i32, i32, i32) {
    %c0_i32 = arith.constant 0 : i32
    %c0_i32_0 = arith.constant 0 : i32
    %c0_i32_1 = arith.constant 0 : i32
    %c0_i32_2 = arith.constant 0 : i32
    return %arg0, %c0_i32, %c0_i32_0, %c0_i32_1 : i32, i32, i32, i32
  }
  func.func @transform_1(%arg0: i32) -> (i32, i32, i32) {
    %c0_i32 = arith.constant 0 : i32
    %c0_i32_0 = arith.constant 0 : i32
    %c0_i32_1 = arith.constant 0 : i32
    %c0_i32_2 = arith.constant 0 : i32
    return %c0_i32, %c0_i32_0, %c0_i32_1 : i32, i32, i32
  }
  func.func @transform_2(%arg0: i32) -> (i32, i32) {
    %c0_i32 = arith.constant 0 : i32
    %c0_i32_0 = arith.constant 0 : i32
    %c0_i32_1 = arith.constant 0 : i32
    return %c0_i32, %c0_i32_0 : i32, i32
  }
  func.func @transform_3(%arg0: i32) -> (i32, i32, i32) {
    %c0_i32 = arith.constant 0 : i32
    %c0_i32_0 = arith.constant 0 : i32
    %c0_i32_1 = arith.constant 0 : i32
    %c0_i32_2 = arith.constant 0 : i32
    return %c0_i32, %c0_i32_0, %c0_i32_1 : i32, i32, i32
  }
  func.func @transform_4(%arg0: i32) -> (i32, i32) {
    %c0_i32 = arith.constant 0 : i32
    %c0_i32_0 = arith.constant 0 : i32
    %c0_i32_1 = arith.constant 0 : i32
    return %c0_i32, %c0_i32_0 : i32, i32
  }
  func.func @transform_5(%arg0: i32) -> (i32, i32, i32, i32) {
    %c0_i32 = arith.constant 0 : i32
    %c0_i32_0 = arith.constant 0 : i32
    %c0_i32_1 = arith.constant 0 : i32
    %c0_i32_2 = arith.constant 0 : i32
    return %arg0, %c0_i32, %c0_i32_0, %c0_i32_1 : i32, i32, i32, i32
  }
}

</mosaic_0001>

<llo_original>
// kernel: tpu_custom_call.1
$region0: #{tpu_custom_call.1}
  #allocation0 [shape = 'u32[]', space=smem, size = 0x4, offset = 0x4, fixed_abs, tag = 'smem constant byte address 0x4 - core index']
  #allocation1 [shape = 'u32[144,128]{1,0:T(1,128)}', space=vmem, size = 0x12000, scoped, tag = 'internal scratch']
  #allocation2 [shape = 'bf16[18,18,4]{2,1,0:T(8,128)(2,1)}', space=vmem, size = 0x1b000, scoped, tag = 'scratch operand']
  %s0 = inlined_call_operand.hbm [shape: f32[2,16,16,4], index: 0, kind: input, shape index: {}]
  %s1 = inlined_call_operand.hbm [shape: bf16[9,4,4], index: 1, kind: input, shape index: {}]
  %s2 = inlined_call_operand.hbm [shape: f32[1,4], index: 2, kind: input, shape index: {}]
  %s3 = inlined_call_operand.hbm [shape: bf16[9,4,4], index: 3, kind: input, shape index: {}]
  %s4 = inlined_call_operand.hbm [shape: f32[1,4], index: 4, kind: input, shape index: {}]
  %s5 = inlined_call_operand.hbm [shape: f32[2,16,16,4], index: 5, kind: output, shape index: {}]
  %s6 = sld [smem:[#allocation0]]
  $region73: #{tpu_custom_call.1} parent=0
    _
  %s8 = ssub.s32 1, %s6
  %s9 = scalar_select 0, %s8, %s6
  $region1: #{tpu_custom_call.1} parent=0
    #allocation3 [shape = 'u8[262144]{0}', space=vmem, size = 0x40000, scoped, tag = 'input window, operand 0']
    #allocation4 [shape = 's32[2]{0}', space=sflag, size = 0x8, scoped, tag = 'scoped memory for tpu_custom_call.1']
    #allocation5 [shape = 's32[2]{0}', space=sflag, size = 0x8, scoped, tag = 'scoped memory for tpu_custom_call.1']
    #allocation6 [shape = 'u8[9216]{0}', space=vmem, size = 0x2400, scoped, tag = 'input window, operand 1, single buffered']
    #allocation7 [shape = 's32[1]{0}', space=sflag, size = 0x4, scoped, tag = 'scoped memory for tpu_custom_call.1']
    #allocation8 [shape = 'u8[512]{0}', space=vmem, size = 0x400, scoped, tag = 'input window, operand 2, single buffered']
    #allocation9 [shape = 'u8[9216]{0}', space=vmem, size = 0x2400, scoped, tag = 'input window, operand 3, single buffered']
    #allocation10 [shape = 's32[1]{0}', space=sflag, size = 0x4, scoped, tag = 'scoped memory for tpu_custom_call.1']
    #allocation11 [shape = 'u8[512]{0}', space=vmem, size = 0x400, scoped, tag = 'input window, operand 4, single buffered']
    #allocation12 [shape = 'u8[262144]{0}', space=vmem, size = 0x40000, scoped, tag = 'output window, operand 0']
    %10 = vsyncpa [#allocation4], 0
    %s11 = scalar_lea.sflag [#allocation4], 1
    %12 = vsyncpa %s11, 0
    %13 = vsyncpa [#allocation7], 0
    %14 = vsyncpa [#allocation10], 0
    %15 = vsyncpa [#allocation5], 0
    %s16 = scalar_lea.sflag [#allocation5], 1
    %17 = vsyncpa %s16, 0
    loop: start=0, step=1, limit=4
    $region2: #{tpu_custom_call.1} parent=1 // loop_pre_header
      _
    $region3: #{tpu_custom_call.1} parent=1 // loop_header
      %s19 = sphi 0, %s23
      %p20 = scmp.ge.s32.totalorder %s19, 4
      %s29 = sphi 0, %s31
      %s32 = sphi 0, %s29
      %s33 = sphi 0, %s32
      %s49 = sphi 0, %s33
      %s53 = sphi 0, %s53
      %s55 = sphi 0, %s53
      %s56 = sphi 0, %s55
      %s70 = sphi 0, %s56
      %s74 = sphi 0, %s74
      %s76 = sphi 0, %s74
      %s77 = sphi 0, %s76
      %s91 = sphi 0, %s77
      %s95 = sphi 0, %s95
      %s97 = sphi 0, %s95
      %s98 = sphi 0, %s97
      %s112 = sphi 0, %s98
      %s116 = sphi 0, %s116
      %s118 = sphi 0, %s116
      %s119 = sphi 0, %s118
      %s133 = sphi 0, %s119
      %s139 = sphi 0, %s141
      %s142 = sphi 0, %s139
      %s143 = sphi 0, %s142
      %s159 = sphi 0, %s143
    $region4: #{tpu_custom_call.1} parent=1 // loop_header_branch
      %22 = sbr.rel (%p20) target = $region8
    $region5: #{tpu_custom_call.1} parent=1 // loop_body
      %s24 = ssub.s32 %s19, 1
      %s25 = ssub.s32 %s19, 2
      %s26 = sadd.s32 %s19, 1
      %s27 = ssub.s32 %s19, %s26
      %p28 = scmp.eq.s32.totalorder %s27, 0
      %s30 = sadd.s32 %s29, 1
      %s31 = scalar_select %p28, %s29, %s30
      %p34 = pneg %p28
      %p35 = scmp.eq.s32.totalorder %s19, 1
      %p36 = por %p34, %p35
      %p37 = scmp.ne.s32.totalorder %s29, %s32
      %p38 = scmp.eq.s32.totalorder %s19, 0
      %p39 = por %p37, %p38
      %p40 = scmp.ne.s32.totalorder %s29, %s32
      %p41 = scmp.eq.s32.totalorder %s24, 1
      %p42 = por %p40, %p41
      %p43 = scmp.ne.s32.totalorder %s32, %s33
      %p44 = scmp.eq.s32.totalorder %s24, 0
      %p45 = por %p43, %p44
      %p46 = scmp.ne.s32.totalorder %s32, %s33
      %p47 = scmp.eq.s32.totalorder %s25, 1
      %p48 = por %p46, %p47
      %p50 = scmp.ne.s32.totalorder %s33, %s49
      %p51 = scmp.eq.s32.totalorder %s25, 0
      %p52 = por %p50, %p51
      %s54 = sadd.s32 %s53, 1
      %p57 = scmp.eq.s32.totalorder %s19, 1
      %p58 = scmp.ne.s32.totalorder %s53, %s55
      %p59 = scmp.eq.s32.totalorder %s19, 0
      %p60 = por %p58, %p59
      %p61 = scmp.ne.s32.totalorder %s53, %s55
      %p62 = scmp.eq.s32.totalorder %s24, 1
      %p63 = por %p61, %p62
      %p64 = scmp.ne.s32.totalorder %s55, %s56
      %p65 = scmp.eq.s32.totalorder %s24, 0
      %p66 = por %p64, %p65
      %p67 = scmp.ne.s32.totalorder %s55, %s56
      %p68 = scmp.eq.s32.totalorder %s25, 1
      %p69 = por %p67, %p68
      %p71 = scmp.ne.s32.totalorder %s56, %s70
      %p72 = scmp.eq.s32.totalorder %s25, 0
      %p73 = por %p71, %p72
      %s75 = sadd.s32 %s74, 1
      %p78 = scmp.eq.s32.totalorder %s19, 1
      %p79 = scmp.ne.s32.totalorder %s74, %s76
      %p80 = scmp.eq.s32.totalorder %s19, 0
      %p81 = por %p79, %p80
      %p82 = scmp.ne.s32.totalorder %s74, %s76
      %p83 = scmp.eq.s32.totalorder %s24, 1
      %p84 = por %p82, %p83
      %p85 = scmp.ne.s32.totalorder %s76, %s77
      %p86 = scmp.eq.s32.totalorder %s24, 0
      %p87 = por %p85, %p86
      %p88 = scmp.ne.s32.totalorder %s76, %s77
      %p89 = scmp.eq.s32.totalorder %s25, 1
      %p90 = por %p88, %p89
      %p92 = scmp.ne.s32.totalorder %s77, %s91
      %p93 = scmp.eq.s32.totalorder %s25, 0
      %p94 = por %p92, %p93
      %s96 = sadd.s32 %s95, 1
      %p99 = scmp.eq.s32.totalorder %s19, 1
      %p100 = scmp.ne.s32.totalorder %s95, %s97
      %p101 = scmp.eq.s32.totalorder %s19, 0
      %p102 = por %p100, %p101
      %p103 = scmp.ne.s32.totalorder %s95, %s97
      %p104 = scmp.eq.s32.totalorder %s24, 1
      %p105 = por %p103, %p104
      %p106 = scmp.ne.s32.totalorder %s97, %s98
      %p107 = scmp.eq.s32.totalorder %s24, 0
      %p108 = por %p106, %p107
      %p109 = scmp.ne.s32.totalorder %s97, %s98
      %p110 = scmp.eq.s32.totalorder %s25, 1
      %p111 = por %p109, %p110
      %p113 = scmp.ne.s32.totalorder %s98, %s112
      %p114 = scmp.eq.s32.totalorder %s25, 0
      %p115 = por %p113, %p114
      %s117 = sadd.s32 %s116, 1
      %p120 = scmp.eq.s32.totalorder %s19, 1
      %p121 = scmp.ne.s32.totalorder %s116, %s118
      %p122 = scmp.eq.s32.totalorder %s19, 0
      %p123 = por %p121, %p122
      %p124 = scmp.ne.s32.totalorder %s116, %s118
      %p125 = scmp.eq.s32.totalorder %s24, 1
      %p126 = por %p124, %p125
      %p127 = scmp.ne.s32.totalorder %s118, %s119
      %p128 = scmp.eq.s32.totalorder %s24, 0
      %p129 = por %p127, %p128
      %p130 = scmp.ne.s32.totalorder %s118, %s119
      %p131 = scmp.eq.s32.totalorder %s25, 1
      %p132 = por %p130, %p131
      %p134 = scmp.ne.s32.totalorder %s119, %s133
      %p135 = scmp.eq.s32.totalorder %s25, 0
      %p136 = por %p134, %p135
      %s137 = ssub.s32 %s19, %s26
      %p138 = scmp.eq.s32.totalorder %s137, 0
      %s140 = sadd.s32 %s139, 1
      %s141 = scalar_select %p138, %s139, %s140
      %p144 = pneg %p138
      %p145 = scmp.eq.s32.totalorder %s19, 1
      %p146 = por %p144, %p145
      %p147 = scmp.ne.s32.totalorder %s139, %s142
      %p148 = scmp.eq.s32.totalorder %s19, 0
      %p149 = por %p147, %p148
      %p150 = scmp.ne.s32.totalorder %s139, %s142
      %p151 = scmp.eq.s32.totalorder %s24, 1
      %p152 = por %p150, %p151
      %p153 = scmp.ne.s32.totalorder %s142, %s143
      %p154 = scmp.eq.s32.totalorder %s24, 0
      %p155 = por %p153, %p154
      %p156 = scmp.ne.s32.totalorder %s142, %s143
      %p157 = scmp.eq.s32.totalorder %s25, 1
      %p158 = por %p156, %p157
      %p160 = scmp.ne.s32.totalorder %s143, %s159
      %p161 = scmp.eq.s32.totalorder %s25, 0
      %p162 = por %p160, %p161
      %p163 = scmp.le.s32.totalorder 1, %s19
      %p164 = scmp.lt.s32.totalorder %s19, 3
      %p165 = pnand %p163, %p164
      %p166 = pneg %p165
      // Predicated region
      $region9: #{tpu_custom_call.1} parent=5 // pred_check
        _
      $region10: #{tpu_custom_call.1} parent=5 // pred_check_branch
        %168 = sbr.rel (%p165) target = $region12
      $region11: #{tpu_custom_call.1} parent=5 // pred_region
        %s169 = ssub.s32 %s19, 1
        // Predicated region
        $region13: #{tpu_custom_call.1} parent=11 // pred_check
          %p170 = pneg %p66
        $region14: #{tpu_custom_call.1} parent=11 // pred_check_branch
          %172 = sbr.rel (%p170) target = $region16
        $region15: #{tpu_custom_call.1} parent=11 // pred_region
          %s174 = ssub.s32 288, 288
          %175 = vsyncadd [#allocation7], %s174
          %s176 = sshll.u32 [#allocation6], 4
          %s177 = int_to_ptr.vmem [resolvable:$true] %s176
          %182 = dma.hbm_to_vmem [thread:$0]  %s1, 288, %s177, [#allocation7], 32, 32, 2
        $region16: #{tpu_custom_call.1} parent=11 // pred_fallthru
          _
        // Predicated region
        $region17: #{tpu_custom_call.1} parent=11 // pred_check
          %p183 = pneg %p87
        $region18: #{tpu_custom_call.1} parent=11 // pred_check_branch
          %185 = sbr.rel (%p183) target = $region20
        $region19: #{tpu_custom_call.1} parent=11 // pred_region
          %s187 = ssub.s32 16, 16
          %188 = vsyncadd [#allocation7], %s187
          %s190 = sshll.u32 [#allocation8], 4
          %s191 = int_to_ptr.vmem [resolvable:$true] %s190
          %193 = dma.hbm_to_vmem [thread:$0]  %s2, 16, %s191, [#allocation7]
        $region20: #{tpu_custom_call.1} parent=11 // pred_fallthru
          _
        // Predicated region
        $region21: #{tpu_custom_call.1} parent=11 // pred_check
          %p194 = pneg %p108
        $region22: #{tpu_custom_call.1} parent=11 // pred_check_branch
          %196 = sbr.rel (%p194) target = $region24
        $region23: #{tpu_custom_call.1} parent=11 // pred_region
          %s198 = ssub.s32 288, 288
          %199 = vsyncadd [#allocation10], %s198
          %s200 = sshll.u32 [#allocation9], 4
          %s201 = int_to_ptr.vmem [resolvable:$true] %s200
          %206 = dma.hbm_to_vmem [thread:$0]  %s3, 288, %s201, [#allocation10], 32, 32, 2
        $region24: #{tpu_custom_call.1} parent=11 // pred_fallthru
          _
        // Predicated region
        $region25: #{tpu_custom_call.1} parent=11 // pred_check
          %p207 = pneg %p129
        $region26: #{tpu_custom_call.1} parent=11 // pred_check_branch
          %209 = sbr.rel (%p207) target = $region28
        $region27: #{tpu_custom_call.1} parent=11 // pred_region
          %s211 = ssub.s32 16, 16
          %212 = vsyncadd [#allocation10], %s211
          %s214 = sshll.u32 [#allocation11], 4
          %s215 = int_to_ptr.vmem [resolvable:$true] %s214
          %217 = dma.hbm_to_vmem [thread:$0]  %s4, 16, %s215, [#allocation10]
        $region28: #{tpu_custom_call.1} parent=11 // pred_fallthru
          _
      $region12: #{tpu_custom_call.1} parent=5 // pred_fallthru
        _
      %p218 = scmp.lt.s32.totalorder %s19, 2
      // Predicated region
      $region29: #{tpu_custom_call.1} parent=5 // pred_check
        %p219 = pneg %p218
      $region30: #{tpu_custom_call.1} parent=5 // pred_check_branch
        %221 = sbr.rel (%p219) target = $region32
      $region31: #{tpu_custom_call.1} parent=5 // pred_region
        // Predicated region
        $region33: #{tpu_custom_call.1} parent=31 // pred_check
          %p222 = pneg %p39
        $region34: #{tpu_custom_call.1} parent=31 // pred_check_branch
          %224 = sbr.rel (%p222) target = $region36
        $region35: #{tpu_custom_call.1} parent=31 // pred_region
          %s225 = sand.u32 %s29, 1
          %s226 = scalar_lea.sflag [#allocation4], %s225
          %s227 = sand.u32 %s29, 1
          %s228 = smul.addr %s227, 256
          %s229 = scalar_lea.vmem [#allocation3], %s228
          %s231 = ssub.s32 4096, 4096
          %232 = vsyncadd %s226, %s231
          %s233 = smul.addr %s19, 32
          %s234 = smul.addr %s233, 128
          %s235 = scalar_lea.hbm %s0, %s234
          %s236 = sshll.u32 %s229, 4
          %s237 = int_to_ptr.vmem [resolvable:$true] %s236
          %242 = dma.hbm_to_vmem [thread:$0]  %s235, 4096, %s237, %s226, 128, 128, 8
        $region36: #{tpu_custom_call.1} parent=31 // pred_fallthru
          _
      $region32: #{tpu_custom_call.1} parent=5 // pred_fallthru
        _
      %p243 = scmp.le.s32.totalorder 1, %s19
      %p244 = scmp.lt.s32.totalorder %s19, 3
      %p245 = pnand %p243, %p244
      %p246 = pneg %p245
      // Predicated region
      $region37: #{tpu_custom_call.1} parent=5 // pred_check
        _
      $region38: #{tpu_custom_call.1} parent=5 // pred_check_branch
        %248 = sbr.rel (%p245) target = $region40
      $region39: #{tpu_custom_call.1} parent=5 // pred_region
        %s249 = ssub.s32 %s19, 1
        %s250 = sand.u32 %s32, 1
        %s251 = scalar_lea.sflag [#allocation4], %s250
        %s252 = sand.u32 %s32, 1
        %s253 = smul.addr %s252, 256
        %s254 = scalar_lea.vmem [#allocation3], %s253
        // Predicated region
        $region41: #{tpu_custom_call.1} parent=39 // pred_check
          %p255 = pneg %p45
        $region42: #{tpu_custom_call.1} parent=39 // pred_check_branch
          %257 = sbr.rel (%p255) target = $region44
        $region43: #{tpu_custom_call.1} parent=39 // pred_region
          %258 = dma.done %s251, 4096
        $region44: #{tpu_custom_call.1} parent=39 // pred_fallthru
          _
        // Predicated region
        $region45: #{tpu_custom_call.1} parent=39 // pred_check
          %p259 = pneg %p66
        $region46: #{tpu_custom_call.1} parent=39 // pred_check_branch
          %261 = sbr.rel (%p259) target = $region48
        $region47: #{tpu_custom_call.1} parent=39 // pred_region
          %262 = dma.done [#allocation7], 288
        $region48: #{tpu_custom_call.1} parent=39 // pred_fallthru
          _
        // Predicated region
        $region49: #{tpu_custom_call.1} parent=39 // pred_check
          %p263 = pneg %p87
        $region50: #{tpu_custom_call.1} parent=39 // pred_check_branch
          %265 = sbr.rel (%p263) target = $region52
        $region51: #{tpu_custom_call.1} parent=39 // pred_region
          %266 = dma.done [#allocation7], 16
        $region52: #{tpu_custom_call.1} parent=39 // pred_fallthru
          _
        // Predicated region
        $region53: #{tpu_custom_call.1} parent=39 // pred_check
          %p267 = pneg %p108
        $region54: #{tpu_custom_call.1} parent=39 // pred_check_branch
          %269 = sbr.rel (%p267) target = $region56
        $region55: #{tpu_custom_call.1} parent=39 // pred_region
          %270 = dma.done [#allocation10], 288
        $region56: #{tpu_custom_call.1} parent=39 // pred_fallthru
          _
        // Predicated region
        $region57: #{tpu_custom_call.1} parent=39 // pred_check
          %p271 = pneg %p129
        $region58: #{tpu_custom_call.1} parent=39 // pred_check_branch
          %273 = sbr.rel (%p271) target = $region60
        $region59: #{tpu_custom_call.1} parent=39 // pred_region
          %274 = dma.done [#allocation10], 16
        $region60: #{tpu_custom_call.1} parent=39 // pred_fallthru
          _
        %s275 = sand.u32 %s32, 1
        %s276 = scalar_lea.sflag [#allocation4], %s275
        %s277 = sand.u32 %s32, 1
        %s278 = smul.addr %s277, 256
        %s279 = scalar_lea.vmem [#allocation3], %s278
        %p280 = pneg %p45
        %p281 = pneg %p42
        %p282 = pneg %p66
        %p283 = pneg %p63
        %p284 = pneg %p87
        %p285 = pneg %p84
        %p286 = pneg %p108
        %p287 = pneg %p105
        %p288 = pneg %p129
        %p289 = pneg %p126
        %p290 = pneg %p155
        %p291 = pneg %p152
        %s292 = sand.u32 %s142, 1
        %s293 = scalar_lea.sflag [#allocation5], %s292
        %s294 = sand.u32 %s142, 1
        %s295 = smul.addr %s294, 256
        %s296 = scalar_lea.vmem [#allocation12], %s295
        %v298 = vld [vmem:[%s254] sm:$0xff]
        %v299 = vld [vmem:[%s254 + $0x8] sm:$0xff]
        %v300 = vld [vmem:[%s254 + $0x10] sm:$0xff]
        %v301 = vld [vmem:[%s254 + $0x18] sm:$0xff]
        %v302 = vld [vmem:[%s254 + $0x20] sm:$0xff]
        %v303 = vld [vmem:[%s254 + $0x28] sm:$0xff]
        %v304 = vld [vmem:[%s254 + $0x30] sm:$0xff]
        %v305 = vld [vmem:[%s254 + $0x38] sm:$0xff]
        %v306 = vld [vmem:[%s254 + $0x40] sm:$0xff]
        %v307 = vld [vmem:[%s254 + $0x48] sm:$0xff]
        %v308 = vld [vmem:[%s254 + $0x50] sm:$0xff]
        %v309 = vld [vmem:[%s254 + $0x58] sm:$0xff]
        %v310 = vld [vmem:[%s254 + $0x60] sm:$0xff]
        %v311 = vld [vmem:[%s254 + $0x68] sm:$0xff]
        %v312 = vld [vmem:[%s254 + $0x70] sm:$0xff]
        %v313 = vld [vmem:[%s254 + $0x78] sm:$0xff]
        %v314 = vld [vmem:[%s254 + $0x80] sm:$0xff]
        %v315 = vld [vmem:[%s254 + $0x88] sm:$0xff]
        %v316 = vld [vmem:[%s254 + $0x90] sm:$0xff]
        %v317 = vld [vmem:[%s254 + $0x98] sm:$0xff]
        %v318 = vld [vmem:[%s254 + $0xa0] sm:$0xff]
        %v319 = vld [vmem:[%s254 + $0xa8] sm:$0xff]
        %v320 = vld [vmem:[%s254 + $0xb0] sm:$0xff]
        %v321 = vld [vmem:[%s254 + $0xb8] sm:$0xff]
        %v322 = vld [vmem:[%s254 + $0xc0] sm:$0xff]
        %v323 = vld [vmem:[%s254 + $0xc8] sm:$0xff]
        %v324 = vld [vmem:[%s254 + $0xd0] sm:$0xff]
        %v325 = vld [vmem:[%s254 + $0xd8] sm:$0xff]
        %v326 = vld [vmem:[%s254 + $0xe0] sm:$0xff]
        %v327 = vld [vmem:[%s254 + $0xe8] sm:$0xff]
        %v328 = vld [vmem:[%s254 + $0xf0] sm:$0xff]
        %v329 = vld [vmem:[%s254 + $0xf8] sm:$0xff]
        %v330 = vpack.c.bf16 %v299, %v298
        %v331 = vpack.c.bf16 %v301, %v300
        %v332 = vpack.c.bf16 %v303, %v302
        %v333 = vpack.c.bf16 %v305, %v304
        %v334 = vpack.c.bf16 %v307, %v306
        %v335 = vpack.c.bf16 %v309, %v308
        %v336 = vpack.c.bf16 %v311, %v310
        %v337 = vpack.c.bf16 %v313, %v312
        %v338 = vpack.c.bf16 %v315, %v314
        %v339 = vpack.c.bf16 %v317, %v316
        %v340 = vpack.c.bf16 %v319, %v318
        %v341 = vpack.c.bf16 %v321, %v320
        %v342 = vpack.c.bf16 %v323, %v322
        %v343 = vpack.c.bf16 %v325, %v324
        %v344 = vpack.c.bf16 %v327, %v326
        %v345 = vpack.c.bf16 %v329, %v328
        %v362 = vunpack.c.l.b16 %v330
        %v363 = vunpack.c.h.b16 %v330
        %v364 = vunpack.c.l.b16 %v331
        %v365 = vunpack.c.h.b16 %v331
        %v366 = vunpack.c.l.b16 %v332
        %v367 = vunpack.c.h.b16 %v332
        %v368 = vunpack.c.l.b16 %v333
        %v369 = vunpack.c.h.b16 %v333
        %v370 = vunpack.c.l.b16 %v334
        %v371 = vunpack.c.h.b16 %v334
        %v372 = vunpack.c.l.b16 %v335
        %v373 = vunpack.c.h.b16 %v335
        %v374 = vunpack.c.l.b16 %v336
        %v375 = vunpack.c.h.b16 %v336
        %v376 = vunpack.c.l.b16 %v337
        %v377 = vunpack.c.h.b16 %v337
        %v378 = vunpack.c.l.b16 %v338
        %v379 = vunpack.c.h.b16 %v338
        %v380 = vunpack.c.l.b16 %v339
        %v381 = vunpack.c.h.b16 %v339
        %v382 = vunpack.c.l.b16 %v340
        %v383 = vunpack.c.h.b16 %v340
        %v384 = vunpack.c.l.b16 %v341
        %v385 = vunpack.c.h.b16 %v341
        %v386 = vunpack.c.l.b16 %v342
        %v387 = vunpack.c.h.b16 %v342
        %v388 = vunpack.c.l.b16 %v343
        %v389 = vunpack.c.h.b16 %v343
        %v390 = vunpack.c.l.b16 %v344
        %v391 = vunpack.c.h.b16 %v344
        %v392 = vunpack.c.l.b16 %v345
        %v393 = vunpack.c.h.b16 %v345
        %v394 = vpack.c.b16 %v362, %v362
        %v395 = vpack.c.b16 %v363, %v363
        %v396 = vpack.c.b16 %v364, %v364
        %v397 = vpack.c.b16 %v365, %v365
        %v398 = vpack.c.b16 %v366, %v366
        %v399 = vpack.c.b16 %v367, %v367
        %v400 = vpack.c.b16 %v368, %v368
        %v401 = vpack.c.b16 %v369, %v369
        %v402 = vpack.c.b16 %v370, %v370
        %v403 = vpack.c.b16 %v371, %v371
        %v404 = vpack.c.b16 %v372, %v372
        %v405 = vpack.c.b16 %v373, %v373
        %v406 = vpack.c.b16 %v374, %v374
        %v407 = vpack.c.b16 %v375, %v375
        %v408 = vpack.c.b16 %v376, %v376
        %v409 = vpack.c.b16 %v377, %v377
        %v410 = vpack.c.b16 %v378, %v378
        %v411 = vpack.c.b16 %v379, %v379
        %v412 = vpack.c.b16 %v380, %v380
        %v413 = vpack.c.b16 %v381, %v381
        %v414 = vpack.c.b16 %v382, %v382
        %v415 = vpack.c.b16 %v383, %v383
        %v416 = vpack.c.b16 %v384, %v384
        %v417 = vpack.c.b16 %v385, %v385
        %v418 = vpack.c.b16 %v386, %v386
        %v419 = vpack.c.b16 %v387, %v387
        %v420 = vpack.c.b16 %v388, %v388
        %v421 = vpack.c.b16 %v389, %v389
        %v422 = vpack.c.b16 %v390, %v390
        %v423 = vpack.c.b16 %v391, %v391
        %v424 = vpack.c.b16 %v392, %v392
        %v425 = vpack.c.b16 %v393, %v393
        %vm426 = vsmask.f32 256
        %vm427 = vsmask.f32 4368
        %vm428 = vmor %vm426, %vm427
        %v430 = vshrl.u32 %v394, 16
        %v432 = vrot.slane %v430, 7
        %v433 = vshll.u32 %v394, 16
        %v435 = vor.u32 %v432, %v433
        %v436 = vrot.slane %v432, 4
        %v438 = vshrl.u32 %v395, 16
        %v440 = vrot.slane %v438, 7
        %v441 = vshll.u32 %v395, 16
        %v443 = vor.u32 %v440, %v441
        %v444 = vsel %vm428, %v436, %v443
        %v445 = vrot.slane %v440, 4
        %v447 = vshrl.u32 %v396, 16
        %v449 = vrot.slane %v447, 7
        %v450 = vshll.u32 %v396, 16
        %v452 = vor.u32 %v449, %v450
        %v453 = vrot.slane %v449, 4
        %v455 = vshrl.u32 %v397, 16
        %v457 = vrot.slane %v455, 7
        %v458 = vshll.u32 %v397, 16
        %v460 = vor.u32 %v457, %v458
        %v461 = vsel %vm428, %v453, %v460
        %v462 = vrot.slane %v457, 4
        %v464 = vshrl.u32 %v398, 16
        %v466 = vrot.slane %v464, 7
        %v467 = vshll.u32 %v398, 16
        %v469 = vor.u32 %v466, %v467
        %v470 = vrot.slane %v466, 4
        %v472 = vshrl.u32 %v399, 16
        %v474 = vrot.slane %v472, 7
        %v475 = vshll.u32 %v399, 16
        %v477 = vor.u32 %v474, %v475
        %v478 = vsel %vm428, %v470, %v477
        %v479 = vrot.slane %v474, 4
        %v481 = vshrl.u32 %v400, 16
        %v483 = vrot.slane %v481, 7
        %v484 = vshll.u32 %v400, 16
        %v486 = vor.u32 %v483, %v484
        %v487 = vrot.slane %v483, 4
        %v489 = vshrl.u32 %v401, 16
        %v491 = vrot.slane %v489, 7
        %v492 = vshll.u32 %v401, 16
        %v494 = vor.u32 %v491, %v492
        %v495 = vsel %vm428, %v487, %v494
        %v496 = vrot.slane %v491, 4
        %v498 = vshrl.u32 %v402, 16
        %v500 = vrot.slane %v498, 7
        %v501 = vshll.u32 %v402, 16
        %v503 = vor.u32 %v500, %v501
        %v504 = vrot.slane %v500, 4
        %v506 = vshrl.u32 %v403, 16
        %v508 = vrot.slane %v506, 7
        %v509 = vshll.u32 %v403, 16
        %v511 = vor.u32 %v508, %v509
        %v512 = vsel %vm428, %v504, %v511
        %v513 = vrot.slane %v508, 4
        %v515 = vshrl.u32 %v404, 16
        %v517 = vrot.slane %v515, 7
        %v518 = vshll.u32 %v404, 16
        %v520 = vor.u32 %v517, %v518
        %v521 = vrot.slane %v517, 4
        %v523 = vshrl.u32 %v405, 16
        %v525 = vrot.slane %v523, 7
        %v526 = vshll.u32 %v405, 16
        %v528 = vor.u32 %v525, %v526
        %v529 = vsel %vm428, %v521, %v528
        %v530 = vrot.slane %v525, 4
        %v532 = vshrl.u32 %v406, 16
        %v534 = vrot.slane %v532, 7
        %v535 = vshll.u32 %v406, 16
        %v537 = vor.u32 %v534, %v535
        %v538 = vrot.slane %v534, 4
        %v540 = vshrl.u32 %v407, 16
        %v542 = vrot.slane %v540, 7
        %v543 = vshll.u32 %v407, 16
        %v545 = vor.u32 %v542, %v543
        %v546 = vsel %vm428, %v538, %v545
        %v547 = vrot.slane %v542, 4
        %v549 = vshrl.u32 %v408, 16
        %v551 = vrot.slane %v549, 7
        %v552 = vshll.u32 %v408, 16
        %v554 = vor.u32 %v551, %v552
        %v555 = vrot.slane %v551, 4
        %v557 = vshrl.u32 %v409, 16
        %v559 = vrot.slane %v557, 7
        %v560 = vshll.u32 %v409, 16
        %v562 = vor.u32 %v559, %v560
        %v563 = vsel %vm428, %v555, %v562
        %v564 = vrot.slane %v559, 4
        %v566 = vshrl.u32 %v410, 16
        %v568 = vrot.slane %v566, 7
        %v569 = vshll.u32 %v410, 16
        %v571 = vor.u32 %v568, %v569
        %v572 = vrot.slane %v568, 4
        %v574 = vshrl.u32 %v411, 16
        %v576 = vrot.slane %v574, 7
        %v577 = vshll.u32 %v411, 16
        %v579 = vor.u32 %v576, %v577
        %v580 = vsel %vm428, %v572, %v579
        %v581 = vrot.slane %v576, 4
        %v583 = vshrl.u32 %v412, 16
        %v585 = vrot.slane %v583, 7
        %v586 = vshll.u32 %v412, 16
        %v588 = vor.u32 %v585, %v586
        %v589 = vrot.slane %v585, 4
        %v591 = vshrl.u32 %v413, 16
        %v593 = vrot.slane %v591, 7
        %v594 = vshll.u32 %v413, 16
        %v596 = vor.u32 %v593, %v594
        %v597 = vsel %vm428, %v589, %v596
        %v598 = vrot.slane %v593, 4
        %v600 = vshrl.u32 %v414, 16
        %v602 = vrot.slane %v600, 7
        %v603 = vshll.u32 %v414, 16
        %v605 = vor.u32 %v602, %v603
        %v606 = vrot.slane %v602, 4
        %v608 = vshrl.u32 %v415, 16
        %v610 = vrot.slane %v608, 7
        %v611 = vshll.u32 %v415, 16
        %v613 = vor.u32 %v610, %v611
        %v614 = vsel %vm428, %v606, %v613
        %v615 = vrot.slane %v610, 4
        %v617 = vshrl.u32 %v416, 16
        %v619 = vrot.slane %v617, 7
        %v620 = vshll.u32 %v416, 16
        %v622 = vor.u32 %v619, %v620
        %v623 = vrot.slane %v619, 4
        %v625 = vshrl.u32 %v417, 16
        %v627 = vrot.slane %v625, 7
        %v628 = vshll.u32 %v417, 16
        %v630 = vor.u32 %v627, %v628
        %v631 = vsel %vm428, %v623, %v630
        %v632 = vrot.slane %v627, 4
        %v634 = vshrl.u32 %v418, 16
        %v636 = vrot.slane %v634, 7
        %v637 = vshll.u32 %v418, 16
        %v639 = vor.u32 %v636, %v637
        %v640 = vrot.slane %v636, 4
        %v642 = vshrl.u32 %v419, 16
        %v644 = vrot.slane %v642, 7
        %v645 = vshll.u32 %v419, 16
        %v647 = vor.u32 %v644, %v645
        %v648 = vsel %vm428, %v640, %v647
        %v649 = vrot.slane %v644, 4
        %v651 = vshrl.u32 %v420, 16
        %v653 = vrot.slane %v651, 7
        %v654 = vshll.u32 %v420, 16
        %v656 = vor.u32 %v653, %v654
        %v657 = vrot.slane %v653, 4
        %v659 = vshrl.u32 %v421, 16
        %v661 = vrot.slane %v659, 7
        %v662 = vshll.u32 %v421, 16
        %v664 = vor.u32 %v661, %v662
        %v665 = vsel %vm428, %v657, %v664
        %v666 = vrot.slane %v661, 4
        %v668 = vshrl.u32 %v422, 16
        %v670 = vrot.slane %v668, 7
        %v671 = vshll.u32 %v422, 16
        %v673 = vor.u32 %v670, %v671
        %v674 = vrot.slane %v670, 4
        %v676 = vshrl.u32 %v423, 16
        %v678 = vrot.slane %v676, 7
        %v679 = vshll.u32 %v423, 16
        %v681 = vor.u32 %v678, %v679
        %v682 = vsel %vm428, %v674, %v681
        %v683 = vrot.slane %v678, 4
        %v685 = vshrl.u32 %v424, 16
        %v687 = vrot.slane %v685, 7
        %v688 = vshll.u32 %v424, 16
        %v690 = vor.u32 %v687, %v688
        %v691 = vrot.slane %v687, 4
        %v693 = vshrl.u32 %v425, 16
        %v695 = vrot.slane %v693, 7
        %v696 = vshll.u32 %v425, 16
        %v698 = vor.u32 %v695, %v696
        %v699 = vsel %vm428, %v691, %v698
        %v700 = vrot.slane %v695, 4
        %s749 = scalar_lea.vmem [#allocation2], 12
        %vm750 = vcmask 27648
        %vm751 = vsmask.f32 7938
        %vm752 = vmand %vm750, %vm751
        %v753 = vld [vmem:[%s749] sm:$0xf]
        %v754 = vsel %vm752, %v435, %v753
        %755 = vst [vmem:[%s749] sm:$0xf] %v754
        %vm756 = vcmask 27648
        %757 = vst.msk [vmem:[%s749 + $0x4] sm:$0xf] %vm756, %v444
        %vm758 = vcmask 24576
        %vm759 = vmand %vm758, %vm426
        %v760 = vld [vmem:[%s749 + $0x8] sm:$0x1]
        %v761 = vsel %vm759, %v445, %v760
        %762 = vst [vmem:[%s749 + $0x8] sm:$0x1] %v761
        %v763 = vld [vmem:[%s749 + $0xc] sm:$0xf]
        %v764 = vsel %vm752, %v452, %v763
        %765 = vst [vmem:[%s749 + $0xc] sm:$0xf] %v764
        %766 = vst.msk [vmem:[%s749 + $0x10] sm:$0xf] %vm756, %v461
        %v767 = vld [vmem:[%s749 + $0x14] sm:$0x1]
        %v768 = vsel %vm759, %v462, %v767
        %769 = vst [vmem:[%s749 + $0x14] sm:$0x1] %v768
        %v770 = vld [vmem:[%s749 + $0x18] sm:$0xf]
        %v771 = vsel %vm752, %v469, %v770
        %772 = vst [vmem:[%s749 + $0x18] sm:$0xf] %v771
        %773 = vst.msk [vmem:[%s749 + $0x1c] sm:$0xf] %vm756, %v478
        %v774 = vld [vmem:[%s749 + $0x20] sm:$0x1]
        %v775 = vsel %vm759, %v479, %v774
        %776 = vst [vmem:[%s749 + $0x20] sm:$0x1] %v775
        %v777 = vld [vmem:[%s749 + $0x24] sm:$0xf]
        %v778 = vsel %vm752, %v486, %v777
        %779 = vst [vmem:[%s749 + $0x24] sm:$0xf] %v778
        %780 = vst.msk [vmem:[%s749 + $0x28] sm:$0xf] %vm756, %v495
        %v781 = vld [vmem:[%s749 + $0x2c] sm:$0x1]
        %v782 = vsel %vm759, %v496, %v781
        %783 = vst [vmem:[%s749 + $0x2c] sm:$0x1] %v782
        %v784 = vld [vmem:[%s749 + $0x30] sm:$0xf]
        %v785 = vsel %vm752, %v503, %v784
        %786 = vst [vmem:[%s749 + $0x30] sm:$0xf] %v785
        %787 = vst.msk [vmem:[%s749 + $0x34] sm:$0xf] %vm756, %v512
        %v788 = vld [vmem:[%s749 + $0x38] sm:$0x1]
        %v789 = vsel %vm759, %v513, %v788
        %790 = vst [vmem:[%s749 + $0x38] sm:$0x1] %v789
        %v791 = vld [vmem:[%s749 + $0x3c] sm:$0xf]
        %v792 = vsel %vm752, %v520, %v791
        %793 = vst [vmem:[%s749 + $0x3c] sm:$0xf] %v792
        %794 = vst.msk [vmem:[%s749 + $0x40] sm:$0xf] %vm756, %v529
        %v795 = vld [vmem:[%s749 + $0x44] sm:$0x1]
        %v796 = vsel %vm759, %v530, %v795
        %797 = vst [vmem:[%s749 + $0x44] sm:$0x1] %v796
        %v798 = vld [vmem:[%s749 + $0x48] sm:$0xf]
        %v799 = vsel %vm752, %v537, %v798
        %800 = vst [vmem:[%s749 + $0x48] sm:$0xf] %v799
        %801 = vst.msk [vmem:[%s749 + $0x4c] sm:$0xf] %vm756, %v546
        %v802 = vld [vmem:[%s749 + $0x50] sm:$0x1]
        %v803 = vsel %vm759, %v547, %v802
        %804 = vst [vmem:[%s749 + $0x50] sm:$0x1] %v803
        %v805 = vld [vmem:[%s749 + $0x54] sm:$0xf]
        %v806 = vsel %vm752, %v554, %v805
        %807 = vst [vmem:[%s749 + $0x54] sm:$0xf] %v806
        %808 = vst.msk [vmem:[%s749 + $0x58] sm:$0xf] %vm756, %v563
        %v809 = vld [vmem:[%s749 + $0x5c] sm:$0x1]
        %v810 = vsel %vm759, %v564, %v809
        %811 = vst [vmem:[%s749 + $0x5c] sm:$0x1] %v810
        %v812 = vld [vmem:[%s749 + $0x60] sm:$0xf]
        %v813 = vsel %vm752, %v571, %v812
        %814 = vst [vmem:[%s749 + $0x60] sm:$0xf] %v813
        %815 = vst.msk [vmem:[%s749 + $0x64] sm:$0xf] %vm756, %v580
        %v816 = vld [vmem:[%s749 + $0x68] sm:$0x1]
        %v817 = vsel %vm759, %v581, %v816
        %818 = vst [vmem:[%s749 + $0x68] sm:$0x1] %v817
        %v819 = vld [vmem:[%s749 + $0x6c] sm:$0xf]
        %v820 = vsel %vm752, %v588, %v819
        %821 = vst [vmem:[%s749 + $0x6c] sm:$0xf] %v820
        %822 = vst.msk [vmem:[%s749 + $0x70] sm:$0xf] %vm756, %v597
        %v823 = vld [vmem:[%s749 + $0x74] sm:$0x1]
        %v824 = vsel %vm759, %v598, %v823
        %825 = vst [vmem:[%s749 + $0x74] sm:$0x1] %v824
        %v826 = vld [vmem:[%s749 + $0x78] sm:$0xf]
        %v827 = vsel %vm752, %v605, %v826
        %828 = vst [vmem:[%s749 + $0x78] sm:$0xf] %v827
        %829 = vst.msk [vmem:[%s749 + $0x7c] sm:$0xf] %vm756, %v614
        %v830 = vld [vmem:[%s749 + $0x80] sm:$0x1]
        %v831 = vsel %vm759, %v615, %v830
        %832 = vst [vmem:[%s749 + $0x80] sm:$0x1] %v831
        %v833 = vld [vmem:[%s749 + $0x84] sm:$0xf]
        %v834 = vsel %vm752, %v622, %v833
        %835 = vst [vmem:[%s749 + $0x84] sm:$0xf] %v834
        %836 = vst.msk [vmem:[%s749 + $0x88] sm:$0xf] %vm756, %v631
        %v837 = vld [vmem:[%s749 + $0x8c] sm:$0x1]
        %v838 = vsel %vm759, %v632, %v837
        %839 = vst [vmem:[%s749 + $0x8c] sm:$0x1] %v838
        %v840 = vld [vmem:[%s749 + $0x90] sm:$0xf]
        %v841 = vsel %vm752, %v639, %v840
        %842 = vst [vmem:[%s749 + $0x90] sm:$0xf] %v841
        %843 = vst.msk [vmem:[%s749 + $0x94] sm:$0xf] %vm756, %v648
        %v844 = vld [vmem:[%s749 + $0x98] sm:$0x1]
        %v845 = vsel %vm759, %v649, %v844
        %846 = vst [vmem:[%s749 + $0x98] sm:$0x1] %v845
        %v847 = vld [vmem:[%s749 + $0x9c] sm:$0xf]
        %v848 = vsel %vm752, %v656, %v847
        %849 = vst [vmem:[%s749 + $0x9c] sm:$0xf] %v848
        %850 = vst.msk [vmem:[%s749 + $0xa0] sm:$0xf] %vm756, %v665
        %v851 = vld [vmem:[%s749 + $0xa4] sm:$0x1]
        %v852 = vsel %vm759, %v666, %v851
        %853 = vst [vmem:[%s749 + $0xa4] sm:$0x1] %v852
        %v854 = vld [vmem:[%s749 + $0xa8] sm:$0xf]
        %v855 = vsel %vm752, %v673, %v854
        %856 = vst [vmem:[%s749 + $0xa8] sm:$0xf] %v855
        %857 = vst.msk [vmem:[%s749 + $0xac] sm:$0xf] %vm756, %v682
        %v858 = vld [vmem:[%s749 + $0xb0] sm:$0x1]
        %v859 = vsel %vm759, %v683, %v858
        %860 = vst [vmem:[%s749 + $0xb0] sm:$0x1] %v859
        %v861 = vld [vmem:[%s749 + $0xb4] sm:$0xf]
        %v862 = vsel %vm752, %v690, %v861
        %863 = vst [vmem:[%s749 + $0xb4] sm:$0xf] %v862
        %864 = vst.msk [vmem:[%s749 + $0xb8] sm:$0xf] %vm756, %v699
        %v865 = vld [vmem:[%s749 + $0xbc] sm:$0x1]
        %v866 = vsel %vm759, %v700, %v865
        %867 = vst [vmem:[%s749 + $0xbc] sm:$0x1] %v866
        %v868 = vrot.slane %v430, 4
        %v869 = vrot.slane %v868, 4
        %v870 = vrot.slane %v447, 4
        %v871 = vrot.slane %v870, 4
        %v872 = vrot.slane %v464, 4
        %v873 = vrot.slane %v872, 4
        %v874 = vrot.slane %v481, 4
        %v875 = vrot.slane %v874, 4
        %v876 = vrot.slane %v498, 4
        %v877 = vrot.slane %v876, 4
        %v878 = vrot.slane %v515, 4
        %v879 = vrot.slane %v878, 4
        %v880 = vrot.slane %v532, 4
        %v881 = vrot.slane %v880, 4
        %v882 = vrot.slane %v549, 4
        %v883 = vrot.slane %v882, 4
        %v884 = vrot.slane %v566, 4
        %v885 = vrot.slane %v884, 4
        %v886 = vrot.slane %v583, 4
        %v887 = vrot.slane %v886, 4
        %v888 = vrot.slane %v600, 4
        %v889 = vrot.slane %v888, 4
        %v890 = vrot.slane %v617, 4
        %v891 = vrot.slane %v890, 4
        %v892 = vrot.slane %v634, 4
        %v893 = vrot.slane %v892, 4
        %v894 = vrot.slane %v651, 4
        %v895 = vrot.slane %v894, 4
        %v896 = vrot.slane %v668, 4
        %v897 = vrot.slane %v896, 4
        %v898 = vrot.slane %v685, 4
        %v899 = vrot.slane %v898, 4
        %v916 = vld [vmem:[%s749] sm:$0x1]
        %v917 = vsel %vm759, %v869, %v916
        %918 = vst [vmem:[%s749] sm:$0x1] %v917
        %v919 = vld [vmem:[%s749 + $0xc] sm:$0x1]
        %v920 = vsel %vm759, %v871, %v919
        %921 = vst [vmem:[%s749 + $0xc] sm:$0x1] %v920
        %v922 = vld [vmem:[%s749 + $0x18] sm:$0x1]
        %v923 = vsel %vm759, %v873, %v922
        %924 = vst [vmem:[%s749 + $0x18] sm:$0x1] %v923
        %v925 = vld [vmem:[%s749 + $0x24] sm:$0x1]
        %v926 = vsel %vm759, %v875, %v925
        %927 = vst [vmem:[%s749 + $0x24] sm:$0x1] %v926
        %v928 = vld [vmem:[%s749 + $0x30] sm:$0x1]
        %v929 = vsel %vm759, %v877, %v928
        %930 = vst [vmem:[%s749 + $0x30] sm:$0x1] %v929
        %v931 = vld [vmem:[%s749 + $0x3c] sm:$0x1]
        %v932 = vsel %vm759, %v879, %v931
        %933 = vst [vmem:[%s749 + $0x3c] sm:$0x1] %v932
        %v934 = vld [vmem:[%s749 + $0x48] sm:$0x1]
        %v935 = vsel %vm759, %v881, %v934
        %936 = vst [vmem:[%s749 + $0x48] sm:$0x1] %v935
        %v937 = vld [vmem:[%s749 + $0x54] sm:$0x1]
        %v938 = vsel %vm759, %v883, %v937
        %939 = vst [vmem:[%s749 + $0x54] sm:$0x1] %v938
        %v940 = vld [vmem:[%s749 + $0x60] sm:$0x1]
        %v941 = vsel %vm759, %v885, %v940
        %942 = vst [vmem:[%s749 + $0x60] sm:$0x1] %v941
        %v943 = vld [vmem:[%s749 + $0x6c] sm:$0x1]
        %v944 = vsel %vm759, %v887, %v943
        %945 = vst [vmem:[%s749 + $0x6c] sm:$0x1] %v944
        %v946 = vld [vmem:[%s749 + $0x78] sm:$0x1]
        %v947 = vsel %vm759, %v889, %v946
        %948 = vst [vmem:[%s749 + $0x78] sm:$0x1] %v947
        %v949 = vld [vmem:[%s749 + $0x84] sm:$0x1]
        %v950 = vsel %vm759, %v891, %v949
        %951 = vst [vmem:[%s749 + $0x84] sm:$0x1] %v950
        %v952 = vld [vmem:[%s749 + $0x90] sm:$0x1]
        %v953 = vsel %vm759, %v893, %v952
        %954 = vst [vmem:[%s749 + $0x90] sm:$0x1] %v953
        %v955 = vld [vmem:[%s749 + $0x9c] sm:$0x1]
        %v956 = vsel %vm759, %v895, %v955
        %957 = vst [vmem:[%s749 + $0x9c] sm:$0x1] %v956
        %v958 = vld [vmem:[%s749 + $0xa8] sm:$0x1]
        %v959 = vsel %vm759, %v897, %v958
        %960 = vst [vmem:[%s749 + $0xa8] sm:$0x1] %v959
        %v961 = vld [vmem:[%s749 + $0xb4] sm:$0x1]
        %v962 = vsel %vm759, %v899, %v961
        %963 = vst [vmem:[%s749 + $0xb4] sm:$0x1] %v962
        %v964 = vrot.slane %v441, 7
        %v965 = vrot.slane %v964, 4
        %v966 = vrot.slane %v458, 7
        %v967 = vrot.slane %v966, 4
        %v968 = vrot.slane %v475, 7
        %v969 = vrot.slane %v968, 4
        %v970 = vrot.slane %v492, 7
        %v971 = vrot.slane %v970, 4
        %v972 = vrot.slane %v509, 7
        %v973 = vrot.slane %v972, 4
        %v974 = vrot.slane %v526, 7
        %v975 = vrot.slane %v974, 4
        %v976 = vrot.slane %v543, 7
        %v977 = vrot.slane %v976, 4
        %v978 = vrot.slane %v560, 7
        %v979 = vrot.slane %v978, 4
        %v980 = vrot.slane %v577, 7
        %v981 = vrot.slane %v980, 4
        %v982 = vrot.slane %v594, 7
        %v983 = vrot.slane %v982, 4
        %v984 = vrot.slane %v611, 7
        %v985 = vrot.slane %v984, 4
        %v986 = vrot.slane %v628, 7
        %v987 = vrot.slane %v986, 4
        %v988 = vrot.slane %v645, 7
        %v989 = vrot.slane %v988, 4
        %v990 = vrot.slane %v662, 7
        %v991 = vrot.slane %v990, 4
        %v992 = vrot.slane %v679, 7
        %v993 = vrot.slane %v992, 4
        %v994 = vrot.slane %v696, 7
        %v995 = vrot.slane %v994, 4
        %vm1012 = vmand %vm758, %vm751
        %v1013 = vld [vmem:[%s749 + $0x8] sm:$0x1]
        %v1014 = vsel %vm1012, %v965, %v1013
        %1015 = vst [vmem:[%s749 + $0x8] sm:$0x1] %v1014
        %v1016 = vld [vmem:[%s749 + $0x14] sm:$0x1]
        %v1017 = vsel %vm1012, %v967, %v1016
        %1018 = vst [vmem:[%s749 + $0x14] sm:$0x1] %v1017
        %v1019 = vld [vmem:[%s749 + $0x20] sm:$0x1]
        %v1020 = vsel %vm1012, %v969, %v1019
        %1021 = vst [vmem:[%s749 + $0x20] sm:$0x1] %v1020
        %v1022 = vld [vmem:[%s749 + $0x2c] sm:$0x1]
        %v1023 = vsel %vm1012, %v971, %v1022
        %1024 = vst [vmem:[%s749 + $0x2c] sm:$0x1] %v1023
        %v1025 = vld [vmem:[%s749 + $0x38] sm:$0x1]
        %v1026 = vsel %vm1012, %v973, %v1025
        %1027 = vst [vmem:[%s749 + $0x38] sm:$0x1] %v1026
        %v1028 = vld [vmem:[%s749 + $0x44] sm:$0x1]
        %v1029 = vsel %vm1012, %v975, %v1028
        %1030 = vst [vmem:[%s749 + $0x44] sm:$0x1] %v1029
        %v1031 = vld [vmem:[%s749 + $0x50] sm:$0x1]
        %v1032 = vsel %vm1012, %v977, %v1031
        %1033 = vst [vmem:[%s749 + $0x50] sm:$0x1] %v1032
        %v1034 = vld [vmem:[%s749 + $0x5c] sm:$0x1]
        %v1035 = vsel %vm1012, %v979, %v1034
        %1036 = vst [vmem:[%s749 + $0x5c] sm:$0x1] %v1035
        %v1037 = vld [vmem:[%s749 + $0x68] sm:$0x1]
        %v1038 = vsel %vm1012, %v981, %v1037
        %1039 = vst [vmem:[%s749 + $0x68] sm:$0x1] %v1038
        %v1040 = vld [vmem:[%s749 + $0x74] sm:$0x1]
        %v1041 = vsel %vm1012, %v983, %v1040
        %1042 = vst [vmem:[%s749 + $0x74] sm:$0x1] %v1041
        %v1043 = vld [vmem:[%s749 + $0x80] sm:$0x1]
        %v1044 = vsel %vm1012, %v985, %v1043
        %1045 = vst [vmem:[%s749 + $0x80] sm:$0x1] %v1044
        %v1046 = vld [vmem:[%s749 + $0x8c] sm:$0x1]
        %v1047 = vsel %vm1012, %v987, %v1046
        %1048 = vst [vmem:[%s749 + $0x8c] sm:$0x1] %v1047
        %v1049 = vld [vmem:[%s749 + $0x98] sm:$0x1]
        %v1050 = vsel %vm1012, %v989, %v1049
        %1051 = vst [vmem:[%s749 + $0x98] sm:$0x1] %v1050
        %v1052 = vld [vmem:[%s749 + $0xa4] sm:$0x1]
        %v1053 = vsel %vm1012, %v991, %v1052
        %1054 = vst [vmem:[%s749 + $0xa4] sm:$0x1] %v1053
        %v1055 = vld [vmem:[%s749 + $0xb0] sm:$0x1]
        %v1056 = vsel %vm1012, %v993, %v1055
        %1057 = vst [vmem:[%s749 + $0xb0] sm:$0x1] %v1056
        %v1058 = vld [vmem:[%s749 + $0xbc] sm:$0x1]
        %v1059 = vsel %vm1012, %v995, %v1058
        %1060 = vst [vmem:[%s749 + $0xbc] sm:$0x1] %v1059
        %v1061 = vld [vmem:[#allocation2] sm:$0xf]
        %v1062 = vsel %vm752, %v452, %v1061
        %1063 = vst [vmem:[#allocation2] sm:$0xf] %v1062
        %1064 = vst.msk [vmem:[#allocation2 + $0x4] sm:$0xf] %vm756, %v461
        %v1065 = vld [vmem:[#allocation2 + $0x8] sm:$0x1]
        %v1066 = vsel %vm759, %v462, %v1065
        %1067 = vst [vmem:[#allocation2 + $0x8] sm:$0x1] %v1066
        %s1068 = scalar_lea.vmem [#allocation2], 204
        %v1069 = vld [vmem:[%s1068] sm:$0xf]
        %v1070 = vsel %vm752, %v673, %v1069
        %1071 = vst [vmem:[%s1068] sm:$0xf] %v1070
        %1072 = vst.msk [vmem:[%s1068 + $0x4] sm:$0xf] %vm756, %v682
        %v1073 = vld [vmem:[%s1068 + $0x8] sm:$0x1]
        %v1074 = vsel %vm759, %v683, %v1073
        %1075 = vst [vmem:[%s1068 + $0x8] sm:$0x1] %v1074
        %v1076 = vld [vmem:[#allocation2] sm:$0x1]
        %v1077 = vsel %vm759, %v871, %v1076
        %1078 = vst [vmem:[#allocation2] sm:$0x1] %v1077
        %v1079 = vld [vmem:[#allocation2 + $0x8] sm:$0x1]
        %v1080 = vsel %vm1012, %v967, %v1079
        %1081 = vst [vmem:[#allocation2 + $0x8] sm:$0x1] %v1080
        %v1082 = vld [vmem:[%s1068] sm:$0x1]
        %v1083 = vsel %vm759, %v897, %v1082
        %1084 = vst [vmem:[%s1068] sm:$0x1] %v1083
        %v1085 = vld [vmem:[%s1068 + $0x8] sm:$0x1]
        %v1086 = vsel %vm1012, %v993, %v1085
        %1087 = vst [vmem:[%s1068 + $0x8] sm:$0x1] %v1086
        %v1088 = vld [vmem:[#allocation2] sm:$0xf]
        %v1089 = vld [vmem:[#allocation2 + $0x4] sm:$0xf]
        %v1090 = vld [vmem:[#allocation2 + $0xc] sm:$0xf]
        %v1091 = vld [vmem:[#allocation2 + $0x10] sm:$0xf]
        %v1092 = vld [vmem:[#allocation2 + $0x18] sm:$0xf]
        %v1093 = vld [vmem:[#allocation2 + $0x1c] sm:$0xf]
        %v1094 = vld [vmem:[#allocation2 + $0x24] sm:$0xf]
        %v1095 = vld [vmem:[#allocation2 + $0x28] sm:$0xf]
        %v1096 = vld [vmem:[#allocation2 + $0x30] sm:$0xf]
        %v1097 = vld [vmem:[#allocation2 + $0x34] sm:$0xf]
        %v1098 = vld [vmem:[#allocation2 + $0x3c] sm:$0xf]
        %v1099 = vld [vmem:[#allocation2 + $0x40] sm:$0xf]
        %v1100 = vld [vmem:[#allocation2 + $0x48] sm:$0xf]
        %v1101 = vld [vmem:[#allocation2 + $0x4c] sm:$0xf]
        %v1102 = vld [vmem:[#allocation2 + $0x54] sm:$0xf]
        %v1103 = vld [vmem:[#allocation2 + $0x58] sm:$0xf]
        %v1104 = vld [vmem:[#allocation2 + $0x60] sm:$0xf]
        %v1105 = vld [vmem:[#allocation2 + $0x64] sm:$0xf]
        %v1106 = vld [vmem:[#allocation2 + $0x6c] sm:$0xf]
        %v1107 = vld [vmem:[#allocation2 + $0x70] sm:$0xf]
        %v1108 = vld [vmem:[#allocation2 + $0x78] sm:$0xf]
        %v1109 = vld [vmem:[#allocation2 + $0x7c] sm:$0xf]
        %v1110 = vld [vmem:[#allocation2 + $0x84] sm:$0xf]
        %v1111 = vld [vmem:[#allocation2 + $0x88] sm:$0xf]
        %v1112 = vld [vmem:[#allocation2 + $0x90] sm:$0xf]
        %v1113 = vld [vmem:[#allocation2 + $0x94] sm:$0xf]
        %v1114 = vld [vmem:[#allocation2 + $0x9c] sm:$0xf]
        %v1115 = vld [vmem:[#allocation2 + $0xa0] sm:$0xf]
        %v1116 = vld [vmem:[#allocation2 + $0xa8] sm:$0xf]
        %v1117 = vld [vmem:[#allocation2 + $0xac] sm:$0xf]
        %v1118 = vld [vmem:[#allocation2 + $0xb4] sm:$0xf]
        %v1119 = vld [vmem:[#allocation2 + $0xb8] sm:$0xf]
        %v1120 = vld [vmem:[#allocation6] sm:$0x3]
        %v1121 = vld [vmem:[#allocation8] sm:$0x1]
        %v1123 = vlaneseq
        %v1124 = vshrl.u32 %v1123, 7
        %v1125 = vsub.s32 0, %v1124
        %v1126 = vrot.slane %v1121, %v1125
        %v1160 = vunpack.c.l.b16 %v1088
        %v1161 = vunpack.c.l.b16 %v1089
        %v1162 = vunpack.c.l.b16 %v1090
        %v1163 = vunpack.c.l.b16 %v1091
        %v1164 = vunpack.c.l.b16 %v1092
        %v1165 = vunpack.c.l.b16 %v1093
        %v1166 = vunpack.c.l.b16 %v1094
        %v1167 = vunpack.c.l.b16 %v1095
        %v1168 = vunpack.c.l.b16 %v1096
        %v1169 = vunpack.c.l.b16 %v1097
        %v1170 = vunpack.c.l.b16 %v1098
        %v1171 = vunpack.c.l.b16 %v1099
        %v1172 = vunpack.c.l.b16 %v1100
        %v1173 = vunpack.c.l.b16 %v1101
        %v1174 = vunpack.c.l.b16 %v1102
        %v1175 = vunpack.c.l.b16 %v1103
        %v1176 = vunpack.c.l.b16 %v1104
        %v1177 = vunpack.c.l.b16 %v1105
        %v1178 = vunpack.c.l.b16 %v1106
        %v1179 = vunpack.c.l.b16 %v1107
        %v1180 = vunpack.c.l.b16 %v1108
        %v1181 = vunpack.c.l.b16 %v1109
        %v1182 = vunpack.c.l.b16 %v1110
        %v1183 = vunpack.c.l.b16 %v1111
        %v1184 = vunpack.c.l.b16 %v1112
        %v1185 = vunpack.c.l.b16 %v1113
        %v1186 = vunpack.c.l.b16 %v1114
        %v1187 = vunpack.c.l.b16 %v1115
        %v1188 = vunpack.c.l.b16 %v1116
        %v1189 = vunpack.c.l.b16 %v1117
        %v1190 = vunpack.c.l.b16 %v1118
        %v1191 = vunpack.c.l.b16 %v1119
        %v1192 = vpack.c.b16 %v1161, %v1160
        %v1193 = vpack.c.b16 %v1163, %v1162
        %v1194 = vpack.c.b16 %v1165, %v1164
        %v1195 = vpack.c.b16 %v1167, %v1166
        %v1196 = vpack.c.b16 %v1169, %v1168
        %v1197 = vpack.c.b16 %v1171, %v1170
        %v1198 = vpack.c.b16 %v1173, %v1172
        %v1199 = vpack.c.b16 %v1175, %v1174
        %v1200 = vpack.c.b16 %v1177, %v1176
        %v1201 = vpack.c.b16 %v1179, %v1178
        %v1202 = vpack.c.b16 %v1181, %v1180
        %v1203 = vpack.c.b16 %v1183, %v1182
        %v1204 = vpack.c.b16 %v1185, %v1184
        %v1205 = vpack.c.b16 %v1187, %v1186
        %v1206 = vpack.c.b16 %v1189, %v1188
        %v1207 = vpack.c.b16 %v1191, %v1190
        %vm1208 = vcmask 31744
        %v1210 = vsel %vm1208, %v1192, 0
        %v1213 = vsel %vm1208, %v1193, 0
        %v1216 = vsel %vm1208, %v1194, 0
        %v1219 = vsel %vm1208, %v1195, 0
        %v1222 = vsel %vm1208, %v1196, 0
        %v1225 = vsel %vm1208, %v1197, 0
        %v1228 = vsel %vm1208, %v1198, 0
        %v1231 = vsel %vm1208, %v1199, 0
        %v1234 = vsel %vm1208, %v1200, 0
        %v1237 = vsel %vm1208, %v1201, 0
        %v1240 = vsel %vm1208, %v1202, 0
        %v1243 = vsel %vm1208, %v1203, 0
        %v1246 = vsel %vm1208, %v1204, 0
        %v1249 = vsel %vm1208, %v1205, 0
        %v1252 = vsel %vm1208, %v1206, 0
        %v1255 = vsel %vm1208, %v1207, 0
        %vm1257 = vcmask 1041408
        %v1259 = vsel %vm1257, %v1120, 0
        %1261 = vmatprep.subr.bf16.mxu0 0
        %1262 = vmatpush1.bf16.msra.mxu0 %v1259
        %1263 = vmatprep.subr.bf16.mxu0 0
        %1264 = vmatpush1.bf16.msra.mxu0 0
        %1265 = vmatprep.subr.bf16.mxu0 0
        %1266 = vmatpush1.bf16.msra.mxu0 0
        %1267 = vmatprep.subr.bf16.mxu0 0
        %1268 = vmatpush1.bf16.msra.mxu0 0
        %1269 = vmatprep.subr.bf16.mxu0 0
        %1270 = vmatpush1.bf16.msra.mxu0 0
        %1271 = vmatprep.subr.bf16.mxu0 0
        %1272 = vmatpush1.bf16.msra.mxu0 0
        %1273 = vmatprep.subr.bf16.mxu0 0
        %1274 = vmatpush1.bf16.msra.mxu0 0
        %1275 = vmatprep.subr.bf16.mxu0 0
        %1276 = vmatpush1.bf16.msra.mxu0 0
        %1277 = vmatprep.subr.bf16.mxu0 0
        %1278 = vmatpush1.bf16.msra.mxu0 0
        %1279 = vmatprep.subr.bf16.mxu0 0
        %1280 = vmatpush1.bf16.msra.mxu0 0
        %1281 = vmatprep.subr.bf16.mxu0 0
        %1282 = vmatpush1.bf16.msra.mxu0 0
        %1283 = vmatprep.subr.bf16.mxu0 0
        %1284 = vmatpush1.bf16.msra.mxu0 0
        %1285 = vmatprep.subr.bf16.mxu0 0
        %1286 = vmatpush1.bf16.msra.mxu0 0
        %1287 = vmatprep.subr.bf16.mxu0 0
        %1288 = vmatpush1.bf16.msra.mxu0 0
        %1289 = vmatprep.subr.bf16.mxu0 0
        %1290 = vmatpush1.bf16.msra.mxu0 0
        %1291 = vmatprep.subr.bf16.mxu0 0
        %1292 = vmatpush1.bf16.msra.mxu0 0
        %1293 = vmatprep.mubr.bf16.mxu0 0
        %1294 = vmatmul.mubr.bf16.gmra.mrb[0].mxu0 %v1210
        %v1295 = vpop.f32.mrb[0].mxu0
        %v1296 = vadd.f32 %v1126, %v1295
        %v1297 = vpop.f32.mrb[0].mxu0
        %v1298 = vpop.f32.mrb[0].mxu0
        %v1299 = vadd.f32 %v1126, %v1298
        %v1300 = vpop.f32.mrb[0].mxu0
        %1301 = vmatprep.mubr.bf16.mxu0 0
        %1302 = vmatmul.mubr.bf16.gmra.mrb[0].mxu0 %v1213
        %v1303 = vpop.f32.mrb[0].mxu0
        %v1304 = vadd.f32 %v1126, %v1303
        %v1305 = vpop.f32.mrb[0].mxu0
        %v1306 = vpop.f32.mrb[0].mxu0
        %v1307 = vadd.f32 %v1126, %v1306
        %v1308 = vpop.f32.mrb[0].mxu0
        %1309 = vmatprep.mubr.bf16.mxu0 0
        %1310 = vmatmul.mubr.bf16.gmra.mrb[0].mxu0 %v1216
        %v1311 = vpop.f32.mrb[0].mxu0
        %v1312 = vadd.f32 %v1126, %v1311
        %v1313 = vpop.f32.mrb[0].mxu0
        %v1314 = vpop.f32.mrb[0].mxu0
        %v1315 = vadd.f32 %v1126, %v1314
        %v1316 = vpop.f32.mrb[0].mxu0
        %1317 = vmatprep.mubr.bf16.mxu0 0
        %1318 = vmatmul.mubr.bf16.gmra.mrb[0].mxu0 %v1219
        %v1319 = vpop.f32.mrb[0].mxu0
        %v1320 = vadd.f32 %v1126, %v1319
        %v1321 = vpop.f32.mrb[0].mxu0
        %v1322 = vpop.f32.mrb[0].mxu0
        %v1323 = vadd.f32 %v1126, %v1322
        %v1324 = vpop.f32.mrb[0].mxu0
        %1325 = vmatprep.mubr.bf16.mxu0 0
        %1326 = vmatmul.mubr.bf16.gmra.mrb[0].mxu0 %v1222
        %v1327 = vpop.f32.mrb[0].mxu0
        %v1328 = vadd.f32 %v1126, %v1327
        %v1329 = vpop.f32.mrb[0].mxu0
        %v1330 = vpop.f32.mrb[0].mxu0
        %v1331 = vadd.f32 %v1126, %v1330
        %v1332 = vpop.f32.mrb[0].mxu0
        %1333 = vmatprep.mubr.bf16.mxu0 0
        %1334 = vmatmul.mubr.bf16.gmra.mrb[0].mxu0 %v1225
        %v1335 = vpop.f32.mrb[0].mxu0
        %v1336 = vadd.f32 %v1126, %v1335
        %v1337 = vpop.f32.mrb[0].mxu0
        %v1338 = vpop.f32.mrb[0].mxu0
        %v1339 = vadd.f32 %v1126, %v1338
        %v1340 = vpop.f32.mrb[0].mxu0
        %1341 = vmatprep.mubr.bf16.mxu0 0
        %1342 = vmatmul.mubr.bf16.gmra.mrb[0].mxu0 %v1228
        %v1343 = vpop.f32.mrb[0].mxu0
        %v1344 = vadd.f32 %v1126, %v1343
        %v1345 = vpop.f32.mrb[0].mxu0
        %v1346 = vpop.f32.mrb[0].mxu0
        %v1347 = vadd.f32 %v1126, %v1346
        %v1348 = vpop.f32.mrb[0].mxu0
        %1349 = vmatprep.mubr.bf16.mxu0 0
        %1350 = vmatmul.mubr.bf16.gmra.mrb[0].mxu0 %v1231
        %v1351 = vpop.f32.mrb[0].mxu0
        %v1352 = vadd.f32 %v1126, %v1351
        %v1353 = vpop.f32.mrb[0].mxu0
        %v1354 = vpop.f32.mrb[0].mxu0
        %v1355 = vadd.f32 %v1126, %v1354
        %v1356 = vpop.f32.mrb[0].mxu0
        %1357 = vmatprep.mubr.bf16.mxu0 0
        %1358 = vmatmul.mubr.bf16.gmra.mrb[0].mxu0 %v1234
        %v1359 = vpop.f32.mrb[0].mxu0
        %v1360 = vadd.f32 %v1126, %v1359
        %v1361 = vpop.f32.mrb[0].mxu0
        %v1362 = vpop.f32.mrb[0].mxu0
        %v1363 = vadd.f32 %v1126, %v1362
        %v1364 = vpop.f32.mrb[0].mxu0
        %1365 = vmatprep.mubr.bf16.mxu0 0
        %1366 = vmatmul.mubr.bf16.gmra.mrb[0].mxu0 %v1237
        %v1367 = vpop.f32.mrb[0].mxu0
        %v1368 = vadd.f32 %v1126, %v1367
        %v1369 = vpop.f32.mrb[0].mxu0
        %v1370 = vpop.f32.mrb[0].mxu0
        %v1371 = vadd.f32 %v1126, %v1370
        %v1372 = vpop.f32.mrb[0].mxu0
        %1373 = vmatprep.mubr.bf16.mxu0 0
        %1374 = vmatmul.mubr.bf16.gmra.mrb[0].mxu0 %v1240
        %v1375 = vpop.f32.mrb[0].mxu0
        %v1376 = vadd.f32 %v1126, %v1375
        %v1377 = vpop.f32.mrb[0].mxu0
        %v1378 = vpop.f32.mrb[0].mxu0
        %v1379 = vadd.f32 %v1126, %v1378
        %v1380 = vpop.f32.mrb[0].mxu0
        %1381 = vmatprep.mubr.bf16.mxu0 0
        %1382 = vmatmul.mubr.bf16.gmra.mrb[0].mxu0 %v1243
        %v1383 = vpop.f32.mrb[0].mxu0
        %v1384 = vadd.f32 %v1126, %v1383
        %v1385 = vpop.f32.mrb[0].mxu0
        %v1386 = vpop.f32.mrb[0].mxu0
        %v1387 = vadd.f32 %v1126, %v1386
        %v1388 = vpop.f32.mrb[0].mxu0
        %1389 = vmatprep.mubr.bf16.mxu0 0
        %1390 = vmatmul.mubr.bf16.gmra.mrb[0].mxu0 %v1246
        %v1391 = vpop.f32.mrb[0].mxu0
        %v1392 = vadd.f32 %v1126, %v1391
        %v1393 = vpop.f32.mrb[0].mxu0
        %v1394 = vpop.f32.mrb[0].mxu0
        %v1395 = vadd.f32 %v1126, %v1394
        %v1396 = vpop.f32.mrb[0].mxu0
        %1397 = vmatprep.mubr.bf16.mxu0 0
        %1398 = vmatmul.mubr.bf16.gmra.mrb[0].mxu0 %v1249
        %v1399 = vpop.f32.mrb[0].mxu0
        %v1400 = vadd.f32 %v1126, %v1399
        %v1401 = vpop.f32.mrb[0].mxu0
        %v1402 = vpop.f32.mrb[0].mxu0
        %v1403 = vadd.f32 %v1126, %v1402
        %v1404 = vpop.f32.mrb[0].mxu0
        %1405 = vmatprep.mubr.bf16.mxu0 0
        %1406 = vmatmul.mubr.bf16.gmra.mrb[0].mxu0 %v1252
        %v1407 = vpop.f32.mrb[0].mxu0
        %v1408 = vadd.f32 %v1126, %v1407
        %v1409 = vpop.f32.mrb[0].mxu0
        %v1410 = vpop.f32.mrb[0].mxu0
        %v1411 = vadd.f32 %v1126, %v1410
        %v1412 = vpop.f32.mrb[0].mxu0
        %1413 = vmatprep.mubr.bf16.mxu0 0
        %1414 = vmatmul.mubr.bf16.gmra.mrb[0].mxu0 %v1255
        %v1415 = vpop.f32.mrb[0].mxu0
        %v1416 = vadd.f32 %v1126, %v1415
        %v1417 = vpop.f32.mrb[0].mxu0
        %v1418 = vpop.f32.mrb[0].mxu0
        %v1419 = vadd.f32 %v1126, %v1418
        %v1420 = vpop.f32.mrb[0].mxu0
        %1421 = vdwg.mxu0
        %v1422 = vld [vmem:[#allocation2] sm:$0xf]
        %v1423 = vld [vmem:[#allocation2 + $0x4] sm:$0xf]
        %v1424 = vld [vmem:[#allocation2 + $0x8] sm:$0x1]
        %v1425 = vld [vmem:[#allocation2 + $0xc] sm:$0xf]
        %v1426 = vld [vmem:[#allocation2 + $0x10] sm:$0xf]
        %v1427 = vld [vmem:[#allocation2 + $0x14] sm:$0x1]
        %v1428 = vld [vmem:[#allocation2 + $0x18] sm:$0xf]
        %v1429 = vld [vmem:[#allocation2 + $0x1c] sm:$0xf]
        %v1430 = vld [vmem:[#allocation2 + $0x20] sm:$0x1]
        %v1431 = vld [vmem:[#allocation2 + $0x24] sm:$0xf]
        %v1432 = vld [vmem:[#allocation2 + $0x28] sm:$0xf]
        %v1433 = vld [vmem:[#allocation2 + $0x2c] sm:$0x1]
        %v1434 = vld [vmem:[#allocation2 + $0x30] sm:$0xf]
        %v1435 = vld [vmem:[#allocation2 + $0x34] sm:$0xf]
        %v1436 = vld [vmem:[#allocation2 + $0x38] sm:$0x1]
        %v1437 = vld [vmem:[#allocation2 + $0x3c] sm:$0xf]
        %v1438 = vld [vmem:[#allocation2 + $0x40] sm:$0xf]
        %v1439 = vld [vmem:[#allocation2 + $0x44] sm:$0x1]
        %v1440 = vld [vmem:[#allocation2 + $0x48] sm:$0xf]
        %v1441 = vld [vmem:[#allocation2 + $0x4c] sm:$0xf]
        %v1442 = vld [vmem:[#allocation2 + $0x50] sm:$0x1]
        %v1443 = vld [vmem:[#allocation2 + $0x54] sm:$0xf]
        %v1444 = vld [vmem:[#allocation2 + $0x58] sm:$0xf]
        %v1445 = vld [vmem:[#allocation2 + $0x5c] sm:$0x1]
        %v1446 = vld [vmem:[#allocation2 + $0x60] sm:$0xf]
        %v1447 = vld [vmem:[#allocation2 + $0x64] sm:$0xf]
        %v1448 = vld [vmem:[#allocation2 + $0x68] sm:$0x1]
        %v1449 = vld [vmem:[#allocation2 + $0x6c] sm:$0xf]
        %v1450 = vld [vmem:[#allocation2 + $0x70] sm:$0xf]
        %v1451 = vld [vmem:[#allocation2 + $0x74] sm:$0x1]
        %v1452 = vld [vmem:[#allocation2 + $0x78] sm:$0xf]
        %v1453 = vld [vmem:[#allocation2 + $0x7c] sm:$0xf]
        %v1454 = vld [vmem:[#allocation2 + $0x80] sm:$0x1]
        %v1455 = vld [vmem:[#allocation2 + $0x84] sm:$0xf]
        %v1456 = vld [vmem:[#allocation2 + $0x88] sm:$0xf]
        %v1457 = vld [vmem:[#allocation2 + $0x8c] sm:$0x1]
        %v1458 = vld [vmem:[#allocation2 + $0x90] sm:$0xf]
        %v1459 = vld [vmem:[#allocation2 + $0x94] sm:$0xf]
        %v1460 = vld [vmem:[#allocation2 + $0x98] sm:$0x1]
        %v1461 = vld [vmem:[#allocation2 + $0x9c] sm:$0xf]
        %v1462 = vld [vmem:[#allocation2 + $0xa0] sm:$0xf]
        %v1463 = vld [vmem:[#allocation2 + $0xa4] sm:$0x1]
        %v1464 = vld [vmem:[#allocation2 + $0xa8] sm:$0xf]
        %v1465 = vld [vmem:[#allocation2 + $0xac] sm:$0xf]
        %v1466 = vld [vmem:[#allocation2 + $0xb0] sm:$0x1]
        %v1467 = vld [vmem:[#allocation2 + $0xb4] sm:$0xf]
        %v1468 = vld [vmem:[#allocation2 + $0xb8] sm:$0xf]
        %v1469 = vld [vmem:[#allocation2 + $0xbc] sm:$0x1]
        %vm1470 = vsmask.f32 3328
        %vm1471 = vsmask.f32 7440
        %vm1472 = vmor %vm1470, %vm1471
        %v1474 = vshrl.u32 %v1422, 16
        %v1476 = vrot.slane %v1474, 4
        %v1477 = vshll.u32 %v1422, 16
        %v1479 = vrot.slane %v1477, 5
        %v1480 = vor.u32 %v1476, %v1479
        %v1481 = vrot.slane %v1480, 4
        %v1483 = vshll.u32 %v1423, 16
        %v1485 = vrot.slane %v1483, 5
        %v1486 = vsel %vm1472, %v1481, %v1485
        %v1487 = vshrl.u32 %v1423, 16
        %v1489 = vrot.slane %v1487, 4
        %v1490 = vor.u32 %v1489, %v1485
        %v1491 = vrot.slane %v1490, 4
        %v1493 = vshll.u32 %v1424, 16
        %v1495 = vrot.slane %v1493, 5
        %v1496 = vsel %vm1472, %v1491, %v1495
        %v1498 = vshrl.u32 %v1425, 16
        %v1500 = vrot.slane %v1498, 4
        %v1501 = vshll.u32 %v1425, 16
        %v1503 = vrot.slane %v1501, 5
        %v1504 = vor.u32 %v1500, %v1503
        %v1505 = vrot.slane %v1504, 4
        %v1507 = vshll.u32 %v1426, 16
        %v1509 = vrot.slane %v1507, 5
        %v1510 = vsel %vm1472, %v1505, %v1509
        %v1511 = vshrl.u32 %v1426, 16
        %v1513 = vrot.slane %v1511, 4
        %v1514 = vor.u32 %v1513, %v1509
        %v1515 = vrot.slane %v1514, 4
        %v1517 = vshll.u32 %v1427, 16
        %v1519 = vrot.slane %v1517, 5
        %v1520 = vsel %vm1472, %v1515, %v1519
        %v1522 = vshrl.u32 %v1428, 16
        %v1524 = vrot.slane %v1522, 4
        %v1525 = vshll.u32 %v1428, 16
        %v1527 = vrot.slane %v1525, 5
        %v1528 = vor.u32 %v1524, %v1527
        %v1529 = vrot.slane %v1528, 4
        %v1531 = vshll.u32 %v1429, 16
        %v1533 = vrot.slane %v1531, 5
        %v1534 = vsel %vm1472, %v1529, %v1533
        %v1535 = vshrl.u32 %v1429, 16
        %v1537 = vrot.slane %v1535, 4
        %v1538 = vor.u32 %v1537, %v1533
        %v1539 = vrot.slane %v1538, 4
        %v1541 = vshll.u32 %v1430, 16
        %v1543 = vrot.slane %v1541, 5
        %v1544 = vsel %vm1472, %v1539, %v1543
        %v1546 = vshrl.u32 %v1431, 16
        %v1548 = vrot.slane %v1546, 4
        %v1549 = vshll.u32 %v1431, 16
        %v1551 = vrot.slane %v1549, 5
        %v1552 = vor.u32 %v1548, %v1551
        %v1553 = vrot.slane %v1552, 4
        %v1555 = vshll.u32 %v1432, 16
        %v1557 = vrot.slane %v1555, 5
        %v1558 = vsel %vm1472, %v1553, %v1557
        %v1559 = vshrl.u32 %v1432, 16
        %v1561 = vrot.slane %v1559, 4
        %v1562 = vor.u32 %v1561, %v1557
        %v1563 = vrot.slane %v1562, 4
        %v1565 = vshll.u32 %v1433, 16
        %v1567 = vrot.slane %v1565, 5
        %v1568 = vsel %vm1472, %v1563, %v1567
        %v1570 = vshrl.u32 %v1434, 16
        %v1572 = vrot.slane %v1570, 4
        %v1573 = vshll.u32 %v1434, 16
        %v1575 = vrot.slane %v1573, 5
        %v1576 = vor.u32 %v1572, %v1575
        %v1577 = vrot.slane %v1576, 4
        %v1579 = vshll.u32 %v1435, 16
        %v1581 = vrot.slane %v1579, 5
        %v1582 = vsel %vm1472, %v1577, %v1581
        %v1583 = vshrl.u32 %v1435, 16
        %v1585 = vrot.slane %v1583, 4
        %v1586 = vor.u32 %v1585, %v1581
        %v1587 = vrot.slane %v1586, 4
        %v1589 = vshll.u32 %v1436, 16
        %v1591 = vrot.slane %v1589, 5
        %v1592 = vsel %vm1472, %v1587, %v1591
        %v1594 = vshrl.u32 %v1437, 16
        %v1596 = vrot.slane %v1594, 4
        %v1597 = vshll.u32 %v1437, 16
        %v1599 = vrot.slane %v1597, 5
        %v1600 = vor.u32 %v1596, %v1599
        %v1601 = vrot.slane %v1600, 4
        %v1603 = vshll.u32 %v1438, 16
        %v1605 = vrot.slane %v1603, 5
        %v1606 = vsel %vm1472, %v1601, %v1605
        %v1607 = vshrl.u32 %v1438, 16
        %v1609 = vrot.slane %v1607, 4
        %v1610 = vor.u32 %v1609, %v1605
        %v1611 = vrot.slane %v1610, 4
        %v1613 = vshll.u32 %v1439, 16
        %v1615 = vrot.slane %v1613, 5
        %v1616 = vsel %vm1472, %v1611, %v1615
        %v1618 = vshrl.u32 %v1440, 16
        %v1620 = vrot.slane %v1618, 4
        %v1621 = vshll.u32 %v1440, 16
        %v1623 = vrot.slane %v1621, 5
        %v1624 = vor.u32 %v1620, %v1623
        %v1625 = vrot.slane %v1624, 4
        %v1627 = vshll.u32 %v1441, 16
        %v1629 = vrot.slane %v1627, 5
        %v1630 = vsel %vm1472, %v1625, %v1629
        %v1631 = vshrl.u32 %v1441, 16
        %v1633 = vrot.slane %v1631, 4
        %v1634 = vor.u32 %v1633, %v1629
        %v1635 = vrot.slane %v1634, 4
        %v1637 = vshll.u32 %v1442, 16
        %v1639 = vrot.slane %v1637, 5
        %v1640 = vsel %vm1472, %v1635, %v1639
        %v1642 = vshrl.u32 %v1443, 16
        %v1644 = vrot.slane %v1642, 4
        %v1645 = vshll.u32 %v1443, 16
        %v1647 = vrot.slane %v1645, 5
        %v1648 = vor.u32 %v1644, %v1647
        %v1649 = vrot.slane %v1648, 4
        %v1651 = vshll.u32 %v1444, 16
        %v1653 = vrot.slane %v1651, 5
        %v1654 = vsel %vm1472, %v1649, %v1653
        %v1655 = vshrl.u32 %v1444, 16
        %v1657 = vrot.slane %v1655, 4
        %v1658 = vor.u32 %v1657, %v1653
        %v1659 = vrot.slane %v1658, 4
        %v1661 = vshll.u32 %v1445, 16
        %v1663 = vrot.slane %v1661, 5
        %v1664 = vsel %vm1472, %v1659, %v1663
        %v1666 = vshrl.u32 %v1446, 16
        %v1668 = vrot.slane %v1666, 4
        %v1669 = vshll.u32 %v1446, 16
        %v1671 = vrot.slane %v1669, 5
        %v1672 = vor.u32 %v1668, %v1671
        %v1673 = vrot.slane %v1672, 4
        %v1675 = vshll.u32 %v1447, 16
        %v1677 = vrot.slane %v1675, 5
        %v1678 = vsel %vm1472, %v1673, %v1677
        %v1679 = vshrl.u32 %v1447, 16
        %v1681 = vrot.slane %v1679, 4
        %v1682 = vor.u32 %v1681, %v1677
        %v1683 = vrot.slane %v1682, 4
        %v1685 = vshll.u32 %v1448, 16
        %v1687 = vrot.slane %v1685, 5
        %v1688 = vsel %vm1472, %v1683, %v1687
        %v1690 = vshrl.u32 %v1449, 16
        %v1692 = vrot.slane %v1690, 4
        %v1693 = vshll.u32 %v1449, 16
        %v1695 = vrot.slane %v1693, 5
        %v1696 = vor.u32 %v1692, %v1695
        %v1697 = vrot.slane %v1696, 4
        %v1699 = vshll.u32 %v1450, 16
        %v1701 = vrot.slane %v1699, 5
        %v1702 = vsel %vm1472, %v1697, %v1701
        %v1703 = vshrl.u32 %v1450, 16
        %v1705 = vrot.slane %v1703, 4
        %v1706 = vor.u32 %v1705, %v1701
        %v1707 = vrot.slane %v1706, 4
        %v1709 = vshll.u32 %v1451, 16
        %v1711 = vrot.slane %v1709, 5
        %v1712 = vsel %vm1472, %v1707, %v1711
        %v1714 = vshrl.u32 %v1452, 16
        %v1716 = vrot.slane %v1714, 4
        %v1717 = vshll.u32 %v1452, 16
        %v1719 = vrot.slane %v1717, 5
        %v1720 = vor.u32 %v1716, %v1719
        %v1721 = vrot.slane %v1720, 4
        %v1723 = vshll.u32 %v1453, 16
        %v1725 = vrot.slane %v1723, 5
        %v1726 = vsel %vm1472, %v1721, %v1725
        %v1727 = vshrl.u32 %v1453, 16
        %v1729 = vrot.slane %v1727, 4
        %v1730 = vor.u32 %v1729, %v1725
        %v1731 = vrot.slane %v1730, 4
        %v1733 = vshll.u32 %v1454, 16
        %v1735 = vrot.slane %v1733, 5
        %v1736 = vsel %vm1472, %v1731, %v1735
        %v1738 = vshrl.u32 %v1455, 16
        %v1740 = vrot.slane %v1738, 4
        %v1741 = vshll.u32 %v1455, 16
        %v1743 = vrot.slane %v1741, 5
        %v1744 = vor.u32 %v1740, %v1743
        %v1745 = vrot.slane %v1744, 4
        %v1747 = vshll.u32 %v1456, 16
        %v1749 = vrot.slane %v1747, 5
        %v1750 = vsel %vm1472, %v1745, %v1749
        %v1751 = vshrl.u32 %v1456, 16
        %v1753 = vrot.slane %v1751, 4
        %v1754 = vor.u32 %v1753, %v1749
        %v1755 = vrot.slane %v1754, 4
        %v1757 = vshll.u32 %v1457, 16
        %v1759 = vrot.slane %v1757, 5
        %v1760 = vsel %vm1472, %v1755, %v1759
        %v1762 = vshrl.u32 %v1458, 16
        %v1764 = vrot.slane %v1762, 4
        %v1765 = vshll.u32 %v1458, 16
        %v1767 = vrot.slane %v1765, 5
        %v1768 = vor.u32 %v1764, %v1767
        %v1769 = vrot.slane %v1768, 4
        %v1771 = vshll.u32 %v1459, 16
        %v1773 = vrot.slane %v1771, 5
        %v1774 = vsel %vm1472, %v1769, %v1773
        %v1775 = vshrl.u32 %v1459, 16
        %v1777 = vrot.slane %v1775, 4
        %v1778 = vor.u32 %v1777, %v1773
        %v1779 = vrot.slane %v1778, 4
        %v1781 = vshll.u32 %v1460, 16
        %v1783 = vrot.slane %v1781, 5
        %v1784 = vsel %vm1472, %v1779, %v1783
        %v1786 = vshrl.u32 %v1461, 16
        %v1788 = vrot.slane %v1786, 4
        %v1789 = vshll.u32 %v1461, 16
        %v1791 = vrot.slane %v1789, 5
        %v1792 = vor.u32 %v1788, %v1791
        %v1793 = vrot.slane %v1792, 4
        %v1795 = vshll.u32 %v1462, 16
        %v1797 = vrot.slane %v1795, 5
        %v1798 = vsel %vm1472, %v1793, %v1797
        %v1799 = vshrl.u32 %v1462, 16
        %v1801 = vrot.slane %v1799, 4
        %v1802 = vor.u32 %v1801, %v1797
        %v1803 = vrot.slane %v1802, 4
        %v1805 = vshll.u32 %v1463, 16
        %v1807 = vrot.slane %v1805, 5
        %v1808 = vsel %vm1472, %v1803, %v1807
        %v1810 = vshrl.u32 %v1464, 16
        %v1812 = vrot.slane %v1810, 4
        %v1813 = vshll.u32 %v1464, 16
        %v1815 = vrot.slane %v1813, 5
        %v1816 = vor.u32 %v1812, %v1815
        %v1817 = vrot.slane %v1816, 4
        %v1819 = vshll.u32 %v1465, 16
        %v1821 = vrot.slane %v1819, 5
        %v1822 = vsel %vm1472, %v1817, %v1821
        %v1823 = vshrl.u32 %v1465, 16
        %v1825 = vrot.slane %v1823, 4
        %v1826 = vor.u32 %v1825, %v1821
        %v1827 = vrot.slane %v1826, 4
        %v1829 = vshll.u32 %v1466, 16
        %v1831 = vrot.slane %v1829, 5
        %v1832 = vsel %vm1472, %v1827, %v1831
        %v1834 = vshrl.u32 %v1467, 16
        %v1836 = vrot.slane %v1834, 4
        %v1837 = vshll.u32 %v1467, 16
        %v1839 = vrot.slane %v1837, 5
        %v1840 = vor.u32 %v1836, %v1839
        %v1841 = vrot.slane %v1840, 4
        %v1843 = vshll.u32 %v1468, 16
        %v1845 = vrot.slane %v1843, 5
        %v1846 = vsel %vm1472, %v1841, %v1845
        %v1847 = vshrl.u32 %v1468, 16
        %v1849 = vrot.slane %v1847, 4
        %v1850 = vor.u32 %v1849, %v1845
        %v1851 = vrot.slane %v1850, 4
        %v1853 = vshll.u32 %v1469, 16
        %v1855 = vrot.slane %v1853, 5
        %v1856 = vsel %vm1472, %v1851, %v1855
        %s1857 = scalar_lea.vmem [#allocation6], 2
        %v1858 = vld [vmem:[%s1857] sm:$0x3]
        %v1859 = vunpack.c.l.b16 %v1486
        %v1860 = vunpack.c.l.b16 %v1496
        %v1861 = vunpack.c.l.b16 %v1510
        %v1862 = vunpack.c.l.b16 %v1520
        %v1863 = vunpack.c.l.b16 %v1534
        %v1864 = vunpack.c.l.b16 %v1544
        %v1865 = vunpack.c.l.b16 %v1558
        %v1866 = vunpack.c.l.b16 %v1568
        %v1867 = vunpack.c.l.b16 %v1582
        %v1868 = vunpack.c.l.b16 %v1592
        %v1869 = vunpack.c.l.b16 %v1606
        %v1870 = vunpack.c.l.b16 %v1616
        %v1871 = vunpack.c.l.b16 %v1630
        %v1872 = vunpack.c.l.b16 %v1640
        %v1873 = vunpack.c.l.b16 %v1654
        %v1874 = vunpack.c.l.b16 %v1664
        %v1875 = vunpack.c.l.b16 %v1678
        %v1876 = vunpack.c.l.b16 %v1688
        %v1877 = vunpack.c.l.b16 %v1702
        %v1878 = vunpack.c.l.b16 %v1712
        %v1879 = vunpack.c.l.b16 %v1726
        %v1880 = vunpack.c.l.b16 %v1736
        %v1881 = vunpack.c.l.b16 %v1750
        %v1882 = vunpack.c.l.b16 %v1760
        %v1883 = vunpack.c.l.b16 %v1774
        %v1884 = vunpack.c.l.b16 %v1784
        %v1885 = vunpack.c.l.b16 %v1798
        %v1886 = vunpack.c.l.b16 %v1808
        %v1887 = vunpack.c.l.b16 %v1822
        %v1888 = vunpack.c.l.b16 %v1832
        %v1889 = vunpack.c.l.b16 %v1846
        %v1890 = vunpack.c.l.b16 %v1856
        %v1891 = vpack.c.b16 %v1860, %v1859
        %v1892 = vpack.c.b16 %v1862, %v1861
        %v1893 = vpack.c.b16 %v1864, %v1863
        %v1894 = vpack.c.b16 %v1866, %v1865
        %v1895 = vpack.c.b16 %v1868, %v1867
        %v1896 = vpack.c.b16 %v1870, %v1869
        %v1897 = vpack.c.b16 %v1872, %v1871
        %v1898 = vpack.c.b16 %v1874, %v1873
        %v1899 = vpack.c.b16 %v1876, %v1875
        %v1900 = vpack.c.b16 %v1878, %v1877
        %v1901 = vpack.c.b16 %v1880, %v1879
        %v1902 = vpack.c.b16 %v1882, %v1881
        %v1903 = vpack.c.b16 %v1884, %v1883
        %v1904 = vpack.c.b16 %v1886, %v1885
        %v1905 = vpack.c.b16 %v1888, %v1887
        %v1906 = vpack.c.b16 %v1890, %v1889
        %v1908 = vsel %vm1208, %v1891, 0
        %v1911 = vsel %vm1208, %v1892, 0
        %v1914 = vsel %vm1208, %v1893, 0
        %v1917 = vsel %vm1208, %v1894, 0
        %v1920 = vsel %vm1208, %v1895, 0
        %v1923 = vsel %vm1208, %v1896, 0
        %v1926 = vsel %vm1208, %v1897, 0
        %v1929 = vsel %vm1208, %v1898, 0
        %v1932 = vsel %vm1208, %v1899, 0
        %v1935 = vsel %vm1208, %v1900, 0
        %v1938 = vsel %vm1208, %v1901, 0
        %v1941 = vsel %vm1208, %v1902, 0
        %v1944 = vsel %vm1208, %v1903, 0
        %v1947 = vsel %vm1208, %v1904, 0
        %v1950 = vsel %vm1208, %v1905, 0
        %v1953 = vsel %vm1208, %v1906, 0
        %v1956 = vsel %vm1257, %v1858, 0
        %1958 = vmatprep.subr.bf16.mxu0 0
        %1959 = vmatpush1.bf16.msra.mxu0 %v1956
        %1960 = vmatprep.subr.bf16.mxu0 0
        %1961 = vmatpush1.bf16.msra.mxu0 0
        %1962 = vmatprep.subr.bf16.mxu0 0
        %1963 = vmatpush1.bf16.msra.mxu0 0
        %1964 = vmatprep.subr.bf16.mxu0 0
        %1965 = vmatpush1.bf16.msra.mxu0 0
        %1966 = vmatprep.subr.bf16.mxu0 0
        %1967 = vmatpush1.bf16.msra.mxu0 0
        %1968 = vmatprep.subr.bf16.mxu0 0
        %1969 = vmatpush1.bf16.msra.mxu0 0
        %1970 = vmatprep.subr.bf16.mxu0 0
        %1971 = vmatpush1.bf16.msra.mxu0 0
        %1972 = vmatprep.subr.bf16.mxu0 0
        %1973 = vmatpush1.bf16.msra.mxu0 0
        %1974 = vmatprep.subr.bf16.mxu0 0
        %1975 = vmatpush1.bf16.msra.mxu0 0
        %1976 = vmatprep.subr.bf16.mxu0 0
        %1977 = vmatpush1.bf16.msra.mxu0 0
        %1978 = vmatprep.subr.bf16.mxu0 0
        %1979 = vmatpush1.bf16.msra.mxu0 0
        %1980 = vmatprep.subr.bf16.mxu0 0
        %1981 = vmatpush1.bf16.msra.mxu0 0
        %1982 = vmatprep.subr.bf16.mxu0 0
        %1983 = vmatpush1.bf16.msra.mxu0 0
        %1984 = vmatprep.subr.bf16.mxu0 0
        %1985 = vmatpush1.bf16.msra.mxu0 0
        %1986 = vmatprep.subr.bf16.mxu0 0
        %1987 = vmatpush1.bf16.msra.mxu0 0
        %1988 = vmatprep.subr.bf16.mxu0 0
        %1989 = vmatpush1.bf16.msra.mxu0 0
        %1990 = vmatprep.mubr.bf16.mxu0 0
        %1991 = vmatmul.mubr.bf16.gmra.mrb[0].mxu0 %v1908
        %v1992 = vpop.f32.mrb[0].mxu0
        %v1993 = vadd.f32 0.0, %v1992
        %v1994 = vpop.f32.mrb[0].mxu0
        %v1995 = vpop.f32.mrb[0].mxu0
        %v1996 = vadd.f32 0.0, %v1995
        %v1997 = vpop.f32.mrb[0].mxu0
        %1998 = vmatprep.mubr.bf16.mxu0 0
        %1999 = vmatmul.mubr.bf16.gmra.mrb[0].mxu0 %v1911
        %v2000 = vpop.f32.mrb[0].mxu0
        %v2001 = vadd.f32 0.0, %v2000
        %v2002 = vpop.f32.mrb[0].mxu0
        %v2003 = vpop.f32.mrb[0].mxu0
        %v2004 = vadd.f32 0.0, %v2003
        %v2005 = vpop.f32.mrb[0].mxu0
        %2006 = vmatprep.mubr.bf16.mxu0 0
        %2007 = vmatmul.mubr.bf16.gmra.mrb[0].mxu0 %v1914
        %v2008 = vpop.f32.mrb[0].mxu0
        %v2009 = vadd.f32 0.0, %v2008
        %v2010 = vpop.f32.mrb[0].mxu0
        %v2011 = vpop.f32.mrb[0].mxu0
        %v2012 = vadd.f32 0.0, %v2011
        %v2013 = vpop.f32.mrb[0].mxu0
        %2014 = vmatprep.mubr.bf16.mxu0 0
        %2015 = vmatmul.mubr.bf16.gmra.mrb[0].mxu0 %v1917
        %v2016 = vpop.f32.mrb[0].mxu0
        %v2017 = vadd.f32 0.0, %v2016
        %v2018 = vpop.f32.mrb[0].mxu0
        %v2019 = vpop.f32.mrb[0].mxu0
        %v2020 = vadd.f32 0.0, %v2019
        %v2021 = vpop.f32.mrb[0].mxu0
        %2022 = vmatprep.mubr.bf16.mxu0 0
        %2023 = vmatmul.mubr.bf16.gmra.mrb[0].mxu0 %v1920
        %v2024 = vpop.f32.mrb[0].mxu0
        %v2025 = vadd.f32 0.0, %v2024
        %v2026 = vpop.f32.mrb[0].mxu0
        %v2027 = vpop.f32.mrb[0].mxu0
        %v2028 = vadd.f32 0.0, %v2027
        %v2029 = vpop.f32.mrb[0].mxu0
        %2030 = vmatprep.mubr.bf16.mxu0 0
        %2031 = vmatmul.mubr.bf16.gmra.mrb[0].mxu0 %v1923
        %v2032 = vpop.f32.mrb[0].mxu0
        %v2033 = vadd.f32 0.0, %v2032
        %v2034 = vpop.f32.mrb[0].mxu0
        %v2035 = vpop.f32.mrb[0].mxu0
        %v2036 = vadd.f32 0.0, %v2035
        %v2037 = vpop.f32.mrb[0].mxu0
        %2038 = vmatprep.mubr.bf16.mxu0 0
        %2039 = vmatmul.mubr.bf16.gmra.mrb[0].mxu0 %v1926
        %v2040 = vpop.f32.mrb[0].mxu0
        %v2041 = vadd.f32 0.0, %v2040
        %v2042 = vpop.f32.mrb[0].mxu0
        %v2043 = vpop.f32.mrb[0].mxu0
        %v2044 = vadd.f32 0.0, %v2043
        %v2045 = vpop.f32.mrb[0].mxu0
        %2046 = vmatprep.mubr.bf16.mxu0 0
        %2047 = vmatmul.mubr.bf16.gmra.mrb[0].mxu0 %v1929
        %v2048 = vpop.f32.mrb[0].mxu0
        %v2049 = vadd.f32 0.0, %v2048
        %v2050 = vpop.f32.mrb[0].mxu0
        %v2051 = vpop.f32.mrb[0].mxu0
        %v2052 = vadd.f32 0.0, %v2051
        %v2053 = vpop.f32.mrb[0].mxu0
        %2054 = vmatprep.mubr.bf16.mxu0 0
        %2055 = vmatmul.mubr.bf16.gmra.mrb[0].mxu0 %v1932
        %v2056 = vpop.f32.mrb[0].mxu0
        %v2057 = vadd.f32 0.0, %v2056
        %v2058 = vpop.f32.mrb[0].mxu0
        %v2059 = vpop.f32.mrb[0].mxu0
        %v2060 = vadd.f32 0.0, %v2059
        %v2061 = vpop.f32.mrb[0].mxu0
        %2062 = vmatprep.mubr.bf16.mxu0 0
        %2063 = vmatmul.mubr.bf16.gmra.mrb[0].mxu0 %v1935
        %v2064 = vpop.f32.mrb[0].mxu0
        %v2065 = vadd.f32 0.0, %v2064
        %v2066 = vpop.f32.mrb[0].mxu0
        %v2067 = vpop.f32.mrb[0].mxu0
        %v2068 = vadd.f32 0.0, %v2067
        %v2069 = vpop.f32.mrb[0].mxu0
        %2070 = vmatprep.mubr.bf16.mxu0 0
        %2071 = vmatmul.mubr.bf16.gmra.mrb[0].mxu0 %v1938
        %v2072 = vpop.f32.mrb[0].mxu0
        %v2073 = vadd.f32 0.0, %v2072
        %v2074 = vpop.f32.mrb[0].mxu0
        %v2075 = vpop.f32.mrb[0].mxu0
        %v2076 = vadd.f32 0.0, %v2075
        %v2077 = vpop.f32.mrb[0].mxu0
        %2078 = vmatprep.mubr.bf16.mxu0 0
        %2079 = vmatmul.mubr.bf16.gmra.mrb[0].mxu0 %v1941
        %v2080 = vpop.f32.mrb[0].mxu0
        %v2081 = vadd.f32 0.0, %v2080
        %v2082 = vpop.f32.mrb[0].mxu0
        %v2083 = vpop.f32.mrb[0].mxu0
        %v2084 = vadd.f32 0.0, %v2083
        %v2085 = vpop.f32.mrb[0].mxu0
        %2086 = vmatprep.mubr.bf16.mxu0 0
        %2087 = vmatmul.mubr.bf16.gmra.mrb[0].mxu0 %v1944
        %v2088 = vpop.f32.mrb[0].mxu0
        %v2089 = vadd.f32 0.0, %v2088
        %v2090 = vpop.f32.mrb[0].mxu0
        %v2091 = vpop.f32.mrb[0].mxu0
        %v2092 = vadd.f32 0.0, %v2091
        %v2093 = vpop.f32.mrb[0].mxu0
        %2094 = vmatprep.mubr.bf16.mxu0 0
        %2095 = vmatmul.mubr.bf16.gmra.mrb[0].mxu0 %v1947
        %v2096 = vpop.f32.mrb[0].mxu0
        %v2097 = vadd.f32 0.0, %v2096
        %v2098 = vpop.f32.mrb[0].mxu0
        %v2099 = vpop.f32.mrb[0].mxu0
        %v2100 = vadd.f32 0.0, %v2099
        %v2101 = vpop.f32.mrb[0].mxu0
        %2102 = vmatprep.mubr.bf16.mxu0 0
        %2103 = vmatmul.mubr.bf16.gmra.mrb[0].mxu0 %v1950
        %v2104 = vpop.f32.mrb[0].mxu0
        %v2105 = vadd.f32 0.0, %v2104
        %v2106 = vpop.f32.mrb[0].mxu0
        %v2107 = vpop.f32.mrb[0].mxu0
        %v2108 = vadd.f32 0.0, %v2107
        %v2109 = vpop.f32.mrb[0].mxu0
        %2110 = vmatprep.mubr.bf16.mxu0 0
        %2111 = vmatmul.mubr.bf16.gmra.mrb[0].mxu0 %v1953
        %v2112 = vpop.f32.mrb[0].mxu0
        %v2113 = vadd.f32 0.0, %v2112
        %v2114 = vpop.f32.mrb[0].mxu0
        %v2115 = vpop.f32.mrb[0].mxu0
        %v2116 = vadd.f32 0.0, %v2115
        %v2117 = vpop.f32.mrb[0].mxu0
        %2118 = vdwg.mxu0
        %v2119 = vadd.f32 %v1296, %v1993
        %v2120 = vadd.f32 %v1299, %v1996
        %v2121 = vadd.f32 %v1304, %v2001
        %v2122 = vadd.f32 %v1307, %v2004
        %v2123 = vadd.f32 %v1312, %v2009
        %v2124 = vadd.f32 %v1315, %v2012
        %v2125 = vadd.f32 %v1320, %v2017
        %v2126 = vadd.f32 %v1323, %v2020
        %v2127 = vadd.f32 %v1328, %v2025
        %v2128 = vadd.f32 %v1331, %v2028
        %v2129 = vadd.f32 %v1336, %v2033
        %v2130 = vadd.f32 %v1339, %v2036
        %v2131 = vadd.f32 %v1344, %v2041
        %v2132 = vadd.f32 %v1347, %v2044
        %v2133 = vadd.f32 %v1352, %v2049
        %v2134 = vadd.f32 %v1355, %v2052
        %v2135 = vadd.f32 %v1360, %v2057
        %v2136 = vadd.f32 %v1363, %v2060
        %v2137 = vadd.f32 %v1368, %v2065
        %v2138 = vadd.f32 %v1371, %v2068
        %v2139 = vadd.f32 %v1376, %v2073
        %v2140 = vadd.f32 %v1379, %v2076
        %v2141 = vadd.f32 %v1384, %v2081
        %v2142 = vadd.f32 %v1387, %v2084
        %v2143 = vadd.f32 %v1392, %v2089
        %v2144 = vadd.f32 %v1395, %v2092
        %v2145 = vadd.f32 %v1400, %v2097
        %v2146 = vadd.f32 %v1403, %v2100
        %v2147 = vadd.f32 %v1408, %v2105
        %v2148 = vadd.f32 %v1411, %v2108
        %v2149 = vadd.f32 %v1416, %v2113
        %v2150 = vadd.f32 %v1419, %v2116
        %v2151 = vld [vmem:[#allocation2] sm:$0xe]
        %v2152 = vld [vmem:[#allocation2 + $0xc] sm:$0xe]
        %v2153 = vld [vmem:[#allocation2 + $0x18] sm:$0xe]
        %v2154 = vld [vmem:[#allocation2 + $0x24] sm:$0xe]
        %v2155 = vld [vmem:[#allocation2 + $0x30] sm:$0xe]
        %v2156 = vld [vmem:[#allocation2 + $0x3c] sm:$0xe]
        %v2157 = vld [vmem:[#allocation2 + $0x48] sm:$0xe]
        %v2158 = vld [vmem:[#allocation2 + $0x54] sm:$0xe]
        %v2159 = vld [vmem:[#allocation2 + $0x60] sm:$0xe]
        %v2160 = vld [vmem:[#allocation2 + $0x6c] sm:$0xe]
        %v2161 = vld [vmem:[#allocation2 + $0x78] sm:$0xe]
        %v2162 = vld [vmem:[#allocation2 + $0x84] sm:$0xe]
        %v2163 = vld [vmem:[#allocation2 + $0x90] sm:$0xe]
        %v2164 = vld [vmem:[#allocation2 + $0x9c] sm:$0xe]
        %v2165 = vld [vmem:[#allocation2 + $0xa8] sm:$0xe]
        %v2166 = vld [vmem:[#allocation2 + $0xb4] sm:$0xe]
        %vm2215 = vcmask 1042432
        %vm2216 = vcmask 1046532
        %vm2217 = vmor %vm2215, %vm2216
        %v2218 = vrot.slane %v2151, 5
        %v2219 = vrot.slane %v2218, 4
        %v2220 = vrot.slane %v1423, 5
        %v2221 = vsel %vm2217, %v2219, %v2220
        %v2222 = vrot.slane %v2220, 4
        %v2223 = vrot.slane %v1424, 5
        %v2224 = vsel %vm2217, %v2222, %v2223
        %v2225 = vrot.slane %v2152, 5
        %v2226 = vrot.slane %v2225, 4
        %v2227 = vrot.slane %v1426, 5
        %v2228 = vsel %vm2217, %v2226, %v2227
        %v2229 = vrot.slane %v2227, 4
        %v2230 = vrot.slane %v1427, 5
        %v2231 = vsel %vm2217, %v2229, %v2230
        %v2232 = vrot.slane %v2153, 5
        %v2233 = vrot.slane %v2232, 4
        %v2234 = vrot.slane %v1429, 5
        %v2235 = vsel %vm2217, %v2233, %v2234
        %v2236 = vrot.slane %v2234, 4
        %v2237 = vrot.slane %v1430, 5
        %v2238 = vsel %vm2217, %v2236, %v2237
        %v2239 = vrot.slane %v2154, 5
        %v2240 = vrot.slane %v2239, 4
        %v2241 = vrot.slane %v1432, 5
        %v2242 = vsel %vm2217, %v2240, %v2241
        %v2243 = vrot.slane %v2241, 4
        %v2244 = vrot.slane %v1433, 5
        %v2245 = vsel %vm2217, %v2243, %v2244
        %v2246 = vrot.slane %v2155, 5
        %v2247 = vrot.slane %v2246, 4
        %v2248 = vrot.slane %v1435, 5
        %v2249 = vsel %vm2217, %v2247, %v2248
        %v2250 = vrot.slane %v2248, 4
        %v2251 = vrot.slane %v1436, 5
        %v2252 = vsel %vm2217, %v2250, %v2251
        %v2253 = vrot.slane %v2156, 5
        %v2254 = vrot.slane %v2253, 4
        %v2255 = vrot.slane %v1438, 5
        %v2256 = vsel %vm2217, %v2254, %v2255
        %v2257 = vrot.slane %v2255, 4
        %v2258 = vrot.slane %v1439, 5
        %v2259 = vsel %vm2217, %v2257, %v2258
        %v2260 = vrot.slane %v2157, 5
        %v2261 = vrot.slane %v2260, 4
        %v2262 = vrot.slane %v1441, 5
        %v2263 = vsel %vm2217, %v2261, %v2262
        %v2264 = vrot.slane %v2262, 4
        %v2265 = vrot.slane %v1442, 5
        %v2266 = vsel %vm2217, %v2264, %v2265
        %v2267 = vrot.slane %v2158, 5
        %v2268 = vrot.slane %v2267, 4
        %v2269 = vrot.slane %v1444, 5
        %v2270 = vsel %vm2217, %v2268, %v2269
        %v2271 = vrot.slane %v2269, 4
        %v2272 = vrot.slane %v1445, 5
        %v2273 = vsel %vm2217, %v2271, %v2272
        %v2274 = vrot.slane %v2159, 5
        %v2275 = vrot.slane %v2274, 4
        %v2276 = vrot.slane %v1447, 5
        %v2277 = vsel %vm2217, %v2275, %v2276
        %v2278 = vrot.slane %v2276, 4
        %v2279 = vrot.slane %v1448, 5
        %v2280 = vsel %vm2217, %v2278, %v2279
        %v2281 = vrot.slane %v2160, 5
        %v2282 = vrot.slane %v2281, 4
        %v2283 = vrot.slane %v1450, 5
        %v2284 = vsel %vm2217, %v2282, %v2283
        %v2285 = vrot.slane %v2283, 4
        %v2286 = vrot.slane %v1451, 5
        %v2287 = vsel %vm2217, %v2285, %v2286
        %v2288 = vrot.slane %v2161, 5
        %v2289 = vrot.slane %v2288, 4
        %v2290 = vrot.slane %v1453, 5
        %v2291 = vsel %vm2217, %v2289, %v2290
        %v2292 = vrot.slane %v2290, 4
        %v2293 = vrot.slane %v1454, 5
        %v2294 = vsel %vm2217, %v2292, %v2293
        %v2295 = vrot.slane %v2162, 5
        %v2296 = vrot.slane %v2295, 4
        %v2297 = vrot.slane %v1456, 5
        %v2298 = vsel %vm2217, %v2296, %v2297
        %v2299 = vrot.slane %v2297, 4
        %v2300 = vrot.slane %v1457, 5
        %v2301 = vsel %vm2217, %v2299, %v2300
        %v2302 = vrot.slane %v2163, 5
        %v2303 = vrot.slane %v2302, 4
        %v2304 = vrot.slane %v1459, 5
        %v2305 = vsel %vm2217, %v2303, %v2304
        %v2306 = vrot.slane %v2304, 4
        %v2307 = vrot.slane %v1460, 5
        %v2308 = vsel %vm2217, %v2306, %v2307
        %v2309 = vrot.slane %v2164, 5
        %v2310 = vrot.slane %v2309, 4
        %v2311 = vrot.slane %v1462, 5
        %v2312 = vsel %vm2217, %v2310, %v2311
        %v2313 = vrot.slane %v2311, 4
        %v2314 = vrot.slane %v1463, 5
        %v2315 = vsel %vm2217, %v2313, %v2314
        %v2316 = vrot.slane %v2165, 5
        %v2317 = vrot.slane %v2316, 4
        %v2318 = vrot.slane %v1465, 5
        %v2319 = vsel %vm2217, %v2317, %v2318
        %v2320 = vrot.slane %v2318, 4
        %v2321 = vrot.slane %v1466, 5
        %v2322 = vsel %vm2217, %v2320, %v2321
        %v2323 = vrot.slane %v2166, 5
        %v2324 = vrot.slane %v2323, 4
        %v2325 = vrot.slane %v1468, 5
        %v2326 = vsel %vm2217, %v2324, %v2325
        %v2327 = vrot.slane %v2325, 4
        %v2328 = vrot.slane %v1469, 5
        %v2329 = vsel %vm2217, %v2327, %v2328
        %s2330 = scalar_lea.vmem [#allocation6], 4
        %v2331 = vld [vmem:[%s2330] sm:$0x3]
        %v2332 = vunpack.c.l.b16 %v2221
        %v2333 = vunpack.c.l.b16 %v2224
        %v2334 = vunpack.c.l.b16 %v2228
        %v2335 = vunpack.c.l.b16 %v2231
        %v2336 = vunpack.c.l.b16 %v2235
        %v2337 = vunpack.c.l.b16 %v2238
        %v2338 = vunpack.c.l.b16 %v2242
        %v2339 = vunpack.c.l.b16 %v2245
        %v2340 = vunpack.c.l.b16 %v2249
        %v2341 = vunpack.c.l.b16 %v2252
        %v2342 = vunpack.c.l.b16 %v2256
        %v2343 = vunpack.c.l.b16 %v2259
        %v2344 = vunpack.c.l.b16 %v2263
        %v2345 = vunpack.c.l.b16 %v2266
        %v2346 = vunpack.c.l.b16 %v2270
        %v2347 = vunpack.c.l.b16 %v2273
        %v2348 = vunpack.c.l.b16 %v2277
        %v2349 = vunpack.c.l.b16 %v2280
        %v2350 = vunpack.c.l.b16 %v2284
        %v2351 = vunpack.c.l.b16 %v2287
        %v2352 = vunpack.c.l.b16 %v2291
        %v2353 = vunpack.c.l.b16 %v2294
        %v2354 = vunpack.c.l.b16 %v2298
        %v2355 = vunpack.c.l.b16 %v2301
        %v2356 = vunpack.c.l.b16 %v2305
        %v2357 = vunpack.c.l.b16 %v2308
        %v2358 = vunpack.c.l.b16 %v2312
        %v2359 = vunpack.c.l.b16 %v2315
        %v2360 = vunpack.c.l.b16 %v2319
        %v2361 = vunpack.c.l.b16 %v2322
        %v2362 = vunpack.c.l.b16 %v2326
        %v2363 = vunpack.c.l.b16 %v2329
        %v2364 = vpack.c.b16 %v2333, %v2332
        %v2365 = vpack.c.b16 %v2335, %v2334
        %v2366 = vpack.c.b16 %v2337, %v2336
        %v2367 = vpack.c.b16 %v2339, %v2338
        %v2368 = vpack.c.b16 %v2341, %v2340
        %v2369 = vpack.c.b16 %v2343, %v2342
        %v2370 = vpack.c.b16 %v2345, %v2344
        %v2371 = vpack.c.b16 %v2347, %v2346
        %v2372 = vpack.c.b16 %v2349, %v2348
        %v2373 = vpack.c.b16 %v2351, %v2350
        %v2374 = vpack.c.b16 %v2353, %v2352
        %v2375 = vpack.c.b16 %v2355, %v2354
        %v2376 = vpack.c.b16 %v2357, %v2356
        %v2377 = vpack.c.b16 %v2359, %v2358
        %v2378 = vpack.c.b16 %v2361, %v2360
        %v2379 = vpack.c.b16 %v2363, %v2362
        %v2381 = vsel %vm1208, %v2364, 0
        %v2384 = vsel %vm1208, %v2365, 0
        %v2387 = vsel %vm1208, %v2366, 0
        %v2390 = vsel %vm1208, %v2367, 0
        %v2393 = vsel %vm1208, %v2368, 0
        %v2396 = vsel %vm1208, %v2369, 0
        %v2399 = vsel %vm1208, %v2370, 0
        %v2402 = vsel %vm1208, %v2371, 0
        %v2405 = vsel %vm1208, %v2372, 0
        %v2408 = vsel %vm1208, %v2373, 0
        %v2411 = vsel %vm1208, %v2374, 0
        %v2414 = vsel %vm1208, %v2375, 0
        %v2417 = vsel %vm1208, %v2376, 0
        %v2420 = vsel %vm1208, %v2377, 0
        %v2423 = vsel %vm1208, %v2378, 0
        %v2426 = vsel %vm1208, %v2379, 0
        %v2429 = vsel %vm1257, %v2331, 0
        %2431 = vmatprep.subr.bf16.mxu0 0
        %2432 = vmatpush1.bf16.msra.mxu0 %v2429
        %2433 = vmatprep.subr.bf16.mxu0 0
        %2434 = vmatpush1.bf16.msra.mxu0 0
        %2435 = vmatprep.subr.bf16.mxu0 0
        %2436 = vmatpush1.bf16.msra.mxu0 0
        %2437 = vmatprep.subr.bf16.mxu0 0
        %2438 = vmatpush1.bf16.msra.mxu0 0
        %2439 = vmatprep.subr.bf16.mxu0 0
        %2440 = vmatpush1.bf16.msra.mxu0 0
        %2441 = vmatprep.subr.bf16.mxu0 0
        %2442 = vmatpush1.bf16.msra.mxu0 0
        %2443 = vmatprep.subr.bf16.mxu0 0
        %2444 = vmatpush1.bf16.msra.mxu0 0
        %2445 = vmatprep.subr.bf16.mxu0 0
        %2446 = vmatpush1.bf16.msra.mxu0 0
        %2447 = vmatprep.subr.bf16.mxu0 0
        %2448 = vmatpush1.bf16.msra.mxu0 0
        %2449 = vmatprep.subr.bf16.mxu0 0
        %2450 = vmatpush1.bf16.msra.mxu0 0
        %2451 = vmatprep.subr.bf16.mxu0 0
        %2452 = vmatpush1.bf16.msra.mxu0 0
        %2453 = vmatprep.subr.bf16.mxu0 0
        %2454 = vmatpush1.bf16.msra.mxu0 0
        %2455 = vmatprep.subr.bf16.mxu0 0
        %2456 = vmatpush1.bf16.msra.mxu0 0
        %2457 = vmatprep.subr.bf16.mxu0 0
        %2458 = vmatpush1.bf16.msra.mxu0 0
        %2459 = vmatprep.subr.bf16.mxu0 0
        %2460 = vmatpush1.bf16.msra.mxu0 0
        %2461 = vmatprep.subr.bf16.mxu0 0
        %2462 = vmatpush1.bf16.msra.mxu0 0
        %2463 = vmatprep.mubr.bf16.mxu0 0
        %2464 = vmatmul.mubr.bf16.gmra.mrb[0].mxu0 %v2381
        %v2465 = vpop.f32.mrb[0].mxu0
        %v2466 = vadd.f32 0.0, %v2465
        %v2467 = vpop.f32.mrb[0].mxu0
        %v2468 = vpop.f32.mrb[0].mxu0
        %v2469 = vadd.f32 0.0, %v2468
        %v2470 = vpop.f32.mrb[0].mxu0
        %2471 = vmatprep.mubr.bf16.mxu0 0
        %2472 = vmatmul.mubr.bf16.gmra.mrb[0].mxu0 %v2384
        %v2473 = vpop.f32.mrb[0].mxu0
        %v2474 = vadd.f32 0.0, %v2473
        %v2475 = vpop.f32.mrb[0].mxu0
        %v2476 = vpop.f32.mrb[0].mxu0
        %v2477 = vadd.f32 0.0, %v2476
        %v2478 = vpop.f32.mrb[0].mxu0
        %2479 = vmatprep.mubr.bf16.mxu0 0
        %2480 = vmatmul.mubr.bf16.gmra.mrb[0].mxu0 %v2387
        %v2481 = vpop.f32.mrb[0].mxu0
        %v2482 = vadd.f32 0.0, %v2481
        %v2483 = vpop.f32.mrb[0].mxu0
        %v2484 = vpop.f32.mrb[0].mxu0
        %v2485 = vadd.f32 0.0, %v2484
        %v2486 = vpop.f32.mrb[0].mxu0
        %2487 = vmatprep.mubr.bf16.mxu0 0
        %2488 = vmatmul.mubr.bf16.gmra.mrb[0].mxu0 %v2390
        %v2489 = vpop.f32.mrb[0].mxu0
        %v2490 = vadd.f32 0.0, %v2489
        %v2491 = vpop.f32.mrb[0].mxu0
        %v2492 = vpop.f32.mrb[0].mxu0
        %v2493 = vadd.f32 0.0, %v2492
        %v2494 = vpop.f32.mrb[0].mxu0
        %2495 = vmatprep.mubr.bf16.mxu0 0
        %2496 = vmatmul.mubr.bf16.gmra.mrb[0].mxu0 %v2393
        %v2497 = vpop.f32.mrb[0].mxu0
        %v2498 = vadd.f32 0.0, %v2497
        %v2499 = vpop.f32.mrb[0].mxu0
        %v2500 = vpop.f32.mrb[0].mxu0
        %v2501 = vadd.f32 0.0, %v2500
        %v2502 = vpop.f32.mrb[0].mxu0
        %2503 = vmatprep.mubr.bf16.mxu0 0
        %2504 = vmatmul.mubr.bf16.gmra.mrb[0].mxu0 %v2396
        %v2505 = vpop.f32.mrb[0].mxu0
        %v2506 = vadd.f32 0.0, %v2505
        %v2507 = vpop.f32.mrb[0].mxu0
        %v2508 = vpop.f32.mrb[0].mxu0
        %v2509 = vadd.f32 0.0, %v2508
        %v2510 = vpop.f32.mrb[0].mxu0
        %2511 = vmatprep.mubr.bf16.mxu0 0
        %2512 = vmatmul.mubr.bf16.gmra.mrb[0].mxu0 %v2399
        %v2513 = vpop.f32.mrb[0].mxu0
        %v2514 = vadd.f32 0.0, %v2513
        %v2515 = vpop.f32.mrb[0].mxu0
        %v2516 = vpop.f32.mrb[0].mxu0
        %v2517 = vadd.f32 0.0, %v2516
        %v2518 = vpop.f32.mrb[0].mxu0
        %2519 = vmatprep.mubr.bf16.mxu0 0
        %2520 = vmatmul.mubr.bf16.gmra.mrb[0].mxu0 %v2402
        %v2521 = vpop.f32.mrb[0].mxu0
        %v2522 = vadd.f32 0.0, %v2521
        %v2523 = vpop.f32.mrb[0].mxu0
        %v2524 = vpop.f32.mrb[0].mxu0
        %v2525 = vadd.f32 0.0, %v2524
        %v2526 = vpop.f32.mrb[0].mxu0
        %2527 = vmatprep.mubr.bf16.mxu0 0
        %2528 = vmatmul.mubr.bf16.gmra.mrb[0].mxu0 %v2405
        %v2529 = vpop.f32.mrb[0].mxu0
        %v2530 = vadd.f32 0.0, %v2529
        %v2531 = vpop.f32.mrb[0].mxu0
        %v2532 = vpop.f32.mrb[0].mxu0
        %v2533 = vadd.f32 0.0, %v2532
        %v2534 = vpop.f32.mrb[0].mxu0
        %2535 = vmatprep.mubr.bf16.mxu0 0
        %2536 = vmatmul.mubr.bf16.gmra.mrb[0].mxu0 %v2408
        %v2537 = vpop.f32.mrb[0].mxu0
        %v2538 = vadd.f32 0.0, %v2537
        %v2539 = vpop.f32.mrb[0].mxu0
        %v2540 = vpop.f32.mrb[0].mxu0
        %v2541 = vadd.f32 0.0, %v2540
        %v2542 = vpop.f32.mrb[0].mxu0
        %2543 = vmatprep.mubr.bf16.mxu0 0
        %2544 = vmatmul.mubr.bf16.gmra.mrb[0].mxu0 %v2411
        %v2545 = vpop.f32.mrb[0].mxu0
        %v2546 = vadd.f32 0.0, %v2545
        %v2547 = vpop.f32.mrb[0].mxu0
        %v2548 = vpop.f32.mrb[0].mxu0
        %v2549 = vadd.f32 0.0, %v2548
        %v2550 = vpop.f32.mrb[0].mxu0
        %2551 = vmatprep.mubr.bf16.mxu0 0
        %2552 = vmatmul.mubr.bf16.gmra.mrb[0].mxu0 %v2414
        %v2553 = vpop.f32.mrb[0].mxu0
        %v2554 = vadd.f32 0.0, %v2553
        %v2555 = vpop.f32.mrb[0].mxu0
        %v2556 = vpop.f32.mrb[0].mxu0
        %v2557 = vadd.f32 0.0, %v2556
        %v2558 = vpop.f32.mrb[0].mxu0
        %2559 = vmatprep.mubr.bf16.mxu0 0
        %2560 = vmatmul.mubr.bf16.gmra.mrb[0].mxu0 %v2417
        %v2561 = vpop.f32.mrb[0].mxu0
        %v2562 = vadd.f32 0.0, %v2561
        %v2563 = vpop.f32.mrb[0].mxu0
        %v2564 = vpop.f32.mrb[0].mxu0
        %v2565 = vadd.f32 0.0, %v2564
        %v2566 = vpop.f32.mrb[0].mxu0
        %2567 = vmatprep.mubr.bf16.mxu0 0
        %2568 = vmatmul.mubr.bf16.gmra.mrb[0].mxu0 %v2420
        %v2569 = vpop.f32.mrb[0].mxu0
        %v2570 = vadd.f32 0.0, %v2569
        %v2571 = vpop.f32.mrb[0].mxu0
        %v2572 = vpop.f32.mrb[0].mxu0
        %v2573 = vadd.f32 0.0, %v2572
        %v2574 = vpop.f32.mrb[0].mxu0
        %2575 = vmatprep.mubr.bf16.mxu0 0
        %2576 = vmatmul.mubr.bf16.gmra.mrb[0].mxu0 %v2423
        %v2577 = vpop.f32.mrb[0].mxu0
        %v2578 = vadd.f32 0.0, %v2577
        %v2579 = vpop.f32.mrb[0].mxu0
        %v2580 = vpop.f32.mrb[0].mxu0
        %v2581 = vadd.f32 0.0, %v2580
        %v2582 = vpop.f32.mrb[0].mxu0
        %2583 = vmatprep.mubr.bf16.mxu0 0
        %2584 = vmatmul.mubr.bf16.gmra.mrb[0].mxu0 %v2426
        %v2585 = vpop.f32.mrb[0].mxu0
        %v2586 = vadd.f32 0.0, %v2585
        %v2587 = vpop.f32.mrb[0].mxu0
        %v2588 = vpop.f32.mrb[0].mxu0
        %v2589 = vadd.f32 0.0, %v2588
        %v2590 = vpop.f32.mrb[0].mxu0
        %2591 = vdwg.mxu0
        %v2592 = vadd.f32 %v2119, %v2466
        %v2593 = vadd.f32 %v2120, %v2469
        %v2594 = vadd.f32 %v2121, %v2474
        %v2595 = vadd.f32 %v2122, %v2477
        %v2596 = vadd.f32 %v2123, %v2482
        %v2597 = vadd.f32 %v2124, %v2485
        %v2598 = vadd.f32 %v2125, %v2490
        %v2599 = vadd.f32 %v2126, %v2493
        %v2600 = vadd.f32 %v2127, %v2498
        %v2601 = vadd.f32 %v2128, %v2501
        %v2602 = vadd.f32 %v2129, %v2506
        %v2603 = vadd.f32 %v2130, %v2509
        %v2604 = vadd.f32 %v2131, %v2514
        %v2605 = vadd.f32 %v2132, %v2517
        %v2606 = vadd.f32 %v2133, %v2522
        %v2607 = vadd.f32 %v2134, %v2525
        %v2608 = vadd.f32 %v2135, %v2530
        %v2609 = vadd.f32 %v2136, %v2533
        %v2610 = vadd.f32 %v2137, %v2538
        %v2611 = vadd.f32 %v2138, %v2541
        %v2612 = vadd.f32 %v2139, %v2546
        %v2613 = vadd.f32 %v2140, %v2549
        %v2614 = vadd.f32 %v2141, %v2554
        %v2615 = vadd.f32 %v2142, %v2557
        %v2616 = vadd.f32 %v2143, %v2562
        %v2617 = vadd.f32 %v2144, %v2565
        %v2618 = vadd.f32 %v2145, %v2570
        %v2619 = vadd.f32 %v2146, %v2573
        %v2620 = vadd.f32 %v2147, %v2578
        %v2621 = vadd.f32 %v2148, %v2581
        %v2622 = vadd.f32 %v2149, %v2586
        %v2623 = vadd.f32 %v2150, %v2589
        %v2624 = vld [vmem:[%s749] sm:$0xf]
        %v2625 = vld [vmem:[%s749 + $0x4] sm:$0xf]
        %v2626 = vld [vmem:[%s749 + $0xc] sm:$0xf]
        %v2627 = vld [vmem:[%s749 + $0x10] sm:$0xf]
        %v2628 = vld [vmem:[%s749 + $0x18] sm:$0xf]
        %v2629 = vld [vmem:[%s749 + $0x1c] sm:$0xf]
        %v2630 = vld [vmem:[%s749 + $0x24] sm:$0xf]
        %v2631 = vld [vmem:[%s749 + $0x28] sm:$0xf]
        %v2632 = vld [vmem:[%s749 + $0x30] sm:$0xf]
        %v2633 = vld [vmem:[%s749 + $0x34] sm:$0xf]
        %v2634 = vld [vmem:[%s749 + $0x3c] sm:$0xf]
        %v2635 = vld [vmem:[%s749 + $0x40] sm:$0xf]
        %v2636 = vld [vmem:[%s749 + $0x48] sm:$0xf]
        %v2637 = vld [vmem:[%s749 + $0x4c] sm:$0xf]
        %v2638 = vld [vmem:[%s749 + $0x54] sm:$0xf]
        %v2639 = vld [vmem:[%s749 + $0x58] sm:$0xf]
        %v2640 = vld [vmem:[%s749 + $0x60] sm:$0xf]
        %v2641 = vld [vmem:[%s749 + $0x64] sm:$0xf]
        %v2642 = vld [vmem:[%s749 + $0x6c] sm:$0xf]
        %v2643 = vld [vmem:[%s749 + $0x70] sm:$0xf]
        %v2644 = vld [vmem:[%s749 + $0x78] sm:$0xf]
        %v2645 = vld [vmem:[%s749 + $0x7c] sm:$0xf]
        %v2646 = vld [vmem:[%s749 + $0x84] sm:$0xf]
        %v2647 = vld [vmem:[%s749 + $0x88] sm:$0xf]
        %v2648 = vld [vmem:[%s749 + $0x90] sm:$0xf]
        %v2649 = vld [vmem:[%s749 + $0x94] sm:$0xf]
        %v2650 = vld [vmem:[%s749 + $0x9c] sm:$0xf]
        %v2651 = vld [vmem:[%s749 + $0xa0] sm:$0xf]
        %v2652 = vld [vmem:[%s749 + $0xa8] sm:$0xf]
        %v2653 = vld [vmem:[%s749 + $0xac] sm:$0xf]
        %v2654 = vld [vmem:[%s749 + $0xb4] sm:$0xf]
        %v2655 = vld [vmem:[%s749 + $0xb8] sm:$0xf]
        %s2656 = scalar_lea.vmem [#allocation6], 6
        %v2657 = vld [vmem:[%s2656] sm:$0x3]
        %v2690 = vunpack.c.l.b16 %v2624
        %v2691 = vunpack.c.l.b16 %v2625
        %v2692 = vunpack.c.l.b16 %v2626
        %v2693 = vunpack.c.l.b16 %v2627
        %v2694 = vunpack.c.l.b16 %v2628
        %v2695 = vunpack.c.l.b16 %v2629
        %v2696 = vunpack.c.l.b16 %v2630
        %v2697 = vunpack.c.l.b16 %v2631
        %v2698 = vunpack.c.l.b16 %v2632
        %v2699 = vunpack.c.l.b16 %v2633
        %v2700 = vunpack.c.l.b16 %v2634
        %v2701 = vunpack.c.l.b16 %v2635
        %v2702 = vunpack.c.l.b16 %v2636
        %v2703 = vunpack.c.l.b16 %v2637
        %v2704 = vunpack.c.l.b16 %v2638
        %v2705 = vunpack.c.l.b16 %v2639
        %v2706 = vunpack.c.l.b16 %v2640
        %v2707 = vunpack.c.l.b16 %v2641
        %v2708 = vunpack.c.l.b16 %v2642
        %v2709 = vunpack.c.l.b16 %v2643
        %v2710 = vunpack.c.l.b16 %v2644
        %v2711 = vunpack.c.l.b16 %v2645
        %v2712 = vunpack.c.l.b16 %v2646
        %v2713 = vunpack.c.l.b16 %v2647
        %v2714 = vunpack.c.l.b16 %v2648
        %v2715 = vunpack.c.l.b16 %v2649
        %v2716 = vunpack.c.l.b16 %v2650
        %v2717 = vunpack.c.l.b16 %v2651
        %v2718 = vunpack.c.l.b16 %v2652
        %v2719 = vunpack.c.l.b16 %v2653
        %v2720 = vunpack.c.l.b16 %v2654
        %v2721 = vunpack.c.l.b16 %v2655
        %v2722 = vpack.c.b16 %v2691, %v2690
        %v2723 = vpack.c.b16 %v2693, %v2692
        %v2724 = vpack.c.b16 %v2695, %v2694
        %v2725 = vpack.c.b16 %v2697, %v2696
        %v2726 = vpack.c.b16 %v2699, %v2698
        %v2727 = vpack.c.b16 %v2701, %v2700
        %v2728 = vpack.c.b16 %v2703, %v2702
        %v2729 = vpack.c.b16 %v2705, %v2704
        %v2730 = vpack.c.b16 %v2707, %v2706
        %v2731 = vpack.c.b16 %v2709, %v2708
        %v2732 = vpack.c.b16 %v2711, %v2710
        %v2733 = vpack.c.b16 %v2713, %v2712
        %v2734 = vpack.c.b16 %v2715, %v2714
        %v2735 = vpack.c.b16 %v2717, %v2716
        %v2736 = vpack.c.b16 %v2719, %v2718
        %v2737 = vpack.c.b16 %v2721, %v2720
        %v2739 = vsel %vm1208, %v2722, 0
        %v2742 = vsel %vm1208, %v2723, 0
        %v2745 = vsel %vm1208, %v2724, 0
        %v2748 = vsel %vm1208, %v2725, 0
        %v2751 = vsel %vm1208, %v2726, 0
        %v2754 = vsel %vm1208, %v2727, 0
        %v2757 = vsel %vm1208, %v2728, 0
        %v2760 = vsel %vm1208, %v2729, 0
        %v2763 = vsel %vm1208, %v2730, 0
        %v2766 = vsel %vm1208, %v2731, 0
        %v2769 = vsel %vm1208, %v2732, 0
        %v2772 = vsel %vm1208, %v2733, 0
        %v2775 = vsel %vm1208, %v2734, 0
        %v2778 = vsel %vm1208, %v2735, 0
        %v2781 = vsel %vm1208, %v2736, 0
        %v2784 = vsel %vm1208, %v2737, 0
        %v2787 = vsel %vm1257, %v2657, 0
        %2789 = vmatprep.subr.bf16.mxu0 0
        %2790 = vmatpush1.bf16.msra.mxu0 %v2787
        %2791 = vmatprep.subr.bf16.mxu0 0
        %2792 = vmatpush1.bf16.msra.mxu0 0
        %2793 = vmatprep.subr.bf16.mxu0 0
        %2794 = vmatpush1.bf16.msra.mxu0 0
        %2795 = vmatprep.subr.bf16.mxu0 0
        %2796 = vmatpush1.bf16.msra.mxu0 0
        %2797 = vmatprep.subr.bf16.mxu0 0
        %2798 = vmatpush1.bf16.msra.mxu0 0
        %2799 = vmatprep.subr.bf16.mxu0 0
        %2800 = vmatpush1.bf16.msra.mxu0 0
        %2801 = vmatprep.subr.bf16.mxu0 0
        %2802 = vmatpush1.bf16.msra.mxu0 0
        %2803 = vmatprep.subr.bf16.mxu0 0
        %2804 = vmatpush1.bf16.msra.mxu0 0
        %2805 = vmatprep.subr.bf16.mxu0 0
        %2806 = vmatpush1.bf16.msra.mxu0 0
        %2807 = vmatprep.subr.bf16.mxu0 0
        %2808 = vmatpush1.bf16.msra.mxu0 0
        %2809 = vmatprep.subr.bf16.mxu0 0
        %2810 = vmatpush1.bf16.msra.mxu0 0
        %2811 = vmatprep.subr.bf16.mxu0 0
        %2812 = vmatpush1.bf16.msra.mxu0 0
        %2813 = vmatprep.subr.bf16.mxu0 0
        %2814 = vmatpush1.bf16.msra.mxu0 0
        %2815 = vmatprep.subr.bf16.mxu0 0
        %2816 = vmatpush1.bf16.msra.mxu0 0
        %2817 = vmatprep.subr.bf16.mxu0 0
        %2818 = vmatpush1.bf16.msra.mxu0 0
        %2819 = vmatprep.subr.bf16.mxu0 0
        %2820 = vmatpush1.bf16.msra.mxu0 0
        %2821 = vmatprep.mubr.bf16.mxu0 0
        %2822 = vmatmul.mubr.bf16.gmra.mrb[0].mxu0 %v2739
        %v2823 = vpop.f32.mrb[0].mxu0
        %v2824 = vadd.f32 0.0, %v2823
        %v2825 = vpop.f32.mrb[0].mxu0
        %v2826 = vpop.f32.mrb[0].mxu0
        %v2827 = vadd.f32 0.0, %v2826
        %v2828 = vpop.f32.mrb[0].mxu0
        %2829 = vmatprep.mubr.bf16.mxu0 0
        %2830 = vmatmul.mubr.bf16.gmra.mrb[0].mxu0 %v2742
        %v2831 = vpop.f32.mrb[0].mxu0
        %v2832 = vadd.f32 0.0, %v2831
        %v2833 = vpop.f32.mrb[0].mxu0
        %v2834 = vpop.f32.mrb[0].mxu0
        %v2835 = vadd.f32 0.0, %v2834
        %v2836 = vpop.f32.mrb[0].mxu0
        %2837 = vmatprep.mubr.bf16.mxu0 0
        %2838 = vmatmul.mubr.bf16.gmra.mrb[0].mxu0 %v2745
        %v2839 = vpop.f32.mrb[0].mxu0
        %v2840 = vadd.f32 0.0, %v2839
        %v2841 = vpop.f32.mrb[0].mxu0
        %v2842 = vpop.f32.mrb[0].mxu0
        %v2843 = vadd.f32 0.0, %v2842
        %v2844 = vpop.f32.mrb[0].mxu0
        %2845 = vmatprep.mubr.bf16.mxu0 0
        %2846 = vmatmul.mubr.bf16.gmra.mrb[0].mxu0 %v2748
        %v2847 = vpop.f32.mrb[0].mxu0
        %v2848 = vadd.f32 0.0, %v2847
        %v2849 = vpop.f32.mrb[0].mxu0
        %v2850 = vpop.f32.mrb[0].mxu0
        %v2851 = vadd.f32 0.0, %v2850
        %v2852 = vpop.f32.mrb[0].mxu0
        %2853 = vmatprep.mubr.bf16.mxu0 0
        %2854 = vmatmul.mubr.bf16.gmra.mrb[0].mxu0 %v2751
        %v2855 = vpop.f32.mrb[0].mxu0
        %v2856 = vadd.f32 0.0, %v2855
        %v2857 = vpop.f32.mrb[0].mxu0
        %v2858 = vpop.f32.mrb[0].mxu0
        %v2859 = vadd.f32 0.0, %v2858
        %v2860 = vpop.f32.mrb[0].mxu0
        %2861 = vmatprep.mubr.bf16.mxu0 0
        %2862 = vmatmul.mubr.bf16.gmra.mrb[0].mxu0 %v2754
        %v2863 = vpop.f32.mrb[0].mxu0
        %v2864 = vadd.f32 0.0, %v2863
        %v2865 = vpop.f32.mrb[0].mxu0
        %v2866 = vpop.f32.mrb[0].mxu0
        %v2867 = vadd.f32 0.0, %v2866
        %v2868 = vpop.f32.mrb[0].mxu0
        %2869 = vmatprep.mubr.bf16.mxu0 0
        %2870 = vmatmul.mubr.bf16.gmra.mrb[0].mxu0 %v2757
        %v2871 = vpop.f32.mrb[0].mxu0
        %v2872 = vadd.f32 0.0, %v2871
        %v2873 = vpop.f32.mrb[0].mxu0
        %v2874 = vpop.f32.mrb[0].mxu0
        %v2875 = vadd.f32 0.0, %v2874
        %v2876 = vpop.f32.mrb[0].mxu0
        %2877 = vmatprep.mubr.bf16.mxu0 0
        %2878 = vmatmul.mubr.bf16.gmra.mrb[0].mxu0 %v2760
        %v2879 = vpop.f32.mrb[0].mxu0
        %v2880 = vadd.f32 0.0, %v2879
        %v2881 = vpop.f32.mrb[0].mxu0
        %v2882 = vpop.f32.mrb[0].mxu0
        %v2883 = vadd.f32 0.0, %v2882
        %v2884 = vpop.f32.mrb[0].mxu0
        %2885 = vmatprep.mubr.bf16.mxu0 0
        %2886 = vmatmul.mubr.bf16.gmra.mrb[0].mxu0 %v2763
        %v2887 = vpop.f32.mrb[0].mxu0
        %v2888 = vadd.f32 0.0, %v2887
        %v2889 = vpop.f32.mrb[0].mxu0
        %v2890 = vpop.f32.mrb[0].mxu0
        %v2891 = vadd.f32 0.0, %v2890
        %v2892 = vpop.f32.mrb[0].mxu0
        %2893 = vmatprep.mubr.bf16.mxu0 0
        %2894 = vmatmul.mubr.bf16.gmra.mrb[0].mxu0 %v2766
        %v2895 = vpop.f32.mrb[0].mxu0
        %v2896 = vadd.f32 0.0, %v2895
        %v2897 = vpop.f32.mrb[0].mxu0
        %v2898 = vpop.f32.mrb[0].mxu0
        %v2899 = vadd.f32 0.0, %v2898
        %v2900 = vpop.f32.mrb[0].mxu0
        %2901 = vmatprep.mubr.bf16.mxu0 0
        %2902 = vmatmul.mubr.bf16.gmra.mrb[0].mxu0 %v2769
        %v2903 = vpop.f32.mrb[0].mxu0
        %v2904 = vadd.f32 0.0, %v2903
        %v2905 = vpop.f32.mrb[0].mxu0
        %v2906 = vpop.f32.mrb[0].mxu0
        %v2907 = vadd.f32 0.0, %v2906
        %v2908 = vpop.f32.mrb[0].mxu0
        %2909 = vmatprep.mubr.bf16.mxu0 0
        %2910 = vmatmul.mubr.bf16.gmra.mrb[0].mxu0 %v2772
        %v2911 = vpop.f32.mrb[0].mxu0
        %v2912 = vadd.f32 0.0, %v2911
        %v2913 = vpop.f32.mrb[0].mxu0
        %v2914 = vpop.f32.mrb[0].mxu0
        %v2915 = vadd.f32 0.0, %v2914
        %v2916 = vpop.f32.mrb[0].mxu0
        %2917 = vmatprep.mubr.bf16.mxu0 0
        %2918 = vmatmul.mubr.bf16.gmra.mrb[0].mxu0 %v2775
        %v2919 = vpop.f32.mrb[0].mxu0
        %v2920 = vadd.f32 0.0, %v2919
        %v2921 = vpop.f32.mrb[0].mxu0
        %v2922 = vpop.f32.mrb[0].mxu0
        %v2923 = vadd.f32 0.0, %v2922
        %v2924 = vpop.f32.mrb[0].mxu0
        %2925 = vmatprep.mubr.bf16.mxu0 0
        %2926 = vmatmul.mubr.bf16.gmra.mrb[0].mxu0 %v2778
        %v2927 = vpop.f32.mrb[0].mxu0
        %v2928 = vadd.f32 0.0, %v2927
        %v2929 = vpop.f32.mrb[0].mxu0
        %v2930 = vpop.f32.mrb[0].mxu0
        %v2931 = vadd.f32 0.0, %v2930
        %v2932 = vpop.f32.mrb[0].mxu0
        %2933 = vmatprep.mubr.bf16.mxu0 0
        %2934 = vmatmul.mubr.bf16.gmra.mrb[0].mxu0 %v2781
        %v2935 = vpop.f32.mrb[0].mxu0
        %v2936 = vadd.f32 0.0, %v2935
        %v2937 = vpop.f32.mrb[0].mxu0
        %v2938 = vpop.f32.mrb[0].mxu0
        %v2939 = vadd.f32 0.0, %v2938
        %v2940 = vpop.f32.mrb[0].mxu0
        %2941 = vmatprep.mubr.bf16.mxu0 0
        %2942 = vmatmul.mubr.bf16.gmra.mrb[0].mxu0 %v2784
        %v2943 = vpop.f32.mrb[0].mxu0
        %v2944 = vadd.f32 0.0, %v2943
        %v2945 = vpop.f32.mrb[0].mxu0
        %v2946 = vpop.f32.mrb[0].mxu0
        %v2947 = vadd.f32 0.0, %v2946
        %v2948 = vpop.f32.mrb[0].mxu0
        %2949 = vdwg.mxu0
        %v2950 = vadd.f32 %v2592, %v2824
        %v2951 = vadd.f32 %v2593, %v2827
        %v2952 = vadd.f32 %v2594, %v2832
        %v2953 = vadd.f32 %v2595, %v2835
        %v2954 = vadd.f32 %v2596, %v2840
        %v2955 = vadd.f32 %v2597, %v2843
        %v2956 = vadd.f32 %v2598, %v2848
        %v2957 = vadd.f32 %v2599, %v2851
        %v2958 = vadd.f32 %v2600, %v2856
        %v2959 = vadd.f32 %v2601, %v2859
        %v2960 = vadd.f32 %v2602, %v2864
        %v2961 = vadd.f32 %v2603, %v2867
        %v2962 = vadd.f32 %v2604, %v2872
        %v2963 = vadd.f32 %v2605, %v2875
        %v2964 = vadd.f32 %v2606, %v2880
        %v2965 = vadd.f32 %v2607, %v2883
        %v2966 = vadd.f32 %v2608, %v2888
        %v2967 = vadd.f32 %v2609, %v2891
        %v2968 = vadd.f32 %v2610, %v2896
        %v2969 = vadd.f32 %v2611, %v2899
        %v2970 = vadd.f32 %v2612, %v2904
        %v2971 = vadd.f32 %v2613, %v2907
        %v2972 = vadd.f32 %v2614, %v2912
        %v2973 = vadd.f32 %v2615, %v2915
        %v2974 = vadd.f32 %v2616, %v2920
        %v2975 = vadd.f32 %v2617, %v2923
        %v2976 = vadd.f32 %v2618, %v2928
        %v2977 = vadd.f32 %v2619, %v2931
        %v2978 = vadd.f32 %v2620, %v2936
        %v2979 = vadd.f32 %v2621, %v2939
        %v2980 = vadd.f32 %v2622, %v2944
        %v2981 = vadd.f32 %v2623, %v2947
        %v2982 = vld [vmem:[%s749] sm:$0xf]
        %v2983 = vld [vmem:[%s749 + $0x4] sm:$0xf]
        %v2984 = vld [vmem:[%s749 + $0x8] sm:$0x1]
        %v2985 = vld [vmem:[%s749 + $0xc] sm:$0xf]
        %v2986 = vld [vmem:[%s749 + $0x10] sm:$0xf]
        %v2987 = vld [vmem:[%s749 + $0x14] sm:$0x1]
        %v2988 = vld [vmem:[%s749 + $0x18] sm:$0xf]
        %v2989 = vld [vmem:[%s749 + $0x1c] sm:$0xf]
        %v2990 = vld [vmem:[%s749 + $0x20] sm:$0x1]
        %v2991 = vld [vmem:[%s749 + $0x24] sm:$0xf]
        %v2992 = vld [vmem:[%s749 + $0x28] sm:$0xf]
        %v2993 = vld [vmem:[%s749 + $0x2c] sm:$0x1]
        %v2994 = vld [vmem:[%s749 + $0x30] sm:$0xf]
        %v2995 = vld [vmem:[%s749 + $0x34] sm:$0xf]
        %v2996 = vld [vmem:[%s749 + $0x38] sm:$0x1]
        %v2997 = vld [vmem:[%s749 + $0x3c] sm:$0xf]
        %v2998 = vld [vmem:[%s749 + $0x40] sm:$0xf]
        %v2999 = vld [vmem:[%s749 + $0x44] sm:$0x1]
        %v3000 = vld [vmem:[%s749 + $0x48] sm:$0xf]
        %v3001 = vld [vmem:[%s749 + $0x4c] sm:$0xf]
        %v3002 = vld [vmem:[%s749 + $0x50] sm:$0x1]
        %v3003 = vld [vmem:[%s749 + $0x54] sm:$0xf]
        %v3004 = vld [vmem:[%s749 + $0x58] sm:$0xf]
        %v3005 = vld [vmem:[%s749 + $0x5c] sm:$0x1]
        %v3006 = vld [vmem:[%s749 + $0x60] sm:$0xf]
        %v3007 = vld [vmem:[%s749 + $0x64] sm:$0xf]
        %v3008 = vld [vmem:[%s749 + $0x68] sm:$0x1]
        %v3009 = vld [vmem:[%s749 + $0x6c] sm:$0xf]
        %v3010 = vld [vmem:[%s749 + $0x70] sm:$0xf]
        %v3011 = vld [vmem:[%s749 + $0x74] sm:$0x1]
        %v3012 = vld [vmem:[%s749 + $0x78] sm:$0xf]
        %v3013 = vld [vmem:[%s749 + $0x7c] sm:$0xf]
        %v3014 = vld [vmem:[%s749 + $0x80] sm:$0x1]
        %v3015 = vld [vmem:[%s749 + $0x84] sm:$0xf]
        %v3016 = vld [vmem:[%s749 + $0x88] sm:$0xf]
        %v3017 = vld [vmem:[%s749 + $0x8c] sm:$0x1]
        %v3018 = vld [vmem:[%s749 + $0x90] sm:$0xf]
        %v3019 = vld [vmem:[%s749 + $0x94] sm:$0xf]
        %v3020 = vld [vmem:[%s749 + $0x98] sm:$0x1]
        %v3021 = vld [vmem:[%s749 + $0x9c] sm:$0xf]
        %v3022 = vld [vmem:[%s749 + $0xa0] sm:$0xf]
        %v3023 = vld [vmem:[%s749 + $0xa4] sm:$0x1]
        %v3024 = vld [vmem:[%s749 + $0xa8] sm:$0xf]
        %v3025 = vld [vmem:[%s749 + $0xac] sm:$0xf]
        %v3026 = vld [vmem:[%s749 + $0xb0] sm:$0x1]
        %v3027 = vld [vmem:[%s749 + $0xb4] sm:$0xf]
        %v3028 = vld [vmem:[%s749 + $0xb8] sm:$0xf]
        %v3029 = vld [vmem:[%s749 + $0xbc] sm:$0x1]
        %v3031 = vshrl.u32 %v2982, 16
        %v3033 = vrot.slane %v3031, 4
        %v3034 = vshll.u32 %v2982, 16
        %v3036 = vrot.slane %v3034, 5
        %v3037 = vor.u32 %v3033, %v3036
        %v3038 = vrot.slane %v3037, 4
        %v3040 = vshll.u32 %v2983, 16
        %v3042 = vrot.slane %v3040, 5
        %v3043 = vsel %vm1472, %v3038, %v3042
        %v3044 = vshrl.u32 %v2983, 16
        %v3046 = vrot.slane %v3044, 4
        %v3047 = vor.u32 %v3046, %v3042
        %v3048 = vrot.slane %v3047, 4
        %v3050 = vshll.u32 %v2984, 16
        %v3052 = vrot.slane %v3050, 5
        %v3053 = vsel %vm1472, %v3048, %v3052
        %v3055 = vshrl.u32 %v2985, 16
        %v3057 = vrot.slane %v3055, 4
        %v3058 = vshll.u32 %v2985, 16
        %v3060 = vrot.slane %v3058, 5
        %v3061 = vor.u32 %v3057, %v3060
        %v3062 = vrot.slane %v3061, 4
        %v3064 = vshll.u32 %v2986, 16
        %v3066 = vrot.slane %v3064, 5
        %v3067 = vsel %vm1472, %v3062, %v3066
        %v3068 = vshrl.u32 %v2986, 16
        %v3070 = vrot.slane %v3068, 4
        %v3071 = vor.u32 %v3070, %v3066
        %v3072 = vrot.slane %v3071, 4
        %v3074 = vshll.u32 %v2987, 16
        %v3076 = vrot.slane %v3074, 5
        %v3077 = vsel %vm1472, %v3072, %v3076
        %v3079 = vshrl.u32 %v2988, 16
        %v3081 = vrot.slane %v3079, 4
        %v3082 = vshll.u32 %v2988, 16
        %v3084 = vrot.slane %v3082, 5
        %v3085 = vor.u32 %v3081, %v3084
        %v3086 = vrot.slane %v3085, 4
        %v3088 = vshll.u32 %v2989, 16
        %v3090 = vrot.slane %v3088, 5
        %v3091 = vsel %vm1472, %v3086, %v3090
        %v3092 = vshrl.u32 %v2989, 16
        %v3094 = vrot.slane %v3092, 4
        %v3095 = vor.u32 %v3094, %v3090
        %v3096 = vrot.slane %v3095, 4
        %v3098 = vshll.u32 %v2990, 16
        %v3100 = vrot.slane %v3098, 5
        %v3101 = vsel %vm1472, %v3096, %v3100
        %v3103 = vshrl.u32 %v2991, 16
        %v3105 = vrot.slane %v3103, 4
        %v3106 = vshll.u32 %v2991, 16
        %v3108 = vrot.slane %v3106, 5
        %v3109 = vor.u32 %v3105, %v3108
        %v3110 = vrot.slane %v3109, 4
        %v3112 = vshll.u32 %v2992, 16
        %v3114 = vrot.slane %v3112, 5
        %v3115 = vsel %vm1472, %v3110, %v3114
        %v3116 = vshrl.u32 %v2992, 16
        %v3118 = vrot.slane %v3116, 4
        %v3119 = vor.u32 %v3118, %v3114
        %v3120 = vrot.slane %v3119, 4
        %v3122 = vshll.u32 %v2993, 16
        %v3124 = vrot.slane %v3122, 5
        %v3125 = vsel %vm1472, %v3120, %v3124
        %v3127 = vshrl.u32 %v2994, 16
        %v3129 = vrot.slane %v3127, 4
        %v3130 = vshll.u32 %v2994, 16
        %v3132 = vrot.slane %v3130, 5
        %v3133 = vor.u32 %v3129, %v3132
        %v3134 = vrot.slane %v3133, 4
        %v3136 = vshll.u32 %v2995, 16
        %v3138 = vrot.slane %v3136, 5
        %v3139 = vsel %vm1472, %v3134, %v3138
        %v3140 = vshrl.u32 %v2995, 16
        %v3142 = vrot.slane %v3140, 4
        %v3143 = vor.u32 %v3142, %v3138
        %v3144 = vrot.slane %v3143, 4
        %v3146 = vshll.u32 %v2996, 16
        %v3148 = vrot.slane %v3146, 5
        %v3149 = vsel %vm1472, %v3144, %v3148
        %v3151 = vshrl.u32 %v2997, 16
        %v3153 = vrot.slane %v3151, 4
        %v3154 = vshll.u32 %v2997, 16
        %v3156 = vrot.slane %v3154, 5
        %v3157 = vor.u32 %v3153, %v3156
        %v3158 = vrot.slane %v3157, 4
        %v3160 = vshll.u32 %v2998, 16
        %v3162 = vrot.slane %v3160, 5
        %v3163 = vsel %vm1472, %v3158, %v3162
        %v3164 = vshrl.u32 %v2998, 16
        %v3166 = vrot.slane %v3164, 4
        %v3167 = vor.u32 %v3166, %v3162
        %v3168 = vrot.slane %v3167, 4
        %v3170 = vshll.u32 %v2999, 16
        %v3172 = vrot.slane %v3170, 5
        %v3173 = vsel %vm1472, %v3168, %v3172
        %v3175 = vshrl.u32 %v3000, 16
        %v3177 = vrot.slane %v3175, 4
        %v3178 = vshll.u32 %v3000, 16
        %v3180 = vrot.slane %v3178, 5
        %v3181 = vor.u32 %v3177, %v3180
        %v3182 = vrot.slane %v3181, 4
        %v3184 = vshll.u32 %v3001, 16
        %v3186 = vrot.slane %v3184, 5
        %v3187 = vsel %vm1472, %v3182, %v3186
        %v3188 = vshrl.u32 %v3001, 16
        %v3190 = vrot.slane %v3188, 4
        %v3191 = vor.u32 %v3190, %v3186
        %v3192 = vrot.slane %v3191, 4
        %v3194 = vshll.u32 %v3002, 16
        %v3196 = vrot.slane %v3194, 5
        %v3197 = vsel %vm1472, %v3192, %v3196
        %v3199 = vshrl.u32 %v3003, 16
        %v3201 = vrot.slane %v3199, 4
        %v3202 = vshll.u32 %v3003, 16
        %v3204 = vrot.slane %v3202, 5
        %v3205 = vor.u32 %v3201, %v3204
        %v3206 = vrot.slane %v3205, 4
        %v3208 = vshll.u32 %v3004, 16
        %v3210 = vrot.slane %v3208, 5
        %v3211 = vsel %vm1472, %v3206, %v3210
        %v3212 = vshrl.u32 %v3004, 16
        %v3214 = vrot.slane %v3212, 4
        %v3215 = vor.u32 %v3214, %v3210
        %v3216 = vrot.slane %v3215, 4
        %v3218 = vshll.u32 %v3005, 16
        %v3220 = vrot.slane %v3218, 5
        %v3221 = vsel %vm1472, %v3216, %v3220
        %v3223 = vshrl.u32 %v3006, 16
        %v3225 = vrot.slane %v3223, 4
        %v3226 = vshll.u32 %v3006, 16
        %v3228 = vrot.slane %v3226, 5
        %v3229 = vor.u32 %v3225, %v3228
        %v3230 = vrot.slane %v3229, 4
        %v3232 = vshll.u32 %v3007, 16
        %v3234 = vrot.slane %v3232, 5
        %v3235 = vsel %vm1472, %v3230, %v3234
        %v3236 = vshrl.u32 %v3007, 16
        %v3238 = vrot.slane %v3236, 4
        %v3239 = vor.u32 %v3238, %v3234
        %v3240 = vrot.slane %v3239, 4
        %v3242 = vshll.u32 %v3008, 16
        %v3244 = vrot.slane %v3242, 5
        %v3245 = vsel %vm1472, %v3240, %v3244
        %v3247 = vshrl.u32 %v3009, 16
        %v3249 = vrot.slane %v3247, 4
        %v3250 = vshll.u32 %v3009, 16
        %v3252 = vrot.slane %v3250, 5
        %v3253 = vor.u32 %v3249, %v3252
        %v3254 = vrot.slane %v3253, 4
        %v3256 = vshll.u32 %v3010, 16
        %v3258 = vrot.slane %v3256, 5
        %v3259 = vsel %vm1472, %v3254, %v3258
        %v3260 = vshrl.u32 %v3010, 16
        %v3262 = vrot.slane %v3260, 4
        %v3263 = vor.u32 %v3262, %v3258
        %v3264 = vrot.slane %v3263, 4
        %v3266 = vshll.u32 %v3011, 16
        %v3268 = vrot.slane %v3266, 5
        %v3269 = vsel %vm1472, %v3264, %v3268
        %v3271 = vshrl.u32 %v3012, 16
        %v3273 = vrot.slane %v3271, 4
        %v3274 = vshll.u32 %v3012, 16
        %v3276 = vrot.slane %v3274, 5
        %v3277 = vor.u32 %v3273, %v3276
        %v3278 = vrot.slane %v3277, 4
        %v3280 = vshll.u32 %v3013, 16
        %v3282 = vrot.slane %v3280, 5
        %v3283 = vsel %vm1472, %v3278, %v3282
        %v3284 = vshrl.u32 %v3013, 16
        %v3286 = vrot.slane %v3284, 4
        %v3287 = vor.u32 %v3286, %v3282
        %v3288 = vrot.slane %v3287, 4
        %v3290 = vshll.u32 %v3014, 16
        %v3292 = vrot.slane %v3290, 5
        %v3293 = vsel %vm1472, %v3288, %v3292
        %v3295 = vshrl.u32 %v3015, 16
        %v3297 = vrot.slane %v3295, 4
        %v3298 = vshll.u32 %v3015, 16
        %v3300 = vrot.slane %v3298, 5
        %v3301 = vor.u32 %v3297, %v3300
        %v3302 = vrot.slane %v3301, 4
        %v3304 = vshll.u32 %v3016, 16
        %v3306 = vrot.slane %v3304, 5
        %v3307 = vsel %vm1472, %v3302, %v3306
        %v3308 = vshrl.u32 %v3016, 16
        %v3310 = vrot.slane %v3308, 4
        %v3311 = vor.u32 %v3310, %v3306
        %v3312 = vrot.slane %v3311, 4
        %v3314 = vshll.u32 %v3017, 16
        %v3316 = vrot.slane %v3314, 5
        %v3317 = vsel %vm1472, %v3312, %v3316
        %v3319 = vshrl.u32 %v3018, 16
        %v3321 = vrot.slane %v3319, 4
        %v3322 = vshll.u32 %v3018, 16
        %v3324 = vrot.slane %v3322, 5
        %v3325 = vor.u32 %v3321, %v3324
        %v3326 = vrot.slane %v3325, 4
        %v3328 = vshll.u32 %v3019, 16
        %v3330 = vrot.slane %v3328, 5
        %v3331 = vsel %vm1472, %v3326, %v3330
        %v3332 = vshrl.u32 %v3019, 16
        %v3334 = vrot.slane %v3332, 4
        %v3335 = vor.u32 %v3334, %v3330
        %v3336 = vrot.slane %v3335, 4
        %v3338 = vshll.u32 %v3020, 16
        %v3340 = vrot.slane %v3338, 5
        %v3341 = vsel %vm1472, %v3336, %v3340
        %v3343 = vshrl.u32 %v3021, 16
        %v3345 = vrot.slane %v3343, 4
        %v3346 = vshll.u32 %v3021, 16
        %v3348 = vrot.slane %v3346, 5
        %v3349 = vor.u32 %v3345, %v3348
        %v3350 = vrot.slane %v3349, 4
        %v3352 = vshll.u32 %v3022, 16
        %v3354 = vrot.slane %v3352, 5
        %v3355 = vsel %vm1472, %v3350, %v3354
        %v3356 = vshrl.u32 %v3022, 16
        %v3358 = vrot.slane %v3356, 4
        %v3359 = vor.u32 %v3358, %v3354
        %v3360 = vrot.slane %v3359, 4
        %v3362 = vshll.u32 %v3023, 16
        %v3364 = vrot.slane %v3362, 5
        %v3365 = vsel %vm1472, %v3360, %v3364
        %v3367 = vshrl.u32 %v3024, 16
        %v3369 = vrot.slane %v3367, 4
        %v3370 = vshll.u32 %v3024, 16
        %v3372 = vrot.slane %v3370, 5
        %v3373 = vor.u32 %v3369, %v3372
        %v3374 = vrot.slane %v3373, 4
        %v3376 = vshll.u32 %v3025, 16
        %v3378 = vrot.slane %v3376, 5
        %v3379 = vsel %vm1472, %v3374, %v3378
        %v3380 = vshrl.u32 %v3025, 16
        %v3382 = vrot.slane %v3380, 4
        %v3383 = vor.u32 %v3382, %v3378
        %v3384 = vrot.slane %v3383, 4
        %v3386 = vshll.u32 %v3026, 16
        %v3388 = vrot.slane %v3386, 5
        %v3389 = vsel %vm1472, %v3384, %v3388
        %v3391 = vshrl.u32 %v3027, 16
        %v3393 = vrot.slane %v3391, 4
        %v3394 = vshll.u32 %v3027, 16
        %v3396 = vrot.slane %v3394, 5
        %v3397 = vor.u32 %v3393, %v3396
        %v3398 = vrot.slane %v3397, 4
        %v3400 = vshll.u32 %v3028, 16
        %v3402 = vrot.slane %v3400, 5
        %v3403 = vsel %vm1472, %v3398, %v3402
        %v3404 = vshrl.u32 %v3028, 16
        %v3406 = vrot.slane %v3404, 4
        %v3407 = vor.u32 %v3406, %v3402
        %v3408 = vrot.slane %v3407, 4
        %v3410 = vshll.u32 %v3029, 16
        %v3412 = vrot.slane %v3410, 5
        %v3413 = vsel %vm1472, %v3408, %v3412
        %s3414 = scalar_lea.vmem [#allocation6], 8
        %v3415 = vld [vmem:[%s3414] sm:$0x3]
        %v3416 = vunpack.c.l.b16 %v3043
        %v3417 = vunpack.c.l.b16 %v3053
        %v3418 = vunpack.c.l.b16 %v3067
        %v3419 = vunpack.c.l.b16 %v3077
        %v3420 = vunpack.c.l.b16 %v3091
        %v3421 = vunpack.c.l.b16 %v3101
        %v3422 = vunpack.c.l.b16 %v3115
        %v3423 = vunpack.c.l.b16 %v3125
        %v3424 = vunpack.c.l.b16 %v3139
        %v3425 = vunpack.c.l.b16 %v3149
        %v3426 = vunpack.c.l.b16 %v3163
        %v3427 = vunpack.c.l.b16 %v3173
        %v3428 = vunpack.c.l.b16 %v3187
        %v3429 = vunpack.c.l.b16 %v3197
        %v3430 = vunpack.c.l.b16 %v3211
        %v3431 = vunpack.c.l.b16 %v3221
        %v3432 = vunpack.c.l.b16 %v3235
        %v3433 = vunpack.c.l.b16 %v3245
        %v3434 = vunpack.c.l.b16 %v3259
        %v3435 = vunpack.c.l.b16 %v3269
        %v3436 = vunpack.c.l.b16 %v3283
        %v3437 = vunpack.c.l.b16 %v3293
        %v3438 = vunpack.c.l.b16 %v3307
        %v3439 = vunpack.c.l.b16 %v3317
        %v3440 = vunpack.c.l.b16 %v3331
        %v3441 = vunpack.c.l.b16 %v3341
        %v3442 = vunpack.c.l.b16 %v3355
        %v3443 = vunpack.c.l.b16 %v3365
        %v3444 = vunpack.c.l.b16 %v3379
        %v3445 = vunpack.c.l.b16 %v3389
        %v3446 = vunpack.c.l.b16 %v3403
        %v3447 = vunpack.c.l.b16 %v3413
        %v3448 = vpack.c.b16 %v3417, %v3416
        %v3449 = vpack.c.b16 %v3419, %v3418
        %v3450 = vpack.c.b16 %v3421, %v3420
        %v3451 = vpack.c.b16 %v3423, %v3422
        %v3452 = vpack.c.b16 %v3425, %v3424
        %v3453 = vpack.c.b16 %v3427, %v3426
        %v3454 = vpack.c.b16 %v3429, %v3428
        %v3455 = vpack.c.b16 %v3431, %v3430
        %v3456 = vpack.c.b16 %v3433, %v3432
        %v3457 = vpack.c.b16 %v3435, %v3434
        %v3458 = vpack.c.b16 %v3437, %v3436
        %v3459 = vpack.c.b16 %v3439, %v3438
        %v3460 = vpack.c.b16 %v3441, %v3440
        %v3461 = vpack.c.b16 %v3443, %v3442
        %v3462 = vpack.c.b16 %v3445, %v3444
        %v3463 = vpack.c.b16 %v3447, %v3446
        %v3465 = vsel %vm1208, %v3448, 0
        %v3468 = vsel %vm1208, %v3449, 0
        %v3471 = vsel %vm1208, %v3450, 0
        %v3474 = vsel %vm1208, %v3451, 0
        %v3477 = vsel %vm1208, %v3452, 0
        %v3480 = vsel %vm1208, %v3453, 0
        %v3483 = vsel %vm1208, %v3454, 0
        %v3486 = vsel %vm1208, %v3455, 0
        %v3489 = vsel %vm1208, %v3456, 0
        %v3492 = vsel %vm1208, %v3457, 0
        %v3495 = vsel %vm1208, %v3458, 0
        %v3498 = vsel %vm1208, %v3459, 0
        %v3501 = vsel %vm1208, %v3460, 0
        %v3504 = vsel %vm1208, %v3461, 0
        %v3507 = vsel %vm1208, %v3462, 0
        %v3510 = vsel %vm1208, %v3463, 0
        %v3513 = vsel %vm1257, %v3415, 0
        %3515 = vmatprep.subr.bf16.mxu0 0
        %3516 = vmatpush1.bf16.msra.mxu0 %v3513
        %3517 = vmatprep.subr.bf16.mxu0 0
        %3518 = vmatpush1.bf16.msra.mxu0 0
        %3519 = vmatprep.subr.bf16.mxu0 0
        %3520 = vmatpush1.bf16.msra.mxu0 0
        %3521 = vmatprep.subr.bf16.mxu0 0
        %3522 = vmatpush1.bf16.msra.mxu0 0
        %3523 = vmatprep.subr.bf16.mxu0 0
        %3524 = vmatpush1.bf16.msra.mxu0 0
        %3525 = vmatprep.subr.bf16.mxu0 0
        %3526 = vmatpush1.bf16.msra.mxu0 0
        %3527 = vmatprep.subr.bf16.mxu0 0
        %3528 = vmatpush1.bf16.msra.mxu0 0
        %3529 = vmatprep.subr.bf16.mxu0 0
        %3530 = vmatpush1.bf16.msra.mxu0 0
        %3531 = vmatprep.subr.bf16.mxu0 0
        %3532 = vmatpush1.bf16.msra.mxu0 0
        %3533 = vmatprep.subr.bf16.mxu0 0
        %3534 = vmatpush1.bf16.msra.mxu0 0
        %3535 = vmatprep.subr.bf16.mxu0 0
        %3536 = vmatpush1.bf16.msra.mxu0 0
        %3537 = vmatprep.subr.bf16.mxu0 0
        %3538 = vmatpush1.bf16.msra.mxu0 0
        %3539 = vmatprep.subr.bf16.mxu0 0
        %3540 = vmatpush1.bf16.msra.mxu0 0
        %3541 = vmatprep.subr.bf16.mxu0 0
        %3542 = vmatpush1.bf16.msra.mxu0 0
        %3543 = vmatprep.subr.bf16.mxu0 0
        %3544 = vmatpush1.bf16.msra.mxu0 0
        %3545 = vmatprep.subr.bf16.mxu0 0
        %3546 = vmatpush1.bf16.msra.mxu0 0
        %3547 = vmatprep.mubr.bf16.mxu0 0
        %3548 = vmatmul.mubr.bf16.gmra.mrb[0].mxu0 %v3465
        %v3549 = vpop.f32.mrb[0].mxu0
        %v3550 = vadd.f32 0.0, %v3549
        %v3551 = vpop.f32.mrb[0].mxu0
        %v3552 = vpop.f32.mrb[0].mxu0
        %v3553 = vadd.f32 0.0, %v3552
        %v3554 = vpop.f32.mrb[0].mxu0
        %3555 = vmatprep.mubr.bf16.mxu0 0
        %3556 = vmatmul.mubr.bf16.gmra.mrb[0].mxu0 %v3468
        %v3557 = vpop.f32.mrb[0].mxu0
        %v3558 = vadd.f32 0.0, %v3557
        %v3559 = vpop.f32.mrb[0].mxu0
        %v3560 = vpop.f32.mrb[0].mxu0
        %v3561 = vadd.f32 0.0, %v3560
        %v3562 = vpop.f32.mrb[0].mxu0
        %3563 = vmatprep.mubr.bf16.mxu0 0
        %3564 = vmatmul.mubr.bf16.gmra.mrb[0].mxu0 %v3471
        %v3565 = vpop.f32.mrb[0].mxu0
        %v3566 = vadd.f32 0.0, %v3565
        %v3567 = vpop.f32.mrb[0].mxu0
        %v3568 = vpop.f32.mrb[0].mxu0
        %v3569 = vadd.f32 0.0, %v3568
        %v3570 = vpop.f32.mrb[0].mxu0
        %3571 = vmatprep.mubr.bf16.mxu0 0
        %3572 = vmatmul.mubr.bf16.gmra.mrb[0].mxu0 %v3474
        %v3573 = vpop.f32.mrb[0].mxu0
        %v3574 = vadd.f32 0.0, %v3573
        %v3575 = vpop.f32.mrb[0].mxu0
        %v3576 = vpop.f32.mrb[0].mxu0
        %v3577 = vadd.f32 0.0, %v3576
        %v3578 = vpop.f32.mrb[0].mxu0
        %3579 = vmatprep.mubr.bf16.mxu0 0
        %3580 = vmatmul.mubr.bf16.gmra.mrb[0].mxu0 %v3477
        %v3581 = vpop.f32.mrb[0].mxu0
        %v3582 = vadd.f32 0.0, %v3581
        %v3583 = vpop.f32.mrb[0].mxu0
        %v3584 = vpop.f32.mrb[0].mxu0
        %v3585 = vadd.f32 0.0, %v3584
        %v3586 = vpop.f32.mrb[0].mxu0
        %3587 = vmatprep.mubr.bf16.mxu0 0
        %3588 = vmatmul.mubr.bf16.gmra.mrb[0].mxu0 %v3480
        %v3589 = vpop.f32.mrb[0].mxu0
        %v3590 = vadd.f32 0.0, %v3589
        %v3591 = vpop.f32.mrb[0].mxu0
        %v3592 = vpop.f32.mrb[0].mxu0
        %v3593 = vadd.f32 0.0, %v3592
        %v3594 = vpop.f32.mrb[0].mxu0
        %3595 = vmatprep.mubr.bf16.mxu0 0
        %3596 = vmatmul.mubr.bf16.gmra.mrb[0].mxu0 %v3483
        %v3597 = vpop.f32.mrb[0].mxu0
        %v3598 = vadd.f32 0.0, %v3597
        %v3599 = vpop.f32.mrb[0].mxu0
        %v3600 = vpop.f32.mrb[0].mxu0
        %v3601 = vadd.f32 0.0, %v3600
        %v3602 = vpop.f32.mrb[0].mxu0
        %3603 = vmatprep.mubr.bf16.mxu0 0
        %3604 = vmatmul.mubr.bf16.gmra.mrb[0].mxu0 %v3486
        %v3605 = vpop.f32.mrb[0].mxu0
        %v3606 = vadd.f32 0.0, %v3605
        %v3607 = vpop.f32.mrb[0].mxu0
        %v3608 = vpop.f32.mrb[0].mxu0
        %v3609 = vadd.f32 0.0, %v3608
        %v3610 = vpop.f32.mrb[0].mxu0
        %3611 = vmatprep.mubr.bf16.mxu0 0
        %3612 = vmatmul.mubr.bf16.gmra.mrb[0].mxu0 %v3489
        %v3613 = vpop.f32.mrb[0].mxu0
        %v3614 = vadd.f32 0.0, %v3613
        %v3615 = vpop.f32.mrb[0].mxu0
        %v3616 = vpop.f32.mrb[0].mxu0
        %v3617 = vadd.f32 0.0, %v3616
        %v3618 = vpop.f32.mrb[0].mxu0
        %3619 = vmatprep.mubr.bf16.mxu0 0
        %3620 = vmatmul.mubr.bf16.gmra.mrb[0].mxu0 %v3492
        %v3621 = vpop.f32.mrb[0].mxu0
        %v3622 = vadd.f32 0.0, %v3621
        %v3623 = vpop.f32.mrb[0].mxu0
        %v3624 = vpop.f32.mrb[0].mxu0
        %v3625 = vadd.f32 0.0, %v3624
        %v3626 = vpop.f32.mrb[0].mxu0
        %3627 = vmatprep.mubr.bf16.mxu0 0
        %3628 = vmatmul.mubr.bf16.gmra.mrb[0].mxu0 %v3495
        %v3629 = vpop.f32.mrb[0].mxu0
        %v3630 = vadd.f32 0.0, %v3629
        %v3631 = vpop.f32.mrb[0].mxu0
        %v3632 = vpop.f32.mrb[0].mxu0
        %v3633 = vadd.f32 0.0, %v3632
        %v3634 = vpop.f32.mrb[0].mxu0
        %3635 = vmatprep.mubr.bf16.mxu0 0
        %3636 = vmatmul.mubr.bf16.gmra.mrb[0].mxu0 %v3498
        %v3637 = vpop.f32.mrb[0].mxu0
        %v3638 = vadd.f32 0.0, %v3637
        %v3639 = vpop.f32.mrb[0].mxu0
        %v3640 = vpop.f32.mrb[0].mxu0
        %v3641 = vadd.f32 0.0, %v3640
        %v3642 = vpop.f32.mrb[0].mxu0
        %3643 = vmatprep.mubr.bf16.mxu0 0
        %3644 = vmatmul.mubr.bf16.gmra.mrb[0].mxu0 %v3501
        %v3645 = vpop.f32.mrb[0].mxu0
        %v3646 = vadd.f32 0.0, %v3645
        %v3647 = vpop.f32.mrb[0].mxu0
        %v3648 = vpop.f32.mrb[0].mxu0
        %v3649 = vadd.f32 0.0, %v3648
        %v3650 = vpop.f32.mrb[0].mxu0
        %3651 = vmatprep.mubr.bf16.mxu0 0
        %3652 = vmatmul.mubr.bf16.gmra.mrb[0].mxu0 %v3504
        %v3653 = vpop.f32.mrb[0].mxu0
        %v3654 = vadd.f32 0.0, %v3653
        %v3655 = vpop.f32.mrb[0].mxu0
        %v3656 = vpop.f32.mrb[0].mxu0
        %v3657 = vadd.f32 0.0, %v3656
        %v3658 = vpop.f32.mrb[0].mxu0
        %3659 = vmatprep.mubr.bf16.mxu0 0
        %3660 = vmatmul.mubr.bf16.gmra.mrb[0].mxu0 %v3507
        %v3661 = vpop.f32.mrb[0].mxu0
        %v3662 = vadd.f32 0.0, %v3661
        %v3663 = vpop.f32.mrb[0].mxu0
        %v3664 = vpop.f32.mrb[0].mxu0
        %v3665 = vadd.f32 0.0, %v3664
        %v3666 = vpop.f32.mrb[0].mxu0
        %3667 = vmatprep.mubr.bf16.mxu0 0
        %3668 = vmatmul.mubr.bf16.gmra.mrb[0].mxu0 %v3510
        %v3669 = vpop.f32.mrb[0].mxu0
        %v3670 = vadd.f32 0.0, %v3669
        %v3671 = vpop.f32.mrb[0].mxu0
        %v3672 = vpop.f32.mrb[0].mxu0
        %v3673 = vadd.f32 0.0, %v3672
        %v3674 = vpop.f32.mrb[0].mxu0
        %3675 = vdwg.mxu0
        %v3676 = vadd.f32 %v2950, %v3550
        %v3677 = vadd.f32 %v2951, %v3553
        %v3678 = vadd.f32 %v2952, %v3558
        %v3679 = vadd.f32 %v2953, %v3561
        %v3680 = vadd.f32 %v2954, %v3566
        %v3681 = vadd.f32 %v2955, %v3569
        %v3682 = vadd.f32 %v2956, %v3574
        %v3683 = vadd.f32 %v2957, %v3577
        %v3684 = vadd.f32 %v2958, %v3582
        %v3685 = vadd.f32 %v2959, %v3585
        %v3686 = vadd.f32 %v2960, %v3590
        %v3687 = vadd.f32 %v2961, %v3593
        %v3688 = vadd.f32 %v2962, %v3598
        %v3689 = vadd.f32 %v2963, %v3601
        %v3690 = vadd.f32 %v2964, %v3606
        %v3691 = vadd.f32 %v2965, %v3609
        %v3692 = vadd.f32 %v2966, %v3614
        %v3693 = vadd.f32 %v2967, %v3617
        %v3694 = vadd.f32 %v2968, %v3622
        %v3695 = vadd.f32 %v2969, %v3625
        %v3696 = vadd.f32 %v2970, %v3630
        %v3697 = vadd.f32 %v2971, %v3633
        %v3698 = vadd.f32 %v2972, %v3638
        %v3699 = vadd.f32 %v2973, %v3641
        %v3700 = vadd.f32 %v2974, %v3646
        %v3701 = vadd.f32 %v2975, %v3649
        %v3702 = vadd.f32 %v2976, %v3654
        %v3703 = vadd.f32 %v2977, %v3657
        %v3704 = vadd.f32 %v2978, %v3662
        %v3705 = vadd.f32 %v2979, %v3665
        %v3706 = vadd.f32 %v2980, %v3670
        %v3707 = vadd.f32 %v2981, %v3673
        %v3708 = vld [vmem:[%s749] sm:$0xe]
        %v3709 = vld [vmem:[%s749 + $0xc] sm:$0xe]
        %v3710 = vld [vmem:[%s749 + $0x18] sm:$0xe]
        %v3711 = vld [vmem:[%s749 + $0x24] sm:$0xe]
        %v3712 = vld [vmem:[%s749 + $0x30] sm:$0xe]
        %v3713 = vld [vmem:[%s749 + $0x3c] sm:$0xe]
        %v3714 = vld [vmem:[%s749 + $0x48] sm:$0xe]
        %v3715 = vld [vmem:[%s749 + $0x54] sm:$0xe]
        %v3716 = vld [vmem:[%s749 + $0x60] sm:$0xe]
        %v3717 = vld [vmem:[%s749 + $0x6c] sm:$0xe]
        %v3718 = vld [vmem:[%s749 + $0x78] sm:$0xe]
        %v3719 = vld [vmem:[%s749 + $0x84] sm:$0xe]
        %v3720 = vld [vmem:[%s749 + $0x90] sm:$0xe]
        %v3721 = vld [vmem:[%s749 + $0x9c] sm:$0xe]
        %v3722 = vld [vmem:[%s749 + $0xa8] sm:$0xe]
        %v3723 = vld [vmem:[%s749 + $0xb4] sm:$0xe]
        %v3772 = vrot.slane %v3708, 5
        %v3773 = vrot.slane %v3772, 4
        %v3774 = vrot.slane %v2983, 5
        %v3775 = vsel %vm2217, %v3773, %v3774
        %v3776 = vrot.slane %v3774, 4
        %v3777 = vrot.slane %v2984, 5
        %v3778 = vsel %vm2217, %v3776, %v3777
        %v3779 = vrot.slane %v3709, 5
        %v3780 = vrot.slane %v3779, 4
        %v3781 = vrot.slane %v2986, 5
        %v3782 = vsel %vm2217, %v3780, %v3781
        %v3783 = vrot.slane %v3781, 4
        %v3784 = vrot.slane %v2987, 5
        %v3785 = vsel %vm2217, %v3783, %v3784
        %v3786 = vrot.slane %v3710, 5
        %v3787 = vrot.slane %v3786, 4
        %v3788 = vrot.slane %v2989, 5
        %v3789 = vsel %vm2217, %v3787, %v3788
        %v3790 = vrot.slane %v3788, 4
        %v3791 = vrot.slane %v2990, 5
        %v3792 = vsel %vm2217, %v3790, %v3791
        %v3793 = vrot.slane %v3711, 5
        %v3794 = vrot.slane %v3793, 4
        %v3795 = vrot.slane %v2992, 5
        %v3796 = vsel %vm2217, %v3794, %v3795
        %v3797 = vrot.slane %v3795, 4
        %v3798 = vrot.slane %v2993, 5
        %v3799 = vsel %vm2217, %v3797, %v3798
        %v3800 = vrot.slane %v3712, 5
        %v3801 = vrot.slane %v3800, 4
        %v3802 = vrot.slane %v2995, 5
        %v3803 = vsel %vm2217, %v3801, %v3802
        %v3804 = vrot.slane %v3802, 4
        %v3805 = vrot.slane %v2996, 5
        %v3806 = vsel %vm2217, %v3804, %v3805
        %v3807 = vrot.slane %v3713, 5
        %v3808 = vrot.slane %v3807, 4
        %v3809 = vrot.slane %v2998, 5
        %v3810 = vsel %vm2217, %v3808, %v3809
        %v3811 = vrot.slane %v3809, 4
        %v3812 = vrot.slane %v2999, 5
        %v3813 = vsel %vm2217, %v3811, %v3812
        %v3814 = vrot.slane %v3714, 5
        %v3815 = vrot.slane %v3814, 4
        %v3816 = vrot.slane %v3001, 5
        %v3817 = vsel %vm2217, %v3815, %v3816
        %v3818 = vrot.slane %v3816, 4
        %v3819 = vrot.slane %v3002, 5
        %v3820 = vsel %vm2217, %v3818, %v3819
        %v3821 = vrot.slane %v3715, 5
        %v3822 = vrot.slane %v3821, 4
        %v3823 = vrot.slane %v3004, 5
        %v3824 = vsel %vm2217, %v3822, %v3823
        %v3825 = vrot.slane %v3823, 4
        %v3826 = vrot.slane %v3005, 5
        %v3827 = vsel %vm2217, %v3825, %v3826
        %v3828 = vrot.slane %v3716, 5
        %v3829 = vrot.slane %v3828, 4
        %v3830 = vrot.slane %v3007, 5
        %v3831 = vsel %vm2217, %v3829, %v3830
        %v3832 = vrot.slane %v3830, 4
        %v3833 = vrot.slane %v3008, 5
        %v3834 = vsel %vm2217, %v3832, %v3833
        %v3835 = vrot.slane %v3717, 5
        %v3836 = vrot.slane %v3835, 4
        %v3837 = vrot.slane %v3010, 5
        %v3838 = vsel %vm2217, %v3836, %v3837
        %v3839 = vrot.slane %v3837, 4
        %v3840 = vrot.slane %v3011, 5
        %v3841 = vsel %vm2217, %v3839, %v3840
        %v3842 = vrot.slane %v3718, 5
        %v3843 = vrot.slane %v3842, 4
        %v3844 = vrot.slane %v3013, 5
        %v3845 = vsel %vm2217, %v3843, %v3844
        %v3846 = vrot.slane %v3844, 4
        %v3847 = vrot.slane %v3014, 5
        %v3848 = vsel %vm2217, %v3846, %v3847
        %v3849 = vrot.slane %v3719, 5
        %v3850 = vrot.slane %v3849, 4
        %v3851 = vrot.slane %v3016, 5
        %v3852 = vsel %vm2217, %v3850, %v3851
        %v3853 = vrot.slane %v3851, 4
        %v3854 = vrot.slane %v3017, 5
        %v3855 = vsel %vm2217, %v3853, %v3854
        %v3856 = vrot.slane %v3720, 5
        %v3857 = vrot.slane %v3856, 4
        %v3858 = vrot.slane %v3019, 5
        %v3859 = vsel %vm2217, %v3857, %v3858
        %v3860 = vrot.slane %v3858, 4
        %v3861 = vrot.slane %v3020, 5
        %v3862 = vsel %vm2217, %v3860, %v3861
        %v3863 = vrot.slane %v3721, 5
        %v3864 = vrot.slane %v3863, 4
        %v3865 = vrot.slane %v3022, 5
        %v3866 = vsel %vm2217, %v3864, %v3865
        %v3867 = vrot.slane %v3865, 4
        %v3868 = vrot.slane %v3023, 5
        %v3869 = vsel %vm2217, %v3867, %v3868
        %v3870 = vrot.slane %v3722, 5
        %v3871 = vrot.slane %v3870, 4
        %v3872 = vrot.slane %v3025, 5
        %v3873 = vsel %vm2217, %v3871, %v3872
        %v3874 = vrot.slane %v3872, 4
        %v3875 = vrot.slane %v3026, 5
        %v3876 = vsel %vm2217, %v3874, %v3875
        %v3877 = vrot.slane %v3723, 5
        %v3878 = vrot.slane %v3877, 4
        %v3879 = vrot.slane %v3028, 5
        %v3880 = vsel %vm2217, %v3878, %v3879
        %v3881 = vrot.slane %v3879, 4
        %v3882 = vrot.slane %v3029, 5
        %v3883 = vsel %vm2217, %v3881, %v3882
        %s3884 = scalar_lea.vmem [#allocation6], 10
        %v3885 = vld [vmem:[%s3884] sm:$0x3]
        %v3886 = vunpack.c.l.b16 %v3775
        %v3887 = vunpack.c.l.b16 %v3778
        %v3888 = vunpack.c.l.b16 %v3782
        %v3889 = vunpack.c.l.b16 %v3785
        %v3890 = vunpack.c.l.b16 %v3789
        %v3891 = vunpack.c.l.b16 %v3792
        %v3892 = vunpack.c.l.b16 %v3796
        %v3893 = vunpack.c.l.b16 %v3799
        %v3894 = vunpack.c.l.b16 %v3803
        %v3895 = vunpack.c.l.b16 %v3806
        %v3896 = vunpack.c.l.b16 %v3810
        %v3897 = vunpack.c.l.b16 %v3813
        %v3898 = vunpack.c.l.b16 %v3817
        %v3899 = vunpack.c.l.b16 %v3820
        %v3900 = vunpack.c.l.b16 %v3824
        %v3901 = vunpack.c.l.b16 %v3827
        %v3902 = vunpack.c.l.b16 %v3831
        %v3903 = vunpack.c.l.b16 %v3834
        %v3904 = vunpack.c.l.b16 %v3838
        %v3905 = vunpack.c.l.b16 %v3841
        %v3906 = vunpack.c.l.b16 %v3845
        %v3907 = vunpack.c.l.b16 %v3848
        %v3908 = vunpack.c.l.b16 %v3852
        %v3909 = vunpack.c.l.b16 %v3855
        %v3910 = vunpack.c.l.b16 %v3859
        %v3911 = vunpack.c.l.b16 %v3862
        %v3912 = vunpack.c.l.b16 %v3866
        %v3913 = vunpack.c.l.b16 %v3869
        %v3914 = vunpack.c.l.b16 %v3873
        %v3915 = vunpack.c.l.b16 %v3876
        %v3916 = vunpack.c.l.b16 %v3880
        %v3917 = vunpack.c.l.b16 %v3883
        %v3918 = vpack.c.b16 %v3887, %v3886
        %v3919 = vpack.c.b16 %v3889, %v3888
        %v3920 = vpack.c.b16 %v3891, %v3890
        %v3921 = vpack.c.b16 %v3893, %v3892
        %v3922 = vpack.c.b16 %v3895, %v3894
        %v3923 = vpack.c.b16 %v3897, %v3896
        %v3924 = vpack.c.b16 %v3899, %v3898
        %v3925 = vpack.c.b16 %v3901, %v3900
        %v3926 = vpack.c.b16 %v3903, %v3902
        %v3927 = vpack.c.b16 %v3905, %v3904
        %v3928 = vpack.c.b16 %v3907, %v3906
        %v3929 = vpack.c.b16 %v3909, %v3908
        %v3930 = vpack.c.b16 %v3911, %v3910
        %v3931 = vpack.c.b16 %v3913, %v3912
        %v3932 = vpack.c.b16 %v3915, %v3914
        %v3933 = vpack.c.b16 %v3917, %v3916
        %v3935 = vsel %vm1208, %v3918, 0
        %v3938 = vsel %vm1208, %v3919, 0
        %v3941 = vsel %vm1208, %v3920, 0
        %v3944 = vsel %vm1208, %v3921, 0
        %v3947 = vsel %vm1208, %v3922, 0
        %v3950 = vsel %vm1208, %v3923, 0
        %v3953 = vsel %vm1208, %v3924, 0
        %v3956 = vsel %vm1208, %v3925, 0
        %v3959 = vsel %vm1208, %v3926, 0
        %v3962 = vsel %vm1208, %v3927, 0
        %v3965 = vsel %vm1208, %v3928, 0
        %v3968 = vsel %vm1208, %v3929, 0
        %v3971 = vsel %vm1208, %v3930, 0
        %v3974 = vsel %vm1208, %v3931, 0
        %v3977 = vsel %vm1208, %v3932, 0
        %v3980 = vsel %vm1208, %v3933, 0
        %v3983 = vsel %vm1257, %v3885, 0
        %3985 = vmatprep.subr.bf16.mxu0 0
        %3986 = vmatpush1.bf16.msra.mxu0 %v3983
        %3987 = vmatprep.subr.bf16.mxu0 0
        %3988 = vmatpush1.bf16.msra.mxu0 0
        %3989 = vmatprep.subr.bf16.mxu0 0
        %3990 = vmatpush1.bf16.msra.mxu0 0
        %3991 = vmatprep.subr.bf16.mxu0 0
        %3992 = vmatpush1.bf16.msra.mxu0 0
        %3993 = vmatprep.subr.bf16.mxu0 0
        %3994 = vmatpush1.bf16.msra.mxu0 0
        %3995 = vmatprep.subr.bf16.mxu0 0
        %3996 = vmatpush1.bf16.msra.mxu0 0
        %3997 = vmatprep.subr.bf16.mxu0 0
        %3998 = vmatpush1.bf16.msra.mxu0 0
        %3999 = vmatprep.subr.bf16.mxu0 0
        %4000 = vmatpush1.bf16.msra.mxu0 0
        %4001 = vmatprep.subr.bf16.mxu0 0
        %4002 = vmatpush1.bf16.msra.mxu0 0
        %4003 = vmatprep.subr.bf16.mxu0 0
        %4004 = vmatpush1.bf16.msra.mxu0 0
        %4005 = vmatprep.subr.bf16.mxu0 0
        %4006 = vmatpush1.bf16.msra.mxu0 0
        %4007 = vmatprep.subr.bf16.mxu0 0
        %4008 = vmatpush1.bf16.msra.mxu0 0
        %4009 = vmatprep.subr.bf16.mxu0 0
        %4010 = vmatpush1.bf16.msra.mxu0 0
        %4011 = vmatprep.subr.bf16.mxu0 0
        %4012 = vmatpush1.bf16.msra.mxu0 0
        %4013 = vmatprep.subr.bf16.mxu0 0
        %4014 = vmatpush1.bf16.msra.mxu0 0
        %4015 = vmatprep.subr.bf16.mxu0 0
        %4016 = vmatpush1.bf16.msra.mxu0 0
        %4017 = vmatprep.mubr.bf16.mxu0 0
        %4018 = vmatmul.mubr.bf16.gmra.mrb[0].mxu0 %v3935
        %v4019 = vpop.f32.mrb[0].mxu0
        %v4020 = vadd.f32 0.0, %v4019
        %v4021 = vpop.f32.mrb[0].mxu0
        %v4022 = vpop.f32.mrb[0].mxu0
        %v4023 = vadd.f32 0.0, %v4022
        %v4024 = vpop.f32.mrb[0].mxu0
        %4025 = vmatprep.mubr.bf16.mxu0 0
        %4026 = vmatmul.mubr.bf16.gmra.mrb[0].mxu0 %v3938
        %v4027 = vpop.f32.mrb[0].mxu0
        %v4028 = vadd.f32 0.0, %v4027
        %v4029 = vpop.f32.mrb[0].mxu0
        %v4030 = vpop.f32.mrb[0].mxu0
        %v4031 = vadd.f32 0.0, %v4030
        %v4032 = vpop.f32.mrb[0].mxu0
        %4033 = vmatprep.mubr.bf16.mxu0 0
        %4034 = vmatmul.mubr.bf16.gmra.mrb[0].mxu0 %v3941
        %v4035 = vpop.f32.mrb[0].mxu0
        %v4036 = vadd.f32 0.0, %v4035
        %v4037 = vpop.f32.mrb[0].mxu0
        %v4038 = vpop.f32.mrb[0].mxu0
        %v4039 = vadd.f32 0.0, %v4038
        %v4040 = vpop.f32.mrb[0].mxu0
        %4041 = vmatprep.mubr.bf16.mxu0 0
        %4042 = vmatmul.mubr.bf16.gmra.mrb[0].mxu0 %v3944
        %v4043 = vpop.f32.mrb[0].mxu0
        %v4044 = vadd.f32 0.0, %v4043
        %v4045 = vpop.f32.mrb[0].mxu0
        %v4046 = vpop.f32.mrb[0].mxu0
        %v4047 = vadd.f32 0.0, %v4046
        %v4048 = vpop.f32.mrb[0].mxu0
        %4049 = vmatprep.mubr.bf16.mxu0 0
        %4050 = vmatmul.mubr.bf16.gmra.mrb[0].mxu0 %v3947
        %v4051 = vpop.f32.mrb[0].mxu0
        %v4052 = vadd.f32 0.0, %v4051
        %v4053 = vpop.f32.mrb[0].mxu0
        %v4054 = vpop.f32.mrb[0].mxu0
        %v4055 = vadd.f32 0.0, %v4054
        %v4056 = vpop.f32.mrb[0].mxu0
        %4057 = vmatprep.mubr.bf16.mxu0 0
        %4058 = vmatmul.mubr.bf16.gmra.mrb[0].mxu0 %v3950
        %v4059 = vpop.f32.mrb[0].mxu0
        %v4060 = vadd.f32 0.0, %v4059
        %v4061 = vpop.f32.mrb[0].mxu0
        %v4062 = vpop.f32.mrb[0].mxu0
        %v4063 = vadd.f32 0.0, %v4062
        %v4064 = vpop.f32.mrb[0].mxu0
        %4065 = vmatprep.mubr.bf16.mxu0 0
        %4066 = vmatmul.mubr.bf16.gmra.mrb[0].mxu0 %v3953
        %v4067 = vpop.f32.mrb[0].mxu0
        %v4068 = vadd.f32 0.0, %v4067
        %v4069 = vpop.f32.mrb[0].mxu0
        %v4070 = vpop.f32.mrb[0].mxu0
        %v4071 = vadd.f32 0.0, %v4070
        %v4072 = vpop.f32.mrb[0].mxu0
        %4073 = vmatprep.mubr.bf16.mxu0 0
        %4074 = vmatmul.mubr.bf16.gmra.mrb[0].mxu0 %v3956
        %v4075 = vpop.f32.mrb[0].mxu0
        %v4076 = vadd.f32 0.0, %v4075
        %v4077 = vpop.f32.mrb[0].mxu0
        %v4078 = vpop.f32.mrb[0].mxu0
        %v4079 = vadd.f32 0.0, %v4078
        %v4080 = vpop.f32.mrb[0].mxu0
        %4081 = vmatprep.mubr.bf16.mxu0 0
        %4082 = vmatmul.mubr.bf16.gmra.mrb[0].mxu0 %v3959
        %v4083 = vpop.f32.mrb[0].mxu0
        %v4084 = vadd.f32 0.0, %v4083
        %v4085 = vpop.f32.mrb[0].mxu0
        %v4086 = vpop.f32.mrb[0].mxu0
        %v4087 = vadd.f32 0.0, %v4086
        %v4088 = vpop.f32.mrb[0].mxu0
        %4089 = vmatprep.mubr.bf16.mxu0 0
        %4090 = vmatmul.mubr.bf16.gmra.mrb[0].mxu0 %v3962
        %v4091 = vpop.f32.mrb[0].mxu0
        %v4092 = vadd.f32 0.0, %v4091
        %v4093 = vpop.f32.mrb[0].mxu0
        %v4094 = vpop.f32.mrb[0].mxu0
        %v4095 = vadd.f32 0.0, %v4094
        %v4096 = vpop.f32.mrb[0].mxu0
        %4097 = vmatprep.mubr.bf16.mxu0 0
        %4098 = vmatmul.mubr.bf16.gmra.mrb[0].mxu0 %v3965
        %v4099 = vpop.f32.mrb[0].mxu0
        %v4100 = vadd.f32 0.0, %v4099
        %v4101 = vpop.f32.mrb[0].mxu0
        %v4102 = vpop.f32.mrb[0].mxu0
        %v4103 = vadd.f32 0.0, %v4102
        %v4104 = vpop.f32.mrb[0].mxu0
        %4105 = vmatprep.mubr.bf16.mxu0 0
        %4106 = vmatmul.mubr.bf16.gmra.mrb[0].mxu0 %v3968
        %v4107 = vpop.f32.mrb[0].mxu0
        %v4108 = vadd.f32 0.0, %v4107
        %v4109 = vpop.f32.mrb[0].mxu0
        %v4110 = vpop.f32.mrb[0].mxu0
        %v4111 = vadd.f32 0.0, %v4110
        %v4112 = vpop.f32.mrb[0].mxu0
        %4113 = vmatprep.mubr.bf16.mxu0 0
        %4114 = vmatmul.mubr.bf16.gmra.mrb[0].mxu0 %v3971
        %v4115 = vpop.f32.mrb[0].mxu0
        %v4116 = vadd.f32 0.0, %v4115
        %v4117 = vpop.f32.mrb[0].mxu0
        %v4118 = vpop.f32.mrb[0].mxu0
        %v4119 = vadd.f32 0.0, %v4118
        %v4120 = vpop.f32.mrb[0].mxu0
        %4121 = vmatprep.mubr.bf16.mxu0 0
        %4122 = vmatmul.mubr.bf16.gmra.mrb[0].mxu0 %v3974
        %v4123 = vpop.f32.mrb[0].mxu0
        %v4124 = vadd.f32 0.0, %v4123
        %v4125 = vpop.f32.mrb[0].mxu0
        %v4126 = vpop.f32.mrb[0].mxu0
        %v4127 = vadd.f32 0.0, %v4126
        %v4128 = vpop.f32.mrb[0].mxu0
        %4129 = vmatprep.mubr.bf16.mxu0 0
        %4130 = vmatmul.mubr.bf16.gmra.mrb[0].mxu0 %v3977
        %v4131 = vpop.f32.mrb[0].mxu0
        %v4132 = vadd.f32 0.0, %v4131
        %v4133 = vpop.f32.mrb[0].mxu0
        %v4134 = vpop.f32.mrb[0].mxu0
        %v4135 = vadd.f32 0.0, %v4134
        %v4136 = vpop.f32.mrb[0].mxu0
        %4137 = vmatprep.mubr.bf16.mxu0 0
        %4138 = vmatmul.mubr.bf16.gmra.mrb[0].mxu0 %v3980
        %v4139 = vpop.f32.mrb[0].mxu0
        %v4140 = vadd.f32 0.0, %v4139
        %v4141 = vpop.f32.mrb[0].mxu0
        %v4142 = vpop.f32.mrb[0].mxu0
        %v4143 = vadd.f32 0.0, %v4142
        %v4144 = vpop.f32.mrb[0].mxu0
        %4145 = vdwg.mxu0
        %v4146 = vadd.f32 %v3676, %v4020
        %v4147 = vadd.f32 %v3677, %v4023
        %v4148 = vadd.f32 %v3678, %v4028
        %v4149 = vadd.f32 %v3679, %v4031
        %v4150 = vadd.f32 %v3680, %v4036
        %v4151 = vadd.f32 %v3681, %v4039
        %v4152 = vadd.f32 %v3682, %v4044
        %v4153 = vadd.f32 %v3683, %v4047
        %v4154 = vadd.f32 %v3684, %v4052
        %v4155 = vadd.f32 %v3685, %v4055
        %v4156 = vadd.f32 %v3686, %v4060
        %v4157 = vadd.f32 %v3687, %v4063
        %v4158 = vadd.f32 %v3688, %v4068
        %v4159 = vadd.f32 %v3689, %v4071
        %v4160 = vadd.f32 %v3690, %v4076
        %v4161 = vadd.f32 %v3691, %v4079
        %v4162 = vadd.f32 %v3692, %v4084
        %v4163 = vadd.f32 %v3693, %v4087
        %v4164 = vadd.f32 %v3694, %v4092
        %v4165 = vadd.f32 %v3695, %v4095
        %v4166 = vadd.f32 %v3696, %v4100
        %v4167 = vadd.f32 %v3697, %v4103
        %v4168 = vadd.f32 %v3698, %v4108
        %v4169 = vadd.f32 %v3699, %v4111
        %v4170 = vadd.f32 %v3700, %v4116
        %v4171 = vadd.f32 %v3701, %v4119
        %v4172 = vadd.f32 %v3702, %v4124
        %v4173 = vadd.f32 %v3703, %v4127
        %v4174 = vadd.f32 %v3704, %v4132
        %v4175 = vadd.f32 %v3705, %v4135
        %v4176 = vadd.f32 %v3706, %v4140
        %v4177 = vadd.f32 %v3707, %v4143
        %s4178 = scalar_lea.vmem [#allocation2], 24
        %v4179 = vld [vmem:[%s4178] sm:$0xf]
        %v4180 = vld [vmem:[%s4178 + $0x4] sm:$0xf]
        %v4181 = vld [vmem:[%s4178 + $0xc] sm:$0xf]
        %v4182 = vld [vmem:[%s4178 + $0x10] sm:$0xf]
        %v4183 = vld [vmem:[%s4178 + $0x18] sm:$0xf]
        %v4184 = vld [vmem:[%s4178 + $0x1c] sm:$0xf]
        %v4185 = vld [vmem:[%s4178 + $0x24] sm:$0xf]
        %v4186 = vld [vmem:[%s4178 + $0x28] sm:$0xf]
        %v4187 = vld [vmem:[%s4178 + $0x30] sm:$0xf]
        %v4188 = vld [vmem:[%s4178 + $0x34] sm:$0xf]
        %v4189 = vld [vmem:[%s4178 + $0x3c] sm:$0xf]
        %v4190 = vld [vmem:[%s4178 + $0x40] sm:$0xf]
        %v4191 = vld [vmem:[%s4178 + $0x48] sm:$0xf]
        %v4192 = vld [vmem:[%s4178 + $0x4c] sm:$0xf]
        %v4193 = vld [vmem:[%s4178 + $0x54] sm:$0xf]
        %v4194 = vld [vmem:[%s4178 + $0x58] sm:$0xf]
        %v4195 = vld [vmem:[%s4178 + $0x60] sm:$0xf]
        %v4196 = vld [vmem:[%s4178 + $0x64] sm:$0xf]
        %v4197 = vld [vmem:[%s4178 + $0x6c] sm:$0xf]
        %v4198 = vld [vmem:[%s4178 + $0x70] sm:$0xf]
        %v4199 = vld [vmem:[%s4178 + $0x78] sm:$0xf]
        %v4200 = vld [vmem:[%s4178 + $0x7c] sm:$0xf]
        %v4201 = vld [vmem:[%s4178 + $0x84] sm:$0xf]
        %v4202 = vld [vmem:[%s4178 + $0x88] sm:$0xf]
        %v4203 = vld [vmem:[%s4178 + $0x90] sm:$0xf]
        %v4204 = vld [vmem:[%s4178 + $0x94] sm:$0xf]
        %v4205 = vld [vmem:[%s4178 + $0x9c] sm:$0xf]
        %v4206 = vld [vmem:[%s4178 + $0xa0] sm:$0xf]
        %v4207 = vld [vmem:[%s4178 + $0xa8] sm:$0xf]
        %v4208 = vld [vmem:[%s4178 + $0xac] sm:$0xf]
        %v4209 = vld [vmem:[%s4178 + $0xb4] sm:$0xf]
        %v4210 = vld [vmem:[%s4178 + $0xb8] sm:$0xf]
        %s4211 = scalar_lea.vmem [#allocation6], 12
        %v4212 = vld [vmem:[%s4211] sm:$0x3]
        %v4245 = vunpack.c.l.b16 %v4179
        %v4246 = vunpack.c.l.b16 %v4180
        %v4247 = vunpack.c.l.b16 %v4181
        %v4248 = vunpack.c.l.b16 %v4182
        %v4249 = vunpack.c.l.b16 %v4183
        %v4250 = vunpack.c.l.b16 %v4184
        %v4251 = vunpack.c.l.b16 %v4185
        %v4252 = vunpack.c.l.b16 %v4186
        %v4253 = vunpack.c.l.b16 %v4187
        %v4254 = vunpack.c.l.b16 %v4188
        %v4255 = vunpack.c.l.b16 %v4189
        %v4256 = vunpack.c.l.b16 %v4190
        %v4257 = vunpack.c.l.b16 %v4191
        %v4258 = vunpack.c.l.b16 %v4192
        %v4259 = vunpack.c.l.b16 %v4193
        %v4260 = vunpack.c.l.b16 %v4194
        %v4261 = vunpack.c.l.b16 %v4195
        %v4262 = vunpack.c.l.b16 %v4196
        %v4263 = vunpack.c.l.b16 %v4197
        %v4264 = vunpack.c.l.b16 %v4198
        %v4265 = vunpack.c.l.b16 %v4199
        %v4266 = vunpack.c.l.b16 %v4200
        %v4267 = vunpack.c.l.b16 %v4201
        %v4268 = vunpack.c.l.b16 %v4202
        %v4269 = vunpack.c.l.b16 %v4203
        %v4270 = vunpack.c.l.b16 %v4204
        %v4271 = vunpack.c.l.b16 %v4205
        %v4272 = vunpack.c.l.b16 %v4206
        %v4273 = vunpack.c.l.b16 %v4207
        %v4274 = vunpack.c.l.b16 %v4208
        %v4275 = vunpack.c.l.b16 %v4209
        %v4276 = vunpack.c.l.b16 %v4210
        %v4277 = vpack.c.b16 %v4246, %v4245
        %v4278 = vpack.c.b16 %v4248, %v4247
        %v4279 = vpack.c.b16 %v4250, %v4249
        %v4280 = vpack.c.b16 %v4252, %v4251
        %v4281 = vpack.c.b16 %v4254, %v4253
        %v4282 = vpack.c.b16 %v4256, %v4255
        %v4283 = vpack.c.b16 %v4258, %v4257
        %v4284 = vpack.c.b16 %v4260, %v4259
        %v4285 = vpack.c.b16 %v4262, %v4261
        %v4286 = vpack.c.b16 %v4264, %v4263
        %v4287 = vpack.c.b16 %v4266, %v4265
        %v4288 = vpack.c.b16 %v4268, %v4267
        %v4289 = vpack.c.b16 %v4270, %v4269
        %v4290 = vpack.c.b16 %v4272, %v4271
        %v4291 = vpack.c.b16 %v4274, %v4273
        %v4292 = vpack.c.b16 %v4276, %v4275
        %v4294 = vsel %vm1208, %v4277, 0
        %v4297 = vsel %vm1208, %v4278, 0
        %v4300 = vsel %vm1208, %v4279, 0
        %v4303 = vsel %vm1208, %v4280, 0
        %v4306 = vsel %vm1208, %v4281, 0
        %v4309 = vsel %vm1208, %v4282, 0
        %v4312 = vsel %vm1208, %v4283, 0
        %v4315 = vsel %vm1208, %v4284, 0
        %v4318 = vsel %vm1208, %v4285, 0
        %v4321 = vsel %vm1208, %v4286, 0
        %v4324 = vsel %vm1208, %v4287, 0
        %v4327 = vsel %vm1208, %v4288, 0
        %v4330 = vsel %vm1208, %v4289, 0
        %v4333 = vsel %vm1208, %v4290, 0
        %v4336 = vsel %vm1208, %v4291, 0
        %v4339 = vsel %vm1208, %v4292, 0
        %v4342 = vsel %vm1257, %v4212, 0
        %4344 = vmatprep.subr.bf16.mxu0 0
        %4345 = vmatpush1.bf16.msra.mxu0 %v4342
        %4346 = vmatprep.subr.bf16.mxu0 0
        %4347 = vmatpush1.bf16.msra.mxu0 0
        %4348 = vmatprep.subr.bf16.mxu0 0
        %4349 = vmatpush1.bf16.msra.mxu0 0
        %4350 = vmatprep.subr.bf16.mxu0 0
        %4351 = vmatpush1.bf16.msra.mxu0 0
        %4352 = vmatprep.subr.bf16.mxu0 0
        %4353 = vmatpush1.bf16.msra.mxu0 0
        %4354 = vmatprep.subr.bf16.mxu0 0
        %4355 = vmatpush1.bf16.msra.mxu0 0
        %4356 = vmatprep.subr.bf16.mxu0 0
        %4357 = vmatpush1.bf16.msra.mxu0 0
        %4358 = vmatprep.subr.bf16.mxu0 0
        %4359 = vmatpush1.bf16.msra.mxu0 0
        %4360 = vmatprep.subr.bf16.mxu0 0
        %4361 = vmatpush1.bf16.msra.mxu0 0
        %4362 = vmatprep.subr.bf16.mxu0 0
        %4363 = vmatpush1.bf16.msra.mxu0 0
        %4364 = vmatprep.subr.bf16.mxu0 0
        %4365 = vmatpush1.bf16.msra.mxu0 0
        %4366 = vmatprep.subr.bf16.mxu0 0
        %4367 = vmatpush1.bf16.msra.mxu0 0
        %4368 = vmatprep.subr.bf16.mxu0 0
        %4369 = vmatpush1.bf16.msra.mxu0 0
        %4370 = vmatprep.subr.bf16.mxu0 0
        %4371 = vmatpush1.bf16.msra.mxu0 0
        %4372 = vmatprep.subr.bf16.mxu0 0
        %4373 = vmatpush1.bf16.msra.mxu0 0
        %4374 = vmatprep.subr.bf16.mxu0 0
        %4375 = vmatpush1.bf16.msra.mxu0 0
        %4376 = vmatprep.mubr.bf16.mxu0 0
        %4377 = vmatmul.mubr.bf16.gmra.mrb[0].mxu0 %v4294
        %v4378 = vpop.f32.mrb[0].mxu0
        %v4379 = vadd.f32 0.0, %v4378
        %v4380 = vpop.f32.mrb[0].mxu0
        %v4381 = vpop.f32.mrb[0].mxu0
        %v4382 = vadd.f32 0.0, %v4381
        %v4383 = vpop.f32.mrb[0].mxu0
        %4384 = vmatprep.mubr.bf16.mxu0 0
        %4385 = vmatmul.mubr.bf16.gmra.mrb[0].mxu0 %v4297
        %v4386 = vpop.f32.mrb[0].mxu0
        %v4387 = vadd.f32 0.0, %v4386
        %v4388 = vpop.f32.mrb[0].mxu0
        %v4389 = vpop.f32.mrb[0].mxu0
        %v4390 = vadd.f32 0.0, %v4389
        %v4391 = vpop.f32.mrb[0].mxu0
        %4392 = vmatprep.mubr.bf16.mxu0 0
        %4393 = vmatmul.mubr.bf16.gmra.mrb[0].mxu0 %v4300
        %v4394 = vpop.f32.mrb[0].mxu0
        %v4395 = vadd.f32 0.0, %v4394
        %v4396 = vpop.f32.mrb[0].mxu0
        %v4397 = vpop.f32.mrb[0].mxu0
        %v4398 = vadd.f32 0.0, %v4397
        %v4399 = vpop.f32.mrb[0].mxu0
        %4400 = vmatprep.mubr.bf16.mxu0 0
        %4401 = vmatmul.mubr.bf16.gmra.mrb[0].mxu0 %v4303
        %v4402 = vpop.f32.mrb[0].mxu0
        %v4403 = vadd.f32 0.0, %v4402
        %v4404 = vpop.f32.mrb[0].mxu0
        %v4405 = vpop.f32.mrb[0].mxu0
        %v4406 = vadd.f32 0.0, %v4405
        %v4407 = vpop.f32.mrb[0].mxu0
        %4408 = vmatprep.mubr.bf16.mxu0 0
        %4409 = vmatmul.mubr.bf16.gmra.mrb[0].mxu0 %v4306
        %v4410 = vpop.f32.mrb[0].mxu0
        %v4411 = vadd.f32 0.0, %v4410
        %v4412 = vpop.f32.mrb[0].mxu0
        %v4413 = vpop.f32.mrb[0].mxu0
        %v4414 = vadd.f32 0.0, %v4413
        %v4415 = vpop.f32.mrb[0].mxu0
        %4416 = vmatprep.mubr.bf16.mxu0 0
        %4417 = vmatmul.mubr.bf16.gmra.mrb[0].mxu0 %v4309
        %v4418 = vpop.f32.mrb[0].mxu0
        %v4419 = vadd.f32 0.0, %v4418
        %v4420 = vpop.f32.mrb[0].mxu0
        %v4421 = vpop.f32.mrb[0].mxu0
        %v4422 = vadd.f32 0.0, %v4421
        %v4423 = vpop.f32.mrb[0].mxu0
        %4424 = vmatprep.mubr.bf16.mxu0 0
        %4425 = vmatmul.mubr.bf16.gmra.mrb[0].mxu0 %v4312
        %v4426 = vpop.f32.mrb[0].mxu0
        %v4427 = vadd.f32 0.0, %v4426
        %v4428 = vpop.f32.mrb[0].mxu0
        %v4429 = vpop.f32.mrb[0].mxu0
        %v4430 = vadd.f32 0.0, %v4429
        %v4431 = vpop.f32.mrb[0].mxu0
        %4432 = vmatprep.mubr.bf16.mxu0 0
        %4433 = vmatmul.mubr.bf16.gmra.mrb[0].mxu0 %v4315
        %v4434 = vpop.f32.mrb[0].mxu0
        %v4435 = vadd.f32 0.0, %v4434
        %v4436 = vpop.f32.mrb[0].mxu0
        %v4437 = vpop.f32.mrb[0].mxu0
        %v4438 = vadd.f32 0.0, %v4437
        %v4439 = vpop.f32.mrb[0].mxu0
        %4440 = vmatprep.mubr.bf16.mxu0 0
        %4441 = vmatmul.mubr.bf16.gmra.mrb[0].mxu0 %v4318
        %v4442 = vpop.f32.mrb[0].mxu0
        %v4443 = vadd.f32 0.0, %v4442
        %v4444 = vpop.f32.mrb[0].mxu0
        %v4445 = vpop.f32.mrb[0].mxu0
        %v4446 = vadd.f32 0.0, %v4445
        %v4447 = vpop.f32.mrb[0].mxu0
        %4448 = vmatprep.mubr.bf16.mxu0 0
        %4449 = vmatmul.mubr.bf16.gmra.mrb[0].mxu0 %v4321
        %v4450 = vpop.f32.mrb[0].mxu0
        %v4451 = vadd.f32 0.0, %v4450
        %v4452 = vpop.f32.mrb[0].mxu0
        %v4453 = vpop.f32.mrb[0].mxu0
        %v4454 = vadd.f32 0.0, %v4453
        %v4455 = vpop.f32.mrb[0].mxu0
        %4456 = vmatprep.mubr.bf16.mxu0 0
        %4457 = vmatmul.mubr.bf16.gmra.mrb[0].mxu0 %v4324
        %v4458 = vpop.f32.mrb[0].mxu0
        %v4459 = vadd.f32 0.0, %v4458
        %v4460 = vpop.f32.mrb[0].mxu0
        %v4461 = vpop.f32.mrb[0].mxu0
        %v4462 = vadd.f32 0.0, %v4461
        %v4463 = vpop.f32.mrb[0].mxu0
        %4464 = vmatprep.mubr.bf16.mxu0 0
        %4465 = vmatmul.mubr.bf16.gmra.mrb[0].mxu0 %v4327
        %v4466 = vpop.f32.mrb[0].mxu0
        %v4467 = vadd.f32 0.0, %v4466
        %v4468 = vpop.f32.mrb[0].mxu0
        %v4469 = vpop.f32.mrb[0].mxu0
        %v4470 = vadd.f32 0.0, %v4469
        %v4471 = vpop.f32.mrb[0].mxu0
        %4472 = vmatprep.mubr.bf16.mxu0 0
        %4473 = vmatmul.mubr.bf16.gmra.mrb[0].mxu0 %v4330
        %v4474 = vpop.f32.mrb[0].mxu0
        %v4475 = vadd.f32 0.0, %v4474
        %v4476 = vpop.f32.mrb[0].mxu0
        %v4477 = vpop.f32.mrb[0].mxu0
        %v4478 = vadd.f32 0.0, %v4477
        %v4479 = vpop.f32.mrb[0].mxu0
        %4480 = vmatprep.mubr.bf16.mxu0 0
        %4481 = vmatmul.mubr.bf16.gmra.mrb[0].mxu0 %v4333
        %v4482 = vpop.f32.mrb[0].mxu0
        %v4483 = vadd.f32 0.0, %v4482
        %v4484 = vpop.f32.mrb[0].mxu0
        %v4485 = vpop.f32.mrb[0].mxu0
        %v4486 = vadd.f32 0.0, %v4485
        %v4487 = vpop.f32.mrb[0].mxu0
        %4488 = vmatprep.mubr.bf16.mxu0 0
        %4489 = vmatmul.mubr.bf16.gmra.mrb[0].mxu0 %v4336
        %v4490 = vpop.f32.mrb[0].mxu0
        %v4491 = vadd.f32 0.0, %v4490
        %v4492 = vpop.f32.mrb[0].mxu0
        %v4493 = vpop.f32.mrb[0].mxu0
        %v4494 = vadd.f32 0.0, %v4493
        %v4495 = vpop.f32.mrb[0].mxu0
        %4496 = vmatprep.mubr.bf16.mxu0 0
        %4497 = vmatmul.mubr.bf16.gmra.mrb[0].mxu0 %v4339
        %v4498 = vpop.f32.mrb[0].mxu0
        %v4499 = vadd.f32 0.0, %v4498
        %v4500 = vpop.f32.mrb[0].mxu0
        %v4501 = vpop.f32.mrb[0].mxu0
        %v4502 = vadd.f32 0.0, %v4501
        %v4503 = vpop.f32.mrb[0].mxu0
        %4504 = vdwg.mxu0
        %v4505 = vadd.f32 %v4146, %v4379
        %v4506 = vadd.f32 %v4147, %v4382
        %v4507 = vadd.f32 %v4148, %v4387
        %v4508 = vadd.f32 %v4149, %v4390
        %v4509 = vadd.f32 %v4150, %v4395
        %v4510 = vadd.f32 %v4151, %v4398
        %v4511 = vadd.f32 %v4152, %v4403
        %v4512 = vadd.f32 %v4153, %v4406
        %v4513 = vadd.f32 %v4154, %v4411
        %v4514 = vadd.f32 %v4155, %v4414
        %v4515 = vadd.f32 %v4156, %v4419
        %v4516 = vadd.f32 %v4157, %v4422
        %v4517 = vadd.f32 %v4158, %v4427
        %v4518 = vadd.f32 %v4159, %v4430
        %v4519 = vadd.f32 %v4160, %v4435
        %v4520 = vadd.f32 %v4161, %v4438
        %v4521 = vadd.f32 %v4162, %v4443
        %v4522 = vadd.f32 %v4163, %v4446
        %v4523 = vadd.f32 %v4164, %v4451
        %v4524 = vadd.f32 %v4165, %v4454
        %v4525 = vadd.f32 %v4166, %v4459
        %v4526 = vadd.f32 %v4167, %v4462
        %v4527 = vadd.f32 %v4168, %v4467
        %v4528 = vadd.f32 %v4169, %v4470
        %v4529 = vadd.f32 %v4170, %v4475
        %v4530 = vadd.f32 %v4171, %v4478
        %v4531 = vadd.f32 %v4172, %v4483
        %v4532 = vadd.f32 %v4173, %v4486
        %v4533 = vadd.f32 %v4174, %v4491
        %v4534 = vadd.f32 %v4175, %v4494
        %v4535 = vadd.f32 %v4176, %v4499
        %v4536 = vadd.f32 %v4177, %v4502
        %v4537 = vld [vmem:[%s4178] sm:$0xf]
        %v4538 = vld [vmem:[%s4178 + $0x4] sm:$0xf]
        %v4539 = vld [vmem:[%s4178 + $0x8] sm:$0x1]
        %v4540 = vld [vmem:[%s4178 + $0xc] sm:$0xf]
        %v4541 = vld [vmem:[%s4178 + $0x10] sm:$0xf]
        %v4542 = vld [vmem:[%s4178 + $0x14] sm:$0x1]
        %v4543 = vld [vmem:[%s4178 + $0x18] sm:$0xf]
        %v4544 = vld [vmem:[%s4178 + $0x1c] sm:$0xf]
        %v4545 = vld [vmem:[%s4178 + $0x20] sm:$0x1]
        %v4546 = vld [vmem:[%s4178 + $0x24] sm:$0xf]
        %v4547 = vld [vmem:[%s4178 + $0x28] sm:$0xf]
        %v4548 = vld [vmem:[%s4178 + $0x2c] sm:$0x1]
        %v4549 = vld [vmem:[%s4178 + $0x30] sm:$0xf]
        %v4550 = vld [vmem:[%s4178 + $0x34] sm:$0xf]
        %v4551 = vld [vmem:[%s4178 + $0x38] sm:$0x1]
        %v4552 = vld [vmem:[%s4178 + $0x3c] sm:$0xf]
        %v4553 = vld [vmem:[%s4178 + $0x40] sm:$0xf]
        %v4554 = vld [vmem:[%s4178 + $0x44] sm:$0x1]
        %v4555 = vld [vmem:[%s4178 + $0x48] sm:$0xf]
        %v4556 = vld [vmem:[%s4178 + $0x4c] sm:$0xf]
        %v4557 = vld [vmem:[%s4178 + $0x50] sm:$0x1]
        %v4558 = vld [vmem:[%s4178 + $0x54] sm:$0xf]
        %v4559 = vld [vmem:[%s4178 + $0x58] sm:$0xf]
        %v4560 = vld [vmem:[%s4178 + $0x5c] sm:$0x1]
        %v4561 = vld [vmem:[%s4178 + $0x60] sm:$0xf]
        %v4562 = vld [vmem:[%s4178 + $0x64] sm:$0xf]
        %v4563 = vld [vmem:[%s4178 + $0x68] sm:$0x1]
        %v4564 = vld [vmem:[%s4178 + $0x6c] sm:$0xf]
        %v4565 = vld [vmem:[%s4178 + $0x70] sm:$0xf]
        %v4566 = vld [vmem:[%s4178 + $0x74] sm:$0x1]
        %v4567 = vld [vmem:[%s4178 + $0x78] sm:$0xf]
        %v4568 = vld [vmem:[%s4178 + $0x7c] sm:$0xf]
        %v4569 = vld [vmem:[%s4178 + $0x80] sm:$0x1]
        %v4570 = vld [vmem:[%s4178 + $0x84] sm:$0xf]
        %v4571 = vld [vmem:[%s4178 + $0x88] sm:$0xf]
        %v4572 = vld [vmem:[%s4178 + $0x8c] sm:$0x1]
        %v4573 = vld [vmem:[%s4178 + $0x90] sm:$0xf]
        %v4574 = vld [vmem:[%s4178 + $0x94] sm:$0xf]
        %v4575 = vld [vmem:[%s4178 + $0x98] sm:$0x1]
        %v4576 = vld [vmem:[%s4178 + $0x9c] sm:$0xf]
        %v4577 = vld [vmem:[%s4178 + $0xa0] sm:$0xf]
        %v4578 = vld [vmem:[%s4178 + $0xa4] sm:$0x1]
        %v4579 = vld [vmem:[%s4178 + $0xa8] sm:$0xf]
        %v4580 = vld [vmem:[%s4178 + $0xac] sm:$0xf]
        %v4581 = vld [vmem:[%s4178 + $0xb0] sm:$0x1]
        %v4582 = vld [vmem:[%s4178 + $0xb4] sm:$0xf]
        %v4583 = vld [vmem:[%s4178 + $0xb8] sm:$0xf]
        %v4584 = vld [vmem:[%s4178 + $0xbc] sm:$0x1]
        %v4586 = vshrl.u32 %v4537, 16
        %v4588 = vrot.slane %v4586, 4
        %v4589 = vshll.u32 %v4537, 16
        %v4591 = vrot.slane %v4589, 5
        %v4592 = vor.u32 %v4588, %v4591
        %v4593 = vrot.slane %v4592, 4
        %v4595 = vshll.u32 %v4538, 16
        %v4597 = vrot.slane %v4595, 5
        %v4598 = vsel %vm1472, %v4593, %v4597
        %v4599 = vshrl.u32 %v4538, 16
        %v4601 = vrot.slane %v4599, 4
        %v4602 = vor.u32 %v4601, %v4597
        %v4603 = vrot.slane %v4602, 4
        %v4605 = vshll.u32 %v4539, 16
        %v4607 = vrot.slane %v4605, 5
        %v4608 = vsel %vm1472, %v4603, %v4607
        %v4610 = vshrl.u32 %v4540, 16
        %v4612 = vrot.slane %v4610, 4
        %v4613 = vshll.u32 %v4540, 16
        %v4615 = vrot.slane %v4613, 5
        %v4616 = vor.u32 %v4612, %v4615
        %v4617 = vrot.slane %v4616, 4
        %v4619 = vshll.u32 %v4541, 16
        %v4621 = vrot.slane %v4619, 5
        %v4622 = vsel %vm1472, %v4617, %v4621
        %v4623 = vshrl.u32 %v4541, 16
        %v4625 = vrot.slane %v4623, 4
        %v4626 = vor.u32 %v4625, %v4621
        %v4627 = vrot.slane %v4626, 4
        %v4629 = vshll.u32 %v4542, 16
        %v4631 = vrot.slane %v4629, 5
        %v4632 = vsel %vm1472, %v4627, %v4631
        %v4634 = vshrl.u32 %v4543, 16
        %v4636 = vrot.slane %v4634, 4
        %v4637 = vshll.u32 %v4543, 16
        %v4639 = vrot.slane %v4637, 5
        %v4640 = vor.u32 %v4636, %v4639
        %v4641 = vrot.slane %v4640, 4
        %v4643 = vshll.u32 %v4544, 16
        %v4645 = vrot.slane %v4643, 5
        %v4646 = vsel %vm1472, %v4641, %v4645
        %v4647 = vshrl.u32 %v4544, 16
        %v4649 = vrot.slane %v4647, 4
        %v4650 = vor.u32 %v4649, %v4645
        %v4651 = vrot.slane %v4650, 4
        %v4653 = vshll.u32 %v4545, 16
        %v4655 = vrot.slane %v4653, 5
        %v4656 = vsel %vm1472, %v4651, %v4655
        %v4658 = vshrl.u32 %v4546, 16
        %v4660 = vrot.slane %v4658, 4
        %v4661 = vshll.u32 %v4546, 16
        %v4663 = vrot.slane %v4661, 5
        %v4664 = vor.u32 %v4660, %v4663
        %v4665 = vrot.slane %v4664, 4
        %v4667 = vshll.u32 %v4547, 16
        %v4669 = vrot.slane %v4667, 5
        %v4670 = vsel %vm1472, %v4665, %v4669
        %v4671 = vshrl.u32 %v4547, 16
        %v4673 = vrot.slane %v4671, 4
        %v4674 = vor.u32 %v4673, %v4669
        %v4675 = vrot.slane %v4674, 4
        %v4677 = vshll.u32 %v4548, 16
        %v4679 = vrot.slane %v4677, 5
        %v4680 = vsel %vm1472, %v4675, %v4679
        %v4682 = vshrl.u32 %v4549, 16
        %v4684 = vrot.slane %v4682, 4
        %v4685 = vshll.u32 %v4549, 16
        %v4687 = vrot.slane %v4685, 5
        %v4688 = vor.u32 %v4684, %v4687
        %v4689 = vrot.slane %v4688, 4
        %v4691 = vshll.u32 %v4550, 16
        %v4693 = vrot.slane %v4691, 5
        %v4694 = vsel %vm1472, %v4689, %v4693
        %v4695 = vshrl.u32 %v4550, 16
        %v4697 = vrot.slane %v4695, 4
        %v4698 = vor.u32 %v4697, %v4693
        %v4699 = vrot.slane %v4698, 4
        %v4701 = vshll.u32 %v4551, 16
        %v4703 = vrot.slane %v4701, 5
        %v4704 = vsel %vm1472, %v4699, %v4703
        %v4706 = vshrl.u32 %v4552, 16
        %v4708 = vrot.slane %v4706, 4
        %v4709 = vshll.u32 %v4552, 16
        %v4711 = vrot.slane %v4709, 5
        %v4712 = vor.u32 %v4708, %v4711
        %v4713 = vrot.slane %v4712, 4
        %v4715 = vshll.u32 %v4553, 16
        %v4717 = vrot.slane %v4715, 5
        %v4718 = vsel %vm1472, %v4713, %v4717
        %v4719 = vshrl.u32 %v4553, 16
        %v4721 = vrot.slane %v4719, 4
        %v4722 = vor.u32 %v4721, %v4717
        %v4723 = vrot.slane %v4722, 4
        %v4725 = vshll.u32 %v4554, 16
        %v4727 = vrot.slane %v4725, 5
        %v4728 = vsel %vm1472, %v4723, %v4727
        %v4730 = vshrl.u32 %v4555, 16
        %v4732 = vrot.slane %v4730, 4
        %v4733 = vshll.u32 %v4555, 16
        %v4735 = vrot.slane %v4733, 5
        %v4736 = vor.u32 %v4732, %v4735
        %v4737 = vrot.slane %v4736, 4
        %v4739 = vshll.u32 %v4556, 16
        %v4741 = vrot.slane %v4739, 5
        %v4742 = vsel %vm1472, %v4737, %v4741
        %v4743 = vshrl.u32 %v4556, 16
        %v4745 = vrot.slane %v4743, 4
        %v4746 = vor.u32 %v4745, %v4741
        %v4747 = vrot.slane %v4746, 4
        %v4749 = vshll.u32 %v4557, 16
        %v4751 = vrot.slane %v4749, 5
        %v4752 = vsel %vm1472, %v4747, %v4751
        %v4754 = vshrl.u32 %v4558, 16
        %v4756 = vrot.slane %v4754, 4
        %v4757 = vshll.u32 %v4558, 16
        %v4759 = vrot.slane %v4757, 5
        %v4760 = vor.u32 %v4756, %v4759
        %v4761 = vrot.slane %v4760, 4
        %v4763 = vshll.u32 %v4559, 16
        %v4765 = vrot.slane %v4763, 5
        %v4766 = vsel %vm1472, %v4761, %v4765
        %v4767 = vshrl.u32 %v4559, 16
        %v4769 = vrot.slane %v4767, 4
        %v4770 = vor.u32 %v4769, %v4765
        %v4771 = vrot.slane %v4770, 4
        %v4773 = vshll.u32 %v4560, 16
        %v4775 = vrot.slane %v4773, 5
        %v4776 = vsel %vm1472, %v4771, %v4775
        %v4778 = vshrl.u32 %v4561, 16
        %v4780 = vrot.slane %v4778, 4
        %v4781 = vshll.u32 %v4561, 16
        %v4783 = vrot.slane %v4781, 5
        %v4784 = vor.u32 %v4780, %v4783
        %v4785 = vrot.slane %v4784, 4
        %v4787 = vshll.u32 %v4562, 16
        %v4789 = vrot.slane %v4787, 5
        %v4790 = vsel %vm1472, %v4785, %v4789
        %v4791 = vshrl.u32 %v4562, 16
        %v4793 = vrot.slane %v4791, 4
        %v4794 = vor.u32 %v4793, %v4789
        %v4795 = vrot.slane %v4794, 4
        %v4797 = vshll.u32 %v4563, 16
        %v4799 = vrot.slane %v4797, 5
        %v4800 = vsel %vm1472, %v4795, %v4799
        %v4802 = vshrl.u32 %v4564, 16
        %v4804 = vrot.slane %v4802, 4
        %v4805 = vshll.u32 %v4564, 16
        %v4807 = vrot.slane %v4805, 5
        %v4808 = vor.u32 %v4804, %v4807
        %v4809 = vrot.slane %v4808, 4
        %v4811 = vshll.u32 %v4565, 16
        %v4813 = vrot.slane %v4811, 5
        %v4814 = vsel %vm1472, %v4809, %v4813
        %v4815 = vshrl.u32 %v4565, 16
        %v4817 = vrot.slane %v4815, 4
        %v4818 = vor.u32 %v4817, %v4813
        %v4819 = vrot.slane %v4818, 4
        %v4821 = vshll.u32 %v4566, 16
        %v4823 = vrot.slane %v4821, 5
        %v4824 = vsel %vm1472, %v4819, %v4823
        %v4826 = vshrl.u32 %v4567, 16
        %v4828 = vrot.slane %v4826, 4
        %v4829 = vshll.u32 %v4567, 16
        %v4831 = vrot.slane %v4829, 5
        %v4832 = vor.u32 %v4828, %v4831
        %v4833 = vrot.slane %v4832, 4
        %v4835 = vshll.u32 %v4568, 16
        %v4837 = vrot.slane %v4835, 5
        %v4838 = vsel %vm1472, %v4833, %v4837
        %v4839 = vshrl.u32 %v4568, 16
        %v4841 = vrot.slane %v4839, 4
        %v4842 = vor.u32 %v4841, %v4837
        %v4843 = vrot.slane %v4842, 4
        %v4845 = vshll.u32 %v4569, 16
        %v4847 = vrot.slane %v4845, 5
        %v4848 = vsel %vm1472, %v4843, %v4847
        %v4850 = vshrl.u32 %v4570, 16
        %v4852 = vrot.slane %v4850, 4
        %v4853 = vshll.u32 %v4570, 16
        %v4855 = vrot.slane %v4853, 5
        %v4856 = vor.u32 %v4852, %v4855
        %v4857 = vrot.slane %v4856, 4
        %v4859 = vshll.u32 %v4571, 16
        %v4861 = vrot.slane %v4859, 5
        %v4862 = vsel %vm1472, %v4857, %v4861
        %v4863 = vshrl.u32 %v4571, 16
        %v4865 = vrot.slane %v4863, 4
        %v4866 = vor.u32 %v4865, %v4861
        %v4867 = vrot.slane %v4866, 4
        %v4869 = vshll.u32 %v4572, 16
        %v4871 = vrot.slane %v4869, 5
        %v4872 = vsel %vm1472, %v4867, %v4871
        %v4874 = vshrl.u32 %v4573, 16
        %v4876 = vrot.slane %v4874, 4
        %v4877 = vshll.u32 %v4573, 16
        %v4879 = vrot.slane %v4877, 5
        %v4880 = vor.u32 %v4876, %v4879
        %v4881 = vrot.slane %v4880, 4
        %v4883 = vshll.u32 %v4574, 16
        %v4885 = vrot.slane %v4883, 5
        %v4886 = vsel %vm1472, %v4881, %v4885
        %v4887 = vshrl.u32 %v4574, 16
        %v4889 = vrot.slane %v4887, 4
        %v4890 = vor.u32 %v4889, %v4885
        %v4891 = vrot.slane %v4890, 4
        %v4893 = vshll.u32 %v4575, 16
        %v4895 = vrot.slane %v4893, 5
        %v4896 = vsel %vm1472, %v4891, %v4895
        %v4898 = vshrl.u32 %v4576, 16
        %v4900 = vrot.slane %v4898, 4
        %v4901 = vshll.u32 %v4576, 16
        %v4903 = vrot.slane %v4901, 5
        %v4904 = vor.u32 %v4900, %v4903
        %v4905 = vrot.slane %v4904, 4
        %v4907 = vshll.u32 %v4577, 16
        %v4909 = vrot.slane %v4907, 5
        %v4910 = vsel %vm1472, %v4905, %v4909
        %v4911 = vshrl.u32 %v4577, 16
        %v4913 = vrot.slane %v4911, 4
        %v4914 = vor.u32 %v4913, %v4909
        %v4915 = vrot.slane %v4914, 4
        %v4917 = vshll.u32 %v4578, 16
        %v4919 = vrot.slane %v4917, 5
        %v4920 = vsel %vm1472, %v4915, %v4919
        %v4922 = vshrl.u32 %v4579, 16
        %v4924 = vrot.slane %v4922, 4
        %v4925 = vshll.u32 %v4579, 16
        %v4927 = vrot.slane %v4925, 5
        %v4928 = vor.u32 %v4924, %v4927
        %v4929 = vrot.slane %v4928, 4
        %v4931 = vshll.u32 %v4580, 16
        %v4933 = vrot.slane %v4931, 5
        %v4934 = vsel %vm1472, %v4929, %v4933
        %v4935 = vshrl.u32 %v4580, 16
        %v4937 = vrot.slane %v4935, 4
        %v4938 = vor.u32 %v4937, %v4933
        %v4939 = vrot.slane %v4938, 4
        %v4941 = vshll.u32 %v4581, 16
        %v4943 = vrot.slane %v4941, 5
        %v4944 = vsel %vm1472, %v4939, %v4943
        %v4946 = vshrl.u32 %v4582, 16
        %v4948 = vrot.slane %v4946, 4
        %v4949 = vshll.u32 %v4582, 16
        %v4951 = vrot.slane %v4949, 5
        %v4952 = vor.u32 %v4948, %v4951
        %v4953 = vrot.slane %v4952, 4
        %v4955 = vshll.u32 %v4583, 16
        %v4957 = vrot.slane %v4955, 5
        %v4958 = vsel %vm1472, %v4953, %v4957
        %v4959 = vshrl.u32 %v4583, 16
        %v4961 = vrot.slane %v4959, 4
        %v4962 = vor.u32 %v4961, %v4957
        %v4963 = vrot.slane %v4962, 4
        %v4965 = vshll.u32 %v4584, 16
        %v4967 = vrot.slane %v4965, 5
        %v4968 = vsel %vm1472, %v4963, %v4967
        %s4969 = scalar_lea.vmem [#allocation6], 14
        %v4970 = vld [vmem:[%s4969] sm:$0x3]
        %v4971 = vunpack.c.l.b16 %v4598
        %v4972 = vunpack.c.l.b16 %v4608
        %v4973 = vunpack.c.l.b16 %v4622
        %v4974 = vunpack.c.l.b16 %v4632
        %v4975 = vunpack.c.l.b16 %v4646
        %v4976 = vunpack.c.l.b16 %v4656
        %v4977 = vunpack.c.l.b16 %v4670
        %v4978 = vunpack.c.l.b16 %v4680
        %v4979 = vunpack.c.l.b16 %v4694
        %v4980 = vunpack.c.l.b16 %v4704
        %v4981 = vunpack.c.l.b16 %v4718
        %v4982 = vunpack.c.l.b16 %v4728
        %v4983 = vunpack.c.l.b16 %v4742
        %v4984 = vunpack.c.l.b16 %v4752
        %v4985 = vunpack.c.l.b16 %v4766
        %v4986 = vunpack.c.l.b16 %v4776
        %v4987 = vunpack.c.l.b16 %v4790
        %v4988 = vunpack.c.l.b16 %v4800
        %v4989 = vunpack.c.l.b16 %v4814
        %v4990 = vunpack.c.l.b16 %v4824
        %v4991 = vunpack.c.l.b16 %v4838
        %v4992 = vunpack.c.l.b16 %v4848
        %v4993 = vunpack.c.l.b16 %v4862
        %v4994 = vunpack.c.l.b16 %v4872
        %v4995 = vunpack.c.l.b16 %v4886
        %v4996 = vunpack.c.l.b16 %v4896
        %v4997 = vunpack.c.l.b16 %v4910
        %v4998 = vunpack.c.l.b16 %v4920
        %v4999 = vunpack.c.l.b16 %v4934
        %v5000 = vunpack.c.l.b16 %v4944
        %v5001 = vunpack.c.l.b16 %v4958
        %v5002 = vunpack.c.l.b16 %v4968
        %v5003 = vpack.c.b16 %v4972, %v4971
        %v5004 = vpack.c.b16 %v4974, %v4973
        %v5005 = vpack.c.b16 %v4976, %v4975
        %v5006 = vpack.c.b16 %v4978, %v4977
        %v5007 = vpack.c.b16 %v4980, %v4979
        %v5008 = vpack.c.b16 %v4982, %v4981
        %v5009 = vpack.c.b16 %v4984, %v4983
        %v5010 = vpack.c.b16 %v4986, %v4985
        %v5011 = vpack.c.b16 %v4988, %v4987
        %v5012 = vpack.c.b16 %v4990, %v4989
        %v5013 = vpack.c.b16 %v4992, %v4991
        %v5014 = vpack.c.b16 %v4994, %v4993
        %v5015 = vpack.c.b16 %v4996, %v4995
        %v5016 = vpack.c.b16 %v4998, %v4997
        %v5017 = vpack.c.b16 %v5000, %v4999
        %v5018 = vpack.c.b16 %v5002, %v5001
        %v5020 = vsel %vm1208, %v5003, 0
        %v5023 = vsel %vm1208, %v5004, 0
        %v5026 = vsel %vm1208, %v5005, 0
        %v5029 = vsel %vm1208, %v5006, 0
        %v5032 = vsel %vm1208, %v5007, 0
        %v5035 = vsel %vm1208, %v5008, 0
        %v5038 = vsel %vm1208, %v5009, 0
        %v5041 = vsel %vm1208, %v5010, 0
        %v5044 = vsel %vm1208, %v5011, 0
        %v5047 = vsel %vm1208, %v5012, 0
        %v5050 = vsel %vm1208, %v5013, 0
        %v5053 = vsel %vm1208, %v5014, 0
        %v5056 = vsel %vm1208, %v5015, 0
        %v5059 = vsel %vm1208, %v5016, 0
        %v5062 = vsel %vm1208, %v5017, 0
        %v5065 = vsel %vm1208, %v5018, 0
        %v5068 = vsel %vm1257, %v4970, 0
        %5070 = vmatprep.subr.bf16.mxu0 0
        %5071 = vmatpush1.bf16.msra.mxu0 %v5068
        %5072 = vmatprep.subr.bf16.mxu0 0
        %5073 = vmatpush1.bf16.msra.mxu0 0
        %5074 = vmatprep.subr.bf16.mxu0 0
        %5075 = vmatpush1.bf16.msra.mxu0 0
        %5076 = vmatprep.subr.bf16.mxu0 0
        %5077 = vmatpush1.bf16.msra.mxu0 0
        %5078 = vmatprep.subr.bf16.mxu0 0
        %5079 = vmatpush1.bf16.msra.mxu0 0
        %5080 = vmatprep.subr.bf16.mxu0 0
        %5081 = vmatpush1.bf16.msra.mxu0 0
        %5082 = vmatprep.subr.bf16.mxu0 0
        %5083 = vmatpush1.bf16.msra.mxu0 0
        %5084 = vmatprep.subr.bf16.mxu0 0
        %5085 = vmatpush1.bf16.msra.mxu0 0
        %5086 = vmatprep.subr.bf16.mxu0 0
        %5087 = vmatpush1.bf16.msra.mxu0 0
        %5088 = vmatprep.subr.bf16.mxu0 0
        %5089 = vmatpush1.bf16.msra.mxu0 0
        %5090 = vmatprep.subr.bf16.mxu0 0
        %5091 = vmatpush1.bf16.msra.mxu0 0
        %5092 = vmatprep.subr.bf16.mxu0 0
        %5093 = vmatpush1.bf16.msra.mxu0 0
        %5094 = vmatprep.subr.bf16.mxu0 0
        %5095 = vmatpush1.bf16.msra.mxu0 0
        %5096 = vmatprep.subr.bf16.mxu0 0
        %5097 = vmatpush1.bf16.msra.mxu0 0
        %5098 = vmatprep.subr.bf16.mxu0 0
        %5099 = vmatpush1.bf16.msra.mxu0 0
        %5100 = vmatprep.subr.bf16.mxu0 0
        %5101 = vmatpush1.bf16.msra.mxu0 0
        %5102 = vmatprep.mubr.bf16.mxu0 0
        %5103 = vmatmul.mubr.bf16.gmra.mrb[0].mxu0 %v5020
        %v5104 = vpop.f32.mrb[0].mxu0
        %v5105 = vadd.f32 0.0, %v5104
        %v5106 = vpop.f32.mrb[0].mxu0
        %v5107 = vpop.f32.mrb[0].mxu0
        %v5108 = vadd.f32 0.0, %v5107
        %v5109 = vpop.f32.mrb[0].mxu0
        %5110 = vmatprep.mubr.bf16.mxu0 0
        %5111 = vmatmul.mubr.bf16.gmra.mrb[0].mxu0 %v5023
        %v5112 = vpop.f32.mrb[0].mxu0
        %v5113 = vadd.f32 0.0, %v5112
        %v5114 = vpop.f32.mrb[0].mxu0
        %v5115 = vpop.f32.mrb[0].mxu0
        %v5116 = vadd.f32 0.0, %v5115
        %v5117 = vpop.f32.mrb[0].mxu0
        %5118 = vmatprep.mubr.bf16.mxu0 0
        %5119 = vmatmul.mubr.bf16.gmra.mrb[0].mxu0 %v5026
        %v5120 = vpop.f32.mrb[0].mxu0
        %v5121 = vadd.f32 0.0, %v5120
        %v5122 = vpop.f32.mrb[0].mxu0
        %v5123 = vpop.f32.mrb[0].mxu0
        %v5124 = vadd.f32 0.0, %v5123
        %v5125 = vpop.f32.mrb[0].mxu0
        %5126 = vmatprep.mubr.bf16.mxu0 0
        %5127 = vmatmul.mubr.bf16.gmra.mrb[0].mxu0 %v5029
        %v5128 = vpop.f32.mrb[0].mxu0
        %v5129 = vadd.f32 0.0, %v5128
        %v5130 = vpop.f32.mrb[0].mxu0
        %v5131 = vpop.f32.mrb[0].mxu0
        %v5132 = vadd.f32 0.0, %v5131
        %v5133 = vpop.f32.mrb[0].mxu0
        %5134 = vmatprep.mubr.bf16.mxu0 0
        %5135 = vmatmul.mubr.bf16.gmra.mrb[0].mxu0 %v5032
        %v5136 = vpop.f32.mrb[0].mxu0
        %v5137 = vadd.f32 0.0, %v5136
        %v5138 = vpop.f32.mrb[0].mxu0
        %v5139 = vpop.f32.mrb[0].mxu0
        %v5140 = vadd.f32 0.0, %v5139
        %v5141 = vpop.f32.mrb[0].mxu0
        %5142 = vmatprep.mubr.bf16.mxu0 0
        %5143 = vmatmul.mubr.bf16.gmra.mrb[0].mxu0 %v5035
        %v5144 = vpop.f32.mrb[0].mxu0
        %v5145 = vadd.f32 0.0, %v5144
        %v5146 = vpop.f32.mrb[0].mxu0
        %v5147 = vpop.f32.mrb[0].mxu0
        %v5148 = vadd.f32 0.0, %v5147
        %v5149 = vpop.f32.mrb[0].mxu0
        %5150 = vmatprep.mubr.bf16.mxu0 0
        %5151 = vmatmul.mubr.bf16.gmra.mrb[0].mxu0 %v5038
        %v5152 = vpop.f32.mrb[0].mxu0
        %v5153 = vadd.f32 0.0, %v5152
        %v5154 = vpop.f32.mrb[0].mxu0
        %v5155 = vpop.f32.mrb[0].mxu0
        %v5156 = vadd.f32 0.0, %v5155
        %v5157 = vpop.f32.mrb[0].mxu0
        %5158 = vmatprep.mubr.bf16.mxu0 0
        %5159 = vmatmul.mubr.bf16.gmra.mrb[0].mxu0 %v5041
        %v5160 = vpop.f32.mrb[0].mxu0
        %v5161 = vadd.f32 0.0, %v5160
        %v5162 = vpop.f32.mrb[0].mxu0
        %v5163 = vpop.f32.mrb[0].mxu0
        %v5164 = vadd.f32 0.0, %v5163
        %v5165 = vpop.f32.mrb[0].mxu0
        %5166 = vmatprep.mubr.bf16.mxu0 0
        %5167 = vmatmul.mubr.bf16.gmra.mrb[0].mxu0 %v5044
        %v5168 = vpop.f32.mrb[0].mxu0
        %v5169 = vadd.f32 0.0, %v5168
        %v5170 = vpop.f32.mrb[0].mxu0
        %v5171 = vpop.f32.mrb[0].mxu0
        %v5172 = vadd.f32 0.0, %v5171
        %v5173 = vpop.f32.mrb[0].mxu0
        %5174 = vmatprep.mubr.bf16.mxu0 0
        %5175 = vmatmul.mubr.bf16.gmra.mrb[0].mxu0 %v5047
        %v5176 = vpop.f32.mrb[0].mxu0
        %v5177 = vadd.f32 0.0, %v5176
        %v5178 = vpop.f32.mrb[0].mxu0
        %v5179 = vpop.f32.mrb[0].mxu0
        %v5180 = vadd.f32 0.0, %v5179
        %v5181 = vpop.f32.mrb[0].mxu0
        %5182 = vmatprep.mubr.bf16.mxu0 0
        %5183 = vmatmul.mubr.bf16.gmra.mrb[0].mxu0 %v5050
        %v5184 = vpop.f32.mrb[0].mxu0
        %v5185 = vadd.f32 0.0, %v5184
        %v5186 = vpop.f32.mrb[0].mxu0
        %v5187 = vpop.f32.mrb[0].mxu0
        %v5188 = vadd.f32 0.0, %v5187
        %v5189 = vpop.f32.mrb[0].mxu0
        %5190 = vmatprep.mubr.bf16.mxu0 0
        %5191 = vmatmul.mubr.bf16.gmra.mrb[0].mxu0 %v5053
        %v5192 = vpop.f32.mrb[0].mxu0
        %v5193 = vadd.f32 0.0, %v5192
        %v5194 = vpop.f32.mrb[0].mxu0
        %v5195 = vpop.f32.mrb[0].mxu0
        %v5196 = vadd.f32 0.0, %v5195
        %v5197 = vpop.f32.mrb[0].mxu0
        %5198 = vmatprep.mubr.bf16.mxu0 0
        %5199 = vmatmul.mubr.bf16.gmra.mrb[0].mxu0 %v5056
        %v5200 = vpop.f32.mrb[0].mxu0
        %v5201 = vadd.f32 0.0, %v5200
        %v5202 = vpop.f32.mrb[0].mxu0
        %v5203 = vpop.f32.mrb[0].mxu0
        %v5204 = vadd.f32 0.0, %v5203
        %v5205 = vpop.f32.mrb[0].mxu0
        %5206 = vmatprep.mubr.bf16.mxu0 0
        %5207 = vmatmul.mubr.bf16.gmra.mrb[0].mxu0 %v5059
        %v5208 = vpop.f32.mrb[0].mxu0
        %v5209 = vadd.f32 0.0, %v5208
        %v5210 = vpop.f32.mrb[0].mxu0
        %v5211 = vpop.f32.mrb[0].mxu0
        %v5212 = vadd.f32 0.0, %v5211
        %v5213 = vpop.f32.mrb[0].mxu0
        %5214 = vmatprep.mubr.bf16.mxu0 0
        %5215 = vmatmul.mubr.bf16.gmra.mrb[0].mxu0 %v5062
        %v5216 = vpop.f32.mrb[0].mxu0
        %v5217 = vadd.f32 0.0, %v5216
        %v5218 = vpop.f32.mrb[0].mxu0
        %v5219 = vpop.f32.mrb[0].mxu0
        %v5220 = vadd.f32 0.0, %v5219
        %v5221 = vpop.f32.mrb[0].mxu0
        %5222 = vmatprep.mubr.bf16.mxu0 0
        %5223 = vmatmul.mubr.bf16.gmra.mrb[0].mxu0 %v5065
        %v5224 = vpop.f32.mrb[0].mxu0
        %v5225 = vadd.f32 0.0, %v5224
        %v5226 = vpop.f32.mrb[0].mxu0
        %v5227 = vpop.f32.mrb[0].mxu0
        %v5228 = vadd.f32 0.0, %v5227
        %v5229 = vpop.f32.mrb[0].mxu0
        %5230 = vdwg.mxu0
        %v5231 = vadd.f32 %v4505, %v5105
        %v5232 = vadd.f32 %v4506, %v5108
        %v5233 = vadd.f32 %v4507, %v5113
        %v5234 = vadd.f32 %v4508, %v5116
        %v5235 = vadd.f32 %v4509, %v5121
        %v5236 = vadd.f32 %v4510, %v5124
        %v5237 = vadd.f32 %v4511, %v5129
        %v5238 = vadd.f32 %v4512, %v5132
        %v5239 = vadd.f32 %v4513, %v5137
        %v5240 = vadd.f32 %v4514, %v5140
        %v5241 = vadd.f32 %v4515, %v5145
        %v5242 = vadd.f32 %v4516, %v5148
        %v5243 = vadd.f32 %v4517, %v5153
        %v5244 = vadd.f32 %v4518, %v5156
        %v5245 = vadd.f32 %v4519, %v5161
        %v5246 = vadd.f32 %v4520, %v5164
        %v5247 = vadd.f32 %v4521, %v5169
        %v5248 = vadd.f32 %v4522, %v5172
        %v5249 = vadd.f32 %v4523, %v5177
        %v5250 = vadd.f32 %v4524, %v5180
        %v5251 = vadd.f32 %v4525, %v5185
        %v5252 = vadd.f32 %v4526, %v5188
        %v5253 = vadd.f32 %v4527, %v5193
        %v5254 = vadd.f32 %v4528, %v5196
        %v5255 = vadd.f32 %v4529, %v5201
        %v5256 = vadd.f32 %v4530, %v5204
        %v5257 = vadd.f32 %v4531, %v5209
        %v5258 = vadd.f32 %v4532, %v5212
        %v5259 = vadd.f32 %v4533, %v5217
        %v5260 = vadd.f32 %v4534, %v5220
        %v5261 = vadd.f32 %v4535, %v5225
        %v5262 = vadd.f32 %v4536, %v5228
        %v5263 = vld [vmem:[%s4178] sm:$0xe]
        %v5264 = vld [vmem:[%s4178 + $0xc] sm:$0xe]
        %v5265 = vld [vmem:[%s4178 + $0x18] sm:$0xe]
        %v5266 = vld [vmem:[%s4178 + $0x24] sm:$0xe]
        %v5267 = vld [vmem:[%s4178 + $0x30] sm:$0xe]
        %v5268 = vld [vmem:[%s4178 + $0x3c] sm:$0xe]
        %v5269 = vld [vmem:[%s4178 + $0x48] sm:$0xe]
        %v5270 = vld [vmem:[%s4178 + $0x54] sm:$0xe]
        %v5271 = vld [vmem:[%s4178 + $0x60] sm:$0xe]
        %v5272 = vld [vmem:[%s4178 + $0x6c] sm:$0xe]
        %v5273 = vld [vmem:[%s4178 + $0x78] sm:$0xe]
        %v5274 = vld [vmem:[%s4178 + $0x84] sm:$0xe]
        %v5275 = vld [vmem:[%s4178 + $0x90] sm:$0xe]
        %v5276 = vld [vmem:[%s4178 + $0x9c] sm:$0xe]
        %v5277 = vld [vmem:[%s4178 + $0xa8] sm:$0xe]
        %v5278 = vld [vmem:[%s4178 + $0xb4] sm:$0xe]
        %v5327 = vrot.slane %v5263, 5
        %v5328 = vrot.slane %v5327, 4
        %v5329 = vrot.slane %v4538, 5
        %v5330 = vsel %vm2217, %v5328, %v5329
        %v5331 = vrot.slane %v5329, 4
        %v5332 = vrot.slane %v4539, 5
        %v5333 = vsel %vm2217, %v5331, %v5332
        %v5334 = vrot.slane %v5264, 5
        %v5335 = vrot.slane %v5334, 4
        %v5336 = vrot.slane %v4541, 5
        %v5337 = vsel %vm2217, %v5335, %v5336
        %v5338 = vrot.slane %v5336, 4
        %v5339 = vrot.slane %v4542, 5
        %v5340 = vsel %vm2217, %v5338, %v5339
        %v5341 = vrot.slane %v5265, 5
        %v5342 = vrot.slane %v5341, 4
        %v5343 = vrot.slane %v4544, 5
        %v5344 = vsel %vm2217, %v5342, %v5343
        %v5345 = vrot.slane %v5343, 4
        %v5346 = vrot.slane %v4545, 5
        %v5347 = vsel %vm2217, %v5345, %v5346
        %v5348 = vrot.slane %v5266, 5
        %v5349 = vrot.slane %v5348, 4
        %v5350 = vrot.slane %v4547, 5
        %v5351 = vsel %vm2217, %v5349, %v5350
        %v5352 = vrot.slane %v5350, 4
        %v5353 = vrot.slane %v4548, 5
        %v5354 = vsel %vm2217, %v5352, %v5353
        %v5355 = vrot.slane %v5267, 5
        %v5356 = vrot.slane %v5355, 4
        %v5357 = vrot.slane %v4550, 5
        %v5358 = vsel %vm2217, %v5356, %v5357
        %v5359 = vrot.slane %v5357, 4
        %v5360 = vrot.slane %v4551, 5
        %v5361 = vsel %vm2217, %v5359, %v5360
        %v5362 = vrot.slane %v5268, 5
        %v5363 = vrot.slane %v5362, 4
        %v5364 = vrot.slane %v4553, 5
        %v5365 = vsel %vm2217, %v5363, %v5364
        %v5366 = vrot.slane %v5364, 4
        %v5367 = vrot.slane %v4554, 5
        %v5368 = vsel %vm2217, %v5366, %v5367
        %v5369 = vrot.slane %v5269, 5
        %v5370 = vrot.slane %v5369, 4
        %v5371 = vrot.slane %v4556, 5
        %v5372 = vsel %vm2217, %v5370, %v5371
        %v5373 = vrot.slane %v5371, 4
        %v5374 = vrot.slane %v4557, 5
        %v5375 = vsel %vm2217, %v5373, %v5374
        %v5376 = vrot.slane %v5270, 5
        %v5377 = vrot.slane %v5376, 4
        %v5378 = vrot.slane %v4559, 5
        %v5379 = vsel %vm2217, %v5377, %v5378
        %v5380 = vrot.slane %v5378, 4
        %v5381 = vrot.slane %v4560, 5
        %v5382 = vsel %vm2217, %v5380, %v5381
        %v5383 = vrot.slane %v5271, 5
        %v5384 = vrot.slane %v5383, 4
        %v5385 = vrot.slane %v4562, 5
        %v5386 = vsel %vm2217, %v5384, %v5385
        %v5387 = vrot.slane %v5385, 4
        %v5388 = vrot.slane %v4563, 5
        %v5389 = vsel %vm2217, %v5387, %v5388
        %v5390 = vrot.slane %v5272, 5
        %v5391 = vrot.slane %v5390, 4
        %v5392 = vrot.slane %v4565, 5
        %v5393 = vsel %vm2217, %v5391, %v5392
        %v5394 = vrot.slane %v5392, 4
        %v5395 = vrot.slane %v4566, 5
        %v5396 = vsel %vm2217, %v5394, %v5395
        %v5397 = vrot.slane %v5273, 5
        %v5398 = vrot.slane %v5397, 4
        %v5399 = vrot.slane %v4568, 5
        %v5400 = vsel %vm2217, %v5398, %v5399
        %v5401 = vrot.slane %v5399, 4
        %v5402 = vrot.slane %v4569, 5
        %v5403 = vsel %vm2217, %v5401, %v5402
        %v5404 = vrot.slane %v5274, 5
        %v5405 = vrot.slane %v5404, 4
        %v5406 = vrot.slane %v4571, 5
        %v5407 = vsel %vm2217, %v5405, %v5406
        %v5408 = vrot.slane %v5406, 4
        %v5409 = vrot.slane %v4572, 5
        %v5410 = vsel %vm2217, %v5408, %v5409
        %v5411 = vrot.slane %v5275, 5
        %v5412 = vrot.slane %v5411, 4
        %v5413 = vrot.slane %v4574, 5
        %v5414 = vsel %vm2217, %v5412, %v5413
        %v5415 = vrot.slane %v5413, 4
        %v5416 = vrot.slane %v4575, 5
        %v5417 = vsel %vm2217, %v5415, %v5416
        %v5418 = vrot.slane %v5276, 5
        %v5419 = vrot.slane %v5418, 4
        %v5420 = vrot.slane %v4577, 5
        %v5421 = vsel %vm2217, %v5419, %v5420
        %v5422 = vrot.slane %v5420, 4
        %v5423 = vrot.slane %v4578, 5
        %v5424 = vsel %vm2217, %v5422, %v5423
        %v5425 = vrot.slane %v5277, 5
        %v5426 = vrot.slane %v5425, 4
        %v5427 = vrot.slane %v4580, 5
        %v5428 = vsel %vm2217, %v5426, %v5427
        %v5429 = vrot.slane %v5427, 4
        %v5430 = vrot.slane %v4581, 5
        %v5431 = vsel %vm2217, %v5429, %v5430
        %v5432 = vrot.slane %v5278, 5
        %v5433 = vrot.slane %v5432, 4
        %v5434 = vrot.slane %v4583, 5
        %v5435 = vsel %vm2217, %v5433, %v5434
        %v5436 = vrot.slane %v5434, 4
        %v5437 = vrot.slane %v4584, 5
        %v5438 = vsel %vm2217, %v5436, %v5437
        %s5439 = scalar_lea.vmem [#allocation6], 16
        %v5440 = vld [vmem:[%s5439] sm:$0x3]
        %v5441 = vunpack.c.l.b16 %v5330
        %v5442 = vunpack.c.l.b16 %v5333
        %v5443 = vunpack.c.l.b16 %v5337
        %v5444 = vunpack.c.l.b16 %v5340
        %v5445 = vunpack.c.l.b16 %v5344
        %v5446 = vunpack.c.l.b16 %v5347
        %v5447 = vunpack.c.l.b16 %v5351
        %v5448 = vunpack.c.l.b16 %v5354
        %v5449 = vunpack.c.l.b16 %v5358
        %v5450 = vunpack.c.l.b16 %v5361
        %v5451 = vunpack.c.l.b16 %v5365
        %v5452 = vunpack.c.l.b16 %v5368
        %v5453 = vunpack.c.l.b16 %v5372
        %v5454 = vunpack.c.l.b16 %v5375
        %v5455 = vunpack.c.l.b16 %v5379
        %v5456 = vunpack.c.l.b16 %v5382
        %v5457 = vunpack.c.l.b16 %v5386
        %v5458 = vunpack.c.l.b16 %v5389
        %v5459 = vunpack.c.l.b16 %v5393
        %v5460 = vunpack.c.l.b16 %v5396
        %v5461 = vunpack.c.l.b16 %v5400
        %v5462 = vunpack.c.l.b16 %v5403
        %v5463 = vunpack.c.l.b16 %v5407
        %v5464 = vunpack.c.l.b16 %v5410
        %v5465 = vunpack.c.l.b16 %v5414
        %v5466 = vunpack.c.l.b16 %v5417
        %v5467 = vunpack.c.l.b16 %v5421
        %v5468 = vunpack.c.l.b16 %v5424
        %v5469 = vunpack.c.l.b16 %v5428
        %v5470 = vunpack.c.l.b16 %v5431
        %v5471 = vunpack.c.l.b16 %v5435
        %v5472 = vunpack.c.l.b16 %v5438
        %v5473 = vpack.c.b16 %v5442, %v5441
        %v5474 = vpack.c.b16 %v5444, %v5443
        %v5475 = vpack.c.b16 %v5446, %v5445
        %v5476 = vpack.c.b16 %v5448, %v5447
        %v5477 = vpack.c.b16 %v5450, %v5449
        %v5478 = vpack.c.b16 %v5452, %v5451
        %v5479 = vpack.c.b16 %v5454, %v5453
        %v5480 = vpack.c.b16 %v5456, %v5455
        %v5481 = vpack.c.b16 %v5458, %v5457
        %v5482 = vpack.c.b16 %v5460, %v5459
        %v5483 = vpack.c.b16 %v5462, %v5461
        %v5484 = vpack.c.b16 %v5464, %v5463
        %v5485 = vpack.c.b16 %v5466, %v5465
        %v5486 = vpack.c.b16 %v5468, %v5467
        %v5487 = vpack.c.b16 %v5470, %v5469
        %v5488 = vpack.c.b16 %v5472, %v5471
        %v5490 = vsel %vm1208, %v5473, 0
        %v5493 = vsel %vm1208, %v5474, 0
        %v5496 = vsel %vm1208, %v5475, 0
        %v5499 = vsel %vm1208, %v5476, 0
        %v5502 = vsel %vm1208, %v5477, 0
        %v5505 = vsel %vm1208, %v5478, 0
        %v5508 = vsel %vm1208, %v5479, 0
        %v5511 = vsel %vm1208, %v5480, 0
        %v5514 = vsel %vm1208, %v5481, 0
        %v5517 = vsel %vm1208, %v5482, 0
        %v5520 = vsel %vm1208, %v5483, 0
        %v5523 = vsel %vm1208, %v5484, 0
        %v5526 = vsel %vm1208, %v5485, 0
        %v5529 = vsel %vm1208, %v5486, 0
        %v5532 = vsel %vm1208, %v5487, 0
        %v5535 = vsel %vm1208, %v5488, 0
        %v5538 = vsel %vm1257, %v5440, 0
        %5540 = vmatprep.subr.bf16.mxu0 0
        %5541 = vmatpush1.bf16.msra.mxu0 %v5538
        %5542 = vmatprep.subr.bf16.mxu0 0
        %5543 = vmatpush1.bf16.msra.mxu0 0
        %5544 = vmatprep.subr.bf16.mxu0 0
        %5545 = vmatpush1.bf16.msra.mxu0 0
        %5546 = vmatprep.subr.bf16.mxu0 0
        %5547 = vmatpush1.bf16.msra.mxu0 0
        %5548 = vmatprep.subr.bf16.mxu0 0
        %5549 = vmatpush1.bf16.msra.mxu0 0
        %5550 = vmatprep.subr.bf16.mxu0 0
        %5551 = vmatpush1.bf16.msra.mxu0 0
        %5552 = vmatprep.subr.bf16.mxu0 0
        %5553 = vmatpush1.bf16.msra.mxu0 0
        %5554 = vmatprep.subr.bf16.mxu0 0
        %5555 = vmatpush1.bf16.msra.mxu0 0
        %5556 = vmatprep.subr.bf16.mxu0 0
        %5557 = vmatpush1.bf16.msra.mxu0 0
        %5558 = vmatprep.subr.bf16.mxu0 0
        %5559 = vmatpush1.bf16.msra.mxu0 0
        %5560 = vmatprep.subr.bf16.mxu0 0
        %5561 = vmatpush1.bf16.msra.mxu0 0
        %5562 = vmatprep.subr.bf16.mxu0 0
        %5563 = vmatpush1.bf16.msra.mxu0 0
        %5564 = vmatprep.subr.bf16.mxu0 0
        %5565 = vmatpush1.bf16.msra.mxu0 0
        %5566 = vmatprep.subr.bf16.mxu0 0
        %5567 = vmatpush1.bf16.msra.mxu0 0
        %5568 = vmatprep.subr.bf16.mxu0 0
        %5569 = vmatpush1.bf16.msra.mxu0 0
        %5570 = vmatprep.subr.bf16.mxu0 0
        %5571 = vmatpush1.bf16.msra.mxu0 0
        %5572 = vmatprep.mubr.bf16.mxu0 0
        %5573 = vmatmul.mubr.bf16.gmra.mrb[0].mxu0 %v5490
        %v5574 = vpop.f32.mrb[0].mxu0
        %v5575 = vadd.f32 0.0, %v5574
        %v5576 = vpop.f32.mrb[0].mxu0
        %v5577 = vpop.f32.mrb[0].mxu0
        %v5578 = vadd.f32 0.0, %v5577
        %v5579 = vpop.f32.mrb[0].mxu0
        %5580 = vmatprep.mubr.bf16.mxu0 0
        %5581 = vmatmul.mubr.bf16.gmra.mrb[0].mxu0 %v5493
        %v5582 = vpop.f32.mrb[0].mxu0
        %v5583 = vadd.f32 0.0, %v5582
        %v5584 = vpop.f32.mrb[0].mxu0
        %v5585 = vpop.f32.mrb[0].mxu0
        %v5586 = vadd.f32 0.0, %v5585
        %v5587 = vpop.f32.mrb[0].mxu0
        %5588 = vmatprep.mubr.bf16.mxu0 0
        %5589 = vmatmul.mubr.bf16.gmra.mrb[0].mxu0 %v5496
        %v5590 = vpop.f32.mrb[0].mxu0
        %v5591 = vadd.f32 0.0, %v5590
        %v5592 = vpop.f32.mrb[0].mxu0
        %v5593 = vpop.f32.mrb[0].mxu0
        %v5594 = vadd.f32 0.0, %v5593
        %v5595 = vpop.f32.mrb[0].mxu0
        %5596 = vmatprep.mubr.bf16.mxu0 0
        %5597 = vmatmul.mubr.bf16.gmra.mrb[0].mxu0 %v5499
        %v5598 = vpop.f32.mrb[0].mxu0
        %v5599 = vadd.f32 0.0, %v5598
        %v5600 = vpop.f32.mrb[0].mxu0
        %v5601 = vpop.f32.mrb[0].mxu0
        %v5602 = vadd.f32 0.0, %v5601
        %v5603 = vpop.f32.mrb[0].mxu0
        %5604 = vmatprep.mubr.bf16.mxu0 0
        %5605 = vmatmul.mubr.bf16.gmra.mrb[0].mxu0 %v5502
        %v5606 = vpop.f32.mrb[0].mxu0
        %v5607 = vadd.f32 0.0, %v5606
        %v5608 = vpop.f32.mrb[0].mxu0
        %v5609 = vpop.f32.mrb[0].mxu0
        %v5610 = vadd.f32 0.0, %v5609
        %v5611 = vpop.f32.mrb[0].mxu0
        %5612 = vmatprep.mubr.bf16.mxu0 0
        %5613 = vmatmul.mubr.bf16.gmra.mrb[0].mxu0 %v5505
        %v5614 = vpop.f32.mrb[0].mxu0
        %v5615 = vadd.f32 0.0, %v5614
        %v5616 = vpop.f32.mrb[0].mxu0
        %v5617 = vpop.f32.mrb[0].mxu0
        %v5618 = vadd.f32 0.0, %v5617
        %v5619 = vpop.f32.mrb[0].mxu0
        %5620 = vmatprep.mubr.bf16.mxu0 0
        %5621 = vmatmul.mubr.bf16.gmra.mrb[0].mxu0 %v5508
        %v5622 = vpop.f32.mrb[0].mxu0
        %v5623 = vadd.f32 0.0, %v5622
        %v5624 = vpop.f32.mrb[0].mxu0
        %v5625 = vpop.f32.mrb[0].mxu0
        %v5626 = vadd.f32 0.0, %v5625
        %v5627 = vpop.f32.mrb[0].mxu0
        %5628 = vmatprep.mubr.bf16.mxu0 0
        %5629 = vmatmul.mubr.bf16.gmra.mrb[0].mxu0 %v5511
        %v5630 = vpop.f32.mrb[0].mxu0
        %v5631 = vadd.f32 0.0, %v5630
        %v5632 = vpop.f32.mrb[0].mxu0
        %v5633 = vpop.f32.mrb[0].mxu0
        %v5634 = vadd.f32 0.0, %v5633
        %v5635 = vpop.f32.mrb[0].mxu0
        %5636 = vmatprep.mubr.bf16.mxu0 0
        %5637 = vmatmul.mubr.bf16.gmra.mrb[0].mxu0 %v5514
        %v5638 = vpop.f32.mrb[0].mxu0
        %v5639 = vadd.f32 0.0, %v5638
        %v5640 = vpop.f32.mrb[0].mxu0
        %v5641 = vpop.f32.mrb[0].mxu0
        %v5642 = vadd.f32 0.0, %v5641
        %v5643 = vpop.f32.mrb[0].mxu0
        %5644 = vmatprep.mubr.bf16.mxu0 0
        %5645 = vmatmul.mubr.bf16.gmra.mrb[0].mxu0 %v5517
        %v5646 = vpop.f32.mrb[0].mxu0
        %v5647 = vadd.f32 0.0, %v5646
        %v5648 = vpop.f32.mrb[0].mxu0
        %v5649 = vpop.f32.mrb[0].mxu0
        %v5650 = vadd.f32 0.0, %v5649
        %v5651 = vpop.f32.mrb[0].mxu0
        %5652 = vmatprep.mubr.bf16.mxu0 0
        %5653 = vmatmul.mubr.bf16.gmra.mrb[0].mxu0 %v5520
        %v5654 = vpop.f32.mrb[0].mxu0
        %v5655 = vadd.f32 0.0, %v5654
        %v5656 = vpop.f32.mrb[0].mxu0
        %v5657 = vpop.f32.mrb[0].mxu0
        %v5658 = vadd.f32 0.0, %v5657
        %v5659 = vpop.f32.mrb[0].mxu0
        %5660 = vmatprep.mubr.bf16.mxu0 0
        %5661 = vmatmul.mubr.bf16.gmra.mrb[0].mxu0 %v5523
        %v5662 = vpop.f32.mrb[0].mxu0
        %v5663 = vadd.f32 0.0, %v5662
        %v5664 = vpop.f32.mrb[0].mxu0
        %v5665 = vpop.f32.mrb[0].mxu0
        %v5666 = vadd.f32 0.0, %v5665
        %v5667 = vpop.f32.mrb[0].mxu0
        %5668 = vmatprep.mubr.bf16.mxu0 0
        %5669 = vmatmul.mubr.bf16.gmra.mrb[0].mxu0 %v5526
        %v5670 = vpop.f32.mrb[0].mxu0
        %v5671 = vadd.f32 0.0, %v5670
        %v5672 = vpop.f32.mrb[0].mxu0
        %v5673 = vpop.f32.mrb[0].mxu0
        %v5674 = vadd.f32 0.0, %v5673
        %v5675 = vpop.f32.mrb[0].mxu0
        %5676 = vmatprep.mubr.bf16.mxu0 0
        %5677 = vmatmul.mubr.bf16.gmra.mrb[0].mxu0 %v5529
        %v5678 = vpop.f32.mrb[0].mxu0
        %v5679 = vadd.f32 0.0, %v5678
        %v5680 = vpop.f32.mrb[0].mxu0
        %v5681 = vpop.f32.mrb[0].mxu0
        %v5682 = vadd.f32 0.0, %v5681
        %v5683 = vpop.f32.mrb[0].mxu0
        %5684 = vmatprep.mubr.bf16.mxu0 0
        %5685 = vmatmul.mubr.bf16.gmra.mrb[0].mxu0 %v5532
        %v5686 = vpop.f32.mrb[0].mxu0
        %v5687 = vadd.f32 0.0, %v5686
        %v5688 = vpop.f32.mrb[0].mxu0
        %v5689 = vpop.f32.mrb[0].mxu0
        %v5690 = vadd.f32 0.0, %v5689
        %v5691 = vpop.f32.mrb[0].mxu0
        %5692 = vmatprep.mubr.bf16.mxu0 0
        %5693 = vmatmul.mubr.bf16.gmra.mrb[0].mxu0 %v5535
        %v5694 = vpop.f32.mrb[0].mxu0
        %v5695 = vadd.f32 0.0, %v5694
        %v5696 = vpop.f32.mrb[0].mxu0
        %v5697 = vpop.f32.mrb[0].mxu0
        %v5698 = vadd.f32 0.0, %v5697
        %v5699 = vpop.f32.mrb[0].mxu0
        %5700 = vdwg.mxu0
        %v5701 = vadd.f32 %v5231, %v5575
        %v5702 = vadd.f32 %v5232, %v5578
        %v5703 = vadd.f32 %v5233, %v5583
        %v5704 = vadd.f32 %v5234, %v5586
        %v5705 = vadd.f32 %v5235, %v5591
        %v5706 = vadd.f32 %v5236, %v5594
        %v5707 = vadd.f32 %v5237, %v5599
        %v5708 = vadd.f32 %v5238, %v5602
        %v5709 = vadd.f32 %v5239, %v5607
        %v5710 = vadd.f32 %v5240, %v5610
        %v5711 = vadd.f32 %v5241, %v5615
        %v5712 = vadd.f32 %v5242, %v5618
        %v5713 = vadd.f32 %v5243, %v5623
        %v5714 = vadd.f32 %v5244, %v5626
        %v5715 = vadd.f32 %v5245, %v5631
        %v5716 = vadd.f32 %v5246, %v5634
        %v5717 = vadd.f32 %v5247, %v5639
        %v5718 = vadd.f32 %v5248, %v5642
        %v5719 = vadd.f32 %v5249, %v5647
        %v5720 = vadd.f32 %v5250, %v5650
        %v5721 = vadd.f32 %v5251, %v5655
        %v5722 = vadd.f32 %v5252, %v5658
        %v5723 = vadd.f32 %v5253, %v5663
        %v5724 = vadd.f32 %v5254, %v5666
        %v5725 = vadd.f32 %v5255, %v5671
        %v5726 = vadd.f32 %v5256, %v5674
        %v5727 = vadd.f32 %v5257, %v5679
        %v5728 = vadd.f32 %v5258, %v5682
        %v5729 = vadd.f32 %v5259, %v5687
        %v5730 = vadd.f32 %v5260, %v5690
        %v5731 = vadd.f32 %v5261, %v5695
        %v5732 = vadd.f32 %v5262, %v5698
        %v5733 = vsel %vm1208, %v5701, 0.0
        %v5734 = vsel %vm1208, %v5702, 0.0
        %v5735 = vadd.f32 %v5733, %v5734
        %v5736 = vsel %vm1208, %v5703, 0.0
        %v5737 = vadd.f32 %v5735, %v5736
        %v5738 = vsel %vm1208, %v5704, 0.0
        %v5739 = vadd.f32 %v5737, %v5738
        %v5740 = vsel %vm1208, %v5705, 0.0
        %v5741 = vadd.f32 %v5739, %v5740
        %v5742 = vsel %vm1208, %v5706, 0.0
        %v5743 = vadd.f32 %v5741, %v5742
        %v5744 = vsel %vm1208, %v5707, 0.0
        %v5745 = vadd.f32 %v5743, %v5744
        %v5746 = vsel %vm1208, %v5708, 0.0
        %v5747 = vadd.f32 %v5745, %v5746
        %v5748 = vsel %vm1208, %v5709, 0.0
        %v5749 = vadd.f32 %v5747, %v5748
        %v5750 = vsel %vm1208, %v5710, 0.0
        %v5751 = vadd.f32 %v5749, %v5750
        %v5752 = vsel %vm1208, %v5711, 0.0
        %v5753 = vadd.f32 %v5751, %v5752
        %v5754 = vsel %vm1208, %v5712, 0.0
        %v5755 = vadd.f32 %v5753, %v5754
        %v5756 = vsel %vm1208, %v5713, 0.0
        %v5757 = vadd.f32 %v5755, %v5756
        %v5758 = vsel %vm1208, %v5714, 0.0
        %v5759 = vadd.f32 %v5757, %v5758
        %v5760 = vsel %vm1208, %v5715, 0.0
        %v5761 = vadd.f32 %v5759, %v5760
        %v5762 = vsel %vm1208, %v5716, 0.0
        %v5763 = vadd.f32 %v5761, %v5762
        %v5764 = vsel %vm1208, %v5717, 0.0
        %v5765 = vadd.f32 %v5763, %v5764
        %v5766 = vsel %vm1208, %v5718, 0.0
        %v5767 = vadd.f32 %v5765, %v5766
        %v5768 = vsel %vm1208, %v5719, 0.0
        %v5769 = vadd.f32 %v5767, %v5768
        %v5770 = vsel %vm1208, %v5720, 0.0
        %v5771 = vadd.f32 %v5769, %v5770
        %v5772 = vsel %vm1208, %v5721, 0.0
        %v5773 = vadd.f32 %v5771, %v5772
        %v5774 = vsel %vm1208, %v5722, 0.0
        %v5775 = vadd.f32 %v5773, %v5774
        %v5776 = vsel %vm1208, %v5723, 0.0
        %v5777 = vadd.f32 %v5775, %v5776
        %v5778 = vsel %vm1208, %v5724, 0.0
        %v5779 = vadd.f32 %v5777, %v5778
        %v5780 = vsel %vm1208, %v5725, 0.0
        %v5781 = vadd.f32 %v5779, %v5780
        %v5782 = vsel %vm1208, %v5726, 0.0
        %v5783 = vadd.f32 %v5781, %v5782
        %v5784 = vsel %vm1208, %v5727, 0.0
        %v5785 = vadd.f32 %v5783, %v5784
        %v5786 = vsel %vm1208, %v5728, 0.0
        %v5787 = vadd.f32 %v5785, %v5786
        %v5788 = vsel %vm1208, %v5729, 0.0
        %v5789 = vadd.f32 %v5787, %v5788
        %v5790 = vsel %vm1208, %v5730, 0.0
        %v5791 = vadd.f32 %v5789, %v5790
        %v5792 = vsel %vm1208, %v5731, 0.0
        %v5793 = vadd.f32 %v5791, %v5792
        %v5794 = vsel %vm1208, %v5732, 0.0
        %v5795 = vadd.f32 %v5793, %v5794
        %v5796 = vrot.slane %v5795, 4
        %v5797 = vadd.f32 %v5795, %v5796
        %v5798 = vrot.slane %v5797, 2
        %v5799 = vadd.f32 %v5797, %v5798
        %v5800 = vrot.slane %v5799, 1
        %v5801 = vadd.f32 %v5799, %v5800
        %v5802 = vrcp.pop 256.0
        %v5803 = vmul.f32 %v5801, %v5802
        %v5804 = vsub.f32 %v5701, %v5803
        %v5805 = vsub.f32 %v5702, %v5803
        %v5806 = vsub.f32 %v5703, %v5803
        %v5807 = vsub.f32 %v5704, %v5803
        %v5808 = vsub.f32 %v5705, %v5803
        %v5809 = vsub.f32 %v5706, %v5803
        %v5810 = vsub.f32 %v5707, %v5803
        %v5811 = vsub.f32 %v5708, %v5803
        %v5812 = vsub.f32 %v5709, %v5803
        %v5813 = vsub.f32 %v5710, %v5803
        %v5814 = vsub.f32 %v5711, %v5803
        %v5815 = vsub.f32 %v5712, %v5803
        %v5816 = vsub.f32 %v5713, %v5803
        %v5817 = vsub.f32 %v5714, %v5803
        %v5818 = vsub.f32 %v5715, %v5803
        %v5819 = vsub.f32 %v5716, %v5803
        %v5820 = vsub.f32 %v5717, %v5803
        %v5821 = vsub.f32 %v5718, %v5803
        %v5822 = vsub.f32 %v5719, %v5803
        %v5823 = vsub.f32 %v5720, %v5803
        %v5824 = vsub.f32 %v5721, %v5803
        %v5825 = vsub.f32 %v5722, %v5803
        %v5826 = vsub.f32 %v5723, %v5803
        %v5827 = vsub.f32 %v5724, %v5803
        %v5828 = vsub.f32 %v5725, %v5803
        %v5829 = vsub.f32 %v5726, %v5803
        %v5830 = vsub.f32 %v5727, %v5803
        %v5831 = vsub.f32 %v5728, %v5803
        %v5832 = vsub.f32 %v5729, %v5803
        %v5833 = vsub.f32 %v5730, %v5803
        %v5834 = vsub.f32 %v5731, %v5803
        %v5835 = vsub.f32 %v5732, %v5803
        %v5836 = vmul.f32 %v5804, %v5804
        %v5837 = vmul.f32 %v5805, %v5805
        %v5838 = vmul.f32 %v5806, %v5806
        %v5839 = vmul.f32 %v5807, %v5807
        %v5840 = vmul.f32 %v5808, %v5808
        %v5841 = vmul.f32 %v5809, %v5809
        %v5842 = vmul.f32 %v5810, %v5810
        %v5843 = vmul.f32 %v5811, %v5811
        %v5844 = vmul.f32 %v5812, %v5812
        %v5845 = vmul.f32 %v5813, %v5813
        %v5846 = vmul.f32 %v5814, %v5814
        %v5847 = vmul.f32 %v5815, %v5815
        %v5848 = vmul.f32 %v5816, %v5816
        %v5849 = vmul.f32 %v5817, %v5817
        %v5850 = vmul.f32 %v5818, %v5818
        %v5851 = vmul.f32 %v5819, %v5819
        %v5852 = vmul.f32 %v5820, %v5820
        %v5853 = vmul.f32 %v5821, %v5821
        %v5854 = vmul.f32 %v5822, %v5822
        %v5855 = vmul.f32 %v5823, %v5823
        %v5856 = vmul.f32 %v5824, %v5824
        %v5857 = vmul.f32 %v5825, %v5825
        %v5858 = vmul.f32 %v5826, %v5826
        %v5859 = vmul.f32 %v5827, %v5827
        %v5860 = vmul.f32 %v5828, %v5828
        %v5861 = vmul.f32 %v5829, %v5829
        %v5862 = vmul.f32 %v5830, %v5830
        %v5863 = vmul.f32 %v5831, %v5831
        %v5864 = vmul.f32 %v5832, %v5832
        %v5865 = vmul.f32 %v5833, %v5833
        %v5866 = vmul.f32 %v5834, %v5834
        %v5867 = vmul.f32 %v5835, %v5835
        %v5868 = vsel %vm1208, %v5836, 0.0
        %v5869 = vsel %vm1208, %v5837, 0.0
        %v5870 = vadd.f32 %v5868, %v5869
        %v5871 = vsel %vm1208, %v5838, 0.0
        %v5872 = vadd.f32 %v5870, %v5871
        %v5873 = vsel %vm1208, %v5839, 0.0
        %v5874 = vadd.f32 %v5872, %v5873
        %v5875 = vsel %vm1208, %v5840, 0.0
        %v5876 = vadd.f32 %v5874, %v5875
        %v5877 = vsel %vm1208, %v5841, 0.0
        %v5878 = vadd.f32 %v5876, %v5877
        %v5879 = vsel %vm1208, %v5842, 0.0
        %v5880 = vadd.f32 %v5878, %v5879
        %v5881 = vsel %vm1208, %v5843, 0.0
        %v5882 = vadd.f32 %v5880, %v5881
        %v5883 = vsel %vm1208, %v5844, 0.0
        %v5884 = vadd.f32 %v5882, %v5883
        %v5885 = vsel %vm1208, %v5845, 0.0
        %v5886 = vadd.f32 %v5884, %v5885
        %v5887 = vsel %vm1208, %v5846, 0.0
        %v5888 = vadd.f32 %v5886, %v5887
        %v5889 = vsel %vm1208, %v5847, 0.0
        %v5890 = vadd.f32 %v5888, %v5889
        %v5891 = vsel %vm1208, %v5848, 0.0
        %v5892 = vadd.f32 %v5890, %v5891
        %v5893 = vsel %vm1208, %v5849, 0.0
        %v5894 = vadd.f32 %v5892, %v5893
        %v5895 = vsel %vm1208, %v5850, 0.0
        %v5896 = vadd.f32 %v5894, %v5895
        %v5897 = vsel %vm1208, %v5851, 0.0
        %v5898 = vadd.f32 %v5896, %v5897
        %v5899 = vsel %vm1208, %v5852, 0.0
        %v5900 = vadd.f32 %v5898, %v5899
        %v5901 = vsel %vm1208, %v5853, 0.0
        %v5902 = vadd.f32 %v5900, %v5901
        %v5903 = vsel %vm1208, %v5854, 0.0
        %v5904 = vadd.f32 %v5902, %v5903
        %v5905 = vsel %vm1208, %v5855, 0.0
        %v5906 = vadd.f32 %v5904, %v5905
        %v5907 = vsel %vm1208, %v5856, 0.0
        %v5908 = vadd.f32 %v5906, %v5907
        %v5909 = vsel %vm1208, %v5857, 0.0
        %v5910 = vadd.f32 %v5908, %v5909
        %v5911 = vsel %vm1208, %v5858, 0.0
        %v5912 = vadd.f32 %v5910, %v5911
        %v5913 = vsel %vm1208, %v5859, 0.0
        %v5914 = vadd.f32 %v5912, %v5913
        %v5915 = vsel %vm1208, %v5860, 0.0
        %v5916 = vadd.f32 %v5914, %v5915
        %v5917 = vsel %vm1208, %v5861, 0.0
        %v5918 = vadd.f32 %v5916, %v5917
        %v5919 = vsel %vm1208, %v5862, 0.0
        %v5920 = vadd.f32 %v5918, %v5919
        %v5921 = vsel %vm1208, %v5863, 0.0
        %v5922 = vadd.f32 %v5920, %v5921
        %v5923 = vsel %vm1208, %v5864, 0.0
        %v5924 = vadd.f32 %v5922, %v5923
        %v5925 = vsel %vm1208, %v5865, 0.0
        %v5926 = vadd.f32 %v5924, %v5925
        %v5927 = vsel %vm1208, %v5866, 0.0
        %v5928 = vadd.f32 %v5926, %v5927
        %v5929 = vsel %vm1208, %v5867, 0.0
        %v5930 = vadd.f32 %v5928, %v5929
        %v5931 = vrot.slane %v5930, 4
        %v5932 = vadd.f32 %v5930, %v5931
        %v5933 = vrot.slane %v5932, 2
        %v5934 = vadd.f32 %v5932, %v5933
        %v5935 = vrot.slane %v5934, 1
        %v5936 = vadd.f32 %v5934, %v5935
        %v5937 = vmul.f32 %v5936, %v5802
        %v5938 = vadd.f32 %v5937, 1e-05
        %v5939 = vrsqrt.pop %v5938
        %v5940 = vmul.f32 %v5804, %v5939
        %v5941 = vmul.f32 %v5805, %v5939
        %v5942 = vmul.f32 %v5806, %v5939
        %v5943 = vmul.f32 %v5807, %v5939
        %v5944 = vmul.f32 %v5808, %v5939
        %v5945 = vmul.f32 %v5809, %v5939
        %v5946 = vmul.f32 %v5810, %v5939
        %v5947 = vmul.f32 %v5811, %v5939
        %v5948 = vmul.f32 %v5812, %v5939
        %v5949 = vmul.f32 %v5813, %v5939
        %v5950 = vmul.f32 %v5814, %v5939
        %v5951 = vmul.f32 %v5815, %v5939
        %v5952 = vmul.f32 %v5816, %v5939
        %v5953 = vmul.f32 %v5817, %v5939
        %v5954 = vmul.f32 %v5818, %v5939
        %v5955 = vmul.f32 %v5819, %v5939
        %v5956 = vmul.f32 %v5820, %v5939
        %v5957 = vmul.f32 %v5821, %v5939
        %v5958 = vmul.f32 %v5822, %v5939
        %v5959 = vmul.f32 %v5823, %v5939
        %v5960 = vmul.f32 %v5824, %v5939
        %v5961 = vmul.f32 %v5825, %v5939
        %v5962 = vmul.f32 %v5826, %v5939
        %v5963 = vmul.f32 %v5827, %v5939
        %v5964 = vmul.f32 %v5828, %v5939
        %v5965 = vmul.f32 %v5829, %v5939
        %v5966 = vmul.f32 %v5830, %v5939
        %v5967 = vmul.f32 %v5831, %v5939
        %v5968 = vmul.f32 %v5832, %v5939
        %v5969 = vmul.f32 %v5833, %v5939
        %v5970 = vmul.f32 %v5834, %v5939
        %v5971 = vmul.f32 %v5835, %v5939
        %v5972 = vmax.f32 %v5940, 0.0
        %v5973 = vmax.f32 %v5941, 0.0
        %v5974 = vmax.f32 %v5942, 0.0
        %v5975 = vmax.f32 %v5943, 0.0
        %v5976 = vmax.f32 %v5944, 0.0
        %v5977 = vmax.f32 %v5945, 0.0
        %v5978 = vmax.f32 %v5946, 0.0
        %v5979 = vmax.f32 %v5947, 0.0
        %v5980 = vmax.f32 %v5948, 0.0
        %v5981 = vmax.f32 %v5949, 0.0
        %v5982 = vmax.f32 %v5950, 0.0
        %v5983 = vmax.f32 %v5951, 0.0
        %v5984 = vmax.f32 %v5952, 0.0
        %v5985 = vmax.f32 %v5953, 0.0
        %v5986 = vmax.f32 %v5954, 0.0
        %v5987 = vmax.f32 %v5955, 0.0
        %v5988 = vmax.f32 %v5956, 0.0
        %v5989 = vmax.f32 %v5957, 0.0
        %v5990 = vmax.f32 %v5958, 0.0
        %v5991 = vmax.f32 %v5959, 0.0
        %v5992 = vmax.f32 %v5960, 0.0
        %v5993 = vmax.f32 %v5961, 0.0
        %v5994 = vmax.f32 %v5962, 0.0
        %v5995 = vmax.f32 %v5963, 0.0
        %v5996 = vmax.f32 %v5964, 0.0
        %v5997 = vmax.f32 %v5965, 0.0
        %v5998 = vmax.f32 %v5966, 0.0
        %v5999 = vmax.f32 %v5967, 0.0
        %v6000 = vmax.f32 %v5968, 0.0
        %v6001 = vmax.f32 %v5969, 0.0
        %v6002 = vmax.f32 %v5970, 0.0
        %v6003 = vmax.f32 %v5971, 0.0
        %v6004 = vpack.c.bf16 %v5973, %v5972
        %v6005 = vpack.c.bf16 %v5975, %v5974
        %v6006 = vpack.c.bf16 %v5977, %v5976
        %v6007 = vpack.c.bf16 %v5979, %v5978
        %v6008 = vpack.c.bf16 %v5981, %v5980
        %v6009 = vpack.c.bf16 %v5983, %v5982
        %v6010 = vpack.c.bf16 %v5985, %v5984
        %v6011 = vpack.c.bf16 %v5987, %v5986
        %v6012 = vpack.c.bf16 %v5989, %v5988
        %v6013 = vpack.c.bf16 %v5991, %v5990
        %v6014 = vpack.c.bf16 %v5993, %v5992
        %v6015 = vpack.c.bf16 %v5995, %v5994
        %v6016 = vpack.c.bf16 %v5997, %v5996
        %v6017 = vpack.c.bf16 %v5999, %v5998
        %v6018 = vpack.c.bf16 %v6001, %v6000
        %v6019 = vpack.c.bf16 %v6003, %v6002
        %v6036 = vunpack.c.l.b16 %v6004
        %v6037 = vunpack.c.h.b16 %v6004
        %v6038 = vunpack.c.l.b16 %v6005
        %v6039 = vunpack.c.h.b16 %v6005
        %v6040 = vunpack.c.l.b16 %v6006
        %v6041 = vunpack.c.h.b16 %v6006
        %v6042 = vunpack.c.l.b16 %v6007
        %v6043 = vunpack.c.h.b16 %v6007
        %v6044 = vunpack.c.l.b16 %v6008
        %v6045 = vunpack.c.h.b16 %v6008
        %v6046 = vunpack.c.l.b16 %v6009
        %v6047 = vunpack.c.h.b16 %v6009
        %v6048 = vunpack.c.l.b16 %v6010
        %v6049 = vunpack.c.h.b16 %v6010
        %v6050 = vunpack.c.l.b16 %v6011
        %v6051 = vunpack.c.h.b16 %v6011
        %v6052 = vunpack.c.l.b16 %v6012
        %v6053 = vunpack.c.h.b16 %v6012
        %v6054 = vunpack.c.l.b16 %v6013
        %v6055 = vunpack.c.h.b16 %v6013
        %v6056 = vunpack.c.l.b16 %v6014
        %v6057 = vunpack.c.h.b16 %v6014
        %v6058 = vunpack.c.l.b16 %v6015
        %v6059 = vunpack.c.h.b16 %v6015
        %v6060 = vunpack.c.l.b16 %v6016
        %v6061 = vunpack.c.h.b16 %v6016
        %v6062 = vunpack.c.l.b16 %v6017
        %v6063 = vunpack.c.h.b16 %v6017
        %v6064 = vunpack.c.l.b16 %v6018
        %v6065 = vunpack.c.h.b16 %v6018
        %v6066 = vunpack.c.l.b16 %v6019
        %v6067 = vunpack.c.h.b16 %v6019
        %v6068 = vpack.c.b16 %v6036, %v6036
        %v6069 = vpack.c.b16 %v6037, %v6037
        %v6070 = vpack.c.b16 %v6038, %v6038
        %v6071 = vpack.c.b16 %v6039, %v6039
        %v6072 = vpack.c.b16 %v6040, %v6040
        %v6073 = vpack.c.b16 %v6041, %v6041
        %v6074 = vpack.c.b16 %v6042, %v6042
        %v6075 = vpack.c.b16 %v6043, %v6043
        %v6076 = vpack.c.b16 %v6044, %v6044
        %v6077 = vpack.c.b16 %v6045, %v6045
        %v6078 = vpack.c.b16 %v6046, %v6046
        %v6079 = vpack.c.b16 %v6047, %v6047
        %v6080 = vpack.c.b16 %v6048, %v6048
        %v6081 = vpack.c.b16 %v6049, %v6049
        %v6082 = vpack.c.b16 %v6050, %v6050
        %v6083 = vpack.c.b16 %v6051, %v6051
        %v6084 = vpack.c.b16 %v6052, %v6052
        %v6085 = vpack.c.b16 %v6053, %v6053
        %v6086 = vpack.c.b16 %v6054, %v6054
        %v6087 = vpack.c.b16 %v6055, %v6055
        %v6088 = vpack.c.b16 %v6056, %v6056
        %v6089 = vpack.c.b16 %v6057, %v6057
        %v6090 = vpack.c.b16 %v6058, %v6058
        %v6091 = vpack.c.b16 %v6059, %v6059
        %v6092 = vpack.c.b16 %v6060, %v6060
        %v6093 = vpack.c.b16 %v6061, %v6061
        %v6094 = vpack.c.b16 %v6062, %v6062
        %v6095 = vpack.c.b16 %v6063, %v6063
        %v6096 = vpack.c.b16 %v6064, %v6064
        %v6097 = vpack.c.b16 %v6065, %v6065
        %v6098 = vpack.c.b16 %v6066, %v6066
        %v6099 = vpack.c.b16 %v6067, %v6067
        %v6101 = vshrl.u32 %v6068, 16
        %v6103 = vrot.slane %v6101, 7
        %v6104 = vshll.u32 %v6068, 16
        %v6106 = vor.u32 %v6103, %v6104
        %v6107 = vrot.slane %v6103, 4
        %v6109 = vshrl.u32 %v6069, 16
        %v6111 = vrot.slane %v6109, 7
        %v6112 = vshll.u32 %v6069, 16
        %v6114 = vor.u32 %v6111, %v6112
        %v6115 = vsel %vm428, %v6107, %v6114
        %v6116 = vrot.slane %v6111, 4
        %v6118 = vshrl.u32 %v6070, 16
        %v6120 = vrot.slane %v6118, 7
        %v6121 = vshll.u32 %v6070, 16
        %v6123 = vor.u32 %v6120, %v6121
        %v6124 = vrot.slane %v6120, 4
        %v6126 = vshrl.u32 %v6071, 16
        %v6128 = vrot.slane %v6126, 7
        %v6129 = vshll.u32 %v6071, 16
        %v6131 = vor.u32 %v6128, %v6129
        %v6132 = vsel %vm428, %v6124, %v6131
        %v6133 = vrot.slane %v6128, 4
        %v6135 = vshrl.u32 %v6072, 16
        %v6137 = vrot.slane %v6135, 7
        %v6138 = vshll.u32 %v6072, 16
        %v6140 = vor.u32 %v6137, %v6138
        %v6141 = vrot.slane %v6137, 4
        %v6143 = vshrl.u32 %v6073, 16
        %v6145 = vrot.slane %v6143, 7
        %v6146 = vshll.u32 %v6073, 16
        %v6148 = vor.u32 %v6145, %v6146
        %v6149 = vsel %vm428, %v6141, %v6148
        %v6150 = vrot.slane %v6145, 4
        %v6152 = vshrl.u32 %v6074, 16
        %v6154 = vrot.slane %v6152, 7
        %v6155 = vshll.u32 %v6074, 16
        %v6157 = vor.u32 %v6154, %v6155
        %v6158 = vrot.slane %v6154, 4
        %v6160 = vshrl.u32 %v6075, 16
        %v6162 = vrot.slane %v6160, 7
        %v6163 = vshll.u32 %v6075, 16
        %v6165 = vor.u32 %v6162, %v6163
        %v6166 = vsel %vm428, %v6158, %v6165
        %v6167 = vrot.slane %v6162, 4
        %v6169 = vshrl.u32 %v6076, 16
        %v6171 = vrot.slane %v6169, 7
        %v6172 = vshll.u32 %v6076, 16
        %v6174 = vor.u32 %v6171, %v6172
        %v6175 = vrot.slane %v6171, 4
        %v6177 = vshrl.u32 %v6077, 16
        %v6179 = vrot.slane %v6177, 7
        %v6180 = vshll.u32 %v6077, 16
        %v6182 = vor.u32 %v6179, %v6180
        %v6183 = vsel %vm428, %v6175, %v6182
        %v6184 = vrot.slane %v6179, 4
        %v6186 = vshrl.u32 %v6078, 16
        %v6188 = vrot.slane %v6186, 7
        %v6189 = vshll.u32 %v6078, 16
        %v6191 = vor.u32 %v6188, %v6189
        %v6192 = vrot.slane %v6188, 4
        %v6194 = vshrl.u32 %v6079, 16
        %v6196 = vrot.slane %v6194, 7
        %v6197 = vshll.u32 %v6079, 16
        %v6199 = vor.u32 %v6196, %v6197
        %v6200 = vsel %vm428, %v6192, %v6199
        %v6201 = vrot.slane %v6196, 4
        %v6203 = vshrl.u32 %v6080, 16
        %v6205 = vrot.slane %v6203, 7
        %v6206 = vshll.u32 %v6080, 16
        %v6208 = vor.u32 %v6205, %v6206
        %v6209 = vrot.slane %v6205, 4
        %v6211 = vshrl.u32 %v6081, 16
        %v6213 = vrot.slane %v6211, 7
        %v6214 = vshll.u32 %v6081, 16
        %v6216 = vor.u32 %v6213, %v6214
        %v6217 = vsel %vm428, %v6209, %v6216
        %v6218 = vrot.slane %v6213, 4
        %v6220 = vshrl.u32 %v6082, 16
        %v6222 = vrot.slane %v6220, 7
        %v6223 = vshll.u32 %v6082, 16
        %v6225 = vor.u32 %v6222, %v6223
        %v6226 = vrot.slane %v6222, 4
        %v6228 = vshrl.u32 %v6083, 16
        %v6230 = vrot.slane %v6228, 7
        %v6231 = vshll.u32 %v6083, 16
        %v6233 = vor.u32 %v6230, %v6231
        %v6234 = vsel %vm428, %v6226, %v6233
        %v6235 = vrot.slane %v6230, 4
        %v6237 = vshrl.u32 %v6084, 16
        %v6239 = vrot.slane %v6237, 7
        %v6240 = vshll.u32 %v6084, 16
        %v6242 = vor.u32 %v6239, %v6240
        %v6243 = vrot.slane %v6239, 4
        %v6245 = vshrl.u32 %v6085, 16
        %v6247 = vrot.slane %v6245, 7
        %v6248 = vshll.u32 %v6085, 16
        %v6250 = vor.u32 %v6247, %v6248
        %v6251 = vsel %vm428, %v6243, %v6250
        %v6252 = vrot.slane %v6247, 4
        %v6254 = vshrl.u32 %v6086, 16
        %v6256 = vrot.slane %v6254, 7
        %v6257 = vshll.u32 %v6086, 16
        %v6259 = vor.u32 %v6256, %v6257
        %v6260 = vrot.slane %v6256, 4
        %v6262 = vshrl.u32 %v6087, 16
        %v6264 = vrot.slane %v6262, 7
        %v6265 = vshll.u32 %v6087, 16
        %v6267 = vor.u32 %v6264, %v6265
        %v6268 = vsel %vm428, %v6260, %v6267
        %v6269 = vrot.slane %v6264, 4
        %v6271 = vshrl.u32 %v6088, 16
        %v6273 = vrot.slane %v6271, 7
        %v6274 = vshll.u32 %v6088, 16
        %v6276 = vor.u32 %v6273, %v6274
        %v6277 = vrot.slane %v6273, 4
        %v6279 = vshrl.u32 %v6089, 16
        %v6281 = vrot.slane %v6279, 7
        %v6282 = vshll.u32 %v6089, 16
        %v6284 = vor.u32 %v6281, %v6282
        %v6285 = vsel %vm428, %v6277, %v6284
        %v6286 = vrot.slane %v6281, 4
        %v6288 = vshrl.u32 %v6090, 16
        %v6290 = vrot.slane %v6288, 7
        %v6291 = vshll.u32 %v6090, 16
        %v6293 = vor.u32 %v6290, %v6291
        %v6294 = vrot.slane %v6290, 4
        %v6296 = vshrl.u32 %v6091, 16
        %v6298 = vrot.slane %v6296, 7
        %v6299 = vshll.u32 %v6091, 16
        %v6301 = vor.u32 %v6298, %v6299
        %v6302 = vsel %vm428, %v6294, %v6301
        %v6303 = vrot.slane %v6298, 4
        %v6305 = vshrl.u32 %v6092, 16
        %v6307 = vrot.slane %v6305, 7
        %v6308 = vshll.u32 %v6092, 16
        %v6310 = vor.u32 %v6307, %v6308
        %v6311 = vrot.slane %v6307, 4
        %v6313 = vshrl.u32 %v6093, 16
        %v6315 = vrot.slane %v6313, 7
        %v6316 = vshll.u32 %v6093, 16
        %v6318 = vor.u32 %v6315, %v6316
        %v6319 = vsel %vm428, %v6311, %v6318
        %v6320 = vrot.slane %v6315, 4
        %v6322 = vshrl.u32 %v6094, 16
        %v6324 = vrot.slane %v6322, 7
        %v6325 = vshll.u32 %v6094, 16
        %v6327 = vor.u32 %v6324, %v6325
        %v6328 = vrot.slane %v6324, 4
        %v6330 = vshrl.u32 %v6095, 16
        %v6332 = vrot.slane %v6330, 7
        %v6333 = vshll.u32 %v6095, 16
        %v6335 = vor.u32 %v6332, %v6333
        %v6336 = vsel %vm428, %v6328, %v6335
        %v6337 = vrot.slane %v6332, 4
        %v6339 = vshrl.u32 %v6096, 16
        %v6341 = vrot.slane %v6339, 7
        %v6342 = vshll.u32 %v6096, 16
        %v6344 = vor.u32 %v6341, %v6342
        %v6345 = vrot.slane %v6341, 4
        %v6347 = vshrl.u32 %v6097, 16
        %v6349 = vrot.slane %v6347, 7
        %v6350 = vshll.u32 %v6097, 16
        %v6352 = vor.u32 %v6349, %v6350
        %v6353 = vsel %vm428, %v6345, %v6352
        %v6354 = vrot.slane %v6349, 4
        %v6356 = vshrl.u32 %v6098, 16
        %v6358 = vrot.slane %v6356, 7
        %v6359 = vshll.u32 %v6098, 16
        %v6361 = vor.u32 %v6358, %v6359
        %v6362 = vrot.slane %v6358, 4
        %v6364 = vshrl.u32 %v6099, 16
        %v6366 = vrot.slane %v6364, 7
        %v6367 = vshll.u32 %v6099, 16
        %v6369 = vor.u32 %v6366, %v6367
        %v6370 = vsel %vm428, %v6362, %v6369
        %v6371 = vrot.slane %v6366, 4
        %v6420 = vsel %vm752, %v6106, %v2982
        %6421 = vst [vmem:[%s749] sm:$0xf] %v6420
        %6422 = vst.msk [vmem:[%s749 + $0x4] sm:$0xf] %vm756, %v6115
        %v6423 = vld [vmem:[%s749 + $0x8] sm:$0x1]
        %v6424 = vsel %vm759, %v6116, %v6423
        %6425 = vst [vmem:[%s749 + $0x8] sm:$0x1] %v6424
        %v6426 = vld [vmem:[%s749 + $0xc] sm:$0xf]
        %v6427 = vsel %vm752, %v6123, %v6426
        %6428 = vst [vmem:[%s749 + $0xc] sm:$0xf] %v6427
        %6429 = vst.msk [vmem:[%s749 + $0x10] sm:$0xf] %vm756, %v6132
        %v6430 = vld [vmem:[%s749 + $0x14] sm:$0x1]
        %v6431 = vsel %vm759, %v6133, %v6430
        %6432 = vst [vmem:[%s749 + $0x14] sm:$0x1] %v6431
        %v6433 = vld [vmem:[%s749 + $0x18] sm:$0xf]
        %v6434 = vsel %vm752, %v6140, %v6433
        %6435 = vst [vmem:[%s749 + $0x18] sm:$0xf] %v6434
        %6436 = vst.msk [vmem:[%s749 + $0x1c] sm:$0xf] %vm756, %v6149
        %v6437 = vld [vmem:[%s749 + $0x20] sm:$0x1]
        %v6438 = vsel %vm759, %v6150, %v6437
        %6439 = vst [vmem:[%s749 + $0x20] sm:$0x1] %v6438
        %v6440 = vld [vmem:[%s749 + $0x24] sm:$0xf]
        %v6441 = vsel %vm752, %v6157, %v6440
        %6442 = vst [vmem:[%s749 + $0x24] sm:$0xf] %v6441
        %6443 = vst.msk [vmem:[%s749 + $0x28] sm:$0xf] %vm756, %v6166
        %v6444 = vld [vmem:[%s749 + $0x2c] sm:$0x1]
        %v6445 = vsel %vm759, %v6167, %v6444
        %6446 = vst [vmem:[%s749 + $0x2c] sm:$0x1] %v6445
        %v6447 = vld [vmem:[%s749 + $0x30] sm:$0xf]
        %v6448 = vsel %vm752, %v6174, %v6447
        %6449 = vst [vmem:[%s749 + $0x30] sm:$0xf] %v6448
        %6450 = vst.msk [vmem:[%s749 + $0x34] sm:$0xf] %vm756, %v6183
        %v6451 = vld [vmem:[%s749 + $0x38] sm:$0x1]
        %v6452 = vsel %vm759, %v6184, %v6451
        %6453 = vst [vmem:[%s749 + $0x38] sm:$0x1] %v6452
        %v6454 = vld [vmem:[%s749 + $0x3c] sm:$0xf]
        %v6455 = vsel %vm752, %v6191, %v6454
        %6456 = vst [vmem:[%s749 + $0x3c] sm:$0xf] %v6455
        %6457 = vst.msk [vmem:[%s749 + $0x40] sm:$0xf] %vm756, %v6200
        %v6458 = vld [vmem:[%s749 + $0x44] sm:$0x1]
        %v6459 = vsel %vm759, %v6201, %v6458
        %6460 = vst [vmem:[%s749 + $0x44] sm:$0x1] %v6459
        %v6461 = vld [vmem:[%s749 + $0x48] sm:$0xf]
        %v6462 = vsel %vm752, %v6208, %v6461
        %6463 = vst [vmem:[%s749 + $0x48] sm:$0xf] %v6462
        %6464 = vst.msk [vmem:[%s749 + $0x4c] sm:$0xf] %vm756, %v6217
        %v6465 = vld [vmem:[%s749 + $0x50] sm:$0x1]
        %v6466 = vsel %vm759, %v6218, %v6465
        %6467 = vst [vmem:[%s749 + $0x50] sm:$0x1] %v6466
        %v6468 = vld [vmem:[%s749 + $0x54] sm:$0xf]
        %v6469 = vsel %vm752, %v6225, %v6468
        %6470 = vst [vmem:[%s749 + $0x54] sm:$0xf] %v6469
        %6471 = vst.msk [vmem:[%s749 + $0x58] sm:$0xf] %vm756, %v6234
        %v6472 = vld [vmem:[%s749 + $0x5c] sm:$0x1]
        %v6473 = vsel %vm759, %v6235, %v6472
        %6474 = vst [vmem:[%s749 + $0x5c] sm:$0x1] %v6473
        %v6475 = vld [vmem:[%s749 + $0x60] sm:$0xf]
        %v6476 = vsel %vm752, %v6242, %v6475
        %6477 = vst [vmem:[%s749 + $0x60] sm:$0xf] %v6476
        %6478 = vst.msk [vmem:[%s749 + $0x64] sm:$0xf] %vm756, %v6251
        %v6479 = vld [vmem:[%s749 + $0x68] sm:$0x1]
        %v6480 = vsel %vm759, %v6252, %v6479
        %6481 = vst [vmem:[%s749 + $0x68] sm:$0x1] %v6480
        %v6482 = vld [vmem:[%s749 + $0x6c] sm:$0xf]
        %v6483 = vsel %vm752, %v6259, %v6482
        %6484 = vst [vmem:[%s749 + $0x6c] sm:$0xf] %v6483
        %6485 = vst.msk [vmem:[%s749 + $0x70] sm:$0xf] %vm756, %v6268
        %v6486 = vld [vmem:[%s749 + $0x74] sm:$0x1]
        %v6487 = vsel %vm759, %v6269, %v6486
        %6488 = vst [vmem:[%s749 + $0x74] sm:$0x1] %v6487
        %v6489 = vld [vmem:[%s749 + $0x78] sm:$0xf]
        %v6490 = vsel %vm752, %v6276, %v6489
        %6491 = vst [vmem:[%s749 + $0x78] sm:$0xf] %v6490
        %6492 = vst.msk [vmem:[%s749 + $0x7c] sm:$0xf] %vm756, %v6285
        %v6493 = vld [vmem:[%s749 + $0x80] sm:$0x1]
        %v6494 = vsel %vm759, %v6286, %v6493
        %6495 = vst [vmem:[%s749 + $0x80] sm:$0x1] %v6494
        %v6496 = vld [vmem:[%s749 + $0x84] sm:$0xf]
        %v6497 = vsel %vm752, %v6293, %v6496
        %6498 = vst [vmem:[%s749 + $0x84] sm:$0xf] %v6497
        %6499 = vst.msk [vmem:[%s749 + $0x88] sm:$0xf] %vm756, %v6302
        %v6500 = vld [vmem:[%s749 + $0x8c] sm:$0x1]
        %v6501 = vsel %vm759, %v6303, %v6500
        %6502 = vst [vmem:[%s749 + $0x8c] sm:$0x1] %v6501
        %v6503 = vld [vmem:[%s749 + $0x90] sm:$0xf]
        %v6504 = vsel %vm752, %v6310, %v6503
        %6505 = vst [vmem:[%s749 + $0x90] sm:$0xf] %v6504
        %6506 = vst.msk [vmem:[%s749 + $0x94] sm:$0xf] %vm756, %v6319
        %v6507 = vld [vmem:[%s749 + $0x98] sm:$0x1]
        %v6508 = vsel %vm759, %v6320, %v6507
        %6509 = vst [vmem:[%s749 + $0x98] sm:$0x1] %v6508
        %v6510 = vld [vmem:[%s749 + $0x9c] sm:$0xf]
        %v6511 = vsel %vm752, %v6327, %v6510
        %6512 = vst [vmem:[%s749 + $0x9c] sm:$0xf] %v6511
        %6513 = vst.msk [vmem:[%s749 + $0xa0] sm:$0xf] %vm756, %v6336
        %v6514 = vld [vmem:[%s749 + $0xa4] sm:$0x1]
        %v6515 = vsel %vm759, %v6337, %v6514
        %6516 = vst [vmem:[%s749 + $0xa4] sm:$0x1] %v6515
        %v6517 = vld [vmem:[%s749 + $0xa8] sm:$0xf]
        %v6518 = vsel %vm752, %v6344, %v6517
        %6519 = vst [vmem:[%s749 + $0xa8] sm:$0xf] %v6518
        %6520 = vst.msk [vmem:[%s749 + $0xac] sm:$0xf] %vm756, %v6353
        %v6521 = vld [vmem:[%s749 + $0xb0] sm:$0x1]
        %v6522 = vsel %vm759, %v6354, %v6521
        %6523 = vst [vmem:[%s749 + $0xb0] sm:$0x1] %v6522
        %v6524 = vld [vmem:[%s749 + $0xb4] sm:$0xf]
        %v6525 = vsel %vm752, %v6361, %v6524
        %6526 = vst [vmem:[%s749 + $0xb4] sm:$0xf] %v6525
        %6527 = vst.msk [vmem:[%s749 + $0xb8] sm:$0xf] %vm756, %v6370
        %v6528 = vld [vmem:[%s749 + $0xbc] sm:$0x1]
        %v6529 = vsel %vm759, %v6371, %v6528
        %6530 = vst [vmem:[%s749 + $0xbc] sm:$0x1] %v6529
        %v6531 = vrot.slane %v6101, 4
        %v6532 = vrot.slane %v6531, 4
        %v6533 = vrot.slane %v6118, 4
        %v6534 = vrot.slane %v6533, 4
        %v6535 = vrot.slane %v6135, 4
        %v6536 = vrot.slane %v6535, 4
        %v6537 = vrot.slane %v6152, 4
        %v6538 = vrot.slane %v6537, 4
        %v6539 = vrot.slane %v6169, 4
        %v6540 = vrot.slane %v6539, 4
        %v6541 = vrot.slane %v6186, 4
        %v6542 = vrot.slane %v6541, 4
        %v6543 = vrot.slane %v6203, 4
        %v6544 = vrot.slane %v6543, 4
        %v6545 = vrot.slane %v6220, 4
        %v6546 = vrot.slane %v6545, 4
        %v6547 = vrot.slane %v6237, 4
        %v6548 = vrot.slane %v6547, 4
        %v6549 = vrot.slane %v6254, 4
        %v6550 = vrot.slane %v6549, 4
        %v6551 = vrot.slane %v6271, 4
        %v6552 = vrot.slane %v6551, 4
        %v6553 = vrot.slane %v6288, 4
        %v6554 = vrot.slane %v6553, 4
        %v6555 = vrot.slane %v6305, 4
        %v6556 = vrot.slane %v6555, 4
        %v6557 = vrot.slane %v6322, 4
        %v6558 = vrot.slane %v6557, 4
        %v6559 = vrot.slane %v6339, 4
        %v6560 = vrot.slane %v6559, 4
        %v6561 = vrot.slane %v6356, 4
        %v6562 = vrot.slane %v6561, 4
        %v6579 = vld [vmem:[%s749] sm:$0x1]
        %v6580 = vsel %vm759, %v6532, %v6579
        %6581 = vst [vmem:[%s749] sm:$0x1] %v6580
        %v6582 = vld [vmem:[%s749 + $0xc] sm:$0x1]
        %v6583 = vsel %vm759, %v6534, %v6582
        %6584 = vst [vmem:[%s749 + $0xc] sm:$0x1] %v6583
        %v6585 = vld [vmem:[%s749 + $0x18] sm:$0x1]
        %v6586 = vsel %vm759, %v6536, %v6585
        %6587 = vst [vmem:[%s749 + $0x18] sm:$0x1] %v6586
        %v6588 = vld [vmem:[%s749 + $0x24] sm:$0x1]
        %v6589 = vsel %vm759, %v6538, %v6588
        %6590 = vst [vmem:[%s749 + $0x24] sm:$0x1] %v6589
        %v6591 = vld [vmem:[%s749 + $0x30] sm:$0x1]
        %v6592 = vsel %vm759, %v6540, %v6591
        %6593 = vst [vmem:[%s749 + $0x30] sm:$0x1] %v6592
        %v6594 = vld [vmem:[%s749 + $0x3c] sm:$0x1]
        %v6595 = vsel %vm759, %v6542, %v6594
        %6596 = vst [vmem:[%s749 + $0x3c] sm:$0x1] %v6595
        %v6597 = vld [vmem:[%s749 + $0x48] sm:$0x1]
        %v6598 = vsel %vm759, %v6544, %v6597
        %6599 = vst [vmem:[%s749 + $0x48] sm:$0x1] %v6598
        %v6600 = vld [vmem:[%s749 + $0x54] sm:$0x1]
        %v6601 = vsel %vm759, %v6546, %v6600
        %6602 = vst [vmem:[%s749 + $0x54] sm:$0x1] %v6601
        %v6603 = vld [vmem:[%s749 + $0x60] sm:$0x1]
        %v6604 = vsel %vm759, %v6548, %v6603
        %6605 = vst [vmem:[%s749 + $0x60] sm:$0x1] %v6604
        %v6606 = vld [vmem:[%s749 + $0x6c] sm:$0x1]
        %v6607 = vsel %vm759, %v6550, %v6606
        %6608 = vst [vmem:[%s749 + $0x6c] sm:$0x1] %v6607
        %v6609 = vld [vmem:[%s749 + $0x78] sm:$0x1]
        %v6610 = vsel %vm759, %v6552, %v6609
        %6611 = vst [vmem:[%s749 + $0x78] sm:$0x1] %v6610
        %v6612 = vld [vmem:[%s749 + $0x84] sm:$0x1]
        %v6613 = vsel %vm759, %v6554, %v6612
        %6614 = vst [vmem:[%s749 + $0x84] sm:$0x1] %v6613
        %v6615 = vld [vmem:[%s749 + $0x90] sm:$0x1]
        %v6616 = vsel %vm759, %v6556, %v6615
        %6617 = vst [vmem:[%s749 + $0x90] sm:$0x1] %v6616
        %v6618 = vld [vmem:[%s749 + $0x9c] sm:$0x1]
        %v6619 = vsel %vm759, %v6558, %v6618
        %6620 = vst [vmem:[%s749 + $0x9c] sm:$0x1] %v6619
        %v6621 = vld [vmem:[%s749 + $0xa8] sm:$0x1]
        %v6622 = vsel %vm759, %v6560, %v6621
        %6623 = vst [vmem:[%s749 + $0xa8] sm:$0x1] %v6622
        %v6624 = vld [vmem:[%s749 + $0xb4] sm:$0x1]
        %v6625 = vsel %vm759, %v6562, %v6624
        %6626 = vst [vmem:[%s749 + $0xb4] sm:$0x1] %v6625
        %v6627 = vrot.slane %v6112, 7
        %v6628 = vrot.slane %v6627, 4
        %v6629 = vrot.slane %v6129, 7
        %v6630 = vrot.slane %v6629, 4
        %v6631 = vrot.slane %v6146, 7
        %v6632 = vrot.slane %v6631, 4
        %v6633 = vrot.slane %v6163, 7
        %v6634 = vrot.slane %v6633, 4
        %v6635 = vrot.slane %v6180, 7
        %v6636 = vrot.slane %v6635, 4
        %v6637 = vrot.slane %v6197, 7
        %v6638 = vrot.slane %v6637, 4
        %v6639 = vrot.slane %v6214, 7
        %v6640 = vrot.slane %v6639, 4
        %v6641 = vrot.slane %v6231, 7
        %v6642 = vrot.slane %v6641, 4
        %v6643 = vrot.slane %v6248, 7
        %v6644 = vrot.slane %v6643, 4
        %v6645 = vrot.slane %v6265, 7
        %v6646 = vrot.slane %v6645, 4
        %v6647 = vrot.slane %v6282, 7
        %v6648 = vrot.slane %v6647, 4
        %v6649 = vrot.slane %v6299, 7
        %v6650 = vrot.slane %v6649, 4
        %v6651 = vrot.slane %v6316, 7
        %v6652 = vrot.slane %v6651, 4
        %v6653 = vrot.slane %v6333, 7
        %v6654 = vrot.slane %v6653, 4
        %v6655 = vrot.slane %v6350, 7
        %v6656 = vrot.slane %v6655, 4
        %v6657 = vrot.slane %v6367, 7
        %v6658 = vrot.slane %v6657, 4
        %v6675 = vld [vmem:[%s749 + $0x8] sm:$0x1]
        %v6676 = vsel %vm1012, %v6628, %v6675
        %6677 = vst [vmem:[%s749 + $0x8] sm:$0x1] %v6676
        %v6678 = vld [vmem:[%s749 + $0x14] sm:$0x1]
        %v6679 = vsel %vm1012, %v6630, %v6678
        %6680 = vst [vmem:[%s749 + $0x14] sm:$0x1] %v6679
        %v6681 = vld [vmem:[%s749 + $0x20] sm:$0x1]
        %v6682 = vsel %vm1012, %v6632, %v6681
        %6683 = vst [vmem:[%s749 + $0x20] sm:$0x1] %v6682
        %v6684 = vld [vmem:[%s749 + $0x2c] sm:$0x1]
        %v6685 = vsel %vm1012, %v6634, %v6684
        %6686 = vst [vmem:[%s749 + $0x2c] sm:$0x1] %v6685
        %v6687 = vld [vmem:[%s749 + $0x38] sm:$0x1]
        %v6688 = vsel %vm1012, %v6636, %v6687
        %6689 = vst [vmem:[%s749 + $0x38] sm:$0x1] %v6688
        %v6690 = vld [vmem:[%s749 + $0x44] sm:$0x1]
        %v6691 = vsel %vm1012, %v6638, %v6690
        %6692 = vst [vmem:[%s749 + $0x44] sm:$0x1] %v6691
        %v6693 = vld [vmem:[%s749 + $0x50] sm:$0x1]
        %v6694 = vsel %vm1012, %v6640, %v6693
        %6695 = vst [vmem:[%s749 + $0x50] sm:$0x1] %v6694
        %v6696 = vld [vmem:[%s749 + $0x5c] sm:$0x1]
        %v6697 = vsel %vm1012, %v6642, %v6696
        %6698 = vst [vmem:[%s749 + $0x5c] sm:$0x1] %v6697
        %v6699 = vld [vmem:[%s749 + $0x68] sm:$0x1]
        %v6700 = vsel %vm1012, %v6644, %v6699
        %6701 = vst [vmem:[%s749 + $0x68] sm:$0x1] %v6700
        %v6702 = vld [vmem:[%s749 + $0x74] sm:$0x1]
        %v6703 = vsel %vm1012, %v6646, %v6702
        %6704 = vst [vmem:[%s749 + $0x74] sm:$0x1] %v6703
        %v6705 = vld [vmem:[%s749 + $0x80] sm:$0x1]
        %v6706 = vsel %vm1012, %v6648, %v6705
        %6707 = vst [vmem:[%s749 + $0x80] sm:$0x1] %v6706
        %v6708 = vld [vmem:[%s749 + $0x8c] sm:$0x1]
        %v6709 = vsel %vm1012, %v6650, %v6708
        %6710 = vst [vmem:[%s749 + $0x8c] sm:$0x1] %v6709
        %v6711 = vld [vmem:[%s749 + $0x98] sm:$0x1]
        %v6712 = vsel %vm1012, %v6652, %v6711
        %6713 = vst [vmem:[%s749 + $0x98] sm:$0x1] %v6712
        %v6714 = vld [vmem:[%s749 + $0xa4] sm:$0x1]
        %v6715 = vsel %vm1012, %v6654, %v6714
        %6716 = vst [vmem:[%s749 + $0xa4] sm:$0x1] %v6715
        %v6717 = vld [vmem:[%s749 + $0xb0] sm:$0x1]
        %v6718 = vsel %vm1012, %v6656, %v6717
        %6719 = vst [vmem:[%s749 + $0xb0] sm:$0x1] %v6718
        %v6720 = vld [vmem:[%s749 + $0xbc] sm:$0x1]
        %v6721 = vsel %vm1012, %v6658, %v6720
        %6722 = vst [vmem:[%s749 + $0xbc] sm:$0x1] %v6721
        %v6723 = vld [vmem:[#allocation2] sm:$0xf]
        %v6724 = vsel %vm752, %v6123, %v6723
        %6725 = vst [vmem:[#allocation2] sm:$0xf] %v6724
        %6726 = vst.msk [vmem:[#allocation2 + $0x4] sm:$0xf] %vm756, %v6132
        %v6727 = vld [vmem:[#allocation2 + $0x8] sm:$0x1]
        %v6728 = vsel %vm759, %v6133, %v6727
        %6729 = vst [vmem:[#allocation2 + $0x8] sm:$0x1] %v6728
        %v6730 = vld [vmem:[%s1068] sm:$0xf]
        %v6731 = vsel %vm752, %v6344, %v6730
        %6732 = vst [vmem:[%s1068] sm:$0xf] %v6731
        %6733 = vst.msk [vmem:[%s1068 + $0x4] sm:$0xf] %vm756, %v6353
        %v6734 = vld [vmem:[%s1068 + $0x8] sm:$0x1]
        %v6735 = vsel %vm759, %v6354, %v6734
        %6736 = vst [vmem:[%s1068 + $0x8] sm:$0x1] %v6735
        %v6737 = vld [vmem:[#allocation2] sm:$0x1]
        %v6738 = vsel %vm759, %v6534, %v6737
        %6739 = vst [vmem:[#allocation2] sm:$0x1] %v6738
        %v6740 = vld [vmem:[#allocation2 + $0x8] sm:$0x1]
        %v6741 = vsel %vm1012, %v6630, %v6740
        %6742 = vst [vmem:[#allocation2 + $0x8] sm:$0x1] %v6741
        %v6743 = vld [vmem:[%s1068] sm:$0x1]
        %v6744 = vsel %vm759, %v6560, %v6743
        %6745 = vst [vmem:[%s1068] sm:$0x1] %v6744
        %v6746 = vld [vmem:[%s1068 + $0x8] sm:$0x1]
        %v6747 = vsel %vm1012, %v6656, %v6746
        %6748 = vst [vmem:[%s1068 + $0x8] sm:$0x1] %v6747
        %v6749 = vld [vmem:[#allocation2] sm:$0xf]
        %v6750 = vld [vmem:[#allocation2 + $0x4] sm:$0xf]
        %v6751 = vld [vmem:[#allocation2 + $0xc] sm:$0xf]
        %v6752 = vld [vmem:[#allocation2 + $0x10] sm:$0xf]
        %v6753 = vld [vmem:[#allocation2 + $0x18] sm:$0xf]
        %v6754 = vld [vmem:[#allocation2 + $0x1c] sm:$0xf]
        %v6755 = vld [vmem:[#allocation2 + $0x24] sm:$0xf]
        %v6756 = vld [vmem:[#allocation2 + $0x28] sm:$0xf]
        %v6757 = vld [vmem:[#allocation2 + $0x30] sm:$0xf]
        %v6758 = vld [vmem:[#allocation2 + $0x34] sm:$0xf]
        %v6759 = vld [vmem:[#allocation2 + $0x3c] sm:$0xf]
        %v6760 = vld [vmem:[#allocation2 + $0x40] sm:$0xf]
        %v6761 = vld [vmem:[#allocation2 + $0x48] sm:$0xf]
        %v6762 = vld [vmem:[#allocation2 + $0x4c] sm:$0xf]
        %v6763 = vld [vmem:[#allocation2 + $0x54] sm:$0xf]
        %v6764 = vld [vmem:[#allocation2 + $0x58] sm:$0xf]
        %v6765 = vld [vmem:[#allocation2 + $0x60] sm:$0xf]
        %v6766 = vld [vmem:[#allocation2 + $0x64] sm:$0xf]
        %v6767 = vld [vmem:[#allocation2 + $0x6c] sm:$0xf]
        %v6768 = vld [vmem:[#allocation2 + $0x70] sm:$0xf]
        %v6769 = vld [vmem:[#allocation2 + $0x78] sm:$0xf]
        %v6770 = vld [vmem:[#allocation2 + $0x7c] sm:$0xf]
        %v6771 = vld [vmem:[#allocation2 + $0x84] sm:$0xf]
        %v6772 = vld [vmem:[#allocation2 + $0x88] sm:$0xf]
        %v6773 = vld [vmem:[#allocation2 + $0x90] sm:$0xf]
        %v6774 = vld [vmem:[#allocation2 + $0x94] sm:$0xf]
        %v6775 = vld [vmem:[#allocation2 + $0x9c] sm:$0xf]
        %v6776 = vld [vmem:[#allocation2 + $0xa0] sm:$0xf]
        %v6777 = vld [vmem:[#allocation2 + $0xa8] sm:$0xf]
        %v6778 = vld [vmem:[#allocation2 + $0xac] sm:$0xf]
        %v6779 = vld [vmem:[#allocation2 + $0xb4] sm:$0xf]
        %v6780 = vld [vmem:[#allocation2 + $0xb8] sm:$0xf]
        %v6781 = vld [vmem:[#allocation9] sm:$0x3]
        %v6782 = vld [vmem:[#allocation11] sm:$0x1]
        %v6784 = vlaneseq
        %v6785 = vshrl.u32 %v6784, 7
        %v6786 = vsub.s32 0, %v6785
        %v6787 = vrot.slane %v6782, %v6786
        %v6821 = vunpack.c.l.b16 %v6749
        %v6822 = vunpack.c.l.b16 %v6750
        %v6823 = vunpack.c.l.b16 %v6751
        %v6824 = vunpack.c.l.b16 %v6752
        %v6825 = vunpack.c.l.b16 %v6753
        %v6826 = vunpack.c.l.b16 %v6754
        %v6827 = vunpack.c.l.b16 %v6755
        %v6828 = vunpack.c.l.b16 %v6756
        %v6829 = vunpack.c.l.b16 %v6757
        %v6830 = vunpack.c.l.b16 %v6758
        %v6831 = vunpack.c.l.b16 %v6759
        %v6832 = vunpack.c.l.b16 %v6760
        %v6833 = vunpack.c.l.b16 %v6761
        %v6834 = vunpack.c.l.b16 %v6762
        %v6835 = vunpack.c.l.b16 %v6763
        %v6836 = vunpack.c.l.b16 %v6764
        %v6837 = vunpack.c.l.b16 %v6765
        %v6838 = vunpack.c.l.b16 %v6766
        %v6839 = vunpack.c.l.b16 %v6767
        %v6840 = vunpack.c.l.b16 %v6768
        %v6841 = vunpack.c.l.b16 %v6769
        %v6842 = vunpack.c.l.b16 %v6770
        %v6843 = vunpack.c.l.b16 %v6771
        %v6844 = vunpack.c.l.b16 %v6772
        %v6845 = vunpack.c.l.b16 %v6773
        %v6846 = vunpack.c.l.b16 %v6774
        %v6847 = vunpack.c.l.b16 %v6775
        %v6848 = vunpack.c.l.b16 %v6776
        %v6849 = vunpack.c.l.b16 %v6777
        %v6850 = vunpack.c.l.b16 %v6778
        %v6851 = vunpack.c.l.b16 %v6779
        %v6852 = vunpack.c.l.b16 %v6780
        %v6853 = vpack.c.b16 %v6822, %v6821
        %v6854 = vpack.c.b16 %v6824, %v6823
        %v6855 = vpack.c.b16 %v6826, %v6825
        %v6856 = vpack.c.b16 %v6828, %v6827
        %v6857 = vpack.c.b16 %v6830, %v6829
        %v6858 = vpack.c.b16 %v6832, %v6831
        %v6859 = vpack.c.b16 %v6834, %v6833
        %v6860 = vpack.c.b16 %v6836, %v6835
        %v6861 = vpack.c.b16 %v6838, %v6837
        %v6862 = vpack.c.b16 %v6840, %v6839
        %v6863 = vpack.c.b16 %v6842, %v6841
        %v6864 = vpack.c.b16 %v6844, %v6843
        %v6865 = vpack.c.b16 %v6846, %v6845
        %v6866 = vpack.c.b16 %v6848, %v6847
        %v6867 = vpack.c.b16 %v6850, %v6849
        %v6868 = vpack.c.b16 %v6852, %v6851
        %v6870 = vsel %vm1208, %v6853, 0
        %v6873 = vsel %vm1208, %v6854, 0
        %v6876 = vsel %vm1208, %v6855, 0
        %v6879 = vsel %vm1208, %v6856, 0
        %v6882 = vsel %vm1208, %v6857, 0
        %v6885 = vsel %vm1208, %v6858, 0
        %v6888 = vsel %vm1208, %v6859, 0
        %v6891 = vsel %vm1208, %v6860, 0
        %v6894 = vsel %vm1208, %v6861, 0
        %v6897 = vsel %vm1208, %v6862, 0
        %v6900 = vsel %vm1208, %v6863, 0
        %v6903 = vsel %vm1208, %v6864, 0
        %v6906 = vsel %vm1208, %v6865, 0
        %v6909 = vsel %vm1208, %v6866, 0
        %v6912 = vsel %vm1208, %v6867, 0
        %v6915 = vsel %vm1208, %v6868, 0
        %v6918 = vsel %vm1257, %v6781, 0
        %6920 = vmatprep.subr.bf16.mxu0 0
        %6921 = vmatpush1.bf16.msra.mxu0 %v6918
        %6922 = vmatprep.subr.bf16.mxu0 0
        %6923 = vmatpush1.bf16.msra.mxu0 0
        %6924 = vmatprep.subr.bf16.mxu0 0
        %6925 = vmatpush1.bf16.msra.mxu0 0
        %6926 = vmatprep.subr.bf16.mxu0 0
        %6927 = vmatpush1.bf16.msra.mxu0 0
        %6928 = vmatprep.subr.bf16.mxu0 0
        %6929 = vmatpush1.bf16.msra.mxu0 0
        %6930 = vmatprep.subr.bf16.mxu0 0
        %6931 = vmatpush1.bf16.msra.mxu0 0
        %6932 = vmatprep.subr.bf16.mxu0 0
        %6933 = vmatpush1.bf16.msra.mxu0 0
        %6934 = vmatprep.subr.bf16.mxu0 0
        %6935 = vmatpush1.bf16.msra.mxu0 0
        %6936 = vmatprep.subr.bf16.mxu0 0
        %6937 = vmatpush1.bf16.msra.mxu0 0
        %6938 = vmatprep.subr.bf16.mxu0 0
        %6939 = vmatpush1.bf16.msra.mxu0 0
        %6940 = vmatprep.subr.bf16.mxu0 0
        %6941 = vmatpush1.bf16.msra.mxu0 0
        %6942 = vmatprep.subr.bf16.mxu0 0
        %6943 = vmatpush1.bf16.msra.mxu0 0
        %6944 = vmatprep.subr.bf16.mxu0 0
        %6945 = vmatpush1.bf16.msra.mxu0 0
        %6946 = vmatprep.subr.bf16.mxu0 0
        %6947 = vmatpush1.bf16.msra.mxu0 0
        %6948 = vmatprep.subr.bf16.mxu0 0
        %6949 = vmatpush1.bf16.msra.mxu0 0
        %6950 = vmatprep.subr.bf16.mxu0 0
        %6951 = vmatpush1.bf16.msra.mxu0 0
        %6952 = vmatprep.mubr.bf16.mxu0 0
        %6953 = vmatmul.mubr.bf16.gmra.mrb[0].mxu0 %v6870
        %v6954 = vpop.f32.mrb[0].mxu0
        %v6955 = vadd.f32 %v6787, %v6954
        %v6956 = vpop.f32.mrb[0].mxu0
        %v6957 = vpop.f32.mrb[0].mxu0
        %v6958 = vadd.f32 %v6787, %v6957
        %v6959 = vpop.f32.mrb[0].mxu0
        %6960 = vmatprep.mubr.bf16.mxu0 0
        %6961 = vmatmul.mubr.bf16.gmra.mrb[0].mxu0 %v6873
        %v6962 = vpop.f32.mrb[0].mxu0
        %v6963 = vadd.f32 %v6787, %v6962
        %v6964 = vpop.f32.mrb[0].mxu0
        %v6965 = vpop.f32.mrb[0].mxu0
        %v6966 = vadd.f32 %v6787, %v6965
        %v6967 = vpop.f32.mrb[0].mxu0
        %6968 = vmatprep.mubr.bf16.mxu0 0
        %6969 = vmatmul.mubr.bf16.gmra.mrb[0].mxu0 %v6876
        %v6970 = vpop.f32.mrb[0].mxu0
        %v6971 = vadd.f32 %v6787, %v6970
        %v6972 = vpop.f32.mrb[0].mxu0
        %v6973 = vpop.f32.mrb[0].mxu0
        %v6974 = vadd.f32 %v6787, %v6973
        %v6975 = vpop.f32.mrb[0].mxu0
        %6976 = vmatprep.mubr.bf16.mxu0 0
        %6977 = vmatmul.mubr.bf16.gmra.mrb[0].mxu0 %v6879
        %v6978 = vpop.f32.mrb[0].mxu0
        %v6979 = vadd.f32 %v6787, %v6978
        %v6980 = vpop.f32.mrb[0].mxu0
        %v6981 = vpop.f32.mrb[0].mxu0
        %v6982 = vadd.f32 %v6787, %v6981
        %v6983 = vpop.f32.mrb[0].mxu0
        %6984 = vmatprep.mubr.bf16.mxu0 0
        %6985 = vmatmul.mubr.bf16.gmra.mrb[0].mxu0 %v6882
        %v6986 = vpop.f32.mrb[0].mxu0
        %v6987 = vadd.f32 %v6787, %v6986
        %v6988 = vpop.f32.mrb[0].mxu0
        %v6989 = vpop.f32.mrb[0].mxu0
        %v6990 = vadd.f32 %v6787, %v6989
        %v6991 = vpop.f32.mrb[0].mxu0
        %6992 = vmatprep.mubr.bf16.mxu0 0
        %6993 = vmatmul.mubr.bf16.gmra.mrb[0].mxu0 %v6885
        %v6994 = vpop.f32.mrb[0].mxu0
        %v6995 = vadd.f32 %v6787, %v6994
        %v6996 = vpop.f32.mrb[0].mxu0
        %v6997 = vpop.f32.mrb[0].mxu0
        %v6998 = vadd.f32 %v6787, %v6997
        %v6999 = vpop.f32.mrb[0].mxu0
        %7000 = vmatprep.mubr.bf16.mxu0 0
        %7001 = vmatmul.mubr.bf16.gmra.mrb[0].mxu0 %v6888
        %v7002 = vpop.f32.mrb[0].mxu0
        %v7003 = vadd.f32 %v6787, %v7002
        %v7004 = vpop.f32.mrb[0].mxu0
        %v7005 = vpop.f32.mrb[0].mxu0
        %v7006 = vadd.f32 %v6787, %v7005
        %v7007 = vpop.f32.mrb[0].mxu0
        %7008 = vmatprep.mubr.bf16.mxu0 0
        %7009 = vmatmul.mubr.bf16.gmra.mrb[0].mxu0 %v6891
        %v7010 = vpop.f32.mrb[0].mxu0
        %v7011 = vadd.f32 %v6787, %v7010
        %v7012 = vpop.f32.mrb[0].mxu0
        %v7013 = vpop.f32.mrb[0].mxu0
        %v7014 = vadd.f32 %v6787, %v7013
        %v7015 = vpop.f32.mrb[0].mxu0
        %7016 = vmatprep.mubr.bf16.mxu0 0
        %7017 = vmatmul.mubr.bf16.gmra.mrb[0].mxu0 %v6894
        %v7018 = vpop.f32.mrb[0].mxu0
        %v7019 = vadd.f32 %v6787, %v7018
        %v7020 = vpop.f32.mrb[0].mxu0
        %v7021 = vpop.f32.mrb[0].mxu0
        %v7022 = vadd.f32 %v6787, %v7021
        %v7023 = vpop.f32.mrb[0].mxu0
        %7024 = vmatprep.mubr.bf16.mxu0 0
        %7025 = vmatmul.mubr.bf16.gmra.mrb[0].mxu0 %v6897
        %v7026 = vpop.f32.mrb[0].mxu0
        %v7027 = vadd.f32 %v6787, %v7026
        %v7028 = vpop.f32.mrb[0].mxu0
        %v7029 = vpop.f32.mrb[0].mxu0
        %v7030 = vadd.f32 %v6787, %v7029
        %v7031 = vpop.f32.mrb[0].mxu0
        %7032 = vmatprep.mubr.bf16.mxu0 0
        %7033 = vmatmul.mubr.bf16.gmra.mrb[0].mxu0 %v6900
        %v7034 = vpop.f32.mrb[0].mxu0
        %v7035 = vadd.f32 %v6787, %v7034
        %v7036 = vpop.f32.mrb[0].mxu0
        %v7037 = vpop.f32.mrb[0].mxu0
        %v7038 = vadd.f32 %v6787, %v7037
        %v7039 = vpop.f32.mrb[0].mxu0
        %7040 = vmatprep.mubr.bf16.mxu0 0
        %7041 = vmatmul.mubr.bf16.gmra.mrb[0].mxu0 %v6903
        %v7042 = vpop.f32.mrb[0].mxu0
        %v7043 = vadd.f32 %v6787, %v7042
        %v7044 = vpop.f32.mrb[0].mxu0
        %v7045 = vpop.f32.mrb[0].mxu0
        %v7046 = vadd.f32 %v6787, %v7045
        %v7047 = vpop.f32.mrb[0].mxu0
        %7048 = vmatprep.mubr.bf16.mxu0 0
        %7049 = vmatmul.mubr.bf16.gmra.mrb[0].mxu0 %v6906
        %v7050 = vpop.f32.mrb[0].mxu0
        %v7051 = vadd.f32 %v6787, %v7050
        %v7052 = vpop.f32.mrb[0].mxu0
        %v7053 = vpop.f32.mrb[0].mxu0
        %v7054 = vadd.f32 %v6787, %v7053
        %v7055 = vpop.f32.mrb[0].mxu0
        %7056 = vmatprep.mubr.bf16.mxu0 0
        %7057 = vmatmul.mubr.bf16.gmra.mrb[0].mxu0 %v6909
        %v7058 = vpop.f32.mrb[0].mxu0
        %v7059 = vadd.f32 %v6787, %v7058
        %v7060 = vpop.f32.mrb[0].mxu0
        %v7061 = vpop.f32.mrb[0].mxu0
        %v7062 = vadd.f32 %v6787, %v7061
        %v7063 = vpop.f32.mrb[0].mxu0
        %7064 = vmatprep.mubr.bf16.mxu0 0
        %7065 = vmatmul.mubr.bf16.gmra.mrb[0].mxu0 %v6912
        %v7066 = vpop.f32.mrb[0].mxu0
        %v7067 = vadd.f32 %v6787, %v7066
        %v7068 = vpop.f32.mrb[0].mxu0
        %v7069 = vpop.f32.mrb[0].mxu0
        %v7070 = vadd.f32 %v6787, %v7069
        %v7071 = vpop.f32.mrb[0].mxu0
        %7072 = vmatprep.mubr.bf16.mxu0 0
        %7073 = vmatmul.mubr.bf16.gmra.mrb[0].mxu0 %v6915
        %v7074 = vpop.f32.mrb[0].mxu0
        %v7075 = vadd.f32 %v6787, %v7074
        %v7076 = vpop.f32.mrb[0].mxu0
        %v7077 = vpop.f32.mrb[0].mxu0
        %v7078 = vadd.f32 %v6787, %v7077
        %v7079 = vpop.f32.mrb[0].mxu0
        %7080 = vdwg.mxu0
        %v7081 = vld [vmem:[#allocation2] sm:$0xf]
        %v7082 = vld [vmem:[#allocation2 + $0x4] sm:$0xf]
        %v7083 = vld [vmem:[#allocation2 + $0x8] sm:$0x1]
        %v7084 = vld [vmem:[#allocation2 + $0xc] sm:$0xf]
        %v7085 = vld [vmem:[#allocation2 + $0x10] sm:$0xf]
        %v7086 = vld [vmem:[#allocation2 + $0x14] sm:$0x1]
        %v7087 = vld [vmem:[#allocation2 + $0x18] sm:$0xf]
        %v7088 = vld [vmem:[#allocation2 + $0x1c] sm:$0xf]
        %v7089 = vld [vmem:[#allocation2 + $0x20] sm:$0x1]
        %v7090 = vld [vmem:[#allocation2 + $0x24] sm:$0xf]
        %v7091 = vld [vmem:[#allocation2 + $0x28] sm:$0xf]
        %v7092 = vld [vmem:[#allocation2 + $0x2c] sm:$0x1]
        %v7093 = vld [vmem:[#allocation2 + $0x30] sm:$0xf]
        %v7094 = vld [vmem:[#allocation2 + $0x34] sm:$0xf]
        %v7095 = vld [vmem:[#allocation2 + $0x38] sm:$0x1]
        %v7096 = vld [vmem:[#allocation2 + $0x3c] sm:$0xf]
        %v7097 = vld [vmem:[#allocation2 + $0x40] sm:$0xf]
        %v7098 = vld [vmem:[#allocation2 + $0x44] sm:$0x1]
        %v7099 = vld [vmem:[#allocation2 + $0x48] sm:$0xf]
        %v7100 = vld [vmem:[#allocation2 + $0x4c] sm:$0xf]
        %v7101 = vld [vmem:[#allocation2 + $0x50] sm:$0x1]
        %v7102 = vld [vmem:[#allocation2 + $0x54] sm:$0xf]
        %v7103 = vld [vmem:[#allocation2 + $0x58] sm:$0xf]
        %v7104 = vld [vmem:[#allocation2 + $0x5c] sm:$0x1]
        %v7105 = vld [vmem:[#allocation2 + $0x60] sm:$0xf]
        %v7106 = vld [vmem:[#allocation2 + $0x64] sm:$0xf]
        %v7107 = vld [vmem:[#allocation2 + $0x68] sm:$0x1]
        %v7108 = vld [vmem:[#allocation2 + $0x6c] sm:$0xf]
        %v7109 = vld [vmem:[#allocation2 + $0x70] sm:$0xf]
        %v7110 = vld [vmem:[#allocation2 + $0x74] sm:$0x1]
        %v7111 = vld [vmem:[#allocation2 + $0x78] sm:$0xf]
        %v7112 = vld [vmem:[#allocation2 + $0x7c] sm:$0xf]
        %v7113 = vld [vmem:[#allocation2 + $0x80] sm:$0x1]
        %v7114 = vld [vmem:[#allocation2 + $0x84] sm:$0xf]
        %v7115 = vld [vmem:[#allocation2 + $0x88] sm:$0xf]
        %v7116 = vld [vmem:[#allocation2 + $0x8c] sm:$0x1]
        %v7117 = vld [vmem:[#allocation2 + $0x90] sm:$0xf]
        %v7118 = vld [vmem:[#allocation2 + $0x94] sm:$0xf]
        %v7119 = vld [vmem:[#allocation2 + $0x98] sm:$0x1]
        %v7120 = vld [vmem:[#allocation2 + $0x9c] sm:$0xf]
        %v7121 = vld [vmem:[#allocation2 + $0xa0] sm:$0xf]
        %v7122 = vld [vmem:[#allocation2 + $0xa4] sm:$0x1]
        %v7123 = vld [vmem:[#allocation2 + $0xa8] sm:$0xf]
        %v7124 = vld [vmem:[#allocation2 + $0xac] sm:$0xf]
        %v7125 = vld [vmem:[#allocation2 + $0xb0] sm:$0x1]
        %v7126 = vld [vmem:[#allocation2 + $0xb4] sm:$0xf]
        %v7127 = vld [vmem:[#allocation2 + $0xb8] sm:$0xf]
        %v7128 = vld [vmem:[#allocation2 + $0xbc] sm:$0x1]
        %v7130 = vshrl.u32 %v7081, 16
        %v7132 = vrot.slane %v7130, 4
        %v7133 = vshll.u32 %v7081, 16
        %v7135 = vrot.slane %v7133, 5
        %v7136 = vor.u32 %v7132, %v7135
        %v7137 = vrot.slane %v7136, 4
        %v7139 = vshll.u32 %v7082, 16
        %v7141 = vrot.slane %v7139, 5
        %v7142 = vsel %vm1472, %v7137, %v7141
        %v7143 = vshrl.u32 %v7082, 16
        %v7145 = vrot.slane %v7143, 4
        %v7146 = vor.u32 %v7145, %v7141
        %v7147 = vrot.slane %v7146, 4
        %v7149 = vshll.u32 %v7083, 16
        %v7151 = vrot.slane %v7149, 5
        %v7152 = vsel %vm1472, %v7147, %v7151
        %v7154 = vshrl.u32 %v7084, 16
        %v7156 = vrot.slane %v7154, 4
        %v7157 = vshll.u32 %v7084, 16
        %v7159 = vrot.slane %v7157, 5
        %v7160 = vor.u32 %v7156, %v7159
        %v7161 = vrot.slane %v7160, 4
        %v7163 = vshll.u32 %v7085, 16
        %v7165 = vrot.slane %v7163, 5
        %v7166 = vsel %vm1472, %v7161, %v7165
        %v7167 = vshrl.u32 %v7085, 16
        %v7169 = vrot.slane %v7167, 4
        %v7170 = vor.u32 %v7169, %v7165
        %v7171 = vrot.slane %v7170, 4
        %v7173 = vshll.u32 %v7086, 16
        %v7175 = vrot.slane %v7173, 5
        %v7176 = vsel %vm1472, %v7171, %v7175
        %v7178 = vshrl.u32 %v7087, 16
        %v7180 = vrot.slane %v7178, 4
        %v7181 = vshll.u32 %v7087, 16
        %v7183 = vrot.slane %v7181, 5
        %v7184 = vor.u32 %v7180, %v7183
        %v7185 = vrot.slane %v7184, 4
        %v7187 = vshll.u32 %v7088, 16
        %v7189 = vrot.slane %v7187, 5
        %v7190 = vsel %vm1472, %v7185, %v7189
        %v7191 = vshrl.u32 %v7088, 16
        %v7193 = vrot.slane %v7191, 4
        %v7194 = vor.u32 %v7193, %v7189
        %v7195 = vrot.slane %v7194, 4
        %v7197 = vshll.u32 %v7089, 16
        %v7199 = vrot.slane %v7197, 5
        %v7200 = vsel %vm1472, %v7195, %v7199
        %v7202 = vshrl.u32 %v7090, 16
        %v7204 = vrot.slane %v7202, 4
        %v7205 = vshll.u32 %v7090, 16
        %v7207 = vrot.slane %v7205, 5
        %v7208 = vor.u32 %v7204, %v7207
        %v7209 = vrot.slane %v7208, 4
        %v7211 = vshll.u32 %v7091, 16
        %v7213 = vrot.slane %v7211, 5
        %v7214 = vsel %vm1472, %v7209, %v7213
        %v7215 = vshrl.u32 %v7091, 16
        %v7217 = vrot.slane %v7215, 4
        %v7218 = vor.u32 %v7217, %v7213
        %v7219 = vrot.slane %v7218, 4
        %v7221 = vshll.u32 %v7092, 16
        %v7223 = vrot.slane %v7221, 5
        %v7224 = vsel %vm1472, %v7219, %v7223
        %v7226 = vshrl.u32 %v7093, 16
        %v7228 = vrot.slane %v7226, 4
        %v7229 = vshll.u32 %v7093, 16
        %v7231 = vrot.slane %v7229, 5
        %v7232 = vor.u32 %v7228, %v7231
        %v7233 = vrot.slane %v7232, 4
        %v7235 = vshll.u32 %v7094, 16
        %v7237 = vrot.slane %v7235, 5
        %v7238 = vsel %vm1472, %v7233, %v7237
        %v7239 = vshrl.u32 %v7094, 16
        %v7241 = vrot.slane %v7239, 4
        %v7242 = vor.u32 %v7241, %v7237
        %v7243 = vrot.slane %v7242, 4
        %v7245 = vshll.u32 %v7095, 16
        %v7247 = vrot.slane %v7245, 5
        %v7248 = vsel %vm1472, %v7243, %v7247
        %v7250 = vshrl.u32 %v7096, 16
        %v7252 = vrot.slane %v7250, 4
        %v7253 = vshll.u32 %v7096, 16
        %v7255 = vrot.slane %v7253, 5
        %v7256 = vor.u32 %v7252, %v7255
        %v7257 = vrot.slane %v7256, 4
        %v7259 = vshll.u32 %v7097, 16
        %v7261 = vrot.slane %v7259, 5
        %v7262 = vsel %vm1472, %v7257, %v7261
        %v7263 = vshrl.u32 %v7097, 16
        %v7265 = vrot.slane %v7263, 4
        %v7266 = vor.u32 %v7265, %v7261
        %v7267 = vrot.slane %v7266, 4
        %v7269 = vshll.u32 %v7098, 16
        %v7271 = vrot.slane %v7269, 5
        %v7272 = vsel %vm1472, %v7267, %v7271
        %v7274 = vshrl.u32 %v7099, 16
        %v7276 = vrot.slane %v7274, 4
        %v7277 = vshll.u32 %v7099, 16
        %v7279 = vrot.slane %v7277, 5
        %v7280 = vor.u32 %v7276, %v7279
        %v7281 = vrot.slane %v7280, 4
        %v7283 = vshll.u32 %v7100, 16
        %v7285 = vrot.slane %v7283, 5
        %v7286 = vsel %vm1472, %v7281, %v7285
        %v7287 = vshrl.u32 %v7100, 16
        %v7289 = vrot.slane %v7287, 4
        %v7290 = vor.u32 %v7289, %v7285
        %v7291 = vrot.slane %v7290, 4
        %v7293 = vshll.u32 %v7101, 16
        %v7295 = vrot.slane %v7293, 5
        %v7296 = vsel %vm1472, %v7291, %v7295
        %v7298 = vshrl.u32 %v7102, 16
        %v7300 = vrot.slane %v7298, 4
        %v7301 = vshll.u32 %v7102, 16
        %v7303 = vrot.slane %v7301, 5
        %v7304 = vor.u32 %v7300, %v7303
        %v7305 = vrot.slane %v7304, 4
        %v7307 = vshll.u32 %v7103, 16
        %v7309 = vrot.slane %v7307, 5
        %v7310 = vsel %vm1472, %v7305, %v7309
        %v7311 = vshrl.u32 %v7103, 16
        %v7313 = vrot.slane %v7311, 4
        %v7314 = vor.u32 %v7313, %v7309
        %v7315 = vrot.slane %v7314, 4
        %v7317 = vshll.u32 %v7104, 16
        %v7319 = vrot.slane %v7317, 5
        %v7320 = vsel %vm1472, %v7315, %v7319
        %v7322 = vshrl.u32 %v7105, 16
        %v7324 = vrot.slane %v7322, 4
        %v7325 = vshll.u32 %v7105, 16
        %v7327 = vrot.slane %v7325, 5
        %v7328 = vor.u32 %v7324, %v7327
        %v7329 = vrot.slane %v7328, 4
        %v7331 = vshll.u32 %v7106, 16
        %v7333 = vrot.slane %v7331, 5
        %v7334 = vsel %vm1472, %v7329, %v7333
        %v7335 = vshrl.u32 %v7106, 16
        %v7337 = vrot.slane %v7335, 4
        %v7338 = vor.u32 %v7337, %v7333
        %v7339 = vrot.slane %v7338, 4
        %v7341 = vshll.u32 %v7107, 16
        %v7343 = vrot.slane %v7341, 5
        %v7344 = vsel %vm1472, %v7339, %v7343
        %v7346 = vshrl.u32 %v7108, 16
        %v7348 = vrot.slane %v7346, 4
        %v7349 = vshll.u32 %v7108, 16
        %v7351 = vrot.slane %v7349, 5
        %v7352 = vor.u32 %v7348, %v7351
        %v7353 = vrot.slane %v7352, 4
        %v7355 = vshll.u32 %v7109, 16
        %v7357 = vrot.slane %v7355, 5
        %v7358 = vsel %vm1472, %v7353, %v7357
        %v7359 = vshrl.u32 %v7109, 16
        %v7361 = vrot.slane %v7359, 4
        %v7362 = vor.u32 %v7361, %v7357
        %v7363 = vrot.slane %v7362, 4
        %v7365 = vshll.u32 %v7110, 16
        %v7367 = vrot.slane %v7365, 5
        %v7368 = vsel %vm1472, %v7363, %v7367
        %v7370 = vshrl.u32 %v7111, 16
        %v7372 = vrot.slane %v7370, 4
        %v7373 = vshll.u32 %v7111, 16
        %v7375 = vrot.slane %v7373, 5
        %v7376 = vor.u32 %v7372, %v7375
        %v7377 = vrot.slane %v7376, 4
        %v7379 = vshll.u32 %v7112, 16
        %v7381 = vrot.slane %v7379, 5
        %v7382 = vsel %vm1472, %v7377, %v7381
        %v7383 = vshrl.u32 %v7112, 16
        %v7385 = vrot.slane %v7383, 4
        %v7386 = vor.u32 %v7385, %v7381
        %v7387 = vrot.slane %v7386, 4
        %v7389 = vshll.u32 %v7113, 16
        %v7391 = vrot.slane %v7389, 5
        %v7392 = vsel %vm1472, %v7387, %v7391
        %v7394 = vshrl.u32 %v7114, 16
        %v7396 = vrot.slane %v7394, 4
        %v7397 = vshll.u32 %v7114, 16
        %v7399 = vrot.slane %v7397, 5
        %v7400 = vor.u32 %v7396, %v7399
        %v7401 = vrot.slane %v7400, 4
        %v7403 = vshll.u32 %v7115, 16
        %v7405 = vrot.slane %v7403, 5
        %v7406 = vsel %vm1472, %v7401, %v7405
        %v7407 = vshrl.u32 %v7115, 16
        %v7409 = vrot.slane %v7407, 4
        %v7410 = vor.u32 %v7409, %v7405
        %v7411 = vrot.slane %v7410, 4
        %v7413 = vshll.u32 %v7116, 16
        %v7415 = vrot.slane %v7413, 5
        %v7416 = vsel %vm1472, %v7411, %v7415
        %v7418 = vshrl.u32 %v7117, 16
        %v7420 = vrot.slane %v7418, 4
        %v7421 = vshll.u32 %v7117, 16
        %v7423 = vrot.slane %v7421, 5
        %v7424 = vor.u32 %v7420, %v7423
        %v7425 = vrot.slane %v7424, 4
        %v7427 = vshll.u32 %v7118, 16
        %v7429 = vrot.slane %v7427, 5
        %v7430 = vsel %vm1472, %v7425, %v7429
        %v7431 = vshrl.u32 %v7118, 16
        %v7433 = vrot.slane %v7431, 4
        %v7434 = vor.u32 %v7433, %v7429
        %v7435 = vrot.slane %v7434, 4
        %v7437 = vshll.u32 %v7119, 16
        %v7439 = vrot.slane %v7437, 5
        %v7440 = vsel %vm1472, %v7435, %v7439
        %v7442 = vshrl.u32 %v7120, 16
        %v7444 = vrot.slane %v7442, 4
        %v7445 = vshll.u32 %v7120, 16
        %v7447 = vrot.slane %v7445, 5
        %v7448 = vor.u32 %v7444, %v7447
        %v7449 = vrot.slane %v7448, 4
        %v7451 = vshll.u32 %v7121, 16
        %v7453 = vrot.slane %v7451, 5
        %v7454 = vsel %vm1472, %v7449, %v7453
        %v7455 = vshrl.u32 %v7121, 16
        %v7457 = vrot.slane %v7455, 4
        %v7458 = vor.u32 %v7457, %v7453
        %v7459 = vrot.slane %v7458, 4
        %v7461 = vshll.u32 %v7122, 16
        %v7463 = vrot.slane %v7461, 5
        %v7464 = vsel %vm1472, %v7459, %v7463
        %v7466 = vshrl.u32 %v7123, 16
        %v7468 = vrot.slane %v7466, 4
        %v7469 = vshll.u32 %v7123, 16
        %v7471 = vrot.slane %v7469, 5
        %v7472 = vor.u32 %v7468, %v7471
        %v7473 = vrot.slane %v7472, 4
        %v7475 = vshll.u32 %v7124, 16
        %v7477 = vrot.slane %v7475, 5
        %v7478 = vsel %vm1472, %v7473, %v7477
        %v7479 = vshrl.u32 %v7124, 16
        %v7481 = vrot.slane %v7479, 4
        %v7482 = vor.u32 %v7481, %v7477
        %v7483 = vrot.slane %v7482, 4
        %v7485 = vshll.u32 %v7125, 16
        %v7487 = vrot.slane %v7485, 5
        %v7488 = vsel %vm1472, %v7483, %v7487
        %v7490 = vshrl.u32 %v7126, 16
        %v7492 = vrot.slane %v7490, 4
        %v7493 = vshll.u32 %v7126, 16
        %v7495 = vrot.slane %v7493, 5
        %v7496 = vor.u32 %v7492, %v7495
        %v7497 = vrot.slane %v7496, 4
        %v7499 = vshll.u32 %v7127, 16
        %v7501 = vrot.slane %v7499, 5
        %v7502 = vsel %vm1472, %v7497, %v7501
        %v7503 = vshrl.u32 %v7127, 16
        %v7505 = vrot.slane %v7503, 4
        %v7506 = vor.u32 %v7505, %v7501
        %v7507 = vrot.slane %v7506, 4
        %v7509 = vshll.u32 %v7128, 16
        %v7511 = vrot.slane %v7509, 5
        %v7512 = vsel %vm1472, %v7507, %v7511
        %s7513 = scalar_lea.vmem [#allocation9], 2
        %v7514 = vld [vmem:[%s7513] sm:$0x3]
        %v7515 = vunpack.c.l.b16 %v7142
        %v7516 = vunpack.c.l.b16 %v7152
        %v7517 = vunpack.c.l.b16 %v7166
        %v7518 = vunpack.c.l.b16 %v7176
        %v7519 = vunpack.c.l.b16 %v7190
        %v7520 = vunpack.c.l.b16 %v7200
        %v7521 = vunpack.c.l.b16 %v7214
        %v7522 = vunpack.c.l.b16 %v7224
        %v7523 = vunpack.c.l.b16 %v7238
        %v7524 = vunpack.c.l.b16 %v7248
        %v7525 = vunpack.c.l.b16 %v7262
        %v7526 = vunpack.c.l.b16 %v7272
        %v7527 = vunpack.c.l.b16 %v7286
        %v7528 = vunpack.c.l.b16 %v7296
        %v7529 = vunpack.c.l.b16 %v7310
        %v7530 = vunpack.c.l.b16 %v7320
        %v7531 = vunpack.c.l.b16 %v7334
        %v7532 = vunpack.c.l.b16 %v7344
        %v7533 = vunpack.c.l.b16 %v7358
        %v7534 = vunpack.c.l.b16 %v7368
        %v7535 = vunpack.c.l.b16 %v7382
        %v7536 = vunpack.c.l.b16 %v7392
        %v7537 = vunpack.c.l.b16 %v7406
        %v7538 = vunpack.c.l.b16 %v7416
        %v7539 = vunpack.c.l.b16 %v7430
        %v7540 = vunpack.c.l.b16 %v7440
        %v7541 = vunpack.c.l.b16 %v7454
        %v7542 = vunpack.c.l.b16 %v7464
        %v7543 = vunpack.c.l.b16 %v7478
        %v7544 = vunpack.c.l.b16 %v7488
        %v7545 = vunpack.c.l.b16 %v7502
        %v7546 = vunpack.c.l.b16 %v7512
        %v7547 = vpack.c.b16 %v7516, %v7515
        %v7548 = vpack.c.b16 %v7518, %v7517
        %v7549 = vpack.c.b16 %v7520, %v7519
        %v7550 = vpack.c.b16 %v7522, %v7521
        %v7551 = vpack.c.b16 %v7524, %v7523
        %v7552 = vpack.c.b16 %v7526, %v7525
        %v7553 = vpack.c.b16 %v7528, %v7527
        %v7554 = vpack.c.b16 %v7530, %v7529
        %v7555 = vpack.c.b16 %v7532, %v7531
        %v7556 = vpack.c.b16 %v7534, %v7533
        %v7557 = vpack.c.b16 %v7536, %v7535
        %v7558 = vpack.c.b16 %v7538, %v7537
        %v7559 = vpack.c.b16 %v7540, %v7539
        %v7560 = vpack.c.b16 %v7542, %v7541
        %v7561 = vpack.c.b16 %v7544, %v7543
        %v7562 = vpack.c.b16 %v7546, %v7545
        %v7564 = vsel %vm1208, %v7547, 0
        %v7567 = vsel %vm1208, %v7548, 0
        %v7570 = vsel %vm1208, %v7549, 0
        %v7573 = vsel %vm1208, %v7550, 0
        %v7576 = vsel %vm1208, %v7551, 0
        %v7579 = vsel %vm1208, %v7552, 0
        %v7582 = vsel %vm1208, %v7553, 0
        %v7585 = vsel %vm1208, %v7554, 0
        %v7588 = vsel %vm1208, %v7555, 0
        %v7591 = vsel %vm1208, %v7556, 0
        %v7594 = vsel %vm1208, %v7557, 0
        %v7597 = vsel %vm1208, %v7558, 0
        %v7600 = vsel %vm1208, %v7559, 0
        %v7603 = vsel %vm1208, %v7560, 0
        %v7606 = vsel %vm1208, %v7561, 0
        %v7609 = vsel %vm1208, %v7562, 0
        %v7612 = vsel %vm1257, %v7514, 0
        %7614 = vmatprep.subr.bf16.mxu0 0
        %7615 = vmatpush1.bf16.msra.mxu0 %v7612
        %7616 = vmatprep.subr.bf16.mxu0 0
        %7617 = vmatpush1.bf16.msra.mxu0 0
        %7618 = vmatprep.subr.bf16.mxu0 0
        %7619 = vmatpush1.bf16.msra.mxu0 0
        %7620 = vmatprep.subr.bf16.mxu0 0
        %7621 = vmatpush1.bf16.msra.mxu0 0
        %7622 = vmatprep.subr.bf16.mxu0 0
        %7623 = vmatpush1.bf16.msra.mxu0 0
        %7624 = vmatprep.subr.bf16.mxu0 0
        %7625 = vmatpush1.bf16.msra.mxu0 0
        %7626 = vmatprep.subr.bf16.mxu0 0
        %7627 = vmatpush1.bf16.msra.mxu0 0
        %7628 = vmatprep.subr.bf16.mxu0 0
        %7629 = vmatpush1.bf16.msra.mxu0 0
        %7630 = vmatprep.subr.bf16.mxu0 0
        %7631 = vmatpush1.bf16.msra.mxu0 0
        %7632 = vmatprep.subr.bf16.mxu0 0
        %7633 = vmatpush1.bf16.msra.mxu0 0
        %7634 = vmatprep.subr.bf16.mxu0 0
        %7635 = vmatpush1.bf16.msra.mxu0 0
        %7636 = vmatprep.subr.bf16.mxu0 0
        %7637 = vmatpush1.bf16.msra.mxu0 0
        %7638 = vmatprep.subr.bf16.mxu0 0
        %7639 = vmatpush1.bf16.msra.mxu0 0
        %7640 = vmatprep.subr.bf16.mxu0 0
        %7641 = vmatpush1.bf16.msra.mxu0 0
        %7642 = vmatprep.subr.bf16.mxu0 0
        %7643 = vmatpush1.bf16.msra.mxu0 0
        %7644 = vmatprep.subr.bf16.mxu0 0
        %7645 = vmatpush1.bf16.msra.mxu0 0
        %7646 = vmatprep.mubr.bf16.mxu0 0
        %7647 = vmatmul.mubr.bf16.gmra.mrb[0].mxu0 %v7564
        %v7648 = vpop.f32.mrb[0].mxu0
        %v7649 = vadd.f32 0.0, %v7648
        %v7650 = vpop.f32.mrb[0].mxu0
        %v7651 = vpop.f32.mrb[0].mxu0
        %v7652 = vadd.f32 0.0, %v7651
        %v7653 = vpop.f32.mrb[0].mxu0
        %7654 = vmatprep.mubr.bf16.mxu0 0
        %7655 = vmatmul.mubr.bf16.gmra.mrb[0].mxu0 %v7567
        %v7656 = vpop.f32.mrb[0].mxu0
        %v7657 = vadd.f32 0.0, %v7656
        %v7658 = vpop.f32.mrb[0].mxu0
        %v7659 = vpop.f32.mrb[0].mxu0
        %v7660 = vadd.f32 0.0, %v7659
        %v7661 = vpop.f32.mrb[0].mxu0
        %7662 = vmatprep.mubr.bf16.mxu0 0
        %7663 = vmatmul.mubr.bf16.gmra.mrb[0].mxu0 %v7570
        %v7664 = vpop.f32.mrb[0].mxu0
        %v7665 = vadd.f32 0.0, %v7664
        %v7666 = vpop.f32.mrb[0].mxu0
        %v7667 = vpop.f32.mrb[0].mxu0
        %v7668 = vadd.f32 0.0, %v7667
        %v7669 = vpop.f32.mrb[0].mxu0
        %7670 = vmatprep.mubr.bf16.mxu0 0
        %7671 = vmatmul.mubr.bf16.gmra.mrb[0].mxu0 %v7573
        %v7672 = vpop.f32.mrb[0].mxu0
        %v7673 = vadd.f32 0.0, %v7672
        %v7674 = vpop.f32.mrb[0].mxu0
        %v7675 = vpop.f32.mrb[0].mxu0
        %v7676 = vadd.f32 0.0, %v7675
        %v7677 = vpop.f32.mrb[0].mxu0
        %7678 = vmatprep.mubr.bf16.mxu0 0
        %7679 = vmatmul.mubr.bf16.gmra.mrb[0].mxu0 %v7576
        %v7680 = vpop.f32.mrb[0].mxu0
        %v7681 = vadd.f32 0.0, %v7680
        %v7682 = vpop.f32.mrb[0].mxu0
        %v7683 = vpop.f32.mrb[0].mxu0
        %v7684 = vadd.f32 0.0, %v7683
        %v7685 = vpop.f32.mrb[0].mxu0
        %7686 = vmatprep.mubr.bf16.mxu0 0
        %7687 = vmatmul.mubr.bf16.gmra.mrb[0].mxu0 %v7579
        %v7688 = vpop.f32.mrb[0].mxu0
        %v7689 = vadd.f32 0.0, %v7688
        %v7690 = vpop.f32.mrb[0].mxu0
        %v7691 = vpop.f32.mrb[0].mxu0
        %v7692 = vadd.f32 0.0, %v7691
        %v7693 = vpop.f32.mrb[0].mxu0
        %7694 = vmatprep.mubr.bf16.mxu0 0
        %7695 = vmatmul.mubr.bf16.gmra.mrb[0].mxu0 %v7582
        %v7696 = vpop.f32.mrb[0].mxu0
        %v7697 = vadd.f32 0.0, %v7696
        %v7698 = vpop.f32.mrb[0].mxu0
        %v7699 = vpop.f32.mrb[0].mxu0
        %v7700 = vadd.f32 0.0, %v7699
        %v7701 = vpop.f32.mrb[0].mxu0
        %7702 = vmatprep.mubr.bf16.mxu0 0
        %7703 = vmatmul.mubr.bf16.gmra.mrb[0].mxu0 %v7585
        %v7704 = vpop.f32.mrb[0].mxu0
        %v7705 = vadd.f32 0.0, %v7704
        %v7706 = vpop.f32.mrb[0].mxu0
        %v7707 = vpop.f32.mrb[0].mxu0
        %v7708 = vadd.f32 0.0, %v7707
        %v7709 = vpop.f32.mrb[0].mxu0
        %7710 = vmatprep.mubr.bf16.mxu0 0
        %7711 = vmatmul.mubr.bf16.gmra.mrb[0].mxu0 %v7588
        %v7712 = vpop.f32.mrb[0].mxu0
        %v7713 = vadd.f32 0.0, %v7712
        %v7714 = vpop.f32.mrb[0].mxu0
        %v7715 = vpop.f32.mrb[0].mxu0
        %v7716 = vadd.f32 0.0, %v7715
        %v7717 = vpop.f32.mrb[0].mxu0
        %7718 = vmatprep.mubr.bf16.mxu0 0
        %7719 = vmatmul.mubr.bf16.gmra.mrb[0].mxu0 %v7591
        %v7720 = vpop.f32.mrb[0].mxu0
        %v7721 = vadd.f32 0.0, %v7720
        %v7722 = vpop.f32.mrb[0].mxu0
        %v7723 = vpop.f32.mrb[0].mxu0
        %v7724 = vadd.f32 0.0, %v7723
        %v7725 = vpop.f32.mrb[0].mxu0
        %7726 = vmatprep.mubr.bf16.mxu0 0
        %7727 = vmatmul.mubr.bf16.gmra.mrb[0].mxu0 %v7594
        %v7728 = vpop.f32.mrb[0].mxu0
        %v7729 = vadd.f32 0.0, %v7728
        %v7730 = vpop.f32.mrb[0].mxu0
        %v7731 = vpop.f32.mrb[0].mxu0
        %v7732 = vadd.f32 0.0, %v7731
        %v7733 = vpop.f32.mrb[0].mxu0
        %7734 = vmatprep.mubr.bf16.mxu0 0
        %7735 = vmatmul.mubr.bf16.gmra.mrb[0].mxu0 %v7597
        %v7736 = vpop.f32.mrb[0].mxu0
        %v7737 = vadd.f32 0.0, %v7736
        %v7738 = vpop.f32.mrb[0].mxu0
        %v7739 = vpop.f32.mrb[0].mxu0
        %v7740 = vadd.f32 0.0, %v7739
        %v7741 = vpop.f32.mrb[0].mxu0
        %7742 = vmatprep.mubr.bf16.mxu0 0
        %7743 = vmatmul.mubr.bf16.gmra.mrb[0].mxu0 %v7600
        %v7744 = vpop.f32.mrb[0].mxu0
        %v7745 = vadd.f32 0.0, %v7744
        %v7746 = vpop.f32.mrb[0].mxu0
        %v7747 = vpop.f32.mrb[0].mxu0
        %v7748 = vadd.f32 0.0, %v7747
        %v7749 = vpop.f32.mrb[0].mxu0
        %7750 = vmatprep.mubr.bf16.mxu0 0
        %7751 = vmatmul.mubr.bf16.gmra.mrb[0].mxu0 %v7603
        %v7752 = vpop.f32.mrb[0].mxu0
        %v7753 = vadd.f32 0.0, %v7752
        %v7754 = vpop.f32.mrb[0].mxu0
        %v7755 = vpop.f32.mrb[0].mxu0
        %v7756 = vadd.f32 0.0, %v7755
        %v7757 = vpop.f32.mrb[0].mxu0
        %7758 = vmatprep.mubr.bf16.mxu0 0
        %7759 = vmatmul.mubr.bf16.gmra.mrb[0].mxu0 %v7606
        %v7760 = vpop.f32.mrb[0].mxu0
        %v7761 = vadd.f32 0.0, %v7760
        %v7762 = vpop.f32.mrb[0].mxu0
        %v7763 = vpop.f32.mrb[0].mxu0
        %v7764 = vadd.f32 0.0, %v7763
        %v7765 = vpop.f32.mrb[0].mxu0
        %7766 = vmatprep.mubr.bf16.mxu0 0
        %7767 = vmatmul.mubr.bf16.gmra.mrb[0].mxu0 %v7609
        %v7768 = vpop.f32.mrb[0].mxu0
        %v7769 = vadd.f32 0.0, %v7768
        %v7770 = vpop.f32.mrb[0].mxu0
        %v7771 = vpop.f32.mrb[0].mxu0
        %v7772 = vadd.f32 0.0, %v7771
        %v7773 = vpop.f32.mrb[0].mxu0
        %7774 = vdwg.mxu0
        %v7775 = vadd.f32 %v6955, %v7649
        %v7776 = vadd.f32 %v6958, %v7652
        %v7777 = vadd.f32 %v6963, %v7657
        %v7778 = vadd.f32 %v6966, %v7660
        %v7779 = vadd.f32 %v6971, %v7665
        %v7780 = vadd.f32 %v6974, %v7668
        %v7781 = vadd.f32 %v6979, %v7673
        %v7782 = vadd.f32 %v6982, %v7676
        %v7783 = vadd.f32 %v6987, %v7681
        %v7784 = vadd.f32 %v6990, %v7684
        %v7785 = vadd.f32 %v6995, %v7689
        %v7786 = vadd.f32 %v6998, %v7692
        %v7787 = vadd.f32 %v7003, %v7697
        %v7788 = vadd.f32 %v7006, %v7700
        %v7789 = vadd.f32 %v7011, %v7705
        %v7790 = vadd.f32 %v7014, %v7708
        %v7791 = vadd.f32 %v7019, %v7713
        %v7792 = vadd.f32 %v7022, %v7716
        %v7793 = vadd.f32 %v7027, %v7721
        %v7794 = vadd.f32 %v7030, %v7724
        %v7795 = vadd.f32 %v7035, %v7729
        %v7796 = vadd.f32 %v7038, %v7732
        %v7797 = vadd.f32 %v7043, %v7737
        %v7798 = vadd.f32 %v7046, %v7740
        %v7799 = vadd.f32 %v7051, %v7745
        %v7800 = vadd.f32 %v7054, %v7748
        %v7801 = vadd.f32 %v7059, %v7753
        %v7802 = vadd.f32 %v7062, %v7756
        %v7803 = vadd.f32 %v7067, %v7761
        %v7804 = vadd.f32 %v7070, %v7764
        %v7805 = vadd.f32 %v7075, %v7769
        %v7806 = vadd.f32 %v7078, %v7772
        %v7807 = vld [vmem:[#allocation2] sm:$0xe]
        %v7808 = vld [vmem:[#allocation2 + $0xc] sm:$0xe]
        %v7809 = vld [vmem:[#allocation2 + $0x18] sm:$0xe]
        %v7810 = vld [vmem:[#allocation2 + $0x24] sm:$0xe]
        %v7811 = vld [vmem:[#allocation2 + $0x30] sm:$0xe]
        %v7812 = vld [vmem:[#allocation2 + $0x3c] sm:$0xe]
        %v7813 = vld [vmem:[#allocation2 + $0x48] sm:$0xe]
        %v7814 = vld [vmem:[#allocation2 + $0x54] sm:$0xe]
        %v7815 = vld [vmem:[#allocation2 + $0x60] sm:$0xe]
        %v7816 = vld [vmem:[#allocation2 + $0x6c] sm:$0xe]
        %v7817 = vld [vmem:[#allocation2 + $0x78] sm:$0xe]
        %v7818 = vld [vmem:[#allocation2 + $0x84] sm:$0xe]
        %v7819 = vld [vmem:[#allocation2 + $0x90] sm:$0xe]
        %v7820 = vld [vmem:[#allocation2 + $0x9c] sm:$0xe]
        %v7821 = vld [vmem:[#allocation2 + $0xa8] sm:$0xe]
        %v7822 = vld [vmem:[#allocation2 + $0xb4] sm:$0xe]
        %v7871 = vrot.slane %v7807, 5
        %v7872 = vrot.slane %v7871, 4
        %v7873 = vrot.slane %v7082, 5
        %v7874 = vsel %vm2217, %v7872, %v7873
        %v7875 = vrot.slane %v7873, 4
        %v7876 = vrot.slane %v7083, 5
        %v7877 = vsel %vm2217, %v7875, %v7876
        %v7878 = vrot.slane %v7808, 5
        %v7879 = vrot.slane %v7878, 4
        %v7880 = vrot.slane %v7085, 5
        %v7881 = vsel %vm2217, %v7879, %v7880
        %v7882 = vrot.slane %v7880, 4
        %v7883 = vrot.slane %v7086, 5
        %v7884 = vsel %vm2217, %v7882, %v7883
        %v7885 = vrot.slane %v7809, 5
        %v7886 = vrot.slane %v7885, 4
        %v7887 = vrot.slane %v7088, 5
        %v7888 = vsel %vm2217, %v7886, %v7887
        %v7889 = vrot.slane %v7887, 4
        %v7890 = vrot.slane %v7089, 5
        %v7891 = vsel %vm2217, %v7889, %v7890
        %v7892 = vrot.slane %v7810, 5
        %v7893 = vrot.slane %v7892, 4
        %v7894 = vrot.slane %v7091, 5
        %v7895 = vsel %vm2217, %v7893, %v7894
        %v7896 = vrot.slane %v7894, 4
        %v7897 = vrot.slane %v7092, 5
        %v7898 = vsel %vm2217, %v7896, %v7897
        %v7899 = vrot.slane %v7811, 5
        %v7900 = vrot.slane %v7899, 4
        %v7901 = vrot.slane %v7094, 5
        %v7902 = vsel %vm2217, %v7900, %v7901
        %v7903 = vrot.slane %v7901, 4
        %v7904 = vrot.slane %v7095, 5
        %v7905 = vsel %vm2217, %v7903, %v7904
        %v7906 = vrot.slane %v7812, 5
        %v7907 = vrot.slane %v7906, 4
        %v7908 = vrot.slane %v7097, 5
        %v7909 = vsel %vm2217, %v7907, %v7908
        %v7910 = vrot.slane %v7908, 4
        %v7911 = vrot.slane %v7098, 5
        %v7912 = vsel %vm2217, %v7910, %v7911
        %v7913 = vrot.slane %v7813, 5
        %v7914 = vrot.slane %v7913, 4
        %v7915 = vrot.slane %v7100, 5
        %v7916 = vsel %vm2217, %v7914, %v7915
        %v7917 = vrot.slane %v7915, 4
        %v7918 = vrot.slane %v7101, 5
        %v7919 = vsel %vm2217, %v7917, %v7918
        %v7920 = vrot.slane %v7814, 5
        %v7921 = vrot.slane %v7920, 4
        %v7922 = vrot.slane %v7103, 5
        %v7923 = vsel %vm2217, %v7921, %v7922
        %v7924 = vrot.slane %v7922, 4
        %v7925 = vrot.slane %v7104, 5
        %v7926 = vsel %vm2217, %v7924, %v7925
        %v7927 = vrot.slane %v7815, 5
        %v7928 = vrot.slane %v7927, 4
        %v7929 = vrot.slane %v7106, 5
        %v7930 = vsel %vm2217, %v7928, %v7929
        %v7931 = vrot.slane %v7929, 4
        %v7932 = vrot.slane %v7107, 5
        %v7933 = vsel %vm2217, %v7931, %v7932
        %v7934 = vrot.slane %v7816, 5
        %v7935 = vrot.slane %v7934, 4
        %v7936 = vrot.slane %v7109, 5
        %v7937 = vsel %vm2217, %v7935, %v7936
        %v7938 = vrot.slane %v7936, 4
        %v7939 = vrot.slane %v7110, 5
        %v7940 = vsel %vm2217, %v7938, %v7939
        %v7941 = vrot.slane %v7817, 5
        %v7942 = vrot.slane %v7941, 4
        %v7943 = vrot.slane %v7112, 5
        %v7944 = vsel %vm2217, %v7942, %v7943
        %v7945 = vrot.slane %v7943, 4
        %v7946 = vrot.slane %v7113, 5
        %v7947 = vsel %vm2217, %v7945, %v7946
        %v7948 = vrot.slane %v7818, 5
        %v7949 = vrot.slane %v7948, 4
        %v7950 = vrot.slane %v7115, 5
        %v7951 = vsel %vm2217, %v7949, %v7950
        %v7952 = vrot.slane %v7950, 4
        %v7953 = vrot.slane %v7116, 5
        %v7954 = vsel %vm2217, %v7952, %v7953
        %v7955 = vrot.slane %v7819, 5
        %v7956 = vrot.slane %v7955, 4
        %v7957 = vrot.slane %v7118, 5
        %v7958 = vsel %vm2217, %v7956, %v7957
        %v7959 = vrot.slane %v7957, 4
        %v7960 = vrot.slane %v7119, 5
        %v7961 = vsel %vm2217, %v7959, %v7960
        %v7962 = vrot.slane %v7820, 5
        %v7963 = vrot.slane %v7962, 4
        %v7964 = vrot.slane %v7121, 5
        %v7965 = vsel %vm2217, %v7963, %v7964
        %v7966 = vrot.slane %v7964, 4
        %v7967 = vrot.slane %v7122, 5
        %v7968 = vsel %vm2217, %v7966, %v7967
        %v7969 = vrot.slane %v7821, 5
        %v7970 = vrot.slane %v7969, 4
        %v7971 = vrot.slane %v7124, 5
        %v7972 = vsel %vm2217, %v7970, %v7971
        %v7973 = vrot.slane %v7971, 4
        %v7974 = vrot.slane %v7125, 5
        %v7975 = vsel %vm2217, %v7973, %v7974
        %v7976 = vrot.slane %v7822, 5
        %v7977 = vrot.slane %v7976, 4
        %v7978 = vrot.slane %v7127, 5
        %v7979 = vsel %vm2217, %v7977, %v7978
        %v7980 = vrot.slane %v7978, 4
        %v7981 = vrot.slane %v7128, 5
        %v7982 = vsel %vm2217, %v7980, %v7981
        %s7983 = scalar_lea.vmem [#allocation9], 4
        %v7984 = vld [vmem:[%s7983] sm:$0x3]
        %v7985 = vunpack.c.l.b16 %v7874
        %v7986 = vunpack.c.l.b16 %v7877
        %v7987 = vunpack.c.l.b16 %v7881
        %v7988 = vunpack.c.l.b16 %v7884
        %v7989 = vunpack.c.l.b16 %v7888
        %v7990 = vunpack.c.l.b16 %v7891
        %v7991 = vunpack.c.l.b16 %v7895
        %v7992 = vunpack.c.l.b16 %v7898
        %v7993 = vunpack.c.l.b16 %v7902
        %v7994 = vunpack.c.l.b16 %v7905
        %v7995 = vunpack.c.l.b16 %v7909
        %v7996 = vunpack.c.l.b16 %v7912
        %v7997 = vunpack.c.l.b16 %v7916
        %v7998 = vunpack.c.l.b16 %v7919
        %v7999 = vunpack.c.l.b16 %v7923
        %v8000 = vunpack.c.l.b16 %v7926
        %v8001 = vunpack.c.l.b16 %v7930
        %v8002 = vunpack.c.l.b16 %v7933
        %v8003 = vunpack.c.l.b16 %v7937
        %v8004 = vunpack.c.l.b16 %v7940
        %v8005 = vunpack.c.l.b16 %v7944
        %v8006 = vunpack.c.l.b16 %v7947
        %v8007 = vunpack.c.l.b16 %v7951
        %v8008 = vunpack.c.l.b16 %v7954
        %v8009 = vunpack.c.l.b16 %v7958
        %v8010 = vunpack.c.l.b16 %v7961
        %v8011 = vunpack.c.l.b16 %v7965
        %v8012 = vunpack.c.l.b16 %v7968
        %v8013 = vunpack.c.l.b16 %v7972
        %v8014 = vunpack.c.l.b16 %v7975
        %v8015 = vunpack.c.l.b16 %v7979
        %v8016 = vunpack.c.l.b16 %v7982
        %v8017 = vpack.c.b16 %v7986, %v7985
        %v8018 = vpack.c.b16 %v7988, %v7987
        %v8019 = vpack.c.b16 %v7990, %v7989
        %v8020 = vpack.c.b16 %v7992, %v7991
        %v8021 = vpack.c.b16 %v7994, %v7993
        %v8022 = vpack.c.b16 %v7996, %v7995
        %v8023 = vpack.c.b16 %v7998, %v7997
        %v8024 = vpack.c.b16 %v8000, %v7999
        %v8025 = vpack.c.b16 %v8002, %v8001
        %v8026 = vpack.c.b16 %v8004, %v8003
        %v8027 = vpack.c.b16 %v8006, %v8005
        %v8028 = vpack.c.b16 %v8008, %v8007
        %v8029 = vpack.c.b16 %v8010, %v8009
        %v8030 = vpack.c.b16 %v8012, %v8011
        %v8031 = vpack.c.b16 %v8014, %v8013
        %v8032 = vpack.c.b16 %v8016, %v8015
        %v8034 = vsel %vm1208, %v8017, 0
        %v8037 = vsel %vm1208, %v8018, 0
        %v8040 = vsel %vm1208, %v8019, 0
        %v8043 = vsel %vm1208, %v8020, 0
        %v8046 = vsel %vm1208, %v8021, 0
        %v8049 = vsel %vm1208, %v8022, 0
        %v8052 = vsel %vm1208, %v8023, 0
        %v8055 = vsel %vm1208, %v8024, 0
        %v8058 = vsel %vm1208, %v8025, 0
        %v8061 = vsel %vm1208, %v8026, 0
        %v8064 = vsel %vm1208, %v8027, 0
        %v8067 = vsel %vm1208, %v8028, 0
        %v8070 = vsel %vm1208, %v8029, 0
        %v8073 = vsel %vm1208, %v8030, 0
        %v8076 = vsel %vm1208, %v8031, 0
        %v8079 = vsel %vm1208, %v8032, 0
        %v8082 = vsel %vm1257, %v7984, 0
        %8084 = vmatprep.subr.bf16.mxu0 0
        %8085 = vmatpush1.bf16.msra.mxu0 %v8082
        %8086 = vmatprep.subr.bf16.mxu0 0
        %8087 = vmatpush1.bf16.msra.mxu0 0
        %8088 = vmatprep.subr.bf16.mxu0 0
        %8089 = vmatpush1.bf16.msra.mxu0 0
        %8090 = vmatprep.subr.bf16.mxu0 0
        %8091 = vmatpush1.bf16.msra.mxu0 0
        %8092 = vmatprep.subr.bf16.mxu0 0
        %8093 = vmatpush1.bf16.msra.mxu0 0
        %8094 = vmatprep.subr.bf16.mxu0 0
        %8095 = vmatpush1.bf16.msra.mxu0 0
        %8096 = vmatprep.subr.bf16.mxu0 0
        %8097 = vmatpush1.bf16.msra.mxu0 0
        %8098 = vmatprep.subr.bf16.mxu0 0
        %8099 = vmatpush1.bf16.msra.mxu0 0
        %8100 = vmatprep.subr.bf16.mxu0 0
        %8101 = vmatpush1.bf16.msra.mxu0 0
        %8102 = vmatprep.subr.bf16.mxu0 0
        %8103 = vmatpush1.bf16.msra.mxu0 0
        %8104 = vmatprep.subr.bf16.mxu0 0
        %8105 = vmatpush1.bf16.msra.mxu0 0
        %8106 = vmatprep.subr.bf16.mxu0 0
        %8107 = vmatpush1.bf16.msra.mxu0 0
        %8108 = vmatprep.subr.bf16.mxu0 0
        %8109 = vmatpush1.bf16.msra.mxu0 0
        %8110 = vmatprep.subr.bf16.mxu0 0
        %8111 = vmatpush1.bf16.msra.mxu0 0
        %8112 = vmatprep.subr.bf16.mxu0 0
        %8113 = vmatpush1.bf16.msra.mxu0 0
        %8114 = vmatprep.subr.bf16.mxu0 0
        %8115 = vmatpush1.bf16.msra.mxu0 0
        %8116 = vmatprep.mubr.bf16.mxu0 0
        %8117 = vmatmul.mubr.bf16.gmra.mrb[0].mxu0 %v8034
        %v8118 = vpop.f32.mrb[0].mxu0
        %v8119 = vadd.f32 0.0, %v8118
        %v8120 = vpop.f32.mrb[0].mxu0
        %v8121 = vpop.f32.mrb[0].mxu0
        %v8122 = vadd.f32 0.0, %v8121
        %v8123 = vpop.f32.mrb[0].mxu0
        %8124 = vmatprep.mubr.bf16.mxu0 0
        %8125 = vmatmul.mubr.bf16.gmra.mrb[0].mxu0 %v8037
        %v8126 = vpop.f32.mrb[0].mxu0
        %v8127 = vadd.f32 0.0, %v8126
        %v8128 = vpop.f32.mrb[0].mxu0
        %v8129 = vpop.f32.mrb[0].mxu0
        %v8130 = vadd.f32 0.0, %v8129
        %v8131 = vpop.f32.mrb[0].mxu0
        %8132 = vmatprep.mubr.bf16.mxu0 0
        %8133 = vmatmul.mubr.bf16.gmra.mrb[0].mxu0 %v8040
        %v8134 = vpop.f32.mrb[0].mxu0
        %v8135 = vadd.f32 0.0, %v8134
        %v8136 = vpop.f32.mrb[0].mxu0
        %v8137 = vpop.f32.mrb[0].mxu0
        %v8138 = vadd.f32 0.0, %v8137
        %v8139 = vpop.f32.mrb[0].mxu0
        %8140 = vmatprep.mubr.bf16.mxu0 0
        %8141 = vmatmul.mubr.bf16.gmra.mrb[0].mxu0 %v8043
        %v8142 = vpop.f32.mrb[0].mxu0
        %v8143 = vadd.f32 0.0, %v8142
        %v8144 = vpop.f32.mrb[0].mxu0
        %v8145 = vpop.f32.mrb[0].mxu0
        %v8146 = vadd.f32 0.0, %v8145
        %v8147 = vpop.f32.mrb[0].mxu0
        %8148 = vmatprep.mubr.bf16.mxu0 0
        %8149 = vmatmul.mubr.bf16.gmra.mrb[0].mxu0 %v8046
        %v8150 = vpop.f32.mrb[0].mxu0
        %v8151 = vadd.f32 0.0, %v8150
        %v8152 = vpop.f32.mrb[0].mxu0
        %v8153 = vpop.f32.mrb[0].mxu0
        %v8154 = vadd.f32 0.0, %v8153
        %v8155 = vpop.f32.mrb[0].mxu0
        %8156 = vmatprep.mubr.bf16.mxu0 0
        %8157 = vmatmul.mubr.bf16.gmra.mrb[0].mxu0 %v8049
        %v8158 = vpop.f32.mrb[0].mxu0
        %v8159 = vadd.f32 0.0, %v8158
        %v8160 = vpop.f32.mrb[0].mxu0
        %v8161 = vpop.f32.mrb[0].mxu0
        %v8162 = vadd.f32 0.0, %v8161
        %v8163 = vpop.f32.mrb[0].mxu0
        %8164 = vmatprep.mubr.bf16.mxu0 0
        %8165 = vmatmul.mubr.bf16.gmra.mrb[0].mxu0 %v8052
        %v8166 = vpop.f32.mrb[0].mxu0
        %v8167 = vadd.f32 0.0, %v8166
        %v8168 = vpop.f32.mrb[0].mxu0
        %v8169 = vpop.f32.mrb[0].mxu0
        %v8170 = vadd.f32 0.0, %v8169
        %v8171 = vpop.f32.mrb[0].mxu0
        %8172 = vmatprep.mubr.bf16.mxu0 0
        %8173 = vmatmul.mubr.bf16.gmra.mrb[0].mxu0 %v8055
        %v8174 = vpop.f32.mrb[0].mxu0
        %v8175 = vadd.f32 0.0, %v8174
        %v8176 = vpop.f32.mrb[0].mxu0
        %v8177 = vpop.f32.mrb[0].mxu0
        %v8178 = vadd.f32 0.0, %v8177
        %v8179 = vpop.f32.mrb[0].mxu0
        %8180 = vmatprep.mubr.bf16.mxu0 0
        %8181 = vmatmul.mubr.bf16.gmra.mrb[0].mxu0 %v8058
        %v8182 = vpop.f32.mrb[0].mxu0
        %v8183 = vadd.f32 0.0, %v8182
        %v8184 = vpop.f32.mrb[0].mxu0
        %v8185 = vpop.f32.mrb[0].mxu0
        %v8186 = vadd.f32 0.0, %v8185
        %v8187 = vpop.f32.mrb[0].mxu0
        %8188 = vmatprep.mubr.bf16.mxu0 0
        %8189 = vmatmul.mubr.bf16.gmra.mrb[0].mxu0 %v8061
        %v8190 = vpop.f32.mrb[0].mxu0
        %v8191 = vadd.f32 0.0, %v8190
        %v8192 = vpop.f32.mrb[0].mxu0
        %v8193 = vpop.f32.mrb[0].mxu0
        %v8194 = vadd.f32 0.0, %v8193
        %v8195 = vpop.f32.mrb[0].mxu0
        %8196 = vmatprep.mubr.bf16.mxu0 0
        %8197 = vmatmul.mubr.bf16.gmra.mrb[0].mxu0 %v8064
        %v8198 = vpop.f32.mrb[0].mxu0
        %v8199 = vadd.f32 0.0, %v8198
        %v8200 = vpop.f32.mrb[0].mxu0
        %v8201 = vpop.f32.mrb[0].mxu0
        %v8202 = vadd.f32 0.0, %v8201
        %v8203 = vpop.f32.mrb[0].mxu0
        %8204 = vmatprep.mubr.bf16.mxu0 0
        %8205 = vmatmul.mubr.bf16.gmra.mrb[0].mxu0 %v8067
        %v8206 = vpop.f32.mrb[0].mxu0
        %v8207 = vadd.f32 0.0, %v8206
        %v8208 = vpop.f32.mrb[0].mxu0
        %v8209 = vpop.f32.mrb[0].mxu0
        %v8210 = vadd.f32 0.0, %v8209
        %v8211 = vpop.f32.mrb[0].mxu0
        %8212 = vmatprep.mubr.bf16.mxu0 0
        %8213 = vmatmul.mubr.bf16.gmra.mrb[0].mxu0 %v8070
        %v8214 = vpop.f32.mrb[0].mxu0
        %v8215 = vadd.f32 0.0, %v8214
        %v8216 = vpop.f32.mrb[0].mxu0
        %v8217 = vpop.f32.mrb[0].mxu0
        %v8218 = vadd.f32 0.0, %v8217
        %v8219 = vpop.f32.mrb[0].mxu0
        %8220 = vmatprep.mubr.bf16.mxu0 0
        %8221 = vmatmul.mubr.bf16.gmra.mrb[0].mxu0 %v8073
        %v8222 = vpop.f32.mrb[0].mxu0
        %v8223 = vadd.f32 0.0, %v8222
        %v8224 = vpop.f32.mrb[0].mxu0
        %v8225 = vpop.f32.mrb[0].mxu0
        %v8226 = vadd.f32 0.0, %v8225
        %v8227 = vpop.f32.mrb[0].mxu0
        %8228 = vmatprep.mubr.bf16.mxu0 0
        %8229 = vmatmul.mubr.bf16.gmra.mrb[0].mxu0 %v8076
        %v8230 = vpop.f32.mrb[0].mxu0
        %v8231 = vadd.f32 0.0, %v8230
        %v8232 = vpop.f32.mrb[0].mxu0
        %v8233 = vpop.f32.mrb[0].mxu0
        %v8234 = vadd.f32 0.0, %v8233
        %v8235 = vpop.f32.mrb[0].mxu0
        %8236 = vmatprep.mubr.bf16.mxu0 0
        %8237 = vmatmul.mubr.bf16.gmra.mrb[0].mxu0 %v8079
        %v8238 = vpop.f32.mrb[0].mxu0
        %v8239 = vadd.f32 0.0, %v8238
        %v8240 = vpop.f32.mrb[0].mxu0
        %v8241 = vpop.f32.mrb[0].mxu0
        %v8242 = vadd.f32 0.0, %v8241
        %v8243 = vpop.f32.mrb[0].mxu0
        %8244 = vdwg.mxu0
        %v8245 = vadd.f32 %v7775, %v8119
        %v8246 = vadd.f32 %v7776, %v8122
        %v8247 = vadd.f32 %v7777, %v8127
        %v8248 = vadd.f32 %v7778, %v8130
        %v8249 = vadd.f32 %v7779, %v8135
        %v8250 = vadd.f32 %v7780, %v8138
        %v8251 = vadd.f32 %v7781, %v8143
        %v8252 = vadd.f32 %v7782, %v8146
        %v8253 = vadd.f32 %v7783, %v8151
        %v8254 = vadd.f32 %v7784, %v8154
        %v8255 = vadd.f32 %v7785, %v8159
        %v8256 = vadd.f32 %v7786, %v8162
        %v8257 = vadd.f32 %v7787, %v8167
        %v8258 = vadd.f32 %v7788, %v8170
        %v8259 = vadd.f32 %v7789, %v8175
        %v8260 = vadd.f32 %v7790, %v8178
        %v8261 = vadd.f32 %v7791, %v8183
        %v8262 = vadd.f32 %v7792, %v8186
        %v8263 = vadd.f32 %v7793, %v8191
        %v8264 = vadd.f32 %v7794, %v8194
        %v8265 = vadd.f32 %v7795, %v8199
        %v8266 = vadd.f32 %v7796, %v8202
        %v8267 = vadd.f32 %v7797, %v8207
        %v8268 = vadd.f32 %v7798, %v8210
        %v8269 = vadd.f32 %v7799, %v8215
        %v8270 = vadd.f32 %v7800, %v8218
        %v8271 = vadd.f32 %v7801, %v8223
        %v8272 = vadd.f32 %v7802, %v8226
        %v8273 = vadd.f32 %v7803, %v8231
        %v8274 = vadd.f32 %v7804, %v8234
        %v8275 = vadd.f32 %v7805, %v8239
        %v8276 = vadd.f32 %v7806, %v8242
        %v8277 = vld [vmem:[%s749] sm:$0xf]
        %v8278 = vld [vmem:[%s749 + $0x4] sm:$0xf]
        %v8279 = vld [vmem:[%s749 + $0xc] sm:$0xf]
        %v8280 = vld [vmem:[%s749 + $0x10] sm:$0xf]
        %v8281 = vld [vmem:[%s749 + $0x18] sm:$0xf]
        %v8282 = vld [vmem:[%s749 + $0x1c] sm:$0xf]
        %v8283 = vld [vmem:[%s749 + $0x24] sm:$0xf]
        %v8284 = vld [vmem:[%s749 + $0x28] sm:$0xf]
        %v8285 = vld [vmem:[%s749 + $0x30] sm:$0xf]
        %v8286 = vld [vmem:[%s749 + $0x34] sm:$0xf]
        %v8287 = vld [vmem:[%s749 + $0x3c] sm:$0xf]
        %v8288 = vld [vmem:[%s749 + $0x40] sm:$0xf]
        %v8289 = vld [vmem:[%s749 + $0x48] sm:$0xf]
        %v8290 = vld [vmem:[%s749 + $0x4c] sm:$0xf]
        %v8291 = vld [vmem:[%s749 + $0x54] sm:$0xf]
        %v8292 = vld [vmem:[%s749 + $0x58] sm:$0xf]
        %v8293 = vld [vmem:[%s749 + $0x60] sm:$0xf]
        %v8294 = vld [vmem:[%s749 + $0x64] sm:$0xf]
        %v8295 = vld [vmem:[%s749 + $0x6c] sm:$0xf]
        %v8296 = vld [vmem:[%s749 + $0x70] sm:$0xf]
        %v8297 = vld [vmem:[%s749 + $0x78] sm:$0xf]
        %v8298 = vld [vmem:[%s749 + $0x7c] sm:$0xf]
        %v8299 = vld [vmem:[%s749 + $0x84] sm:$0xf]
        %v8300 = vld [vmem:[%s749 + $0x88] sm:$0xf]
        %v8301 = vld [vmem:[%s749 + $0x90] sm:$0xf]
        %v8302 = vld [vmem:[%s749 + $0x94] sm:$0xf]
        %v8303 = vld [vmem:[%s749 + $0x9c] sm:$0xf]
        %v8304 = vld [vmem:[%s749 + $0xa0] sm:$0xf]
        %v8305 = vld [vmem:[%s749 + $0xa8] sm:$0xf]
        %v8306 = vld [vmem:[%s749 + $0xac] sm:$0xf]
        %v8307 = vld [vmem:[%s749 + $0xb4] sm:$0xf]
        %v8308 = vld [vmem:[%s749 + $0xb8] sm:$0xf]
        %s8309 = scalar_lea.vmem [#allocation9], 6
        %v8310 = vld [vmem:[%s8309] sm:$0x3]
        %v8343 = vunpack.c.l.b16 %v8277
        %v8344 = vunpack.c.l.b16 %v8278
        %v8345 = vunpack.c.l.b16 %v8279
        %v8346 = vunpack.c.l.b16 %v8280
        %v8347 = vunpack.c.l.b16 %v8281
        %v8348 = vunpack.c.l.b16 %v8282
        %v8349 = vunpack.c.l.b16 %v8283
        %v8350 = vunpack.c.l.b16 %v8284
        %v8351 = vunpack.c.l.b16 %v8285
        %v8352 = vunpack.c.l.b16 %v8286
        %v8353 = vunpack.c.l.b16 %v8287
        %v8354 = vunpack.c.l.b16 %v8288
        %v8355 = vunpack.c.l.b16 %v8289
        %v8356 = vunpack.c.l.b16 %v8290
        %v8357 = vunpack.c.l.b16 %v8291
        %v8358 = vunpack.c.l.b16 %v8292
        %v8359 = vunpack.c.l.b16 %v8293
        %v8360 = vunpack.c.l.b16 %v8294
        %v8361 = vunpack.c.l.b16 %v8295
        %v8362 = vunpack.c.l.b16 %v8296
        %v8363 = vunpack.c.l.b16 %v8297
        %v8364 = vunpack.c.l.b16 %v8298
        %v8365 = vunpack.c.l.b16 %v8299
        %v8366 = vunpack.c.l.b16 %v8300
        %v8367 = vunpack.c.l.b16 %v8301
        %v8368 = vunpack.c.l.b16 %v8302
        %v8369 = vunpack.c.l.b16 %v8303
        %v8370 = vunpack.c.l.b16 %v8304
        %v8371 = vunpack.c.l.b16 %v8305
        %v8372 = vunpack.c.l.b16 %v8306
        %v8373 = vunpack.c.l.b16 %v8307
        %v8374 = vunpack.c.l.b16 %v8308
        %v8375 = vpack.c.b16 %v8344, %v8343
        %v8376 = vpack.c.b16 %v8346, %v8345
        %v8377 = vpack.c.b16 %v8348, %v8347
        %v8378 = vpack.c.b16 %v8350, %v8349
        %v8379 = vpack.c.b16 %v8352, %v8351
        %v8380 = vpack.c.b16 %v8354, %v8353
        %v8381 = vpack.c.b16 %v8356, %v8355
        %v8382 = vpack.c.b16 %v8358, %v8357
        %v8383 = vpack.c.b16 %v8360, %v8359
        %v8384 = vpack.c.b16 %v8362, %v8361
        %v8385 = vpack.c.b16 %v8364, %v8363
        %v8386 = vpack.c.b16 %v8366, %v8365
        %v8387 = vpack.c.b16 %v8368, %v8367
        %v8388 = vpack.c.b16 %v8370, %v8369
        %v8389 = vpack.c.b16 %v8372, %v8371
        %v8390 = vpack.c.b16 %v8374, %v8373
        %v8392 = vsel %vm1208, %v8375, 0
        %v8395 = vsel %vm1208, %v8376, 0
        %v8398 = vsel %vm1208, %v8377, 0
        %v8401 = vsel %vm1208, %v8378, 0
        %v8404 = vsel %vm1208, %v8379, 0
        %v8407 = vsel %vm1208, %v8380, 0
        %v8410 = vsel %vm1208, %v8381, 0
        %v8413 = vsel %vm1208, %v8382, 0
        %v8416 = vsel %vm1208, %v8383, 0
        %v8419 = vsel %vm1208, %v8384, 0
        %v8422 = vsel %vm1208, %v8385, 0
        %v8425 = vsel %vm1208, %v8386, 0
        %v8428 = vsel %vm1208, %v8387, 0
        %v8431 = vsel %vm1208, %v8388, 0
        %v8434 = vsel %vm1208, %v8389, 0
        %v8437 = vsel %vm1208, %v8390, 0
        %v8440 = vsel %vm1257, %v8310, 0
        %8442 = vmatprep.subr.bf16.mxu0 0
        %8443 = vmatpush1.bf16.msra.mxu0 %v8440
        %8444 = vmatprep.subr.bf16.mxu0 0
        %8445 = vmatpush1.bf16.msra.mxu0 0
        %8446 = vmatprep.subr.bf16.mxu0 0
        %8447 = vmatpush1.bf16.msra.mxu0 0
        %8448 = vmatprep.subr.bf16.mxu0 0
        %8449 = vmatpush1.bf16.msra.mxu0 0
        %8450 = vmatprep.subr.bf16.mxu0 0
        %8451 = vmatpush1.bf16.msra.mxu0 0
        %8452 = vmatprep.subr.bf16.mxu0 0
        %8453 = vmatpush1.bf16.msra.mxu0 0
        %8454 = vmatprep.subr.bf16.mxu0 0
        %8455 = vmatpush1.bf16.msra.mxu0 0
        %8456 = vmatprep.subr.bf16.mxu0 0
        %8457 = vmatpush1.bf16.msra.mxu0 0
        %8458 = vmatprep.subr.bf16.mxu0 0
        %8459 = vmatpush1.bf16.msra.mxu0 0
        %8460 = vmatprep.subr.bf16.mxu0 0
        %8461 = vmatpush1.bf16.msra.mxu0 0
        %8462 = vmatprep.subr.bf16.mxu0 0
        %8463 = vmatpush1.bf16.msra.mxu0 0
        %8464 = vmatprep.subr.bf16.mxu0 0
        %8465 = vmatpush1.bf16.msra.mxu0 0
        %8466 = vmatprep.subr.bf16.mxu0 0
        %8467 = vmatpush1.bf16.msra.mxu0 0
        %8468 = vmatprep.subr.bf16.mxu0 0
        %8469 = vmatpush1.bf16.msra.mxu0 0
        %8470 = vmatprep.subr.bf16.mxu0 0
        %8471 = vmatpush1.bf16.msra.mxu0 0
        %8472 = vmatprep.subr.bf16.mxu0 0
        %8473 = vmatpush1.bf16.msra.mxu0 0
        %8474 = vmatprep.mubr.bf16.mxu0 0
        %8475 = vmatmul.mubr.bf16.gmra.mrb[0].mxu0 %v8392
        %v8476 = vpop.f32.mrb[0].mxu0
        %v8477 = vadd.f32 0.0, %v8476
        %v8478 = vpop.f32.mrb[0].mxu0
        %v8479 = vpop.f32.mrb[0].mxu0
        %v8480 = vadd.f32 0.0, %v8479
        %v8481 = vpop.f32.mrb[0].mxu0
        %8482 = vmatprep.mubr.bf16.mxu0 0
        %8483 = vmatmul.mubr.bf16.gmra.mrb[0].mxu0 %v8395
        %v8484 = vpop.f32.mrb[0].mxu0
        %v8485 = vadd.f32 0.0, %v8484
        %v8486 = vpop.f32.mrb[0].mxu0
        %v8487 = vpop.f32.mrb[0].mxu0
        %v8488 = vadd.f32 0.0, %v8487
        %v8489 = vpop.f32.mrb[0].mxu0
        %8490 = vmatprep.mubr.bf16.mxu0 0
        %8491 = vmatmul.mubr.bf16.gmra.mrb[0].mxu0 %v8398
        %v8492 = vpop.f32.mrb[0].mxu0
        %v8493 = vadd.f32 0.0, %v8492
        %v8494 = vpop.f32.mrb[0].mxu0
        %v8495 = vpop.f32.mrb[0].mxu0
        %v8496 = vadd.f32 0.0, %v8495
        %v8497 = vpop.f32.mrb[0].mxu0
        %8498 = vmatprep.mubr.bf16.mxu0 0
        %8499 = vmatmul.mubr.bf16.gmra.mrb[0].mxu0 %v8401
        %v8500 = vpop.f32.mrb[0].mxu0
        %v8501 = vadd.f32 0.0, %v8500
        %v8502 = vpop.f32.mrb[0].mxu0
        %v8503 = vpop.f32.mrb[0].mxu0
        %v8504 = vadd.f32 0.0, %v8503
        %v8505 = vpop.f32.mrb[0].mxu0
        %8506 = vmatprep.mubr.bf16.mxu0 0
        %8507 = vmatmul.mubr.bf16.gmra.mrb[0].mxu0 %v8404
        %v8508 = vpop.f32.mrb[0].mxu0
        %v8509 = vadd.f32 0.0, %v8508
        %v8510 = vpop.f32.mrb[0].mxu0
        %v8511 = vpop.f32.mrb[0].mxu0
        %v8512 = vadd.f32 0.0, %v8511
        %v8513 = vpop.f32.mrb[0].mxu0
        %8514 = vmatprep.mubr.bf16.mxu0 0
        %8515 = vmatmul.mubr.bf16.gmra.mrb[0].mxu0 %v8407
        %v8516 = vpop.f32.mrb[0].mxu0
        %v8517 = vadd.f32 0.0, %v8516
        %v8518 = vpop.f32.mrb[0].mxu0
        %v8519 = vpop.f32.mrb[0].mxu0
        %v8520 = vadd.f32 0.0, %v8519
        %v8521 = vpop.f32.mrb[0].mxu0
        %8522 = vmatprep.mubr.bf16.mxu0 0
        %8523 = vmatmul.mubr.bf16.gmra.mrb[0].mxu0 %v8410
        %v8524 = vpop.f32.mrb[0].mxu0
        %v8525 = vadd.f32 0.0, %v8524
        %v8526 = vpop.f32.mrb[0].mxu0
        %v8527 = vpop.f32.mrb[0].mxu0
        %v8528 = vadd.f32 0.0, %v8527
        %v8529 = vpop.f32.mrb[0].mxu0
        %8530 = vmatprep.mubr.bf16.mxu0 0
        %8531 = vmatmul.mubr.bf16.gmra.mrb[0].mxu0 %v8413
        %v8532 = vpop.f32.mrb[0].mxu0
        %v8533 = vadd.f32 0.0, %v8532
        %v8534 = vpop.f32.mrb[0].mxu0
        %v8535 = vpop.f32.mrb[0].mxu0
        %v8536 = vadd.f32 0.0, %v8535
        %v8537 = vpop.f32.mrb[0].mxu0
        %8538 = vmatprep.mubr.bf16.mxu0 0
        %8539 = vmatmul.mubr.bf16.gmra.mrb[0].mxu0 %v8416
        %v8540 = vpop.f32.mrb[0].mxu0
        %v8541 = vadd.f32 0.0, %v8540
        %v8542 = vpop.f32.mrb[0].mxu0
        %v8543 = vpop.f32.mrb[0].mxu0
        %v8544 = vadd.f32 0.0, %v8543
        %v8545 = vpop.f32.mrb[0].mxu0
        %8546 = vmatprep.mubr.bf16.mxu0 0
        %8547 = vmatmul.mubr.bf16.gmra.mrb[0].mxu0 %v8419
        %v8548 = vpop.f32.mrb[0].mxu0
        %v8549 = vadd.f32 0.0, %v8548
        %v8550 = vpop.f32.mrb[0].mxu0
        %v8551 = vpop.f32.mrb[0].mxu0
        %v8552 = vadd.f32 0.0, %v8551
        %v8553 = vpop.f32.mrb[0].mxu0
        %8554 = vmatprep.mubr.bf16.mxu0 0
        %8555 = vmatmul.mubr.bf16.gmra.mrb[0].mxu0 %v8422
        %v8556 = vpop.f32.mrb[0].mxu0
        %v8557 = vadd.f32 0.0, %v8556
        %v8558 = vpop.f32.mrb[0].mxu0
        %v8559 = vpop.f32.mrb[0].mxu0
        %v8560 = vadd.f32 0.0, %v8559
        %v8561 = vpop.f32.mrb[0].mxu0
        %8562 = vmatprep.mubr.bf16.mxu0 0
        %8563 = vmatmul.mubr.bf16.gmra.mrb[0].mxu0 %v8425
        %v8564 = vpop.f32.mrb[0].mxu0
        %v8565 = vadd.f32 0.0, %v8564
        %v8566 = vpop.f32.mrb[0].mxu0
        %v8567 = vpop.f32.mrb[0].mxu0
        %v8568 = vadd.f32 0.0, %v8567
        %v8569 = vpop.f32.mrb[0].mxu0
        %8570 = vmatprep.mubr.bf16.mxu0 0
        %8571 = vmatmul.mubr.bf16.gmra.mrb[0].mxu0 %v8428
        %v8572 = vpop.f32.mrb[0].mxu0
        %v8573 = vadd.f32 0.0, %v8572
        %v8574 = vpop.f32.mrb[0].mxu0
        %v8575 = vpop.f32.mrb[0].mxu0
        %v8576 = vadd.f32 0.0, %v8575
        %v8577 = vpop.f32.mrb[0].mxu0
        %8578 = vmatprep.mubr.bf16.mxu0 0
        %8579 = vmatmul.mubr.bf16.gmra.mrb[0].mxu0 %v8431
        %v8580 = vpop.f32.mrb[0].mxu0
        %v8581 = vadd.f32 0.0, %v8580
        %v8582 = vpop.f32.mrb[0].mxu0
        %v8583 = vpop.f32.mrb[0].mxu0
        %v8584 = vadd.f32 0.0, %v8583
        %v8585 = vpop.f32.mrb[0].mxu0
        %8586 = vmatprep.mubr.bf16.mxu0 0
        %8587 = vmatmul.mubr.bf16.gmra.mrb[0].mxu0 %v8434
        %v8588 = vpop.f32.mrb[0].mxu0
        %v8589 = vadd.f32 0.0, %v8588
        %v8590 = vpop.f32.mrb[0].mxu0
        %v8591 = vpop.f32.mrb[0].mxu0
        %v8592 = vadd.f32 0.0, %v8591
        %v8593 = vpop.f32.mrb[0].mxu0
        %8594 = vmatprep.mubr.bf16.mxu0 0
        %8595 = vmatmul.mubr.bf16.gmra.mrb[0].mxu0 %v8437
        %v8596 = vpop.f32.mrb[0].mxu0
        %v8597 = vadd.f32 0.0, %v8596
        %v8598 = vpop.f32.mrb[0].mxu0
        %v8599 = vpop.f32.mrb[0].mxu0
        %v8600 = vadd.f32 0.0, %v8599
        %v8601 = vpop.f32.mrb[0].mxu0
        %8602 = vdwg.mxu0
        %v8603 = vadd.f32 %v8245, %v8477
        %v8604 = vadd.f32 %v8246, %v8480
        %v8605 = vadd.f32 %v8247, %v8485
        %v8606 = vadd.f32 %v8248, %v8488
        %v8607 = vadd.f32 %v8249, %v8493
        %v8608 = vadd.f32 %v8250, %v8496
        %v8609 = vadd.f32 %v8251, %v8501
        %v8610 = vadd.f32 %v8252, %v8504
        %v8611 = vadd.f32 %v8253, %v8509
        %v8612 = vadd.f32 %v8254, %v8512
        %v8613 = vadd.f32 %v8255, %v8517
        %v8614 = vadd.f32 %v8256, %v8520
        %v8615 = vadd.f32 %v8257, %v8525
        %v8616 = vadd.f32 %v8258, %v8528
        %v8617 = vadd.f32 %v8259, %v8533
        %v8618 = vadd.f32 %v8260, %v8536
        %v8619 = vadd.f32 %v8261, %v8541
        %v8620 = vadd.f32 %v8262, %v8544
        %v8621 = vadd.f32 %v8263, %v8549
        %v8622 = vadd.f32 %v8264, %v8552
        %v8623 = vadd.f32 %v8265, %v8557
        %v8624 = vadd.f32 %v8266, %v8560
        %v8625 = vadd.f32 %v8267, %v8565
        %v8626 = vadd.f32 %v8268, %v8568
        %v8627 = vadd.f32 %v8269, %v8573
        %v8628 = vadd.f32 %v8270, %v8576
        %v8629 = vadd.f32 %v8271, %v8581
        %v8630 = vadd.f32 %v8272, %v8584
        %v8631 = vadd.f32 %v8273, %v8589
        %v8632 = vadd.f32 %v8274, %v8592
        %v8633 = vadd.f32 %v8275, %v8597
        %v8634 = vadd.f32 %v8276, %v8600
        %v8635 = vld [vmem:[%s749] sm:$0xf]
        %v8636 = vld [vmem:[%s749 + $0x4] sm:$0xf]
        %v8637 = vld [vmem:[%s749 + $0x8] sm:$0x1]
        %v8638 = vld [vmem:[%s749 + $0xc] sm:$0xf]
        %v8639 = vld [vmem:[%s749 + $0x10] sm:$0xf]
        %v8640 = vld [vmem:[%s749 + $0x14] sm:$0x1]
        %v8641 = vld [vmem:[%s749 + $0x18] sm:$0xf]
        %v8642 = vld [vmem:[%s749 + $0x1c] sm:$0xf]
        %v8643 = vld [vmem:[%s749 + $0x20] sm:$0x1]
        %v8644 = vld [vmem:[%s749 + $0x24] sm:$0xf]
        %v8645 = vld [vmem:[%s749 + $0x28] sm:$0xf]
        %v8646 = vld [vmem:[%s749 + $0x2c] sm:$0x1]
        %v8647 = vld [vmem:[%s749 + $0x30] sm:$0xf]
        %v8648 = vld [vmem:[%s749 + $0x34] sm:$0xf]
        %v8649 = vld [vmem:[%s749 + $0x38] sm:$0x1]
        %v8650 = vld [vmem:[%s749 + $0x3c] sm:$0xf]
        %v8651 = vld [vmem:[%s749 + $0x40] sm:$0xf]
        %v8652 = vld [vmem:[%s749 + $0x44] sm:$0x1]
        %v8653 = vld [vmem:[%s749 + $0x48] sm:$0xf]
        %v8654 = vld [vmem:[%s749 + $0x4c] sm:$0xf]
        %v8655 = vld [vmem:[%s749 + $0x50] sm:$0x1]
        %v8656 = vld [vmem:[%s749 + $0x54] sm:$0xf]
        %v8657 = vld [vmem:[%s749 + $0x58] sm:$0xf]
        %v8658 = vld [vmem:[%s749 + $0x5c] sm:$0x1]
        %v8659 = vld [vmem:[%s749 + $0x60] sm:$0xf]
        %v8660 = vld [vmem:[%s749 + $0x64] sm:$0xf]
        %v8661 = vld [vmem:[%s749 + $0x68] sm:$0x1]
        %v8662 = vld [vmem:[%s749 + $0x6c] sm:$0xf]
        %v8663 = vld [vmem:[%s749 + $0x70] sm:$0xf]
        %v8664 = vld [vmem:[%s749 + $0x74] sm:$0x1]
        %v8665 = vld [vmem:[%s749 + $0x78] sm:$0xf]
        %v8666 = vld [vmem:[%s749 + $0x7c] sm:$0xf]
        %v8667 = vld [vmem:[%s749 + $0x80] sm:$0x1]
        %v8668 = vld [vmem:[%s749 + $0x84] sm:$0xf]
        %v8669 = vld [vmem:[%s749 + $0x88] sm:$0xf]
        %v8670 = vld [vmem:[%s749 + $0x8c] sm:$0x1]
        %v8671 = vld [vmem:[%s749 + $0x90] sm:$0xf]
        %v8672 = vld [vmem:[%s749 + $0x94] sm:$0xf]
        %v8673 = vld [vmem:[%s749 + $0x98] sm:$0x1]
        %v8674 = vld [vmem:[%s749 + $0x9c] sm:$0xf]
        %v8675 = vld [vmem:[%s749 + $0xa0] sm:$0xf]
        %v8676 = vld [vmem:[%s749 + $0xa4] sm:$0x1]
        %v8677 = vld [vmem:[%s749 + $0xa8] sm:$0xf]
        %v8678 = vld [vmem:[%s749 + $0xac] sm:$0xf]
        %v8679 = vld [vmem:[%s749 + $0xb0] sm:$0x1]
        %v8680 = vld [vmem:[%s749 + $0xb4] sm:$0xf]
        %v8681 = vld [vmem:[%s749 + $0xb8] sm:$0xf]
        %v8682 = vld [vmem:[%s749 + $0xbc] sm:$0x1]
        %v8684 = vshrl.u32 %v8635, 16
        %v8686 = vrot.slane %v8684, 4
        %v8687 = vshll.u32 %v8635, 16
        %v8689 = vrot.slane %v8687, 5
        %v8690 = vor.u32 %v8686, %v8689
        %v8691 = vrot.slane %v8690, 4
        %v8693 = vshll.u32 %v8636, 16
        %v8695 = vrot.slane %v8693, 5
        %v8696 = vsel %vm1472, %v8691, %v8695
        %v8697 = vshrl.u32 %v8636, 16
        %v8699 = vrot.slane %v8697, 4
        %v8700 = vor.u32 %v8699, %v8695
        %v8701 = vrot.slane %v8700, 4
        %v8703 = vshll.u32 %v8637, 16
        %v8705 = vrot.slane %v8703, 5
        %v8706 = vsel %vm1472, %v8701, %v8705
        %v8708 = vshrl.u32 %v8638, 16
        %v8710 = vrot.slane %v8708, 4
        %v8711 = vshll.u32 %v8638, 16
        %v8713 = vrot.slane %v8711, 5
        %v8714 = vor.u32 %v8710, %v8713
        %v8715 = vrot.slane %v8714, 4
        %v8717 = vshll.u32 %v8639, 16
        %v8719 = vrot.slane %v8717, 5
        %v8720 = vsel %vm1472, %v8715, %v8719
        %v8721 = vshrl.u32 %v8639, 16
        %v8723 = vrot.slane %v8721, 4
        %v8724 = vor.u32 %v8723, %v8719
        %v8725 = vrot.slane %v8724, 4
        %v8727 = vshll.u32 %v8640, 16
        %v8729 = vrot.slane %v8727, 5
        %v8730 = vsel %vm1472, %v8725, %v8729
        %v8732 = vshrl.u32 %v8641, 16
        %v8734 = vrot.slane %v8732, 4
        %v8735 = vshll.u32 %v8641, 16
        %v8737 = vrot.slane %v8735, 5
        %v8738 = vor.u32 %v8734, %v8737
        %v8739 = vrot.slane %v8738, 4
        %v8741 = vshll.u32 %v8642, 16
        %v8743 = vrot.slane %v8741, 5
        %v8744 = vsel %vm1472, %v8739, %v8743
        %v8745 = vshrl.u32 %v8642, 16
        %v8747 = vrot.slane %v8745, 4
        %v8748 = vor.u32 %v8747, %v8743
        %v8749 = vrot.slane %v8748, 4
        %v8751 = vshll.u32 %v8643, 16
        %v8753 = vrot.slane %v8751, 5
        %v8754 = vsel %vm1472, %v8749, %v8753
        %v8756 = vshrl.u32 %v8644, 16
        %v8758 = vrot.slane %v8756, 4
        %v8759 = vshll.u32 %v8644, 16
        %v8761 = vrot.slane %v8759, 5
        %v8762 = vor.u32 %v8758, %v8761
        %v8763 = vrot.slane %v8762, 4
        %v8765 = vshll.u32 %v8645, 16
        %v8767 = vrot.slane %v8765, 5
        %v8768 = vsel %vm1472, %v8763, %v8767
        %v8769 = vshrl.u32 %v8645, 16
        %v8771 = vrot.slane %v8769, 4
        %v8772 = vor.u32 %v8771, %v8767
        %v8773 = vrot.slane %v8772, 4
        %v8775 = vshll.u32 %v8646, 16
        %v8777 = vrot.slane %v8775, 5
        %v8778 = vsel %vm1472, %v8773, %v8777
        %v8780 = vshrl.u32 %v8647, 16
        %v8782 = vrot.slane %v8780, 4
        %v8783 = vshll.u32 %v8647, 16
        %v8785 = vrot.slane %v8783, 5
        %v8786 = vor.u32 %v8782, %v8785
        %v8787 = vrot.slane %v8786, 4
        %v8789 = vshll.u32 %v8648, 16
        %v8791 = vrot.slane %v8789, 5
        %v8792 = vsel %vm1472, %v8787, %v8791
        %v8793 = vshrl.u32 %v8648, 16
        %v8795 = vrot.slane %v8793, 4
        %v8796 = vor.u32 %v8795, %v8791
        %v8797 = vrot.slane %v8796, 4
        %v8799 = vshll.u32 %v8649, 16
        %v8801 = vrot.slane %v8799, 5
        %v8802 = vsel %vm1472, %v8797, %v8801
        %v8804 = vshrl.u32 %v8650, 16
        %v8806 = vrot.slane %v8804, 4
        %v8807 = vshll.u32 %v8650, 16
        %v8809 = vrot.slane %v8807, 5
        %v8810 = vor.u32 %v8806, %v8809
        %v8811 = vrot.slane %v8810, 4
        %v8813 = vshll.u32 %v8651, 16
        %v8815 = vrot.slane %v8813, 5
        %v8816 = vsel %vm1472, %v8811, %v8815
        %v8817 = vshrl.u32 %v8651, 16
        %v8819 = vrot.slane %v8817, 4
        %v8820 = vor.u32 %v8819, %v8815
        %v8821 = vrot.slane %v8820, 4
        %v8823 = vshll.u32 %v8652, 16
        %v8825 = vrot.slane %v8823, 5
        %v8826 = vsel %vm1472, %v8821, %v8825
        %v8828 = vshrl.u32 %v8653, 16
        %v8830 = vrot.slane %v8828, 4
        %v8831 = vshll.u32 %v8653, 16
        %v8833 = vrot.slane %v8831, 5
        %v8834 = vor.u32 %v8830, %v8833
        %v8835 = vrot.slane %v8834, 4
        %v8837 = vshll.u32 %v8654, 16
        %v8839 = vrot.slane %v8837, 5
        %v8840 = vsel %vm1472, %v8835, %v8839
        %v8841 = vshrl.u32 %v8654, 16
        %v8843 = vrot.slane %v8841, 4
        %v8844 = vor.u32 %v8843, %v8839
        %v8845 = vrot.slane %v8844, 4
        %v8847 = vshll.u32 %v8655, 16
        %v8849 = vrot.slane %v8847, 5
        %v8850 = vsel %vm1472, %v8845, %v8849
        %v8852 = vshrl.u32 %v8656, 16
        %v8854 = vrot.slane %v8852, 4
        %v8855 = vshll.u32 %v8656, 16
        %v8857 = vrot.slane %v8855, 5
        %v8858 = vor.u32 %v8854, %v8857
        %v8859 = vrot.slane %v8858, 4
        %v8861 = vshll.u32 %v8657, 16
        %v8863 = vrot.slane %v8861, 5
        %v8864 = vsel %vm1472, %v8859, %v8863
        %v8865 = vshrl.u32 %v8657, 16
        %v8867 = vrot.slane %v8865, 4
        %v8868 = vor.u32 %v8867, %v8863
        %v8869 = vrot.slane %v8868, 4
        %v8871 = vshll.u32 %v8658, 16
        %v8873 = vrot.slane %v8871, 5
        %v8874 = vsel %vm1472, %v8869, %v8873
        %v8876 = vshrl.u32 %v8659, 16
        %v8878 = vrot.slane %v8876, 4
        %v8879 = vshll.u32 %v8659, 16
        %v8881 = vrot.slane %v8879, 5
        %v8882 = vor.u32 %v8878, %v8881
        %v8883 = vrot.slane %v8882, 4
        %v8885 = vshll.u32 %v8660, 16
        %v8887 = vrot.slane %v8885, 5
        %v8888 = vsel %vm1472, %v8883, %v8887
        %v8889 = vshrl.u32 %v8660, 16
        %v8891 = vrot.slane %v8889, 4
        %v8892 = vor.u32 %v8891, %v8887
        %v8893 = vrot.slane %v8892, 4
        %v8895 = vshll.u32 %v8661, 16
        %v8897 = vrot.slane %v8895, 5
        %v8898 = vsel %vm1472, %v8893, %v8897
        %v8900 = vshrl.u32 %v8662, 16
        %v8902 = vrot.slane %v8900, 4
        %v8903 = vshll.u32 %v8662, 16
        %v8905 = vrot.slane %v8903, 5
        %v8906 = vor.u32 %v8902, %v8905
        %v8907 = vrot.slane %v8906, 4
        %v8909 = vshll.u32 %v8663, 16
        %v8911 = vrot.slane %v8909, 5
        %v8912 = vsel %vm1472, %v8907, %v8911
        %v8913 = vshrl.u32 %v8663, 16
        %v8915 = vrot.slane %v8913, 4
        %v8916 = vor.u32 %v8915, %v8911
        %v8917 = vrot.slane %v8916, 4
        %v8919 = vshll.u32 %v8664, 16
        %v8921 = vrot.slane %v8919, 5
        %v8922 = vsel %vm1472, %v8917, %v8921
        %v8924 = vshrl.u32 %v8665, 16
        %v8926 = vrot.slane %v8924, 4
        %v8927 = vshll.u32 %v8665, 16
        %v8929 = vrot.slane %v8927, 5
        %v8930 = vor.u32 %v8926, %v8929
        %v8931 = vrot.slane %v8930, 4
        %v8933 = vshll.u32 %v8666, 16
        %v8935 = vrot.slane %v8933, 5
        %v8936 = vsel %vm1472, %v8931, %v8935
        %v8937 = vshrl.u32 %v8666, 16
        %v8939 = vrot.slane %v8937, 4
        %v8940 = vor.u32 %v8939, %v8935
        %v8941 = vrot.slane %v8940, 4
        %v8943 = vshll.u32 %v8667, 16
        %v8945 = vrot.slane %v8943, 5
        %v8946 = vsel %vm1472, %v8941, %v8945
        %v8948 = vshrl.u32 %v8668, 16
        %v8950 = vrot.slane %v8948, 4
        %v8951 = vshll.u32 %v8668, 16
        %v8953 = vrot.slane %v8951, 5
        %v8954 = vor.u32 %v8950, %v8953
        %v8955 = vrot.slane %v8954, 4
        %v8957 = vshll.u32 %v8669, 16
        %v8959 = vrot.slane %v8957, 5
        %v8960 = vsel %vm1472, %v8955, %v8959
        %v8961 = vshrl.u32 %v8669, 16
        %v8963 = vrot.slane %v8961, 4
        %v8964 = vor.u32 %v8963, %v8959
        %v8965 = vrot.slane %v8964, 4
        %v8967 = vshll.u32 %v8670, 16
        %v8969 = vrot.slane %v8967, 5
        %v8970 = vsel %vm1472, %v8965, %v8969
        %v8972 = vshrl.u32 %v8671, 16
        %v8974 = vrot.slane %v8972, 4
        %v8975 = vshll.u32 %v8671, 16
        %v8977 = vrot.slane %v8975, 5
        %v8978 = vor.u32 %v8974, %v8977
        %v8979 = vrot.slane %v8978, 4
        %v8981 = vshll.u32 %v8672, 16
        %v8983 = vrot.slane %v8981, 5
        %v8984 = vsel %vm1472, %v8979, %v8983
        %v8985 = vshrl.u32 %v8672, 16
        %v8987 = vrot.slane %v8985, 4
        %v8988 = vor.u32 %v8987, %v8983
        %v8989 = vrot.slane %v8988, 4
        %v8991 = vshll.u32 %v8673, 16
        %v8993 = vrot.slane %v8991, 5
        %v8994 = vsel %vm1472, %v8989, %v8993
        %v8996 = vshrl.u32 %v8674, 16
        %v8998 = vrot.slane %v8996, 4
        %v8999 = vshll.u32 %v8674, 16
        %v9001 = vrot.slane %v8999, 5
        %v9002 = vor.u32 %v8998, %v9001
        %v9003 = vrot.slane %v9002, 4
        %v9005 = vshll.u32 %v8675, 16
        %v9007 = vrot.slane %v9005, 5
        %v9008 = vsel %vm1472, %v9003, %v9007
        %v9009 = vshrl.u32 %v8675, 16
        %v9011 = vrot.slane %v9009, 4
        %v9012 = vor.u32 %v9011, %v9007
        %v9013 = vrot.slane %v9012, 4
        %v9015 = vshll.u32 %v8676, 16
        %v9017 = vrot.slane %v9015, 5
        %v9018 = vsel %vm1472, %v9013, %v9017
        %v9020 = vshrl.u32 %v8677, 16
        %v9022 = vrot.slane %v9020, 4
        %v9023 = vshll.u32 %v8677, 16
        %v9025 = vrot.slane %v9023, 5
        %v9026 = vor.u32 %v9022, %v9025
        %v9027 = vrot.slane %v9026, 4
        %v9029 = vshll.u32 %v8678, 16
        %v9031 = vrot.slane %v9029, 5
        %v9032 = vsel %vm1472, %v9027, %v9031
        %v9033 = vshrl.u32 %v8678, 16
        %v9035 = vrot.slane %v9033, 4
        %v9036 = vor.u32 %v9035, %v9031
        %v9037 = vrot.slane %v9036, 4
        %v9039 = vshll.u32 %v8679, 16
        %v9041 = vrot.slane %v9039, 5
        %v9042 = vsel %vm1472, %v9037, %v9041
        %v9044 = vshrl.u32 %v8680, 16
        %v9046 = vrot.slane %v9044, 4
        %v9047 = vshll.u32 %v8680, 16
        %v9049 = vrot.slane %v9047, 5
        %v9050 = vor.u32 %v9046, %v9049
        %v9051 = vrot.slane %v9050, 4
        %v9053 = vshll.u32 %v8681, 16
        %v9055 = vrot.slane %v9053, 5
        %v9056 = vsel %vm1472, %v9051, %v9055
        %v9057 = vshrl.u32 %v8681, 16
        %v9059 = vrot.slane %v9057, 4
        %v9060 = vor.u32 %v9059, %v9055
        %v9061 = vrot.slane %v9060, 4
        %v9063 = vshll.u32 %v8682, 16
        %v9065 = vrot.slane %v9063, 5
        %v9066 = vsel %vm1472, %v9061, %v9065
        %s9067 = scalar_lea.vmem [#allocation9], 8
        %v9068 = vld [vmem:[%s9067] sm:$0x3]
        %v9069 = vunpack.c.l.b16 %v8696
        %v9070 = vunpack.c.l.b16 %v8706
        %v9071 = vunpack.c.l.b16 %v8720
        %v9072 = vunpack.c.l.b16 %v8730
        %v9073 = vunpack.c.l.b16 %v8744
        %v9074 = vunpack.c.l.b16 %v8754
        %v9075 = vunpack.c.l.b16 %v8768
        %v9076 = vunpack.c.l.b16 %v8778
        %v9077 = vunpack.c.l.b16 %v8792
        %v9078 = vunpack.c.l.b16 %v8802
        %v9079 = vunpack.c.l.b16 %v8816
        %v9080 = vunpack.c.l.b16 %v8826
        %v9081 = vunpack.c.l.b16 %v8840
        %v9082 = vunpack.c.l.b16 %v8850
        %v9083 = vunpack.c.l.b16 %v8864
        %v9084 = vunpack.c.l.b16 %v8874
        %v9085 = vunpack.c.l.b16 %v8888
        %v9086 = vunpack.c.l.b16 %v8898
        %v9087 = vunpack.c.l.b16 %v8912
        %v9088 = vunpack.c.l.b16 %v8922
        %v9089 = vunpack.c.l.b16 %v8936
        %v9090 = vunpack.c.l.b16 %v8946
        %v9091 = vunpack.c.l.b16 %v8960
        %v9092 = vunpack.c.l.b16 %v8970
        %v9093 = vunpack.c.l.b16 %v8984
        %v9094 = vunpack.c.l.b16 %v8994
        %v9095 = vunpack.c.l.b16 %v9008
        %v9096 = vunpack.c.l.b16 %v9018
        %v9097 = vunpack.c.l.b16 %v9032
        %v9098 = vunpack.c.l.b16 %v9042
        %v9099 = vunpack.c.l.b16 %v9056
        %v9100 = vunpack.c.l.b16 %v9066
        %v9101 = vpack.c.b16 %v9070, %v9069
        %v9102 = vpack.c.b16 %v9072, %v9071
        %v9103 = vpack.c.b16 %v9074, %v9073
        %v9104 = vpack.c.b16 %v9076, %v9075
        %v9105 = vpack.c.b16 %v9078, %v9077
        %v9106 = vpack.c.b16 %v9080, %v9079
        %v9107 = vpack.c.b16 %v9082, %v9081
        %v9108 = vpack.c.b16 %v9084, %v9083
        %v9109 = vpack.c.b16 %v9086, %v9085
        %v9110 = vpack.c.b16 %v9088, %v9087
        %v9111 = vpack.c.b16 %v9090, %v9089
        %v9112 = vpack.c.b16 %v9092, %v9091
        %v9113 = vpack.c.b16 %v9094, %v9093
        %v9114 = vpack.c.b16 %v9096, %v9095
        %v9115 = vpack.c.b16 %v9098, %v9097
        %v9116 = vpack.c.b16 %v9100, %v9099
        %v9118 = vsel %vm1208, %v9101, 0
        %v9121 = vsel %vm1208, %v9102, 0
        %v9124 = vsel %vm1208, %v9103, 0
        %v9127 = vsel %vm1208, %v9104, 0
        %v9130 = vsel %vm1208, %v9105, 0
        %v9133 = vsel %vm1208, %v9106, 0
        %v9136 = vsel %vm1208, %v9107, 0
        %v9139 = vsel %vm1208, %v9108, 0
        %v9142 = vsel %vm1208, %v9109, 0
        %v9145 = vsel %vm1208, %v9110, 0
        %v9148 = vsel %vm1208, %v9111, 0
        %v9151 = vsel %vm1208, %v9112, 0
        %v9154 = vsel %vm1208, %v9113, 0
        %v9157 = vsel %vm1208, %v9114, 0
        %v9160 = vsel %vm1208, %v9115, 0
        %v9163 = vsel %vm1208, %v9116, 0
        %v9166 = vsel %vm1257, %v9068, 0
        %9168 = vmatprep.subr.bf16.mxu0 0
        %9169 = vmatpush1.bf16.msra.mxu0 %v9166
        %9170 = vmatprep.subr.bf16.mxu0 0
        %9171 = vmatpush1.bf16.msra.mxu0 0
        %9172 = vmatprep.subr.bf16.mxu0 0
        %9173 = vmatpush1.bf16.msra.mxu0 0
        %9174 = vmatprep.subr.bf16.mxu0 0
        %9175 = vmatpush1.bf16.msra.mxu0 0
        %9176 = vmatprep.subr.bf16.mxu0 0
        %9177 = vmatpush1.bf16.msra.mxu0 0
        %9178 = vmatprep.subr.bf16.mxu0 0
        %9179 = vmatpush1.bf16.msra.mxu0 0
        %9180 = vmatprep.subr.bf16.mxu0 0
        %9181 = vmatpush1.bf16.msra.mxu0 0
        %9182 = vmatprep.subr.bf16.mxu0 0
        %9183 = vmatpush1.bf16.msra.mxu0 0
        %9184 = vmatprep.subr.bf16.mxu0 0
        %9185 = vmatpush1.bf16.msra.mxu0 0
        %9186 = vmatprep.subr.bf16.mxu0 0
        %9187 = vmatpush1.bf16.msra.mxu0 0
        %9188 = vmatprep.subr.bf16.mxu0 0
        %9189 = vmatpush1.bf16.msra.mxu0 0
        %9190 = vmatprep.subr.bf16.mxu0 0
        %9191 = vmatpush1.bf16.msra.mxu0 0
        %9192 = vmatprep.subr.bf16.mxu0 0
        %9193 = vmatpush1.bf16.msra.mxu0 0
        %9194 = vmatprep.subr.bf16.mxu0 0
        %9195 = vmatpush1.bf16.msra.mxu0 0
        %9196 = vmatprep.subr.bf16.mxu0 0
        %9197 = vmatpush1.bf16.msra.mxu0 0
        %9198 = vmatprep.subr.bf16.mxu0 0
        %9199 = vmatpush1.bf16.msra.mxu0 0
        %9200 = vmatprep.mubr.bf16.mxu0 0
        %9201 = vmatmul.mubr.bf16.gmra.mrb[0].mxu0 %v9118
        %v9202 = vpop.f32.mrb[0].mxu0
        %v9203 = vadd.f32 0.0, %v9202
        %v9204 = vpop.f32.mrb[0].mxu0
        %v9205 = vpop.f32.mrb[0].mxu0
        %v9206 = vadd.f32 0.0, %v9205
        %v9207 = vpop.f32.mrb[0].mxu0
        %9208 = vmatprep.mubr.bf16.mxu0 0
        %9209 = vmatmul.mubr.bf16.gmra.mrb[0].mxu0 %v9121
        %v9210 = vpop.f32.mrb[0].mxu0
        %v9211 = vadd.f32 0.0, %v9210
        %v9212 = vpop.f32.mrb[0].mxu0
        %v9213 = vpop.f32.mrb[0].mxu0
        %v9214 = vadd.f32 0.0, %v9213
        %v9215 = vpop.f32.mrb[0].mxu0
        %9216 = vmatprep.mubr.bf16.mxu0 0
        %9217 = vmatmul.mubr.bf16.gmra.mrb[0].mxu0 %v9124
        %v9218 = vpop.f32.mrb[0].mxu0
        %v9219 = vadd.f32 0.0, %v9218
        %v9220 = vpop.f32.mrb[0].mxu0
        %v9221 = vpop.f32.mrb[0].mxu0
        %v9222 = vadd.f32 0.0, %v9221
        %v9223 = vpop.f32.mrb[0].mxu0
        %9224 = vmatprep.mubr.bf16.mxu0 0
        %9225 = vmatmul.mubr.bf16.gmra.mrb[0].mxu0 %v9127
        %v9226 = vpop.f32.mrb[0].mxu0
        %v9227 = vadd.f32 0.0, %v9226
        %v9228 = vpop.f32.mrb[0].mxu0
        %v9229 = vpop.f32.mrb[0].mxu0
        %v9230 = vadd.f32 0.0, %v9229
        %v9231 = vpop.f32.mrb[0].mxu0
        %9232 = vmatprep.mubr.bf16.mxu0 0
        %9233 = vmatmul.mubr.bf16.gmra.mrb[0].mxu0 %v9130
        %v9234 = vpop.f32.mrb[0].mxu0
        %v9235 = vadd.f32 0.0, %v9234
        %v9236 = vpop.f32.mrb[0].mxu0
        %v9237 = vpop.f32.mrb[0].mxu0
        %v9238 = vadd.f32 0.0, %v9237
        %v9239 = vpop.f32.mrb[0].mxu0
        %9240 = vmatprep.mubr.bf16.mxu0 0
        %9241 = vmatmul.mubr.bf16.gmra.mrb[0].mxu0 %v9133
        %v9242 = vpop.f32.mrb[0].mxu0
        %v9243 = vadd.f32 0.0, %v9242
        %v9244 = vpop.f32.mrb[0].mxu0
        %v9245 = vpop.f32.mrb[0].mxu0
        %v9246 = vadd.f32 0.0, %v9245
        %v9247 = vpop.f32.mrb[0].mxu0
        %9248 = vmatprep.mubr.bf16.mxu0 0
        %9249 = vmatmul.mubr.bf16.gmra.mrb[0].mxu0 %v9136
        %v9250 = vpop.f32.mrb[0].mxu0
        %v9251 = vadd.f32 0.0, %v9250
        %v9252 = vpop.f32.mrb[0].mxu0
        %v9253 = vpop.f32.mrb[0].mxu0
        %v9254 = vadd.f32 0.0, %v9253
        %v9255 = vpop.f32.mrb[0].mxu0
        %9256 = vmatprep.mubr.bf16.mxu0 0
        %9257 = vmatmul.mubr.bf16.gmra.mrb[0].mxu0 %v9139
        %v9258 = vpop.f32.mrb[0].mxu0
        %v9259 = vadd.f32 0.0, %v9258
        %v9260 = vpop.f32.mrb[0].mxu0
        %v9261 = vpop.f32.mrb[0].mxu0
        %v9262 = vadd.f32 0.0, %v9261
        %v9263 = vpop.f32.mrb[0].mxu0
        %9264 = vmatprep.mubr.bf16.mxu0 0
        %9265 = vmatmul.mubr.bf16.gmra.mrb[0].mxu0 %v9142
        %v9266 = vpop.f32.mrb[0].mxu0
        %v9267 = vadd.f32 0.0, %v9266
        %v9268 = vpop.f32.mrb[0].mxu0
        %v9269 = vpop.f32.mrb[0].mxu0
        %v9270 = vadd.f32 0.0, %v9269
        %v9271 = vpop.f32.mrb[0].mxu0
        %9272 = vmatprep.mubr.bf16.mxu0 0
        %9273 = vmatmul.mubr.bf16.gmra.mrb[0].mxu0 %v9145
        %v9274 = vpop.f32.mrb[0].mxu0
        %v9275 = vadd.f32 0.0, %v9274
        %v9276 = vpop.f32.mrb[0].mxu0
        %v9277 = vpop.f32.mrb[0].mxu0
        %v9278 = vadd.f32 0.0, %v9277
        %v9279 = vpop.f32.mrb[0].mxu0
        %9280 = vmatprep.mubr.bf16.mxu0 0
        %9281 = vmatmul.mubr.bf16.gmra.mrb[0].mxu0 %v9148
        %v9282 = vpop.f32.mrb[0].mxu0
        %v9283 = vadd.f32 0.0, %v9282
        %v9284 = vpop.f32.mrb[0].mxu0
        %v9285 = vpop.f32.mrb[0].mxu0
        %v9286 = vadd.f32 0.0, %v9285
        %v9287 = vpop.f32.mrb[0].mxu0
        %9288 = vmatprep.mubr.bf16.mxu0 0
        %9289 = vmatmul.mubr.bf16.gmra.mrb[0].mxu0 %v9151
        %v9290 = vpop.f32.mrb[0].mxu0
        %v9291 = vadd.f32 0.0, %v9290
        %v9292 = vpop.f32.mrb[0].mxu0
        %v9293 = vpop.f32.mrb[0].mxu0
        %v9294 = vadd.f32 0.0, %v9293
        %v9295 = vpop.f32.mrb[0].mxu0
        %9296 = vmatprep.mubr.bf16.mxu0 0
        %9297 = vmatmul.mubr.bf16.gmra.mrb[0].mxu0 %v9154
        %v9298 = vpop.f32.mrb[0].mxu0
        %v9299 = vadd.f32 0.0, %v9298
        %v9300 = vpop.f32.mrb[0].mxu0
        %v9301 = vpop.f32.mrb[0].mxu0
        %v9302 = vadd.f32 0.0, %v9301
        %v9303 = vpop.f32.mrb[0].mxu0
        %9304 = vmatprep.mubr.bf16.mxu0 0
        %9305 = vmatmul.mubr.bf16.gmra.mrb[0].mxu0 %v9157
        %v9306 = vpop.f32.mrb[0].mxu0
        %v9307 = vadd.f32 0.0, %v9306
        %v9308 = vpop.f32.mrb[0].mxu0
        %v9309 = vpop.f32.mrb[0].mxu0
        %v9310 = vadd.f32 0.0, %v9309
        %v9311 = vpop.f32.mrb[0].mxu0
        %9312 = vmatprep.mubr.bf16.mxu0 0
        %9313 = vmatmul.mubr.bf16.gmra.mrb[0].mxu0 %v9160
        %v9314 = vpop.f32.mrb[0].mxu0
        %v9315 = vadd.f32 0.0, %v9314
        %v9316 = vpop.f32.mrb[0].mxu0
        %v9317 = vpop.f32.mrb[0].mxu0
        %v9318 = vadd.f32 0.0, %v9317
        %v9319 = vpop.f32.mrb[0].mxu0
        %9320 = vmatprep.mubr.bf16.mxu0 0
        %9321 = vmatmul.mubr.bf16.gmra.mrb[0].mxu0 %v9163
        %v9322 = vpop.f32.mrb[0].mxu0
        %v9323 = vadd.f32 0.0, %v9322
        %v9324 = vpop.f32.mrb[0].mxu0
        %v9325 = vpop.f32.mrb[0].mxu0
        %v9326 = vadd.f32 0.0, %v9325
        %v9327 = vpop.f32.mrb[0].mxu0
        %9328 = vdwg.mxu0
        %v9329 = vadd.f32 %v8603, %v9203
        %v9330 = vadd.f32 %v8604, %v9206
        %v9331 = vadd.f32 %v8605, %v9211
        %v9332 = vadd.f32 %v8606, %v9214
        %v9333 = vadd.f32 %v8607, %v9219
        %v9334 = vadd.f32 %v8608, %v9222
        %v9335 = vadd.f32 %v8609, %v9227
        %v9336 = vadd.f32 %v8610, %v9230
        %v9337 = vadd.f32 %v8611, %v9235
        %v9338 = vadd.f32 %v8612, %v9238
        %v9339 = vadd.f32 %v8613, %v9243
        %v9340 = vadd.f32 %v8614, %v9246
        %v9341 = vadd.f32 %v8615, %v9251
        %v9342 = vadd.f32 %v8616, %v9254
        %v9343 = vadd.f32 %v8617, %v9259
        %v9344 = vadd.f32 %v8618, %v9262
        %v9345 = vadd.f32 %v8619, %v9267
        %v9346 = vadd.f32 %v8620, %v9270
        %v9347 = vadd.f32 %v8621, %v9275
        %v9348 = vadd.f32 %v8622, %v9278
        %v9349 = vadd.f32 %v8623, %v9283
        %v9350 = vadd.f32 %v8624, %v9286
        %v9351 = vadd.f32 %v8625, %v9291
        %v9352 = vadd.f32 %v8626, %v9294
        %v9353 = vadd.f32 %v8627, %v9299
        %v9354 = vadd.f32 %v8628, %v9302
        %v9355 = vadd.f32 %v8629, %v9307
        %v9356 = vadd.f32 %v8630, %v9310
        %v9357 = vadd.f32 %v8631, %v9315
        %v9358 = vadd.f32 %v8632, %v9318
        %v9359 = vadd.f32 %v8633, %v9323
        %v9360 = vadd.f32 %v8634, %v9326
        %v9361 = vld [vmem:[%s749] sm:$0xe]
        %v9362 = vld [vmem:[%s749 + $0xc] sm:$0xe]
        %v9363 = vld [vmem:[%s749 + $0x18] sm:$0xe]
        %v9364 = vld [vmem:[%s749 + $0x24] sm:$0xe]
        %v9365 = vld [vmem:[%s749 + $0x30] sm:$0xe]
        %v9366 = vld [vmem:[%s749 + $0x3c] sm:$0xe]
        %v9367 = vld [vmem:[%s749 + $0x48] sm:$0xe]
        %v9368 = vld [vmem:[%s749 + $0x54] sm:$0xe]
        %v9369 = vld [vmem:[%s749 + $0x60] sm:$0xe]
        %v9370 = vld [vmem:[%s749 + $0x6c] sm:$0xe]
        %v9371 = vld [vmem:[%s749 + $0x78] sm:$0xe]
        %v9372 = vld [vmem:[%s749 + $0x84] sm:$0xe]
        %v9373 = vld [vmem:[%s749 + $0x90] sm:$0xe]
        %v9374 = vld [vmem:[%s749 + $0x9c] sm:$0xe]
        %v9375 = vld [vmem:[%s749 + $0xa8] sm:$0xe]
        %v9376 = vld [vmem:[%s749 + $0xb4] sm:$0xe]
        %v9425 = vrot.slane %v9361, 5
        %v9426 = vrot.slane %v9425, 4
        %v9427 = vrot.slane %v8636, 5
        %v9428 = vsel %vm2217, %v9426, %v9427
        %v9429 = vrot.slane %v9427, 4
        %v9430 = vrot.slane %v8637, 5
        %v9431 = vsel %vm2217, %v9429, %v9430
        %v9432 = vrot.slane %v9362, 5
        %v9433 = vrot.slane %v9432, 4
        %v9434 = vrot.slane %v8639, 5
        %v9435 = vsel %vm2217, %v9433, %v9434
        %v9436 = vrot.slane %v9434, 4
        %v9437 = vrot.slane %v8640, 5
        %v9438 = vsel %vm2217, %v9436, %v9437
        %v9439 = vrot.slane %v9363, 5
        %v9440 = vrot.slane %v9439, 4
        %v9441 = vrot.slane %v8642, 5
        %v9442 = vsel %vm2217, %v9440, %v9441
        %v9443 = vrot.slane %v9441, 4
        %v9444 = vrot.slane %v8643, 5
        %v9445 = vsel %vm2217, %v9443, %v9444
        %v9446 = vrot.slane %v9364, 5
        %v9447 = vrot.slane %v9446, 4
        %v9448 = vrot.slane %v8645, 5
        %v9449 = vsel %vm2217, %v9447, %v9448
        %v9450 = vrot.slane %v9448, 4
        %v9451 = vrot.slane %v8646, 5
        %v9452 = vsel %vm2217, %v9450, %v9451
        %v9453 = vrot.slane %v9365, 5
        %v9454 = vrot.slane %v9453, 4
        %v9455 = vrot.slane %v8648, 5
        %v9456 = vsel %vm2217, %v9454, %v9455
        %v9457 = vrot.slane %v9455, 4
        %v9458 = vrot.slane %v8649, 5
        %v9459 = vsel %vm2217, %v9457, %v9458
        %v9460 = vrot.slane %v9366, 5
        %v9461 = vrot.slane %v9460, 4
        %v9462 = vrot.slane %v8651, 5
        %v9463 = vsel %vm2217, %v9461, %v9462
        %v9464 = vrot.slane %v9462, 4
        %v9465 = vrot.slane %v8652, 5
        %v9466 = vsel %vm2217, %v9464, %v9465
        %v9467 = vrot.slane %v9367, 5
        %v9468 = vrot.slane %v9467, 4
        %v9469 = vrot.slane %v8654, 5
        %v9470 = vsel %vm2217, %v9468, %v9469
        %v9471 = vrot.slane %v9469, 4
        %v9472 = vrot.slane %v8655, 5
        %v9473 = vsel %vm2217, %v9471, %v9472
        %v9474 = vrot.slane %v9368, 5
        %v9475 = vrot.slane %v9474, 4
        %v9476 = vrot.slane %v8657, 5
        %v9477 = vsel %vm2217, %v9475, %v9476
        %v9478 = vrot.slane %v9476, 4
        %v9479 = vrot.slane %v8658, 5
        %v9480 = vsel %vm2217, %v9478, %v9479
        %v9481 = vrot.slane %v9369, 5
        %v9482 = vrot.slane %v9481, 4
        %v9483 = vrot.slane %v8660, 5
        %v9484 = vsel %vm2217, %v9482, %v9483
        %v9485 = vrot.slane %v9483, 4
        %v9486 = vrot.slane %v8661, 5
        %v9487 = vsel %vm2217, %v9485, %v9486
        %v9488 = vrot.slane %v9370, 5
        %v9489 = vrot.slane %v9488, 4
        %v9490 = vrot.slane %v8663, 5
        %v9491 = vsel %vm2217, %v9489, %v9490
        %v9492 = vrot.slane %v9490, 4
        %v9493 = vrot.slane %v8664, 5
        %v9494 = vsel %vm2217, %v9492, %v9493
        %v9495 = vrot.slane %v9371, 5
        %v9496 = vrot.slane %v9495, 4
        %v9497 = vrot.slane %v8666, 5
        %v9498 = vsel %vm2217, %v9496, %v9497
        %v9499 = vrot.slane %v9497, 4
        %v9500 = vrot.slane %v8667, 5
        %v9501 = vsel %vm2217, %v9499, %v9500
        %v9502 = vrot.slane %v9372, 5
        %v9503 = vrot.slane %v9502, 4
        %v9504 = vrot.slane %v8669, 5
        %v9505 = vsel %vm2217, %v9503, %v9504
        %v9506 = vrot.slane %v9504, 4
        %v9507 = vrot.slane %v8670, 5
        %v9508 = vsel %vm2217, %v9506, %v9507
        %v9509 = vrot.slane %v9373, 5
        %v9510 = vrot.slane %v9509, 4
        %v9511 = vrot.slane %v8672, 5
        %v9512 = vsel %vm2217, %v9510, %v9511
        %v9513 = vrot.slane %v9511, 4
        %v9514 = vrot.slane %v8673, 5
        %v9515 = vsel %vm2217, %v9513, %v9514
        %v9516 = vrot.slane %v9374, 5
        %v9517 = vrot.slane %v9516, 4
        %v9518 = vrot.slane %v8675, 5
        %v9519 = vsel %vm2217, %v9517, %v9518
        %v9520 = vrot.slane %v9518, 4
        %v9521 = vrot.slane %v8676, 5
        %v9522 = vsel %vm2217, %v9520, %v9521
        %v9523 = vrot.slane %v9375, 5
        %v9524 = vrot.slane %v9523, 4
        %v9525 = vrot.slane %v8678, 5
        %v9526 = vsel %vm2217, %v9524, %v9525
        %v9527 = vrot.slane %v9525, 4
        %v9528 = vrot.slane %v8679, 5
        %v9529 = vsel %vm2217, %v9527, %v9528
        %v9530 = vrot.slane %v9376, 5
        %v9531 = vrot.slane %v9530, 4
        %v9532 = vrot.slane %v8681, 5
        %v9533 = vsel %vm2217, %v9531, %v9532
        %v9534 = vrot.slane %v9532, 4
        %v9535 = vrot.slane %v8682, 5
        %v9536 = vsel %vm2217, %v9534, %v9535
        %s9537 = scalar_lea.vmem [#allocation9], 10
        %v9538 = vld [vmem:[%s9537] sm:$0x3]
        %v9539 = vunpack.c.l.b16 %v9428
        %v9540 = vunpack.c.l.b16 %v9431
        %v9541 = vunpack.c.l.b16 %v9435
        %v9542 = vunpack.c.l.b16 %v9438
        %v9543 = vunpack.c.l.b16 %v9442
        %v9544 = vunpack.c.l.b16 %v9445
        %v9545 = vunpack.c.l.b16 %v9449
        %v9546 = vunpack.c.l.b16 %v9452
        %v9547 = vunpack.c.l.b16 %v9456
        %v9548 = vunpack.c.l.b16 %v9459
        %v9549 = vunpack.c.l.b16 %v9463
        %v9550 = vunpack.c.l.b16 %v9466
        %v9551 = vunpack.c.l.b16 %v9470
        %v9552 = vunpack.c.l.b16 %v9473
        %v9553 = vunpack.c.l.b16 %v9477
        %v9554 = vunpack.c.l.b16 %v9480
        %v9555 = vunpack.c.l.b16 %v9484
        %v9556 = vunpack.c.l.b16 %v9487
        %v9557 = vunpack.c.l.b16 %v9491
        %v9558 = vunpack.c.l.b16 %v9494
        %v9559 = vunpack.c.l.b16 %v9498
        %v9560 = vunpack.c.l.b16 %v9501
        %v9561 = vunpack.c.l.b16 %v9505
        %v9562 = vunpack.c.l.b16 %v9508
        %v9563 = vunpack.c.l.b16 %v9512
        %v9564 = vunpack.c.l.b16 %v9515
        %v9565 = vunpack.c.l.b16 %v9519
        %v9566 = vunpack.c.l.b16 %v9522
        %v9567 = vunpack.c.l.b16 %v9526
        %v9568 = vunpack.c.l.b16 %v9529
        %v9569 = vunpack.c.l.b16 %v9533
        %v9570 = vunpack.c.l.b16 %v9536
        %v9571 = vpack.c.b16 %v9540, %v9539
        %v9572 = vpack.c.b16 %v9542, %v9541
        %v9573 = vpack.c.b16 %v9544, %v9543
        %v9574 = vpack.c.b16 %v9546, %v9545
        %v9575 = vpack.c.b16 %v9548, %v9547
        %v9576 = vpack.c.b16 %v9550, %v9549
        %v9577 = vpack.c.b16 %v9552, %v9551
        %v9578 = vpack.c.b16 %v9554, %v9553
        %v9579 = vpack.c.b16 %v9556, %v9555
        %v9580 = vpack.c.b16 %v9558, %v9557
        %v9581 = vpack.c.b16 %v9560, %v9559
        %v9582 = vpack.c.b16 %v9562, %v9561
        %v9583 = vpack.c.b16 %v9564, %v9563
        %v9584 = vpack.c.b16 %v9566, %v9565
        %v9585 = vpack.c.b16 %v9568, %v9567
        %v9586 = vpack.c.b16 %v9570, %v9569
        %v9588 = vsel %vm1208, %v9571, 0
        %v9591 = vsel %vm1208, %v9572, 0
        %v9594 = vsel %vm1208, %v9573, 0
        %v9597 = vsel %vm1208, %v9574, 0
        %v9600 = vsel %vm1208, %v9575, 0
        %v9603 = vsel %vm1208, %v9576, 0
        %v9606 = vsel %vm1208, %v9577, 0
        %v9609 = vsel %vm1208, %v9578, 0
        %v9612 = vsel %vm1208, %v9579, 0
        %v9615 = vsel %vm1208, %v9580, 0
        %v9618 = vsel %vm1208, %v9581, 0
        %v9621 = vsel %vm1208, %v9582, 0
        %v9624 = vsel %vm1208, %v9583, 0
        %v9627 = vsel %vm1208, %v9584, 0
        %v9630 = vsel %vm1208, %v9585, 0
        %v9633 = vsel %vm1208, %v9586, 0
        %v9636 = vsel %vm1257, %v9538, 0
        %9638 = vmatprep.subr.bf16.mxu0 0
        %9639 = vmatpush1.bf16.msra.mxu0 %v9636
        %9640 = vmatprep.subr.bf16.mxu0 0
        %9641 = vmatpush1.bf16.msra.mxu0 0
        %9642 = vmatprep.subr.bf16.mxu0 0
        %9643 = vmatpush1.bf16.msra.mxu0 0
        %9644 = vmatprep.subr.bf16.mxu0 0
        %9645 = vmatpush1.bf16.msra.mxu0 0
        %9646 = vmatprep.subr.bf16.mxu0 0
        %9647 = vmatpush1.bf16.msra.mxu0 0
        %9648 = vmatprep.subr.bf16.mxu0 0
        %9649 = vmatpush1.bf16.msra.mxu0 0
        %9650 = vmatprep.subr.bf16.mxu0 0
        %9651 = vmatpush1.bf16.msra.mxu0 0
        %9652 = vmatprep.subr.bf16.mxu0 0
        %9653 = vmatpush1.bf16.msra.mxu0 0
        %9654 = vmatprep.subr.bf16.mxu0 0
        %9655 = vmatpush1.bf16.msra.mxu0 0
        %9656 = vmatprep.subr.bf16.mxu0 0
        %9657 = vmatpush1.bf16.msra.mxu0 0
        %9658 = vmatprep.subr.bf16.mxu0 0
        %9659 = vmatpush1.bf16.msra.mxu0 0
        %9660 = vmatprep.subr.bf16.mxu0 0
        %9661 = vmatpush1.bf16.msra.mxu0 0
        %9662 = vmatprep.subr.bf16.mxu0 0
        %9663 = vmatpush1.bf16.msra.mxu0 0
        %9664 = vmatprep.subr.bf16.mxu0 0
        %9665 = vmatpush1.bf16.msra.mxu0 0
        %9666 = vmatprep.subr.bf16.mxu0 0
        %9667 = vmatpush1.bf16.msra.mxu0 0
        %9668 = vmatprep.subr.bf16.mxu0 0
        %9669 = vmatpush1.bf16.msra.mxu0 0
        %9670 = vmatprep.mubr.bf16.mxu0 0
        %9671 = vmatmul.mubr.bf16.gmra.mrb[0].mxu0 %v9588
        %v9672 = vpop.f32.mrb[0].mxu0
        %v9673 = vadd.f32 0.0, %v9672
        %v9674 = vpop.f32.mrb[0].mxu0
        %v9675 = vpop.f32.mrb[0].mxu0
        %v9676 = vadd.f32 0.0, %v9675
        %v9677 = vpop.f32.mrb[0].mxu0
        %9678 = vmatprep.mubr.bf16.mxu0 0
        %9679 = vmatmul.mubr.bf16.gmra.mrb[0].mxu0 %v9591
        %v9680 = vpop.f32.mrb[0].mxu0
        %v9681 = vadd.f32 0.0, %v9680
        %v9682 = vpop.f32.mrb[0].mxu0
        %v9683 = vpop.f32.mrb[0].mxu0
        %v9684 = vadd.f32 0.0, %v9683
        %v9685 = vpop.f32.mrb[0].mxu0
        %9686 = vmatprep.mubr.bf16.mxu0 0
        %9687 = vmatmul.mubr.bf16.gmra.mrb[0].mxu0 %v9594
        %v9688 = vpop.f32.mrb[0].mxu0
        %v9689 = vadd.f32 0.0, %v9688
        %v9690 = vpop.f32.mrb[0].mxu0
        %v9691 = vpop.f32.mrb[0].mxu0
        %v9692 = vadd.f32 0.0, %v9691
        %v9693 = vpop.f32.mrb[0].mxu0
        %9694 = vmatprep.mubr.bf16.mxu0 0
        %9695 = vmatmul.mubr.bf16.gmra.mrb[0].mxu0 %v9597
        %v9696 = vpop.f32.mrb[0].mxu0
        %v9697 = vadd.f32 0.0, %v9696
        %v9698 = vpop.f32.mrb[0].mxu0
        %v9699 = vpop.f32.mrb[0].mxu0
        %v9700 = vadd.f32 0.0, %v9699
        %v9701 = vpop.f32.mrb[0].mxu0
        %9702 = vmatprep.mubr.bf16.mxu0 0
        %9703 = vmatmul.mubr.bf16.gmra.mrb[0].mxu0 %v9600
        %v9704 = vpop.f32.mrb[0].mxu0
        %v9705 = vadd.f32 0.0, %v9704
        %v9706 = vpop.f32.mrb[0].mxu0
        %v9707 = vpop.f32.mrb[0].mxu0
        %v9708 = vadd.f32 0.0, %v9707
        %v9709 = vpop.f32.mrb[0].mxu0
        %9710 = vmatprep.mubr.bf16.mxu0 0
        %9711 = vmatmul.mubr.bf16.gmra.mrb[0].mxu0 %v9603
        %v9712 = vpop.f32.mrb[0].mxu0
        %v9713 = vadd.f32 0.0, %v9712
        %v9714 = vpop.f32.mrb[0].mxu0
        %v9715 = vpop.f32.mrb[0].mxu0
        %v9716 = vadd.f32 0.0, %v9715
        %v9717 = vpop.f32.mrb[0].mxu0
        %9718 = vmatprep.mubr.bf16.mxu0 0
        %9719 = vmatmul.mubr.bf16.gmra.mrb[0].mxu0 %v9606
        %v9720 = vpop.f32.mrb[0].mxu0
        %v9721 = vadd.f32 0.0, %v9720
        %v9722 = vpop.f32.mrb[0].mxu0
        %v9723 = vpop.f32.mrb[0].mxu0
        %v9724 = vadd.f32 0.0, %v9723
        %v9725 = vpop.f32.mrb[0].mxu0
        %9726 = vmatprep.mubr.bf16.mxu0 0
        %9727 = vmatmul.mubr.bf16.gmra.mrb[0].mxu0 %v9609
        %v9728 = vpop.f32.mrb[0].mxu0
        %v9729 = vadd.f32 0.0, %v9728
        %v9730 = vpop.f32.mrb[0].mxu0
        %v9731 = vpop.f32.mrb[0].mxu0
        %v9732 = vadd.f32 0.0, %v9731
        %v9733 = vpop.f32.mrb[0].mxu0
        %9734 = vmatprep.mubr.bf16.mxu0 0
        %9735 = vmatmul.mubr.bf16.gmra.mrb[0].mxu0 %v9612
        %v9736 = vpop.f32.mrb[0].mxu0
        %v9737 = vadd.f32 0.0, %v9736
        %v9738 = vpop.f32.mrb[0].mxu0
        %v9739 = vpop.f32.mrb[0].mxu0
        %v9740 = vadd.f32 0.0, %v9739
        %v9741 = vpop.f32.mrb[0].mxu0
        %9742 = vmatprep.mubr.bf16.mxu0 0
        %9743 = vmatmul.mubr.bf16.gmra.mrb[0].mxu0 %v9615
        %v9744 = vpop.f32.mrb[0].mxu0
        %v9745 = vadd.f32 0.0, %v9744
        %v9746 = vpop.f32.mrb[0].mxu0
        %v9747 = vpop.f32.mrb[0].mxu0
        %v9748 = vadd.f32 0.0, %v9747
        %v9749 = vpop.f32.mrb[0].mxu0
        %9750 = vmatprep.mubr.bf16.mxu0 0
        %9751 = vmatmul.mubr.bf16.gmra.mrb[0].mxu0 %v9618
        %v9752 = vpop.f32.mrb[0].mxu0
        %v9753 = vadd.f32 0.0, %v9752
        %v9754 = vpop.f32.mrb[0].mxu0
        %v9755 = vpop.f32.mrb[0].mxu0
        %v9756 = vadd.f32 0.0, %v9755
        %v9757 = vpop.f32.mrb[0].mxu0
        %9758 = vmatprep.mubr.bf16.mxu0 0
        %9759 = vmatmul.mubr.bf16.gmra.mrb[0].mxu0 %v9621
        %v9760 = vpop.f32.mrb[0].mxu0
        %v9761 = vadd.f32 0.0, %v9760
        %v9762 = vpop.f32.mrb[0].mxu0
        %v9763 = vpop.f32.mrb[0].mxu0
        %v9764 = vadd.f32 0.0, %v9763
        %v9765 = vpop.f32.mrb[0].mxu0
        %9766 = vmatprep.mubr.bf16.mxu0 0
        %9767 = vmatmul.mubr.bf16.gmra.mrb[0].mxu0 %v9624
        %v9768 = vpop.f32.mrb[0].mxu0
        %v9769 = vadd.f32 0.0, %v9768
        %v9770 = vpop.f32.mrb[0].mxu0
        %v9771 = vpop.f32.mrb[0].mxu0
        %v9772 = vadd.f32 0.0, %v9771
        %v9773 = vpop.f32.mrb[0].mxu0
        %9774 = vmatprep.mubr.bf16.mxu0 0
        %9775 = vmatmul.mubr.bf16.gmra.mrb[0].mxu0 %v9627
        %v9776 = vpop.f32.mrb[0].mxu0
        %v9777 = vadd.f32 0.0, %v9776
        %v9778 = vpop.f32.mrb[0].mxu0
        %v9779 = vpop.f32.mrb[0].mxu0
        %v9780 = vadd.f32 0.0, %v9779
        %v9781 = vpop.f32.mrb[0].mxu0
        %9782 = vmatprep.mubr.bf16.mxu0 0
        %9783 = vmatmul.mubr.bf16.gmra.mrb[0].mxu0 %v9630
        %v9784 = vpop.f32.mrb[0].mxu0
        %v9785 = vadd.f32 0.0, %v9784
        %v9786 = vpop.f32.mrb[0].mxu0
        %v9787 = vpop.f32.mrb[0].mxu0
        %v9788 = vadd.f32 0.0, %v9787
        %v9789 = vpop.f32.mrb[0].mxu0
        %9790 = vmatprep.mubr.bf16.mxu0 0
        %9791 = vmatmul.mubr.bf16.gmra.mrb[0].mxu0 %v9633
        %v9792 = vpop.f32.mrb[0].mxu0
        %v9793 = vadd.f32 0.0, %v9792
        %v9794 = vpop.f32.mrb[0].mxu0
        %v9795 = vpop.f32.mrb[0].mxu0
        %v9796 = vadd.f32 0.0, %v9795
        %v9797 = vpop.f32.mrb[0].mxu0
        %9798 = vdwg.mxu0
        %v9799 = vadd.f32 %v9329, %v9673
        %v9800 = vadd.f32 %v9330, %v9676
        %v9801 = vadd.f32 %v9331, %v9681
        %v9802 = vadd.f32 %v9332, %v9684
        %v9803 = vadd.f32 %v9333, %v9689
        %v9804 = vadd.f32 %v9334, %v9692
        %v9805 = vadd.f32 %v9335, %v9697
        %v9806 = vadd.f32 %v9336, %v9700
        %v9807 = vadd.f32 %v9337, %v9705
        %v9808 = vadd.f32 %v9338, %v9708
        %v9809 = vadd.f32 %v9339, %v9713
        %v9810 = vadd.f32 %v9340, %v9716
        %v9811 = vadd.f32 %v9341, %v9721
        %v9812 = vadd.f32 %v9342, %v9724
        %v9813 = vadd.f32 %v9343, %v9729
        %v9814 = vadd.f32 %v9344, %v9732
        %v9815 = vadd.f32 %v9345, %v9737
        %v9816 = vadd.f32 %v9346, %v9740
        %v9817 = vadd.f32 %v9347, %v9745
        %v9818 = vadd.f32 %v9348, %v9748
        %v9819 = vadd.f32 %v9349, %v9753
        %v9820 = vadd.f32 %v9350, %v9756
        %v9821 = vadd.f32 %v9351, %v9761
        %v9822 = vadd.f32 %v9352, %v9764
        %v9823 = vadd.f32 %v9353, %v9769
        %v9824 = vadd.f32 %v9354, %v9772
        %v9825 = vadd.f32 %v9355, %v9777
        %v9826 = vadd.f32 %v9356, %v9780
        %v9827 = vadd.f32 %v9357, %v9785
        %v9828 = vadd.f32 %v9358, %v9788
        %v9829 = vadd.f32 %v9359, %v9793
        %v9830 = vadd.f32 %v9360, %v9796
        %v9831 = vld [vmem:[%s4178] sm:$0xf]
        %v9832 = vld [vmem:[%s4178 + $0x4] sm:$0xf]
        %v9833 = vld [vmem:[%s4178 + $0xc] sm:$0xf]
        %v9834 = vld [vmem:[%s4178 + $0x10] sm:$0xf]
        %v9835 = vld [vmem:[%s4178 + $0x18] sm:$0xf]
        %v9836 = vld [vmem:[%s4178 + $0x1c] sm:$0xf]
        %v9837 = vld [vmem:[%s4178 + $0x24] sm:$0xf]
        %v9838 = vld [vmem:[%s4178 + $0x28] sm:$0xf]
        %v9839 = vld [vmem:[%s4178 + $0x30] sm:$0xf]
        %v9840 = vld [vmem:[%s4178 + $0x34] sm:$0xf]
        %v9841 = vld [vmem:[%s4178 + $0x3c] sm:$0xf]
        %v9842 = vld [vmem:[%s4178 + $0x40] sm:$0xf]
        %v9843 = vld [vmem:[%s4178 + $0x48] sm:$0xf]
        %v9844 = vld [vmem:[%s4178 + $0x4c] sm:$0xf]
        %v9845 = vld [vmem:[%s4178 + $0x54] sm:$0xf]
        %v9846 = vld [vmem:[%s4178 + $0x58] sm:$0xf]
        %v9847 = vld [vmem:[%s4178 + $0x60] sm:$0xf]
        %v9848 = vld [vmem:[%s4178 + $0x64] sm:$0xf]
        %v9849 = vld [vmem:[%s4178 + $0x6c] sm:$0xf]
        %v9850 = vld [vmem:[%s4178 + $0x70] sm:$0xf]
        %v9851 = vld [vmem:[%s4178 + $0x78] sm:$0xf]
        %v9852 = vld [vmem:[%s4178 + $0x7c] sm:$0xf]
        %v9853 = vld [vmem:[%s4178 + $0x84] sm:$0xf]
        %v9854 = vld [vmem:[%s4178 + $0x88] sm:$0xf]
        %v9855 = vld [vmem:[%s4178 + $0x90] sm:$0xf]
        %v9856 = vld [vmem:[%s4178 + $0x94] sm:$0xf]
        %v9857 = vld [vmem:[%s4178 + $0x9c] sm:$0xf]
        %v9858 = vld [vmem:[%s4178 + $0xa0] sm:$0xf]
        %v9859 = vld [vmem:[%s4178 + $0xa8] sm:$0xf]
        %v9860 = vld [vmem:[%s4178 + $0xac] sm:$0xf]
        %v9861 = vld [vmem:[%s4178 + $0xb4] sm:$0xf]
        %v9862 = vld [vmem:[%s4178 + $0xb8] sm:$0xf]
        %s9863 = scalar_lea.vmem [#allocation9], 12
        %v9864 = vld [vmem:[%s9863] sm:$0x3]
        %v9897 = vunpack.c.l.b16 %v9831
        %v9898 = vunpack.c.l.b16 %v9832
        %v9899 = vunpack.c.l.b16 %v9833
        %v9900 = vunpack.c.l.b16 %v9834
        %v9901 = vunpack.c.l.b16 %v9835
        %v9902 = vunpack.c.l.b16 %v9836
        %v9903 = vunpack.c.l.b16 %v9837
        %v9904 = vunpack.c.l.b16 %v9838
        %v9905 = vunpack.c.l.b16 %v9839
        %v9906 = vunpack.c.l.b16 %v9840
        %v9907 = vunpack.c.l.b16 %v9841
        %v9908 = vunpack.c.l.b16 %v9842
        %v9909 = vunpack.c.l.b16 %v9843
        %v9910 = vunpack.c.l.b16 %v9844
        %v9911 = vunpack.c.l.b16 %v9845
        %v9912 = vunpack.c.l.b16 %v9846
        %v9913 = vunpack.c.l.b16 %v9847
        %v9914 = vunpack.c.l.b16 %v9848
        %v9915 = vunpack.c.l.b16 %v9849
        %v9916 = vunpack.c.l.b16 %v9850
        %v9917 = vunpack.c.l.b16 %v9851
        %v9918 = vunpack.c.l.b16 %v9852
        %v9919 = vunpack.c.l.b16 %v9853
        %v9920 = vunpack.c.l.b16 %v9854
        %v9921 = vunpack.c.l.b16 %v9855
        %v9922 = vunpack.c.l.b16 %v9856
        %v9923 = vunpack.c.l.b16 %v9857
        %v9924 = vunpack.c.l.b16 %v9858
        %v9925 = vunpack.c.l.b16 %v9859
        %v9926 = vunpack.c.l.b16 %v9860
        %v9927 = vunpack.c.l.b16 %v9861
        %v9928 = vunpack.c.l.b16 %v9862
        %v9929 = vpack.c.b16 %v9898, %v9897
        %v9930 = vpack.c.b16 %v9900, %v9899
        %v9931 = vpack.c.b16 %v9902, %v9901
        %v9932 = vpack.c.b16 %v9904, %v9903
        %v9933 = vpack.c.b16 %v9906, %v9905
        %v9934 = vpack.c.b16 %v9908, %v9907
        %v9935 = vpack.c.b16 %v9910, %v9909
        %v9936 = vpack.c.b16 %v9912, %v9911
        %v9937 = vpack.c.b16 %v9914, %v9913
        %v9938 = vpack.c.b16 %v9916, %v9915
        %v9939 = vpack.c.b16 %v9918, %v9917
        %v9940 = vpack.c.b16 %v9920, %v9919
        %v9941 = vpack.c.b16 %v9922, %v9921
        %v9942 = vpack.c.b16 %v9924, %v9923
        %v9943 = vpack.c.b16 %v9926, %v9925
        %v9944 = vpack.c.b16 %v9928, %v9927
        %v9946 = vsel %vm1208, %v9929, 0
        %v9949 = vsel %vm1208, %v9930, 0
        %v9952 = vsel %vm1208, %v9931, 0
        %v9955 = vsel %vm1208, %v9932, 0
        %v9958 = vsel %vm1208, %v9933, 0
        %v9961 = vsel %vm1208, %v9934, 0
        %v9964 = vsel %vm1208, %v9935, 0
        %v9967 = vsel %vm1208, %v9936, 0
        %v9970 = vsel %vm1208, %v9937, 0
        %v9973 = vsel %vm1208, %v9938, 0
        %v9976 = vsel %vm1208, %v9939, 0
        %v9979 = vsel %vm1208, %v9940, 0
        %v9982 = vsel %vm1208, %v9941, 0
        %v9985 = vsel %vm1208, %v9942, 0
        %v9988 = vsel %vm1208, %v9943, 0
        %v9991 = vsel %vm1208, %v9944, 0
        %v9994 = vsel %vm1257, %v9864, 0
        %9996 = vmatprep.subr.bf16.mxu0 0
        %9997 = vmatpush1.bf16.msra.mxu0 %v9994
        %9998 = vmatprep.subr.bf16.mxu0 0
        %9999 = vmatpush1.bf16.msra.mxu0 0
        %10000 = vmatprep.subr.bf16.mxu0 0
        %10001 = vmatpush1.bf16.msra.mxu0 0
        %10002 = vmatprep.subr.bf16.mxu0 0
        %10003 = vmatpush1.bf16.msra.mxu0 0
        %10004 = vmatprep.subr.bf16.mxu0 0
        %10005 = vmatpush1.bf16.msra.mxu0 0
        %10006 = vmatprep.subr.bf16.mxu0 0
        %10007 = vmatpush1.bf16.msra.mxu0 0
        %10008 = vmatprep.subr.bf16.mxu0 0
        %10009 = vmatpush1.bf16.msra.mxu0 0
        %10010 = vmatprep.subr.bf16.mxu0 0
        %10011 = vmatpush1.bf16.msra.mxu0 0
        %10012 = vmatprep.subr.bf16.mxu0 0
        %10013 = vmatpush1.bf16.msra.mxu0 0
        %10014 = vmatprep.subr.bf16.mxu0 0
        %10015 = vmatpush1.bf16.msra.mxu0 0
        %10016 = vmatprep.subr.bf16.mxu0 0
        %10017 = vmatpush1.bf16.msra.mxu0 0
        %10018 = vmatprep.subr.bf16.mxu0 0
        %10019 = vmatpush1.bf16.msra.mxu0 0
        %10020 = vmatprep.subr.bf16.mxu0 0
        %10021 = vmatpush1.bf16.msra.mxu0 0
        %10022 = vmatprep.subr.bf16.mxu0 0
        %10023 = vmatpush1.bf16.msra.mxu0 0
        %10024 = vmatprep.subr.bf16.mxu0 0
        %10025 = vmatpush1.bf16.msra.mxu0 0
        %10026 = vmatprep.subr.bf16.mxu0 0
        %10027 = vmatpush1.bf16.msra.mxu0 0
        %10028 = vmatprep.mubr.bf16.mxu0 0
        %10029 = vmatmul.mubr.bf16.gmra.mrb[0].mxu0 %v9946
        %v10030 = vpop.f32.mrb[0].mxu0
        %v10031 = vadd.f32 0.0, %v10030
        %v10032 = vpop.f32.mrb[0].mxu0
        %v10033 = vpop.f32.mrb[0].mxu0
        %v10034 = vadd.f32 0.0, %v10033
        %v10035 = vpop.f32.mrb[0].mxu0
        %10036 = vmatprep.mubr.bf16.mxu0 0
        %10037 = vmatmul.mubr.bf16.gmra.mrb[0].mxu0 %v9949
        %v10038 = vpop.f32.mrb[0].mxu0
        %v10039 = vadd.f32 0.0, %v10038
        %v10040 = vpop.f32.mrb[0].mxu0
        %v10041 = vpop.f32.mrb[0].mxu0
        %v10042 = vadd.f32 0.0, %v10041
        %v10043 = vpop.f32.mrb[0].mxu0
        %10044 = vmatprep.mubr.bf16.mxu0 0
        %10045 = vmatmul.mubr.bf16.gmra.mrb[0].mxu0 %v9952
        %v10046 = vpop.f32.mrb[0].mxu0
        %v10047 = vadd.f32 0.0, %v10046
        %v10048 = vpop.f32.mrb[0].mxu0
        %v10049 = vpop.f32.mrb[0].mxu0
        %v10050 = vadd.f32 0.0, %v10049
        %v10051 = vpop.f32.mrb[0].mxu0
        %10052 = vmatprep.mubr.bf16.mxu0 0
        %10053 = vmatmul.mubr.bf16.gmra.mrb[0].mxu0 %v9955
        %v10054 = vpop.f32.mrb[0].mxu0
        %v10055 = vadd.f32 0.0, %v10054
        %v10056 = vpop.f32.mrb[0].mxu0
        %v10057 = vpop.f32.mrb[0].mxu0
        %v10058 = vadd.f32 0.0, %v10057
        %v10059 = vpop.f32.mrb[0].mxu0
        %10060 = vmatprep.mubr.bf16.mxu0 0
        %10061 = vmatmul.mubr.bf16.gmra.mrb[0].mxu0 %v9958
        %v10062 = vpop.f32.mrb[0].mxu0
        %v10063 = vadd.f32 0.0, %v10062
        %v10064 = vpop.f32.mrb[0].mxu0
        %v10065 = vpop.f32.mrb[0].mxu0
        %v10066 = vadd.f32 0.0, %v10065
        %v10067 = vpop.f32.mrb[0].mxu0
        %10068 = vmatprep.mubr.bf16.mxu0 0
        %10069 = vmatmul.mubr.bf16.gmra.mrb[0].mxu0 %v9961
        %v10070 = vpop.f32.mrb[0].mxu0
        %v10071 = vadd.f32 0.0, %v10070
        %v10072 = vpop.f32.mrb[0].mxu0
        %v10073 = vpop.f32.mrb[0].mxu0
        %v10074 = vadd.f32 0.0, %v10073
        %v10075 = vpop.f32.mrb[0].mxu0
        %10076 = vmatprep.mubr.bf16.mxu0 0
        %10077 = vmatmul.mubr.bf16.gmra.mrb[0].mxu0 %v9964
        %v10078 = vpop.f32.mrb[0].mxu0
        %v10079 = vadd.f32 0.0, %v10078
        %v10080 = vpop.f32.mrb[0].mxu0
        %v10081 = vpop.f32.mrb[0].mxu0
        %v10082 = vadd.f32 0.0, %v10081
        %v10083 = vpop.f32.mrb[0].mxu0
        %10084 = vmatprep.mubr.bf16.mxu0 0
        %10085 = vmatmul.mubr.bf16.gmra.mrb[0].mxu0 %v9967
        %v10086 = vpop.f32.mrb[0].mxu0
        %v10087 = vadd.f32 0.0, %v10086
        %v10088 = vpop.f32.mrb[0].mxu0
        %v10089 = vpop.f32.mrb[0].mxu0
        %v10090 = vadd.f32 0.0, %v10089
        %v10091 = vpop.f32.mrb[0].mxu0
        %10092 = vmatprep.mubr.bf16.mxu0 0
        %10093 = vmatmul.mubr.bf16.gmra.mrb[0].mxu0 %v9970
        %v10094 = vpop.f32.mrb[0].mxu0
        %v10095 = vadd.f32 0.0, %v10094
        %v10096 = vpop.f32.mrb[0].mxu0
        %v10097 = vpop.f32.mrb[0].mxu0
        %v10098 = vadd.f32 0.0, %v10097
        %v10099 = vpop.f32.mrb[0].mxu0
        %10100 = vmatprep.mubr.bf16.mxu0 0
        %10101 = vmatmul.mubr.bf16.gmra.mrb[0].mxu0 %v9973
        %v10102 = vpop.f32.mrb[0].mxu0
        %v10103 = vadd.f32 0.0, %v10102
        %v10104 = vpop.f32.mrb[0].mxu0
        %v10105 = vpop.f32.mrb[0].mxu0
        %v10106 = vadd.f32 0.0, %v10105
        %v10107 = vpop.f32.mrb[0].mxu0
        %10108 = vmatprep.mubr.bf16.mxu0 0
        %10109 = vmatmul.mubr.bf16.gmra.mrb[0].mxu0 %v9976
        %v10110 = vpop.f32.mrb[0].mxu0
        %v10111 = vadd.f32 0.0, %v10110
        %v10112 = vpop.f32.mrb[0].mxu0
        %v10113 = vpop.f32.mrb[0].mxu0
        %v10114 = vadd.f32 0.0, %v10113
        %v10115 = vpop.f32.mrb[0].mxu0
        %10116 = vmatprep.mubr.bf16.mxu0 0
        %10117 = vmatmul.mubr.bf16.gmra.mrb[0].mxu0 %v9979
        %v10118 = vpop.f32.mrb[0].mxu0
        %v10119 = vadd.f32 0.0, %v10118
        %v10120 = vpop.f32.mrb[0].mxu0
        %v10121 = vpop.f32.mrb[0].mxu0
        %v10122 = vadd.f32 0.0, %v10121
        %v10123 = vpop.f32.mrb[0].mxu0
        %10124 = vmatprep.mubr.bf16.mxu0 0
        %10125 = vmatmul.mubr.bf16.gmra.mrb[0].mxu0 %v9982
        %v10126 = vpop.f32.mrb[0].mxu0
        %v10127 = vadd.f32 0.0, %v10126
        %v10128 = vpop.f32.mrb[0].mxu0
        %v10129 = vpop.f32.mrb[0].mxu0
        %v10130 = vadd.f32 0.0, %v10129
        %v10131 = vpop.f32.mrb[0].mxu0
        %10132 = vmatprep.mubr.bf16.mxu0 0
        %10133 = vmatmul.mubr.bf16.gmra.mrb[0].mxu0 %v9985
        %v10134 = vpop.f32.mrb[0].mxu0
        %v10135 = vadd.f32 0.0, %v10134
        %v10136 = vpop.f32.mrb[0].mxu0
        %v10137 = vpop.f32.mrb[0].mxu0
        %v10138 = vadd.f32 0.0, %v10137
        %v10139 = vpop.f32.mrb[0].mxu0
        %10140 = vmatprep.mubr.bf16.mxu0 0
        %10141 = vmatmul.mubr.bf16.gmra.mrb[0].mxu0 %v9988
        %v10142 = vpop.f32.mrb[0].mxu0
        %v10143 = vadd.f32 0.0, %v10142
        %v10144 = vpop.f32.mrb[0].mxu0
        %v10145 = vpop.f32.mrb[0].mxu0
        %v10146 = vadd.f32 0.0, %v10145
        %v10147 = vpop.f32.mrb[0].mxu0
        %10148 = vmatprep.mubr.bf16.mxu0 0
        %10149 = vmatmul.mubr.bf16.gmra.mrb[0].mxu0 %v9991
        %v10150 = vpop.f32.mrb[0].mxu0
        %v10151 = vadd.f32 0.0, %v10150
        %v10152 = vpop.f32.mrb[0].mxu0
        %v10153 = vpop.f32.mrb[0].mxu0
        %v10154 = vadd.f32 0.0, %v10153
        %v10155 = vpop.f32.mrb[0].mxu0
        %10156 = vdwg.mxu0
        %v10157 = vadd.f32 %v9799, %v10031
        %v10158 = vadd.f32 %v9800, %v10034
        %v10159 = vadd.f32 %v9801, %v10039
        %v10160 = vadd.f32 %v9802, %v10042
        %v10161 = vadd.f32 %v9803, %v10047
        %v10162 = vadd.f32 %v9804, %v10050
        %v10163 = vadd.f32 %v9805, %v10055
        %v10164 = vadd.f32 %v9806, %v10058
        %v10165 = vadd.f32 %v9807, %v10063
        %v10166 = vadd.f32 %v9808, %v10066
        %v10167 = vadd.f32 %v9809, %v10071
        %v10168 = vadd.f32 %v9810, %v10074
        %v10169 = vadd.f32 %v9811, %v10079
        %v10170 = vadd.f32 %v9812, %v10082
        %v10171 = vadd.f32 %v9813, %v10087
        %v10172 = vadd.f32 %v9814, %v10090
        %v10173 = vadd.f32 %v9815, %v10095
        %v10174 = vadd.f32 %v9816, %v10098
        %v10175 = vadd.f32 %v9817, %v10103
        %v10176 = vadd.f32 %v9818, %v10106
        %v10177 = vadd.f32 %v9819, %v10111
        %v10178 = vadd.f32 %v9820, %v10114
        %v10179 = vadd.f32 %v9821, %v10119
        %v10180 = vadd.f32 %v9822, %v10122
        %v10181 = vadd.f32 %v9823, %v10127
        %v10182 = vadd.f32 %v9824, %v10130
        %v10183 = vadd.f32 %v9825, %v10135
        %v10184 = vadd.f32 %v9826, %v10138
        %v10185 = vadd.f32 %v9827, %v10143
        %v10186 = vadd.f32 %v9828, %v10146
        %v10187 = vadd.f32 %v9829, %v10151
        %v10188 = vadd.f32 %v9830, %v10154
        %v10189 = vld [vmem:[%s4178] sm:$0xf]
        %v10190 = vld [vmem:[%s4178 + $0x4] sm:$0xf]
        %v10191 = vld [vmem:[%s4178 + $0x8] sm:$0x1]
        %v10192 = vld [vmem:[%s4178 + $0xc] sm:$0xf]
        %v10193 = vld [vmem:[%s4178 + $0x10] sm:$0xf]
        %v10194 = vld [vmem:[%s4178 + $0x14] sm:$0x1]
        %v10195 = vld [vmem:[%s4178 + $0x18] sm:$0xf]
        %v10196 = vld [vmem:[%s4178 + $0x1c] sm:$0xf]
        %v10197 = vld [vmem:[%s4178 + $0x20] sm:$0x1]
        %v10198 = vld [vmem:[%s4178 + $0x24] sm:$0xf]
        %v10199 = vld [vmem:[%s4178 + $0x28] sm:$0xf]
        %v10200 = vld [vmem:[%s4178 + $0x2c] sm:$0x1]
        %v10201 = vld [vmem:[%s4178 + $0x30] sm:$0xf]
        %v10202 = vld [vmem:[%s4178 + $0x34] sm:$0xf]
        %v10203 = vld [vmem:[%s4178 + $0x38] sm:$0x1]
        %v10204 = vld [vmem:[%s4178 + $0x3c] sm:$0xf]
        %v10205 = vld [vmem:[%s4178 + $0x40] sm:$0xf]
        %v10206 = vld [vmem:[%s4178 + $0x44] sm:$0x1]
        %v10207 = vld [vmem:[%s4178 + $0x48] sm:$0xf]
        %v10208 = vld [vmem:[%s4178 + $0x4c] sm:$0xf]
        %v10209 = vld [vmem:[%s4178 + $0x50] sm:$0x1]
        %v10210 = vld [vmem:[%s4178 + $0x54] sm:$0xf]
        %v10211 = vld [vmem:[%s4178 + $0x58] sm:$0xf]
        %v10212 = vld [vmem:[%s4178 + $0x5c] sm:$0x1]
        %v10213 = vld [vmem:[%s4178 + $0x60] sm:$0xf]
        %v10214 = vld [vmem:[%s4178 + $0x64] sm:$0xf]
        %v10215 = vld [vmem:[%s4178 + $0x68] sm:$0x1]
        %v10216 = vld [vmem:[%s4178 + $0x6c] sm:$0xf]
        %v10217 = vld [vmem:[%s4178 + $0x70] sm:$0xf]
        %v10218 = vld [vmem:[%s4178 + $0x74] sm:$0x1]
        %v10219 = vld [vmem:[%s4178 + $0x78] sm:$0xf]
        %v10220 = vld [vmem:[%s4178 + $0x7c] sm:$0xf]
        %v10221 = vld [vmem:[%s4178 + $0x80] sm:$0x1]
        %v10222 = vld [vmem:[%s4178 + $0x84] sm:$0xf]
        %v10223 = vld [vmem:[%s4178 + $0x88] sm:$0xf]
        %v10224 = vld [vmem:[%s4178 + $0x8c] sm:$0x1]
        %v10225 = vld [vmem:[%s4178 + $0x90] sm:$0xf]
        %v10226 = vld [vmem:[%s4178 + $0x94] sm:$0xf]
        %v10227 = vld [vmem:[%s4178 + $0x98] sm:$0x1]
        %v10228 = vld [vmem:[%s4178 + $0x9c] sm:$0xf]
        %v10229 = vld [vmem:[%s4178 + $0xa0] sm:$0xf]
        %v10230 = vld [vmem:[%s4178 + $0xa4] sm:$0x1]
        %v10231 = vld [vmem:[%s4178 + $0xa8] sm:$0xf]
        %v10232 = vld [vmem:[%s4178 + $0xac] sm:$0xf]
        %v10233 = vld [vmem:[%s4178 + $0xb0] sm:$0x1]
        %v10234 = vld [vmem:[%s4178 + $0xb4] sm:$0xf]
        %v10235 = vld [vmem:[%s4178 + $0xb8] sm:$0xf]
        %v10236 = vld [vmem:[%s4178 + $0xbc] sm:$0x1]
        %v10238 = vshrl.u32 %v10189, 16
        %v10240 = vrot.slane %v10238, 4
        %v10241 = vshll.u32 %v10189, 16
        %v10243 = vrot.slane %v10241, 5
        %v10244 = vor.u32 %v10240, %v10243
        %v10245 = vrot.slane %v10244, 4
        %v10247 = vshll.u32 %v10190, 16
        %v10249 = vrot.slane %v10247, 5
        %v10250 = vsel %vm1472, %v10245, %v10249
        %v10251 = vshrl.u32 %v10190, 16
        %v10253 = vrot.slane %v10251, 4
        %v10254 = vor.u32 %v10253, %v10249
        %v10255 = vrot.slane %v10254, 4
        %v10257 = vshll.u32 %v10191, 16
        %v10259 = vrot.slane %v10257, 5
        %v10260 = vsel %vm1472, %v10255, %v10259
        %v10262 = vshrl.u32 %v10192, 16
        %v10264 = vrot.slane %v10262, 4
        %v10265 = vshll.u32 %v10192, 16
        %v10267 = vrot.slane %v10265, 5
        %v10268 = vor.u32 %v10264, %v10267
        %v10269 = vrot.slane %v10268, 4
        %v10271 = vshll.u32 %v10193, 16
        %v10273 = vrot.slane %v10271, 5
        %v10274 = vsel %vm1472, %v10269, %v10273
        %v10275 = vshrl.u32 %v10193, 16
        %v10277 = vrot.slane %v10275, 4
        %v10278 = vor.u32 %v10277, %v10273
        %v10279 = vrot.slane %v10278, 4
        %v10281 = vshll.u32 %v10194, 16
        %v10283 = vrot.slane %v10281, 5
        %v10284 = vsel %vm1472, %v10279, %v10283
        %v10286 = vshrl.u32 %v10195, 16
        %v10288 = vrot.slane %v10286, 4
        %v10289 = vshll.u32 %v10195, 16
        %v10291 = vrot.slane %v10289, 5
        %v10292 = vor.u32 %v10288, %v10291
        %v10293 = vrot.slane %v10292, 4
        %v10295 = vshll.u32 %v10196, 16
        %v10297 = vrot.slane %v10295, 5
        %v10298 = vsel %vm1472, %v10293, %v10297
        %v10299 = vshrl.u32 %v10196, 16
        %v10301 = vrot.slane %v10299, 4
        %v10302 = vor.u32 %v10301, %v10297
        %v10303 = vrot.slane %v10302, 4
        %v10305 = vshll.u32 %v10197, 16
        %v10307 = vrot.slane %v10305, 5
        %v10308 = vsel %vm1472, %v10303, %v10307
        %v10310 = vshrl.u32 %v10198, 16
        %v10312 = vrot.slane %v10310, 4
        %v10313 = vshll.u32 %v10198, 16
        %v10315 = vrot.slane %v10313, 5
        %v10316 = vor.u32 %v10312, %v10315
        %v10317 = vrot.slane %v10316, 4
        %v10319 = vshll.u32 %v10199, 16
        %v10321 = vrot.slane %v10319, 5
        %v10322 = vsel %vm1472, %v10317, %v10321
        %v10323 = vshrl.u32 %v10199, 16
        %v10325 = vrot.slane %v10323, 4
        %v10326 = vor.u32 %v10325, %v10321
        %v10327 = vrot.slane %v10326, 4
        %v10329 = vshll.u32 %v10200, 16
        %v10331 = vrot.slane %v10329, 5
        %v10332 = vsel %vm1472, %v10327, %v10331
        %v10334 = vshrl.u32 %v10201, 16
        %v10336 = vrot.slane %v10334, 4
        %v10337 = vshll.u32 %v10201, 16
        %v10339 = vrot.slane %v10337, 5
        %v10340 = vor.u32 %v10336, %v10339
        %v10341 = vrot.slane %v10340, 4
        %v10343 = vshll.u32 %v10202, 16
        %v10345 = vrot.slane %v10343, 5
        %v10346 = vsel %vm1472, %v10341, %v10345
        %v10347 = vshrl.u32 %v10202, 16
        %v10349 = vrot.slane %v10347, 4
        %v10350 = vor.u32 %v10349, %v10345
        %v10351 = vrot.slane %v10350, 4
        %v10353 = vshll.u32 %v10203, 16
        %v10355 = vrot.slane %v10353, 5
        %v10356 = vsel %vm1472, %v10351, %v10355
        %v10358 = vshrl.u32 %v10204, 16
        %v10360 = vrot.slane %v10358, 4
        %v10361 = vshll.u32 %v10204, 16
        %v10363 = vrot.slane %v10361, 5
        %v10364 = vor.u32 %v10360, %v10363
        %v10365 = vrot.slane %v10364, 4
        %v10367 = vshll.u32 %v10205, 16
        %v10369 = vrot.slane %v10367, 5
        %v10370 = vsel %vm1472, %v10365, %v10369
        %v10371 = vshrl.u32 %v10205, 16
        %v10373 = vrot.slane %v10371, 4
        %v10374 = vor.u32 %v10373, %v10369
        %v10375 = vrot.slane %v10374, 4
        %v10377 = vshll.u32 %v10206, 16
        %v10379 = vrot.slane %v10377, 5
        %v10380 = vsel %vm1472, %v10375, %v10379
        %v10382 = vshrl.u32 %v10207, 16
        %v10384 = vrot.slane %v10382, 4
        %v10385 = vshll.u32 %v10207, 16
        %v10387 = vrot.slane %v10385, 5
        %v10388 = vor.u32 %v10384, %v10387
        %v10389 = vrot.slane %v10388, 4
        %v10391 = vshll.u32 %v10208, 16
        %v10393 = vrot.slane %v10391, 5
        %v10394 = vsel %vm1472, %v10389, %v10393
        %v10395 = vshrl.u32 %v10208, 16
        %v10397 = vrot.slane %v10395, 4
        %v10398 = vor.u32 %v10397, %v10393
        %v10399 = vrot.slane %v10398, 4
        %v10401 = vshll.u32 %v10209, 16
        %v10403 = vrot.slane %v10401, 5
        %v10404 = vsel %vm1472, %v10399, %v10403
        %v10406 = vshrl.u32 %v10210, 16
        %v10408 = vrot.slane %v10406, 4
        %v10409 = vshll.u32 %v10210, 16
        %v10411 = vrot.slane %v10409, 5
        %v10412 = vor.u32 %v10408, %v10411
        %v10413 = vrot.slane %v10412, 4
        %v10415 = vshll.u32 %v10211, 16
        %v10417 = vrot.slane %v10415, 5
        %v10418 = vsel %vm1472, %v10413, %v10417
        %v10419 = vshrl.u32 %v10211, 16
        %v10421 = vrot.slane %v10419, 4
        %v10422 = vor.u32 %v10421, %v10417
        %v10423 = vrot.slane %v10422, 4
        %v10425 = vshll.u32 %v10212, 16
        %v10427 = vrot.slane %v10425, 5
        %v10428 = vsel %vm1472, %v10423, %v10427
        %v10430 = vshrl.u32 %v10213, 16
        %v10432 = vrot.slane %v10430, 4
        %v10433 = vshll.u32 %v10213, 16
        %v10435 = vrot.slane %v10433, 5
        %v10436 = vor.u32 %v10432, %v10435
        %v10437 = vrot.slane %v10436, 4
        %v10439 = vshll.u32 %v10214, 16
        %v10441 = vrot.slane %v10439, 5
        %v10442 = vsel %vm1472, %v10437, %v10441
        %v10443 = vshrl.u32 %v10214, 16
        %v10445 = vrot.slane %v10443, 4
        %v10446 = vor.u32 %v10445, %v10441
        %v10447 = vrot.slane %v10446, 4
        %v10449 = vshll.u32 %v10215, 16
        %v10451 = vrot.slane %v10449, 5
        %v10452 = vsel %vm1472, %v10447, %v10451
        %v10454 = vshrl.u32 %v10216, 16
        %v10456 = vrot.slane %v10454, 4
        %v10457 = vshll.u32 %v10216, 16
        %v10459 = vrot.slane %v10457, 5
        %v10460 = vor.u32 %v10456, %v10459
        %v10461 = vrot.slane %v10460, 4
        %v10463 = vshll.u32 %v10217, 16
        %v10465 = vrot.slane %v10463, 5
        %v10466 = vsel %vm1472, %v10461, %v10465
        %v10467 = vshrl.u32 %v10217, 16
        %v10469 = vrot.slane %v10467, 4
        %v10470 = vor.u32 %v10469, %v10465
        %v10471 = vrot.slane %v10470, 4
        %v10473 = vshll.u32 %v10218, 16
        %v10475 = vrot.slane %v10473, 5
        %v10476 = vsel %vm1472, %v10471, %v10475
        %v10478 = vshrl.u32 %v10219, 16
        %v10480 = vrot.slane %v10478, 4
        %v10481 = vshll.u32 %v10219, 16
        %v10483 = vrot.slane %v10481, 5
        %v10484 = vor.u32 %v10480, %v10483
        %v10485 = vrot.slane %v10484, 4
        %v10487 = vshll.u32 %v10220, 16
        %v10489 = vrot.slane %v10487, 5
        %v10490 = vsel %vm1472, %v10485, %v10489
        %v10491 = vshrl.u32 %v10220, 16
        %v10493 = vrot.slane %v10491, 4
        %v10494 = vor.u32 %v10493, %v10489
        %v10495 = vrot.slane %v10494, 4
        %v10497 = vshll.u32 %v10221, 16
        %v10499 = vrot.slane %v10497, 5
        %v10500 = vsel %vm1472, %v10495, %v10499
        %v10502 = vshrl.u32 %v10222, 16
        %v10504 = vrot.slane %v10502, 4
        %v10505 = vshll.u32 %v10222, 16
        %v10507 = vrot.slane %v10505, 5
        %v10508 = vor.u32 %v10504, %v10507
        %v10509 = vrot.slane %v10508, 4
        %v10511 = vshll.u32 %v10223, 16
        %v10513 = vrot.slane %v10511, 5
        %v10514 = vsel %vm1472, %v10509, %v10513
        %v10515 = vshrl.u32 %v10223, 16
        %v10517 = vrot.slane %v10515, 4
        %v10518 = vor.u32 %v10517, %v10513
        %v10519 = vrot.slane %v10518, 4
        %v10521 = vshll.u32 %v10224, 16
        %v10523 = vrot.slane %v10521, 5
        %v10524 = vsel %vm1472, %v10519, %v10523
        %v10526 = vshrl.u32 %v10225, 16
        %v10528 = vrot.slane %v10526, 4
        %v10529 = vshll.u32 %v10225, 16
        %v10531 = vrot.slane %v10529, 5
        %v10532 = vor.u32 %v10528, %v10531
        %v10533 = vrot.slane %v10532, 4
        %v10535 = vshll.u32 %v10226, 16
        %v10537 = vrot.slane %v10535, 5
        %v10538 = vsel %vm1472, %v10533, %v10537
        %v10539 = vshrl.u32 %v10226, 16
        %v10541 = vrot.slane %v10539, 4
        %v10542 = vor.u32 %v10541, %v10537
        %v10543 = vrot.slane %v10542, 4
        %v10545 = vshll.u32 %v10227, 16
        %v10547 = vrot.slane %v10545, 5
        %v10548 = vsel %vm1472, %v10543, %v10547
        %v10550 = vshrl.u32 %v10228, 16
        %v10552 = vrot.slane %v10550, 4
        %v10553 = vshll.u32 %v10228, 16
        %v10555 = vrot.slane %v10553, 5
        %v10556 = vor.u32 %v10552, %v10555
        %v10557 = vrot.slane %v10556, 4
        %v10559 = vshll.u32 %v10229, 16
        %v10561 = vrot.slane %v10559, 5
        %v10562 = vsel %vm1472, %v10557, %v10561
        %v10563 = vshrl.u32 %v10229, 16
        %v10565 = vrot.slane %v10563, 4
        %v10566 = vor.u32 %v10565, %v10561
        %v10567 = vrot.slane %v10566, 4
        %v10569 = vshll.u32 %v10230, 16
        %v10571 = vrot.slane %v10569, 5
        %v10572 = vsel %vm1472, %v10567, %v10571
        %v10574 = vshrl.u32 %v10231, 16
        %v10576 = vrot.slane %v10574, 4
        %v10577 = vshll.u32 %v10231, 16
        %v10579 = vrot.slane %v10577, 5
        %v10580 = vor.u32 %v10576, %v10579
        %v10581 = vrot.slane %v10580, 4
        %v10583 = vshll.u32 %v10232, 16
        %v10585 = vrot.slane %v10583, 5
        %v10586 = vsel %vm1472, %v10581, %v10585
        %v10587 = vshrl.u32 %v10232, 16
        %v10589 = vrot.slane %v10587, 4
        %v10590 = vor.u32 %v10589, %v10585
        %v10591 = vrot.slane %v10590, 4
        %v10593 = vshll.u32 %v10233, 16
        %v10595 = vrot.slane %v10593, 5
        %v10596 = vsel %vm1472, %v10591, %v10595
        %v10598 = vshrl.u32 %v10234, 16
        %v10600 = vrot.slane %v10598, 4
        %v10601 = vshll.u32 %v10234, 16
        %v10603 = vrot.slane %v10601, 5
        %v10604 = vor.u32 %v10600, %v10603
        %v10605 = vrot.slane %v10604, 4
        %v10607 = vshll.u32 %v10235, 16
        %v10609 = vrot.slane %v10607, 5
        %v10610 = vsel %vm1472, %v10605, %v10609
        %v10611 = vshrl.u32 %v10235, 16
        %v10613 = vrot.slane %v10611, 4
        %v10614 = vor.u32 %v10613, %v10609
        %v10615 = vrot.slane %v10614, 4
        %v10617 = vshll.u32 %v10236, 16
        %v10619 = vrot.slane %v10617, 5
        %v10620 = vsel %vm1472, %v10615, %v10619
        %s10621 = scalar_lea.vmem [#allocation9], 14
        %v10622 = vld [vmem:[%s10621] sm:$0x3]
        %v10623 = vunpack.c.l.b16 %v10250
        %v10624 = vunpack.c.l.b16 %v10260
        %v10625 = vunpack.c.l.b16 %v10274
        %v10626 = vunpack.c.l.b16 %v10284
        %v10627 = vunpack.c.l.b16 %v10298
        %v10628 = vunpack.c.l.b16 %v10308
        %v10629 = vunpack.c.l.b16 %v10322
        %v10630 = vunpack.c.l.b16 %v10332
        %v10631 = vunpack.c.l.b16 %v10346
        %v10632 = vunpack.c.l.b16 %v10356
        %v10633 = vunpack.c.l.b16 %v10370
        %v10634 = vunpack.c.l.b16 %v10380
        %v10635 = vunpack.c.l.b16 %v10394
        %v10636 = vunpack.c.l.b16 %v10404
        %v10637 = vunpack.c.l.b16 %v10418
        %v10638 = vunpack.c.l.b16 %v10428
        %v10639 = vunpack.c.l.b16 %v10442
        %v10640 = vunpack.c.l.b16 %v10452
        %v10641 = vunpack.c.l.b16 %v10466
        %v10642 = vunpack.c.l.b16 %v10476
        %v10643 = vunpack.c.l.b16 %v10490
        %v10644 = vunpack.c.l.b16 %v10500
        %v10645 = vunpack.c.l.b16 %v10514
        %v10646 = vunpack.c.l.b16 %v10524
        %v10647 = vunpack.c.l.b16 %v10538
        %v10648 = vunpack.c.l.b16 %v10548
        %v10649 = vunpack.c.l.b16 %v10562
        %v10650 = vunpack.c.l.b16 %v10572
        %v10651 = vunpack.c.l.b16 %v10586
        %v10652 = vunpack.c.l.b16 %v10596
        %v10653 = vunpack.c.l.b16 %v10610
        %v10654 = vunpack.c.l.b16 %v10620
        %v10655 = vpack.c.b16 %v10624, %v10623
        %v10656 = vpack.c.b16 %v10626, %v10625
        %v10657 = vpack.c.b16 %v10628, %v10627
        %v10658 = vpack.c.b16 %v10630, %v10629
        %v10659 = vpack.c.b16 %v10632, %v10631
        %v10660 = vpack.c.b16 %v10634, %v10633
        %v10661 = vpack.c.b16 %v10636, %v10635
        %v10662 = vpack.c.b16 %v10638, %v10637
        %v10663 = vpack.c.b16 %v10640, %v10639
        %v10664 = vpack.c.b16 %v10642, %v10641
        %v10665 = vpack.c.b16 %v10644, %v10643
        %v10666 = vpack.c.b16 %v10646, %v10645
        %v10667 = vpack.c.b16 %v10648, %v10647
        %v10668 = vpack.c.b16 %v10650, %v10649
        %v10669 = vpack.c.b16 %v10652, %v10651
        %v10670 = vpack.c.b16 %v10654, %v10653
        %v10672 = vsel %vm1208, %v10655, 0
        %v10675 = vsel %vm1208, %v10656, 0
        %v10678 = vsel %vm1208, %v10657, 0
        %v10681 = vsel %vm1208, %v10658, 0
        %v10684 = vsel %vm1208, %v10659, 0
        %v10687 = vsel %vm1208, %v10660, 0
        %v10690 = vsel %vm1208, %v10661, 0
        %v10693 = vsel %vm1208, %v10662, 0
        %v10696 = vsel %vm1208, %v10663, 0
        %v10699 = vsel %vm1208, %v10664, 0
        %v10702 = vsel %vm1208, %v10665, 0
        %v10705 = vsel %vm1208, %v10666, 0
        %v10708 = vsel %vm1208, %v10667, 0
        %v10711 = vsel %vm1208, %v10668, 0
        %v10714 = vsel %vm1208, %v10669, 0
        %v10717 = vsel %vm1208, %v10670, 0
        %v10720 = vsel %vm1257, %v10622, 0
        %10722 = vmatprep.subr.bf16.mxu0 0
        %10723 = vmatpush1.bf16.msra.mxu0 %v10720
        %10724 = vmatprep.subr.bf16.mxu0 0
        %10725 = vmatpush1.bf16.msra.mxu0 0
        %10726 = vmatprep.subr.bf16.mxu0 0
        %10727 = vmatpush1.bf16.msra.mxu0 0
        %10728 = vmatprep.subr.bf16.mxu0 0
        %10729 = vmatpush1.bf16.msra.mxu0 0
        %10730 = vmatprep.subr.bf16.mxu0 0
        %10731 = vmatpush1.bf16.msra.mxu0 0
        %10732 = vmatprep.subr.bf16.mxu0 0
        %10733 = vmatpush1.bf16.msra.mxu0 0
        %10734 = vmatprep.subr.bf16.mxu0 0
        %10735 = vmatpush1.bf16.msra.mxu0 0
        %10736 = vmatprep.subr.bf16.mxu0 0
        %10737 = vmatpush1.bf16.msra.mxu0 0
        %10738 = vmatprep.subr.bf16.mxu0 0
        %10739 = vmatpush1.bf16.msra.mxu0 0
        %10740 = vmatprep.subr.bf16.mxu0 0
        %10741 = vmatpush1.bf16.msra.mxu0 0
        %10742 = vmatprep.subr.bf16.mxu0 0
        %10743 = vmatpush1.bf16.msra.mxu0 0
        %10744 = vmatprep.subr.bf16.mxu0 0
        %10745 = vmatpush1.bf16.msra.mxu0 0
        %10746 = vmatprep.subr.bf16.mxu0 0
        %10747 = vmatpush1.bf16.msra.mxu0 0
        %10748 = vmatprep.subr.bf16.mxu0 0
        %10749 = vmatpush1.bf16.msra.mxu0 0
        %10750 = vmatprep.subr.bf16.mxu0 0
        %10751 = vmatpush1.bf16.msra.mxu0 0
        %10752 = vmatprep.subr.bf16.mxu0 0
        %10753 = vmatpush1.bf16.msra.mxu0 0
        %10754 = vmatprep.mubr.bf16.mxu0 0
        %10755 = vmatmul.mubr.bf16.gmra.mrb[0].mxu0 %v10672
        %v10756 = vpop.f32.mrb[0].mxu0
        %v10757 = vadd.f32 0.0, %v10756
        %v10758 = vpop.f32.mrb[0].mxu0
        %v10759 = vpop.f32.mrb[0].mxu0
        %v10760 = vadd.f32 0.0, %v10759
        %v10761 = vpop.f32.mrb[0].mxu0
        %10762 = vmatprep.mubr.bf16.mxu0 0
        %10763 = vmatmul.mubr.bf16.gmra.mrb[0].mxu0 %v10675
        %v10764 = vpop.f32.mrb[0].mxu0
        %v10765 = vadd.f32 0.0, %v10764
        %v10766 = vpop.f32.mrb[0].mxu0
        %v10767 = vpop.f32.mrb[0].mxu0
        %v10768 = vadd.f32 0.0, %v10767
        %v10769 = vpop.f32.mrb[0].mxu0
        %10770 = vmatprep.mubr.bf16.mxu0 0
        %10771 = vmatmul.mubr.bf16.gmra.mrb[0].mxu0 %v10678
        %v10772 = vpop.f32.mrb[0].mxu0
        %v10773 = vadd.f32 0.0, %v10772
        %v10774 = vpop.f32.mrb[0].mxu0
        %v10775 = vpop.f32.mrb[0].mxu0
        %v10776 = vadd.f32 0.0, %v10775
        %v10777 = vpop.f32.mrb[0].mxu0
        %10778 = vmatprep.mubr.bf16.mxu0 0
        %10779 = vmatmul.mubr.bf16.gmra.mrb[0].mxu0 %v10681
        %v10780 = vpop.f32.mrb[0].mxu0
        %v10781 = vadd.f32 0.0, %v10780
        %v10782 = vpop.f32.mrb[0].mxu0
        %v10783 = vpop.f32.mrb[0].mxu0
        %v10784 = vadd.f32 0.0, %v10783
        %v10785 = vpop.f32.mrb[0].mxu0
        %10786 = vmatprep.mubr.bf16.mxu0 0
        %10787 = vmatmul.mubr.bf16.gmra.mrb[0].mxu0 %v10684
        %v10788 = vpop.f32.mrb[0].mxu0
        %v10789 = vadd.f32 0.0, %v10788
        %v10790 = vpop.f32.mrb[0].mxu0
        %v10791 = vpop.f32.mrb[0].mxu0
        %v10792 = vadd.f32 0.0, %v10791
        %v10793 = vpop.f32.mrb[0].mxu0
        %10794 = vmatprep.mubr.bf16.mxu0 0
        %10795 = vmatmul.mubr.bf16.gmra.mrb[0].mxu0 %v10687
        %v10796 = vpop.f32.mrb[0].mxu0
        %v10797 = vadd.f32 0.0, %v10796
        %v10798 = vpop.f32.mrb[0].mxu0
        %v10799 = vpop.f32.mrb[0].mxu0
        %v10800 = vadd.f32 0.0, %v10799
        %v10801 = vpop.f32.mrb[0].mxu0
        %10802 = vmatprep.mubr.bf16.mxu0 0
        %10803 = vmatmul.mubr.bf16.gmra.mrb[0].mxu0 %v10690
        %v10804 = vpop.f32.mrb[0].mxu0
        %v10805 = vadd.f32 0.0, %v10804
        %v10806 = vpop.f32.mrb[0].mxu0
        %v10807 = vpop.f32.mrb[0].mxu0
        %v10808 = vadd.f32 0.0, %v10807
        %v10809 = vpop.f32.mrb[0].mxu0
        %10810 = vmatprep.mubr.bf16.mxu0 0
        %10811 = vmatmul.mubr.bf16.gmra.mrb[0].mxu0 %v10693
        %v10812 = vpop.f32.mrb[0].mxu0
        %v10813 = vadd.f32 0.0, %v10812
        %v10814 = vpop.f32.mrb[0].mxu0
        %v10815 = vpop.f32.mrb[0].mxu0
        %v10816 = vadd.f32 0.0, %v10815
        %v10817 = vpop.f32.mrb[0].mxu0
        %10818 = vmatprep.mubr.bf16.mxu0 0
        %10819 = vmatmul.mubr.bf16.gmra.mrb[0].mxu0 %v10696
        %v10820 = vpop.f32.mrb[0].mxu0
        %v10821 = vadd.f32 0.0, %v10820
        %v10822 = vpop.f32.mrb[0].mxu0
        %v10823 = vpop.f32.mrb[0].mxu0
        %v10824 = vadd.f32 0.0, %v10823
        %v10825 = vpop.f32.mrb[0].mxu0
        %10826 = vmatprep.mubr.bf16.mxu0 0
        %10827 = vmatmul.mubr.bf16.gmra.mrb[0].mxu0 %v10699
        %v10828 = vpop.f32.mrb[0].mxu0
        %v10829 = vadd.f32 0.0, %v10828
        %v10830 = vpop.f32.mrb[0].mxu0
        %v10831 = vpop.f32.mrb[0].mxu0
        %v10832 = vadd.f32 0.0, %v10831
        %v10833 = vpop.f32.mrb[0].mxu0
        %10834 = vmatprep.mubr.bf16.mxu0 0
        %10835 = vmatmul.mubr.bf16.gmra.mrb[0].mxu0 %v10702
        %v10836 = vpop.f32.mrb[0].mxu0
        %v10837 = vadd.f32 0.0, %v10836
        %v10838 = vpop.f32.mrb[0].mxu0
        %v10839 = vpop.f32.mrb[0].mxu0
        %v10840 = vadd.f32 0.0, %v10839
        %v10841 = vpop.f32.mrb[0].mxu0
        %10842 = vmatprep.mubr.bf16.mxu0 0
        %10843 = vmatmul.mubr.bf16.gmra.mrb[0].mxu0 %v10705
        %v10844 = vpop.f32.mrb[0].mxu0
        %v10845 = vadd.f32 0.0, %v10844
        %v10846 = vpop.f32.mrb[0].mxu0
        %v10847 = vpop.f32.mrb[0].mxu0
        %v10848 = vadd.f32 0.0, %v10847
        %v10849 = vpop.f32.mrb[0].mxu0
        %10850 = vmatprep.mubr.bf16.mxu0 0
        %10851 = vmatmul.mubr.bf16.gmra.mrb[0].mxu0 %v10708
        %v10852 = vpop.f32.mrb[0].mxu0
        %v10853 = vadd.f32 0.0, %v10852
        %v10854 = vpop.f32.mrb[0].mxu0
        %v10855 = vpop.f32.mrb[0].mxu0
        %v10856 = vadd.f32 0.0, %v10855
        %v10857 = vpop.f32.mrb[0].mxu0
        %10858 = vmatprep.mubr.bf16.mxu0 0
        %10859 = vmatmul.mubr.bf16.gmra.mrb[0].mxu0 %v10711
        %v10860 = vpop.f32.mrb[0].mxu0
        %v10861 = vadd.f32 0.0, %v10860
        %v10862 = vpop.f32.mrb[0].mxu0
        %v10863 = vpop.f32.mrb[0].mxu0
        %v10864 = vadd.f32 0.0, %v10863
        %v10865 = vpop.f32.mrb[0].mxu0
        %10866 = vmatprep.mubr.bf16.mxu0 0
        %10867 = vmatmul.mubr.bf16.gmra.mrb[0].mxu0 %v10714
        %v10868 = vpop.f32.mrb[0].mxu0
        %v10869 = vadd.f32 0.0, %v10868
        %v10870 = vpop.f32.mrb[0].mxu0
        %v10871 = vpop.f32.mrb[0].mxu0
        %v10872 = vadd.f32 0.0, %v10871
        %v10873 = vpop.f32.mrb[0].mxu0
        %10874 = vmatprep.mubr.bf16.mxu0 0
        %10875 = vmatmul.mubr.bf16.gmra.mrb[0].mxu0 %v10717
        %v10876 = vpop.f32.mrb[0].mxu0
        %v10877 = vadd.f32 0.0, %v10876
        %v10878 = vpop.f32.mrb[0].mxu0
        %v10879 = vpop.f32.mrb[0].mxu0
        %v10880 = vadd.f32 0.0, %v10879
        %v10881 = vpop.f32.mrb[0].mxu0
        %10882 = vdwg.mxu0
        %v10883 = vadd.f32 %v10157, %v10757
        %v10884 = vadd.f32 %v10158, %v10760
        %v10885 = vadd.f32 %v10159, %v10765
        %v10886 = vadd.f32 %v10160, %v10768
        %v10887 = vadd.f32 %v10161, %v10773
        %v10888 = vadd.f32 %v10162, %v10776
        %v10889 = vadd.f32 %v10163, %v10781
        %v10890 = vadd.f32 %v10164, %v10784
        %v10891 = vadd.f32 %v10165, %v10789
        %v10892 = vadd.f32 %v10166, %v10792
        %v10893 = vadd.f32 %v10167, %v10797
        %v10894 = vadd.f32 %v10168, %v10800
        %v10895 = vadd.f32 %v10169, %v10805
        %v10896 = vadd.f32 %v10170, %v10808
        %v10897 = vadd.f32 %v10171, %v10813
        %v10898 = vadd.f32 %v10172, %v10816
        %v10899 = vadd.f32 %v10173, %v10821
        %v10900 = vadd.f32 %v10174, %v10824
        %v10901 = vadd.f32 %v10175, %v10829
        %v10902 = vadd.f32 %v10176, %v10832
        %v10903 = vadd.f32 %v10177, %v10837
        %v10904 = vadd.f32 %v10178, %v10840
        %v10905 = vadd.f32 %v10179, %v10845
        %v10906 = vadd.f32 %v10180, %v10848
        %v10907 = vadd.f32 %v10181, %v10853
        %v10908 = vadd.f32 %v10182, %v10856
        %v10909 = vadd.f32 %v10183, %v10861
        %v10910 = vadd.f32 %v10184, %v10864
        %v10911 = vadd.f32 %v10185, %v10869
        %v10912 = vadd.f32 %v10186, %v10872
        %v10913 = vadd.f32 %v10187, %v10877
        %v10914 = vadd.f32 %v10188, %v10880
        %v10915 = vld [vmem:[%s4178] sm:$0xe]
        %v10916 = vld [vmem:[%s4178 + $0xc] sm:$0xe]
        %v10917 = vld [vmem:[%s4178 + $0x18] sm:$0xe]
        %v10918 = vld [vmem:[%s4178 + $0x24] sm:$0xe]
        %v10919 = vld [vmem:[%s4178 + $0x30] sm:$0xe]
        %v10920 = vld [vmem:[%s4178 + $0x3c] sm:$0xe]
        %v10921 = vld [vmem:[%s4178 + $0x48] sm:$0xe]
        %v10922 = vld [vmem:[%s4178 + $0x54] sm:$0xe]
        %v10923 = vld [vmem:[%s4178 + $0x60] sm:$0xe]
        %v10924 = vld [vmem:[%s4178 + $0x6c] sm:$0xe]
        %v10925 = vld [vmem:[%s4178 + $0x78] sm:$0xe]
        %v10926 = vld [vmem:[%s4178 + $0x84] sm:$0xe]
        %v10927 = vld [vmem:[%s4178 + $0x90] sm:$0xe]
        %v10928 = vld [vmem:[%s4178 + $0x9c] sm:$0xe]
        %v10929 = vld [vmem:[%s4178 + $0xa8] sm:$0xe]
        %v10930 = vld [vmem:[%s4178 + $0xb4] sm:$0xe]
        %v10979 = vrot.slane %v10915, 5
        %v10980 = vrot.slane %v10979, 4
        %v10981 = vrot.slane %v10190, 5
        %v10982 = vsel %vm2217, %v10980, %v10981
        %v10983 = vrot.slane %v10981, 4
        %v10984 = vrot.slane %v10191, 5
        %v10985 = vsel %vm2217, %v10983, %v10984
        %v10986 = vrot.slane %v10916, 5
        %v10987 = vrot.slane %v10986, 4
        %v10988 = vrot.slane %v10193, 5
        %v10989 = vsel %vm2217, %v10987, %v10988
        %v10990 = vrot.slane %v10988, 4
        %v10991 = vrot.slane %v10194, 5
        %v10992 = vsel %vm2217, %v10990, %v10991
        %v10993 = vrot.slane %v10917, 5
        %v10994 = vrot.slane %v10993, 4
        %v10995 = vrot.slane %v10196, 5
        %v10996 = vsel %vm2217, %v10994, %v10995
        %v10997 = vrot.slane %v10995, 4
        %v10998 = vrot.slane %v10197, 5
        %v10999 = vsel %vm2217, %v10997, %v10998
        %v11000 = vrot.slane %v10918, 5
        %v11001 = vrot.slane %v11000, 4
        %v11002 = vrot.slane %v10199, 5
        %v11003 = vsel %vm2217, %v11001, %v11002
        %v11004 = vrot.slane %v11002, 4
        %v11005 = vrot.slane %v10200, 5
        %v11006 = vsel %vm2217, %v11004, %v11005
        %v11007 = vrot.slane %v10919, 5
        %v11008 = vrot.slane %v11007, 4
        %v11009 = vrot.slane %v10202, 5
        %v11010 = vsel %vm2217, %v11008, %v11009
        %v11011 = vrot.slane %v11009, 4
        %v11012 = vrot.slane %v10203, 5
        %v11013 = vsel %vm2217, %v11011, %v11012
        %v11014 = vrot.slane %v10920, 5
        %v11015 = vrot.slane %v11014, 4
        %v11016 = vrot.slane %v10205, 5
        %v11017 = vsel %vm2217, %v11015, %v11016
        %v11018 = vrot.slane %v11016, 4
        %v11019 = vrot.slane %v10206, 5
        %v11020 = vsel %vm2217, %v11018, %v11019
        %v11021 = vrot.slane %v10921, 5
        %v11022 = vrot.slane %v11021, 4
        %v11023 = vrot.slane %v10208, 5
        %v11024 = vsel %vm2217, %v11022, %v11023
        %v11025 = vrot.slane %v11023, 4
        %v11026 = vrot.slane %v10209, 5
        %v11027 = vsel %vm2217, %v11025, %v11026
        %v11028 = vrot.slane %v10922, 5
        %v11029 = vrot.slane %v11028, 4
        %v11030 = vrot.slane %v10211, 5
        %v11031 = vsel %vm2217, %v11029, %v11030
        %v11032 = vrot.slane %v11030, 4
        %v11033 = vrot.slane %v10212, 5
        %v11034 = vsel %vm2217, %v11032, %v11033
        %v11035 = vrot.slane %v10923, 5
        %v11036 = vrot.slane %v11035, 4
        %v11037 = vrot.slane %v10214, 5
        %v11038 = vsel %vm2217, %v11036, %v11037
        %v11039 = vrot.slane %v11037, 4
        %v11040 = vrot.slane %v10215, 5
        %v11041 = vsel %vm2217, %v11039, %v11040
        %v11042 = vrot.slane %v10924, 5
        %v11043 = vrot.slane %v11042, 4
        %v11044 = vrot.slane %v10217, 5
        %v11045 = vsel %vm2217, %v11043, %v11044
        %v11046 = vrot.slane %v11044, 4
        %v11047 = vrot.slane %v10218, 5
        %v11048 = vsel %vm2217, %v11046, %v11047
        %v11049 = vrot.slane %v10925, 5
        %v11050 = vrot.slane %v11049, 4
        %v11051 = vrot.slane %v10220, 5
        %v11052 = vsel %vm2217, %v11050, %v11051
        %v11053 = vrot.slane %v11051, 4
        %v11054 = vrot.slane %v10221, 5
        %v11055 = vsel %vm2217, %v11053, %v11054
        %v11056 = vrot.slane %v10926, 5
        %v11057 = vrot.slane %v11056, 4
        %v11058 = vrot.slane %v10223, 5
        %v11059 = vsel %vm2217, %v11057, %v11058
        %v11060 = vrot.slane %v11058, 4
        %v11061 = vrot.slane %v10224, 5
        %v11062 = vsel %vm2217, %v11060, %v11061
        %v11063 = vrot.slane %v10927, 5
        %v11064 = vrot.slane %v11063, 4
        %v11065 = vrot.slane %v10226, 5
        %v11066 = vsel %vm2217, %v11064, %v11065
        %v11067 = vrot.slane %v11065, 4
        %v11068 = vrot.slane %v10227, 5
        %v11069 = vsel %vm2217, %v11067, %v11068
        %v11070 = vrot.slane %v10928, 5
        %v11071 = vrot.slane %v11070, 4
        %v11072 = vrot.slane %v10229, 5
        %v11073 = vsel %vm2217, %v11071, %v11072
        %v11074 = vrot.slane %v11072, 4
        %v11075 = vrot.slane %v10230, 5
        %v11076 = vsel %vm2217, %v11074, %v11075
        %v11077 = vrot.slane %v10929, 5
        %v11078 = vrot.slane %v11077, 4
        %v11079 = vrot.slane %v10232, 5
        %v11080 = vsel %vm2217, %v11078, %v11079
        %v11081 = vrot.slane %v11079, 4
        %v11082 = vrot.slane %v10233, 5
        %v11083 = vsel %vm2217, %v11081, %v11082
        %v11084 = vrot.slane %v10930, 5
        %v11085 = vrot.slane %v11084, 4
        %v11086 = vrot.slane %v10235, 5
        %v11087 = vsel %vm2217, %v11085, %v11086
        %v11088 = vrot.slane %v11086, 4
        %v11089 = vrot.slane %v10236, 5
        %v11090 = vsel %vm2217, %v11088, %v11089
        %s11091 = scalar_lea.vmem [#allocation9], 16
        %v11092 = vld [vmem:[%s11091] sm:$0x3]
        %v11093 = vunpack.c.l.b16 %v10982
        %v11094 = vunpack.c.l.b16 %v10985
        %v11095 = vunpack.c.l.b16 %v10989
        %v11096 = vunpack.c.l.b16 %v10992
        %v11097 = vunpack.c.l.b16 %v10996
        %v11098 = vunpack.c.l.b16 %v10999
        %v11099 = vunpack.c.l.b16 %v11003
        %v11100 = vunpack.c.l.b16 %v11006
        %v11101 = vunpack.c.l.b16 %v11010
        %v11102 = vunpack.c.l.b16 %v11013
        %v11103 = vunpack.c.l.b16 %v11017
        %v11104 = vunpack.c.l.b16 %v11020
        %v11105 = vunpack.c.l.b16 %v11024
        %v11106 = vunpack.c.l.b16 %v11027
        %v11107 = vunpack.c.l.b16 %v11031
        %v11108 = vunpack.c.l.b16 %v11034
        %v11109 = vunpack.c.l.b16 %v11038
        %v11110 = vunpack.c.l.b16 %v11041
        %v11111 = vunpack.c.l.b16 %v11045
        %v11112 = vunpack.c.l.b16 %v11048
        %v11113 = vunpack.c.l.b16 %v11052
        %v11114 = vunpack.c.l.b16 %v11055
        %v11115 = vunpack.c.l.b16 %v11059
        %v11116 = vunpack.c.l.b16 %v11062
        %v11117 = vunpack.c.l.b16 %v11066
        %v11118 = vunpack.c.l.b16 %v11069
        %v11119 = vunpack.c.l.b16 %v11073
        %v11120 = vunpack.c.l.b16 %v11076
        %v11121 = vunpack.c.l.b16 %v11080
        %v11122 = vunpack.c.l.b16 %v11083
        %v11123 = vunpack.c.l.b16 %v11087
        %v11124 = vunpack.c.l.b16 %v11090
        %v11125 = vpack.c.b16 %v11094, %v11093
        %v11126 = vpack.c.b16 %v11096, %v11095
        %v11127 = vpack.c.b16 %v11098, %v11097
        %v11128 = vpack.c.b16 %v11100, %v11099
        %v11129 = vpack.c.b16 %v11102, %v11101
        %v11130 = vpack.c.b16 %v11104, %v11103
        %v11131 = vpack.c.b16 %v11106, %v11105
        %v11132 = vpack.c.b16 %v11108, %v11107
        %v11133 = vpack.c.b16 %v11110, %v11109
        %v11134 = vpack.c.b16 %v11112, %v11111
        %v11135 = vpack.c.b16 %v11114, %v11113
        %v11136 = vpack.c.b16 %v11116, %v11115
        %v11137 = vpack.c.b16 %v11118, %v11117
        %v11138 = vpack.c.b16 %v11120, %v11119
        %v11139 = vpack.c.b16 %v11122, %v11121
        %v11140 = vpack.c.b16 %v11124, %v11123
        %v11142 = vsel %vm1208, %v11125, 0
        %v11145 = vsel %vm1208, %v11126, 0
        %v11148 = vsel %vm1208, %v11127, 0
        %v11151 = vsel %vm1208, %v11128, 0
        %v11154 = vsel %vm1208, %v11129, 0
        %v11157 = vsel %vm1208, %v11130, 0
        %v11160 = vsel %vm1208, %v11131, 0
        %v11163 = vsel %vm1208, %v11132, 0
        %v11166 = vsel %vm1208, %v11133, 0
        %v11169 = vsel %vm1208, %v11134, 0
        %v11172 = vsel %vm1208, %v11135, 0
        %v11175 = vsel %vm1208, %v11136, 0
        %v11178 = vsel %vm1208, %v11137, 0
        %v11181 = vsel %vm1208, %v11138, 0
        %v11184 = vsel %vm1208, %v11139, 0
        %v11187 = vsel %vm1208, %v11140, 0
        %v11190 = vsel %vm1257, %v11092, 0
        %11192 = vmatprep.subr.bf16.mxu0 0
        %11193 = vmatpush1.bf16.msra.mxu0 %v11190
        %11194 = vmatprep.subr.bf16.mxu0 0
        %11195 = vmatpush1.bf16.msra.mxu0 0
        %11196 = vmatprep.subr.bf16.mxu0 0
        %11197 = vmatpush1.bf16.msra.mxu0 0
        %11198 = vmatprep.subr.bf16.mxu0 0
        %11199 = vmatpush1.bf16.msra.mxu0 0
        %11200 = vmatprep.subr.bf16.mxu0 0
        %11201 = vmatpush1.bf16.msra.mxu0 0
        %11202 = vmatprep.subr.bf16.mxu0 0
        %11203 = vmatpush1.bf16.msra.mxu0 0
        %11204 = vmatprep.subr.bf16.mxu0 0
        %11205 = vmatpush1.bf16.msra.mxu0 0
        %11206 = vmatprep.subr.bf16.mxu0 0
        %11207 = vmatpush1.bf16.msra.mxu0 0
        %11208 = vmatprep.subr.bf16.mxu0 0
        %11209 = vmatpush1.bf16.msra.mxu0 0
        %11210 = vmatprep.subr.bf16.mxu0 0
        %11211 = vmatpush1.bf16.msra.mxu0 0
        %11212 = vmatprep.subr.bf16.mxu0 0
        %11213 = vmatpush1.bf16.msra.mxu0 0
        %11214 = vmatprep.subr.bf16.mxu0 0
        %11215 = vmatpush1.bf16.msra.mxu0 0
        %11216 = vmatprep.subr.bf16.mxu0 0
        %11217 = vmatpush1.bf16.msra.mxu0 0
        %11218 = vmatprep.subr.bf16.mxu0 0
        %11219 = vmatpush1.bf16.msra.mxu0 0
        %11220 = vmatprep.subr.bf16.mxu0 0
        %11221 = vmatpush1.bf16.msra.mxu0 0
        %11222 = vmatprep.subr.bf16.mxu0 0
        %11223 = vmatpush1.bf16.msra.mxu0 0
        %11224 = vmatprep.mubr.bf16.mxu0 0
        %11225 = vmatmul.mubr.bf16.gmra.mrb[0].mxu0 %v11142
        %v11226 = vpop.f32.mrb[0].mxu0
        %v11227 = vadd.f32 0.0, %v11226
        %v11228 = vpop.f32.mrb[0].mxu0
        %v11229 = vpop.f32.mrb[0].mxu0
        %v11230 = vadd.f32 0.0, %v11229
        %v11231 = vpop.f32.mrb[0].mxu0
        %11232 = vmatprep.mubr.bf16.mxu0 0
        %11233 = vmatmul.mubr.bf16.gmra.mrb[0].mxu0 %v11145
        %v11234 = vpop.f32.mrb[0].mxu0
        %v11235 = vadd.f32 0.0, %v11234
        %v11236 = vpop.f32.mrb[0].mxu0
        %v11237 = vpop.f32.mrb[0].mxu0
        %v11238 = vadd.f32 0.0, %v11237
        %v11239 = vpop.f32.mrb[0].mxu0
        %11240 = vmatprep.mubr.bf16.mxu0 0
        %11241 = vmatmul.mubr.bf16.gmra.mrb[0].mxu0 %v11148
        %v11242 = vpop.f32.mrb[0].mxu0
        %v11243 = vadd.f32 0.0, %v11242
        %v11244 = vpop.f32.mrb[0].mxu0
        %v11245 = vpop.f32.mrb[0].mxu0
        %v11246 = vadd.f32 0.0, %v11245
        %v11247 = vpop.f32.mrb[0].mxu0
        %11248 = vmatprep.mubr.bf16.mxu0 0
        %11249 = vmatmul.mubr.bf16.gmra.mrb[0].mxu0 %v11151
        %v11250 = vpop.f32.mrb[0].mxu0
        %v11251 = vadd.f32 0.0, %v11250
        %v11252 = vpop.f32.mrb[0].mxu0
        %v11253 = vpop.f32.mrb[0].mxu0
        %v11254 = vadd.f32 0.0, %v11253
        %v11255 = vpop.f32.mrb[0].mxu0
        %11256 = vmatprep.mubr.bf16.mxu0 0
        %11257 = vmatmul.mubr.bf16.gmra.mrb[0].mxu0 %v11154
        %v11258 = vpop.f32.mrb[0].mxu0
        %v11259 = vadd.f32 0.0, %v11258
        %v11260 = vpop.f32.mrb[0].mxu0
        %v11261 = vpop.f32.mrb[0].mxu0
        %v11262 = vadd.f32 0.0, %v11261
        %v11263 = vpop.f32.mrb[0].mxu0
        %11264 = vmatprep.mubr.bf16.mxu0 0
        %11265 = vmatmul.mubr.bf16.gmra.mrb[0].mxu0 %v11157
        %v11266 = vpop.f32.mrb[0].mxu0
        %v11267 = vadd.f32 0.0, %v11266
        %v11268 = vpop.f32.mrb[0].mxu0
        %v11269 = vpop.f32.mrb[0].mxu0
        %v11270 = vadd.f32 0.0, %v11269
        %v11271 = vpop.f32.mrb[0].mxu0
        %11272 = vmatprep.mubr.bf16.mxu0 0
        %11273 = vmatmul.mubr.bf16.gmra.mrb[0].mxu0 %v11160
        %v11274 = vpop.f32.mrb[0].mxu0
        %v11275 = vadd.f32 0.0, %v11274
        %v11276 = vpop.f32.mrb[0].mxu0
        %v11277 = vpop.f32.mrb[0].mxu0
        %v11278 = vadd.f32 0.0, %v11277
        %v11279 = vpop.f32.mrb[0].mxu0
        %11280 = vmatprep.mubr.bf16.mxu0 0
        %11281 = vmatmul.mubr.bf16.gmra.mrb[0].mxu0 %v11163
        %v11282 = vpop.f32.mrb[0].mxu0
        %v11283 = vadd.f32 0.0, %v11282
        %v11284 = vpop.f32.mrb[0].mxu0
        %v11285 = vpop.f32.mrb[0].mxu0
        %v11286 = vadd.f32 0.0, %v11285
        %v11287 = vpop.f32.mrb[0].mxu0
        %11288 = vmatprep.mubr.bf16.mxu0 0
        %11289 = vmatmul.mubr.bf16.gmra.mrb[0].mxu0 %v11166
        %v11290 = vpop.f32.mrb[0].mxu0
        %v11291 = vadd.f32 0.0, %v11290
        %v11292 = vpop.f32.mrb[0].mxu0
        %v11293 = vpop.f32.mrb[0].mxu0
        %v11294 = vadd.f32 0.0, %v11293
        %v11295 = vpop.f32.mrb[0].mxu0
        %11296 = vmatprep.mubr.bf16.mxu0 0
        %11297 = vmatmul.mubr.bf16.gmra.mrb[0].mxu0 %v11169
        %v11298 = vpop.f32.mrb[0].mxu0
        %v11299 = vadd.f32 0.0, %v11298
        %v11300 = vpop.f32.mrb[0].mxu0
        %v11301 = vpop.f32.mrb[0].mxu0
        %v11302 = vadd.f32 0.0, %v11301
        %v11303 = vpop.f32.mrb[0].mxu0
        %11304 = vmatprep.mubr.bf16.mxu0 0
        %11305 = vmatmul.mubr.bf16.gmra.mrb[0].mxu0 %v11172
        %v11306 = vpop.f32.mrb[0].mxu0
        %v11307 = vadd.f32 0.0, %v11306
        %v11308 = vpop.f32.mrb[0].mxu0
        %v11309 = vpop.f32.mrb[0].mxu0
        %v11310 = vadd.f32 0.0, %v11309
        %v11311 = vpop.f32.mrb[0].mxu0
        %11312 = vmatprep.mubr.bf16.mxu0 0
        %11313 = vmatmul.mubr.bf16.gmra.mrb[0].mxu0 %v11175
        %v11314 = vpop.f32.mrb[0].mxu0
        %v11315 = vadd.f32 0.0, %v11314
        %v11316 = vpop.f32.mrb[0].mxu0
        %v11317 = vpop.f32.mrb[0].mxu0
        %v11318 = vadd.f32 0.0, %v11317
        %v11319 = vpop.f32.mrb[0].mxu0
        %11320 = vmatprep.mubr.bf16.mxu0 0
        %11321 = vmatmul.mubr.bf16.gmra.mrb[0].mxu0 %v11178
        %v11322 = vpop.f32.mrb[0].mxu0
        %v11323 = vadd.f32 0.0, %v11322
        %v11324 = vpop.f32.mrb[0].mxu0
        %v11325 = vpop.f32.mrb[0].mxu0
        %v11326 = vadd.f32 0.0, %v11325
        %v11327 = vpop.f32.mrb[0].mxu0
        %11328 = vmatprep.mubr.bf16.mxu0 0
        %11329 = vmatmul.mubr.bf16.gmra.mrb[0].mxu0 %v11181
        %v11330 = vpop.f32.mrb[0].mxu0
        %v11331 = vadd.f32 0.0, %v11330
        %v11332 = vpop.f32.mrb[0].mxu0
        %v11333 = vpop.f32.mrb[0].mxu0
        %v11334 = vadd.f32 0.0, %v11333
        %v11335 = vpop.f32.mrb[0].mxu0
        %11336 = vmatprep.mubr.bf16.mxu0 0
        %11337 = vmatmul.mubr.bf16.gmra.mrb[0].mxu0 %v11184
        %v11338 = vpop.f32.mrb[0].mxu0
        %v11339 = vadd.f32 0.0, %v11338
        %v11340 = vpop.f32.mrb[0].mxu0
        %v11341 = vpop.f32.mrb[0].mxu0
        %v11342 = vadd.f32 0.0, %v11341
        %v11343 = vpop.f32.mrb[0].mxu0
        %11344 = vmatprep.mubr.bf16.mxu0 0
        %11345 = vmatmul.mubr.bf16.gmra.mrb[0].mxu0 %v11187
        %v11346 = vpop.f32.mrb[0].mxu0
        %v11347 = vadd.f32 0.0, %v11346
        %v11348 = vpop.f32.mrb[0].mxu0
        %v11349 = vpop.f32.mrb[0].mxu0
        %v11350 = vadd.f32 0.0, %v11349
        %v11351 = vpop.f32.mrb[0].mxu0
        %11352 = vdwg.mxu0
        %v11353 = vadd.f32 %v10883, %v11227
        %v11354 = vadd.f32 %v10884, %v11230
        %v11355 = vadd.f32 %v10885, %v11235
        %v11356 = vadd.f32 %v10886, %v11238
        %v11357 = vadd.f32 %v10887, %v11243
        %v11358 = vadd.f32 %v10888, %v11246
        %v11359 = vadd.f32 %v10889, %v11251
        %v11360 = vadd.f32 %v10890, %v11254
        %v11361 = vadd.f32 %v10891, %v11259
        %v11362 = vadd.f32 %v10892, %v11262
        %v11363 = vadd.f32 %v10893, %v11267
        %v11364 = vadd.f32 %v10894, %v11270
        %v11365 = vadd.f32 %v10895, %v11275
        %v11366 = vadd.f32 %v10896, %v11278
        %v11367 = vadd.f32 %v10897, %v11283
        %v11368 = vadd.f32 %v10898, %v11286
        %v11369 = vadd.f32 %v10899, %v11291
        %v11370 = vadd.f32 %v10900, %v11294
        %v11371 = vadd.f32 %v10901, %v11299
        %v11372 = vadd.f32 %v10902, %v11302
        %v11373 = vadd.f32 %v10903, %v11307
        %v11374 = vadd.f32 %v10904, %v11310
        %v11375 = vadd.f32 %v10905, %v11315
        %v11376 = vadd.f32 %v10906, %v11318
        %v11377 = vadd.f32 %v10907, %v11323
        %v11378 = vadd.f32 %v10908, %v11326
        %v11379 = vadd.f32 %v10909, %v11331
        %v11380 = vadd.f32 %v10910, %v11334
        %v11381 = vadd.f32 %v10911, %v11339
        %v11382 = vadd.f32 %v10912, %v11342
        %v11383 = vadd.f32 %v10913, %v11347
        %v11384 = vadd.f32 %v10914, %v11350
        %v11385 = vsel %vm1208, %v11353, 0.0
        %v11386 = vsel %vm1208, %v11354, 0.0
        %v11387 = vadd.f32 %v11385, %v11386
        %v11388 = vsel %vm1208, %v11355, 0.0
        %v11389 = vadd.f32 %v11387, %v11388
        %v11390 = vsel %vm1208, %v11356, 0.0
        %v11391 = vadd.f32 %v11389, %v11390
        %v11392 = vsel %vm1208, %v11357, 0.0
        %v11393 = vadd.f32 %v11391, %v11392
        %v11394 = vsel %vm1208, %v11358, 0.0
        %v11395 = vadd.f32 %v11393, %v11394
        %v11396 = vsel %vm1208, %v11359, 0.0
        %v11397 = vadd.f32 %v11395, %v11396
        %v11398 = vsel %vm1208, %v11360, 0.0
        %v11399 = vadd.f32 %v11397, %v11398
        %v11400 = vsel %vm1208, %v11361, 0.0
        %v11401 = vadd.f32 %v11399, %v11400
        %v11402 = vsel %vm1208, %v11362, 0.0
        %v11403 = vadd.f32 %v11401, %v11402
        %v11404 = vsel %vm1208, %v11363, 0.0
        %v11405 = vadd.f32 %v11403, %v11404
        %v11406 = vsel %vm1208, %v11364, 0.0
        %v11407 = vadd.f32 %v11405, %v11406
        %v11408 = vsel %vm1208, %v11365, 0.0
        %v11409 = vadd.f32 %v11407, %v11408
        %v11410 = vsel %vm1208, %v11366, 0.0
        %v11411 = vadd.f32 %v11409, %v11410
        %v11412 = vsel %vm1208, %v11367, 0.0
        %v11413 = vadd.f32 %v11411, %v11412
        %v11414 = vsel %vm1208, %v11368, 0.0
        %v11415 = vadd.f32 %v11413, %v11414
        %v11416 = vsel %vm1208, %v11369, 0.0
        %v11417 = vadd.f32 %v11415, %v11416
        %v11418 = vsel %vm1208, %v11370, 0.0
        %v11419 = vadd.f32 %v11417, %v11418
        %v11420 = vsel %vm1208, %v11371, 0.0
        %v11421 = vadd.f32 %v11419, %v11420
        %v11422 = vsel %vm1208, %v11372, 0.0
        %v11423 = vadd.f32 %v11421, %v11422
        %v11424 = vsel %vm1208, %v11373, 0.0
        %v11425 = vadd.f32 %v11423, %v11424
        %v11426 = vsel %vm1208, %v11374, 0.0
        %v11427 = vadd.f32 %v11425, %v11426
        %v11428 = vsel %vm1208, %v11375, 0.0
        %v11429 = vadd.f32 %v11427, %v11428
        %v11430 = vsel %vm1208, %v11376, 0.0
        %v11431 = vadd.f32 %v11429, %v11430
        %v11432 = vsel %vm1208, %v11377, 0.0
        %v11433 = vadd.f32 %v11431, %v11432
        %v11434 = vsel %vm1208, %v11378, 0.0
        %v11435 = vadd.f32 %v11433, %v11434
        %v11436 = vsel %vm1208, %v11379, 0.0
        %v11437 = vadd.f32 %v11435, %v11436
        %v11438 = vsel %vm1208, %v11380, 0.0
        %v11439 = vadd.f32 %v11437, %v11438
        %v11440 = vsel %vm1208, %v11381, 0.0
        %v11441 = vadd.f32 %v11439, %v11440
        %v11442 = vsel %vm1208, %v11382, 0.0
        %v11443 = vadd.f32 %v11441, %v11442
        %v11444 = vsel %vm1208, %v11383, 0.0
        %v11445 = vadd.f32 %v11443, %v11444
        %v11446 = vsel %vm1208, %v11384, 0.0
        %v11447 = vadd.f32 %v11445, %v11446
        %v11448 = vrot.slane %v11447, 4
        %v11449 = vadd.f32 %v11447, %v11448
        %v11450 = vrot.slane %v11449, 2
        %v11451 = vadd.f32 %v11449, %v11450
        %v11452 = vrot.slane %v11451, 1
        %v11453 = vadd.f32 %v11451, %v11452
        %v11454 = vmul.f32 %v11453, %v5802
        %v11455 = vsub.f32 %v11353, %v11454
        %v11456 = vsub.f32 %v11354, %v11454
        %v11457 = vsub.f32 %v11355, %v11454
        %v11458 = vsub.f32 %v11356, %v11454
        %v11459 = vsub.f32 %v11357, %v11454
        %v11460 = vsub.f32 %v11358, %v11454
        %v11461 = vsub.f32 %v11359, %v11454
        %v11462 = vsub.f32 %v11360, %v11454
        %v11463 = vsub.f32 %v11361, %v11454
        %v11464 = vsub.f32 %v11362, %v11454
        %v11465 = vsub.f32 %v11363, %v11454
        %v11466 = vsub.f32 %v11364, %v11454
        %v11467 = vsub.f32 %v11365, %v11454
        %v11468 = vsub.f32 %v11366, %v11454
        %v11469 = vsub.f32 %v11367, %v11454
        %v11470 = vsub.f32 %v11368, %v11454
        %v11471 = vsub.f32 %v11369, %v11454
        %v11472 = vsub.f32 %v11370, %v11454
        %v11473 = vsub.f32 %v11371, %v11454
        %v11474 = vsub.f32 %v11372, %v11454
        %v11475 = vsub.f32 %v11373, %v11454
        %v11476 = vsub.f32 %v11374, %v11454
        %v11477 = vsub.f32 %v11375, %v11454
        %v11478 = vsub.f32 %v11376, %v11454
        %v11479 = vsub.f32 %v11377, %v11454
        %v11480 = vsub.f32 %v11378, %v11454
        %v11481 = vsub.f32 %v11379, %v11454
        %v11482 = vsub.f32 %v11380, %v11454
        %v11483 = vsub.f32 %v11381, %v11454
        %v11484 = vsub.f32 %v11382, %v11454
        %v11485 = vsub.f32 %v11383, %v11454
        %v11486 = vsub.f32 %v11384, %v11454
        %v11487 = vmul.f32 %v11455, %v11455
        %v11488 = vmul.f32 %v11456, %v11456
        %v11489 = vmul.f32 %v11457, %v11457
        %v11490 = vmul.f32 %v11458, %v11458
        %v11491 = vmul.f32 %v11459, %v11459
        %v11492 = vmul.f32 %v11460, %v11460
        %v11493 = vmul.f32 %v11461, %v11461
        %v11494 = vmul.f32 %v11462, %v11462
        %v11495 = vmul.f32 %v11463, %v11463
        %v11496 = vmul.f32 %v11464, %v11464
        %v11497 = vmul.f32 %v11465, %v11465
        %v11498 = vmul.f32 %v11466, %v11466
        %v11499 = vmul.f32 %v11467, %v11467
        %v11500 = vmul.f32 %v11468, %v11468
        %v11501 = vmul.f32 %v11469, %v11469
        %v11502 = vmul.f32 %v11470, %v11470
        %v11503 = vmul.f32 %v11471, %v11471
        %v11504 = vmul.f32 %v11472, %v11472
        %v11505 = vmul.f32 %v11473, %v11473
        %v11506 = vmul.f32 %v11474, %v11474
        %v11507 = vmul.f32 %v11475, %v11475
        %v11508 = vmul.f32 %v11476, %v11476
        %v11509 = vmul.f32 %v11477, %v11477
        %v11510 = vmul.f32 %v11478, %v11478
        %v11511 = vmul.f32 %v11479, %v11479
        %v11512 = vmul.f32 %v11480, %v11480
        %v11513 = vmul.f32 %v11481, %v11481
        %v11514 = vmul.f32 %v11482, %v11482
        %v11515 = vmul.f32 %v11483, %v11483
        %v11516 = vmul.f32 %v11484, %v11484
        %v11517 = vmul.f32 %v11485, %v11485
        %v11518 = vmul.f32 %v11486, %v11486
        %v11519 = vsel %vm1208, %v11487, 0.0
        %v11520 = vsel %vm1208, %v11488, 0.0
        %v11521 = vadd.f32 %v11519, %v11520
        %v11522 = vsel %vm1208, %v11489, 0.0
        %v11523 = vadd.f32 %v11521, %v11522
        %v11524 = vsel %vm1208, %v11490, 0.0
        %v11525 = vadd.f32 %v11523, %v11524
        %v11526 = vsel %vm1208, %v11491, 0.0
        %v11527 = vadd.f32 %v11525, %v11526
        %v11528 = vsel %vm1208, %v11492, 0.0
        %v11529 = vadd.f32 %v11527, %v11528
        %v11530 = vsel %vm1208, %v11493, 0.0
        %v11531 = vadd.f32 %v11529, %v11530
        %v11532 = vsel %vm1208, %v11494, 0.0
        %v11533 = vadd.f32 %v11531, %v11532
        %v11534 = vsel %vm1208, %v11495, 0.0
        %v11535 = vadd.f32 %v11533, %v11534
        %v11536 = vsel %vm1208, %v11496, 0.0
        %v11537 = vadd.f32 %v11535, %v11536
        %v11538 = vsel %vm1208, %v11497, 0.0
        %v11539 = vadd.f32 %v11537, %v11538
        %v11540 = vsel %vm1208, %v11498, 0.0
        %v11541 = vadd.f32 %v11539, %v11540
        %v11542 = vsel %vm1208, %v11499, 0.0
        %v11543 = vadd.f32 %v11541, %v11542
        %v11544 = vsel %vm1208, %v11500, 0.0
        %v11545 = vadd.f32 %v11543, %v11544
        %v11546 = vsel %vm1208, %v11501, 0.0
        %v11547 = vadd.f32 %v11545, %v11546
        %v11548 = vsel %vm1208, %v11502, 0.0
        %v11549 = vadd.f32 %v11547, %v11548
        %v11550 = vsel %vm1208, %v11503, 0.0
        %v11551 = vadd.f32 %v11549, %v11550
        %v11552 = vsel %vm1208, %v11504, 0.0
        %v11553 = vadd.f32 %v11551, %v11552
        %v11554 = vsel %vm1208, %v11505, 0.0
        %v11555 = vadd.f32 %v11553, %v11554
        %v11556 = vsel %vm1208, %v11506, 0.0
        %v11557 = vadd.f32 %v11555, %v11556
        %v11558 = vsel %vm1208, %v11507, 0.0
        %v11559 = vadd.f32 %v11557, %v11558
        %v11560 = vsel %vm1208, %v11508, 0.0
        %v11561 = vadd.f32 %v11559, %v11560
        %v11562 = vsel %vm1208, %v11509, 0.0
        %v11563 = vadd.f32 %v11561, %v11562
        %v11564 = vsel %vm1208, %v11510, 0.0
        %v11565 = vadd.f32 %v11563, %v11564
        %v11566 = vsel %vm1208, %v11511, 0.0
        %v11567 = vadd.f32 %v11565, %v11566
        %v11568 = vsel %vm1208, %v11512, 0.0
        %v11569 = vadd.f32 %v11567, %v11568
        %v11570 = vsel %vm1208, %v11513, 0.0
        %v11571 = vadd.f32 %v11569, %v11570
        %v11572 = vsel %vm1208, %v11514, 0.0
        %v11573 = vadd.f32 %v11571, %v11572
        %v11574 = vsel %vm1208, %v11515, 0.0
        %v11575 = vadd.f32 %v11573, %v11574
        %v11576 = vsel %vm1208, %v11516, 0.0
        %v11577 = vadd.f32 %v11575, %v11576
        %v11578 = vsel %vm1208, %v11517, 0.0
        %v11579 = vadd.f32 %v11577, %v11578
        %v11580 = vsel %vm1208, %v11518, 0.0
        %v11581 = vadd.f32 %v11579, %v11580
        %v11582 = vrot.slane %v11581, 4
        %v11583 = vadd.f32 %v11581, %v11582
        %v11584 = vrot.slane %v11583, 2
        %v11585 = vadd.f32 %v11583, %v11584
        %v11586 = vrot.slane %v11585, 1
        %v11587 = vadd.f32 %v11585, %v11586
        %v11588 = vmul.f32 %v11587, %v5802
        %v11589 = vadd.f32 %v11588, 1e-05
        %v11590 = vrsqrt.pop %v11589
        %v11591 = vmul.f32 %v11455, %v11590
        %v11592 = vmul.f32 %v11456, %v11590
        %v11593 = vmul.f32 %v11457, %v11590
        %v11594 = vmul.f32 %v11458, %v11590
        %v11595 = vmul.f32 %v11459, %v11590
        %v11596 = vmul.f32 %v11460, %v11590
        %v11597 = vmul.f32 %v11461, %v11590
        %v11598 = vmul.f32 %v11462, %v11590
        %v11599 = vmul.f32 %v11463, %v11590
        %v11600 = vmul.f32 %v11464, %v11590
        %v11601 = vmul.f32 %v11465, %v11590
        %v11602 = vmul.f32 %v11466, %v11590
        %v11603 = vmul.f32 %v11467, %v11590
        %v11604 = vmul.f32 %v11468, %v11590
        %v11605 = vmul.f32 %v11469, %v11590
        %v11606 = vmul.f32 %v11470, %v11590
        %v11607 = vmul.f32 %v11471, %v11590
        %v11608 = vmul.f32 %v11472, %v11590
        %v11609 = vmul.f32 %v11473, %v11590
        %v11610 = vmul.f32 %v11474, %v11590
        %v11611 = vmul.f32 %v11475, %v11590
        %v11612 = vmul.f32 %v11476, %v11590
        %v11613 = vmul.f32 %v11477, %v11590
        %v11614 = vmul.f32 %v11478, %v11590
        %v11615 = vmul.f32 %v11479, %v11590
        %v11616 = vmul.f32 %v11480, %v11590
        %v11617 = vmul.f32 %v11481, %v11590
        %v11618 = vmul.f32 %v11482, %v11590
        %v11619 = vmul.f32 %v11483, %v11590
        %v11620 = vmul.f32 %v11484, %v11590
        %v11621 = vmul.f32 %v11485, %v11590
        %v11622 = vmul.f32 %v11486, %v11590
        %v11623 = vadd.f32 %v298, %v11591
        %v11624 = vadd.f32 %v299, %v11592
        %v11625 = vadd.f32 %v300, %v11593
        %v11626 = vadd.f32 %v301, %v11594
        %v11627 = vadd.f32 %v302, %v11595
        %v11628 = vadd.f32 %v303, %v11596
        %v11629 = vadd.f32 %v304, %v11597
        %v11630 = vadd.f32 %v305, %v11598
        %v11631 = vadd.f32 %v306, %v11599
        %v11632 = vadd.f32 %v307, %v11600
        %v11633 = vadd.f32 %v308, %v11601
        %v11634 = vadd.f32 %v309, %v11602
        %v11635 = vadd.f32 %v310, %v11603
        %v11636 = vadd.f32 %v311, %v11604
        %v11637 = vadd.f32 %v312, %v11605
        %v11638 = vadd.f32 %v313, %v11606
        %v11639 = vadd.f32 %v314, %v11607
        %v11640 = vadd.f32 %v315, %v11608
        %v11641 = vadd.f32 %v316, %v11609
        %v11642 = vadd.f32 %v317, %v11610
        %v11643 = vadd.f32 %v318, %v11611
        %v11644 = vadd.f32 %v319, %v11612
        %v11645 = vadd.f32 %v320, %v11613
        %v11646 = vadd.f32 %v321, %v11614
        %v11647 = vadd.f32 %v322, %v11615
        %v11648 = vadd.f32 %v323, %v11616
        %v11649 = vadd.f32 %v324, %v11617
        %v11650 = vadd.f32 %v325, %v11618
        %v11651 = vadd.f32 %v326, %v11619
        %v11652 = vadd.f32 %v327, %v11620
        %v11653 = vadd.f32 %v328, %v11621
        %v11654 = vadd.f32 %v329, %v11622
        %11655 = vst.msk [vmem:[%s296] sm:$0xff] %vm1208, %v11623
        %11656 = vst.msk [vmem:[%s296 + $0x8] sm:$0xff] %vm1208, %v11624
        %11657 = vst.msk [vmem:[%s296 + $0x10] sm:$0xff] %vm1208, %v11625
        %11658 = vst.msk [vmem:[%s296 + $0x18] sm:$0xff] %vm1208, %v11626
        %11659 = vst.msk [vmem:[%s296 + $0x20] sm:$0xff] %vm1208, %v11627
        %11660 = vst.msk [vmem:[%s296 + $0x28] sm:$0xff] %vm1208, %v11628
        %11661 = vst.msk [vmem:[%s296 + $0x30] sm:$0xff] %vm1208, %v11629
        %11662 = vst.msk [vmem:[%s296 + $0x38] sm:$0xff] %vm1208, %v11630
        %11663 = vst.msk [vmem:[%s296 + $0x40] sm:$0xff] %vm1208, %v11631
        %11664 = vst.msk [vmem:[%s296 + $0x48] sm:$0xff] %vm1208, %v11632
        %11665 = vst.msk [vmem:[%s296 + $0x50] sm:$0xff] %vm1208, %v11633
        %11666 = vst.msk [vmem:[%s296 + $0x58] sm:$0xff] %vm1208, %v11634
        %11667 = vst.msk [vmem:[%s296 + $0x60] sm:$0xff] %vm1208, %v11635
        %11668 = vst.msk [vmem:[%s296 + $0x68] sm:$0xff] %vm1208, %v11636
        %11669 = vst.msk [vmem:[%s296 + $0x70] sm:$0xff] %vm1208, %v11637
        %11670 = vst.msk [vmem:[%s296 + $0x78] sm:$0xff] %vm1208, %v11638
        %11671 = vst.msk [vmem:[%s296 + $0x80] sm:$0xff] %vm1208, %v11639
        %11672 = vst.msk [vmem:[%s296 + $0x88] sm:$0xff] %vm1208, %v11640
        %11673 = vst.msk [vmem:[%s296 + $0x90] sm:$0xff] %vm1208, %v11641
        %11674 = vst.msk [vmem:[%s296 + $0x98] sm:$0xff] %vm1208, %v11642
        %11675 = vst.msk [vmem:[%s296 + $0xa0] sm:$0xff] %vm1208, %v11643
        %11676 = vst.msk [vmem:[%s296 + $0xa8] sm:$0xff] %vm1208, %v11644
        %11677 = vst.msk [vmem:[%s296 + $0xb0] sm:$0xff] %vm1208, %v11645
        %11678 = vst.msk [vmem:[%s296 + $0xb8] sm:$0xff] %vm1208, %v11646
        %11679 = vst.msk [vmem:[%s296 + $0xc0] sm:$0xff] %vm1208, %v11647
        %11680 = vst.msk [vmem:[%s296 + $0xc8] sm:$0xff] %vm1208, %v11648
        %11681 = vst.msk [vmem:[%s296 + $0xd0] sm:$0xff] %vm1208, %v11649
        %11682 = vst.msk [vmem:[%s296 + $0xd8] sm:$0xff] %vm1208, %v11650
        %11683 = vst.msk [vmem:[%s296 + $0xe0] sm:$0xff] %vm1208, %v11651
        %11684 = vst.msk [vmem:[%s296 + $0xe8] sm:$0xff] %vm1208, %v11652
        %11685 = vst.msk [vmem:[%s296 + $0xf0] sm:$0xff] %vm1208, %v11653
        %11686 = vst.msk [vmem:[%s296 + $0xf8] sm:$0xff] %vm1208, %v11654
        %s11687 = sand.u32 %s142, 1
        %s11688 = scalar_lea.sflag [#allocation5], %s11687
        %s11689 = sand.u32 %s142, 1
        %s11690 = smul.addr %s11689, 256
        %s11691 = scalar_lea.vmem [#allocation12], %s11690
        // Predicated region
        $region61: #{tpu_custom_call.1} parent=39 // pred_check
          %p11692 = pneg %p152
        $region62: #{tpu_custom_call.1} parent=39 // pred_check_branch
          %11694 = sbr.rel (%p11692) target = $region64
        $region63: #{tpu_custom_call.1} parent=39 // pred_region
          %s11696 = ssub.s32 4096, 4096
          %11697 = vsyncadd %s11688, %s11696
          %s11698 = smul.addr %s24, 32
          %s11699 = smul.addr %s11698, 128
          %s11700 = scalar_lea.hbm %s5, %s11699
          %s11701 = sshll.u32 %s11691, 4
          %s11702 = int_to_ptr.vmem [resolvable:$true] %s11701
          %11707 = dma.vmem_to_hbm [thread:$0]  %s11702, 4096, %s11700, %s11688, 128, 128, 8
        $region64: #{tpu_custom_call.1} parent=39 // pred_fallthru
          _
      $region40: #{tpu_custom_call.1} parent=5 // pred_fallthru
        _
      %p11708 = scmp.le.s32.totalorder 2, %s19
      // Predicated region
      $region65: #{tpu_custom_call.1} parent=5 // pred_check
        %p11709 = pneg %p11708
      $region66: #{tpu_custom_call.1} parent=5 // pred_check_branch
        %11711 = sbr.rel (%p11709) target = $region68
      $region67: #{tpu_custom_call.1} parent=5 // pred_region
        %s11712 = ssub.s32 %s19, 2
        // Predicated region
        $region69: #{tpu_custom_call.1} parent=67 // pred_check
          %p11713 = pneg %p158
        $region70: #{tpu_custom_call.1} parent=67 // pred_check_branch
          %11715 = sbr.rel (%p11713) target = $region72
        $region71: #{tpu_custom_call.1} parent=67 // pred_region
          %s11716 = sand.u32 %s143, 1
          %s11717 = scalar_lea.sflag [#allocation5], %s11716
          %s11718 = sand.u32 %s143, 1
          %s11719 = smul.addr %s11718, 256
          %s11720 = scalar_lea.vmem [#allocation12], %s11719
          %11721 = dma.done %s11717, 4096
        $region72: #{tpu_custom_call.1} parent=67 // pred_fallthru
          _
      $region68: #{tpu_custom_call.1} parent=5 // pred_fallthru
        _
    $region6: #{tpu_custom_call.1} parent=1 // loop_footer
      %s23 = sadd.s32 1, %s19
    $region7: #{tpu_custom_call.1} parent=1 // loop_footer_branch
      %18 = sbr.rel target = $region3
    $region8: #{tpu_custom_call.1} parent=1 // loop_exit
      _
    %11722 = vsyncpa [#allocation4], 1
    %s11723 = scalar_lea.sflag [#allocation4], 1
    %11724 = vsyncpa %s11723, 1
    %11725 = vsyncpa [#allocation7], 1
    %11726 = vsyncpa [#allocation10], 1
    %11727 = vsyncpa [#allocation5], 1
    %s11728 = scalar_lea.sflag [#allocation5], 1
    %11729 = vsyncpa %s11728, 1

</llo_original>
